<compile_context>
chip_gen: v7x
topology: tpu7x:2x2x1
jax: 0.10.0
libtpu: 0.0.40
codegen_flags: <defaults>
</compile_context>

<pallas_src>
import jax
import jax.numpy as jnp
from jax.experimental import pallas as pl
from jax.experimental.pallas import tpu as pltpu


def _feature_extractor_kernel(x_ref, wconv_ref, bconv_ref, wfc_ref, bfc_ref,
                              out_ref, pooled_ref):
    # x_ref:      (Bt, S, C)  bf16  channels-last activations for Bt samples
    # wconv_ref:  (C, 2048)   bf16  1x1 conv weight as a matmul (in -> out)
    # bconv_ref:  (1, 2048)   f32   conv bias
    # wfc_ref:    (2048, 768) bf16  fc weight (in, out), pre-scaled by 1/S on the host
    # bfc_ref:    (1, 768)    f32   fc bias
    # out_ref:    (Bt, 768)   f32
    # pooled_ref: (Bt, 2048)  f32   VMEM scratch: per-sample pooled features
    bt = x_ref.shape[0]

    # "base_model": per-sample pointwise conv (MXU, M=S), ReLU, spatial sum-pool.
    # Per-sample issue keeps the (S, 2048) f32 intermediate small (VMEM-friendly);
    # MXU pass count equals the single (Bt*S, C) @ (C, 2048) formulation.
    for b in range(bt):  # static unroll, Bt is small
        h = jnp.dot(x_ref[b], wconv_ref[...],
                    preferred_element_type=jnp.float32)          # (S, 2048) f32
        h = jnp.maximum(h + bconv_ref[...], 0.0)
        # Spatial sum; the 1/S mean scale is folded into wfc on the host.
        pooled_ref[b:b + 1, :] = jnp.sum(h, axis=0, keepdims=True)

    # fc: one (Bt, 2048) @ (2048, 768) MXU matmul per grid step, lane-dense store.
    y = jnp.dot(pooled_ref[...].astype(jnp.bfloat16), wfc_ref[...],
                preferred_element_type=jnp.float32)              # (Bt, 768) f32
    out_ref[...] = y + bfc_ref[...]


def feature_extractor_channels_last(x_cl, wconv, bconv, wfc, bfc, *, block_batch=8):
    """x_cl: (B, HW, C) channels-last, spatially flattened, f32. Returns (B, 768) f32.

    block_batch should be a multiple of 8 (sublane tile) when B > block_batch.
    """
    B, S, C = x_cl.shape
    F1 = wconv.shape[1]
    F2 = wfc.shape[1]

    Bt = B if B <= block_batch else block_batch
    B_pad = -(-B // Bt) * Bt
    if B_pad != B:
        x_cl = jnp.pad(x_cl, ((0, B_pad - B), (0, 0), (0, 0)))

    # bf16 weights/activations, f32 accumulation in the kernel; biases stay f32.
    x_bf = x_cl.astype(jnp.bfloat16)
    wconv_bf = wconv.astype(jnp.bfloat16)
    wfc_bf = (wfc * (1.0 / S)).astype(jnp.bfloat16)   # fold 1/HW pooling scale
    bconv2d = bconv.reshape(1, F1).astype(jnp.float32)
    bfc2d = bfc.reshape(1, F2).astype(jnp.float32)

    out = pl.pallas_call(
        _feature_extractor_kernel,
        out_shape=jax.ShapeDtypeStruct((B_pad, F2), jnp.float32),
        grid_spec=pltpu.PrefetchScalarGridSpec(
            num_scalar_prefetch=0,
            grid=(B_pad // Bt,),
            in_specs=[
                pl.BlockSpec((Bt, S, C), lambda g: (g, 0, 0)),
                # Weights / biases: constant index_map -> DMA'd once, kept resident.
                pl.BlockSpec((C, F1), lambda g: (0, 0)),
                pl.BlockSpec((1, F1), lambda g: (0, 0)),
                pl.BlockSpec((F1, F2), lambda g: (0, 0)),
                pl.BlockSpec((1, F2), lambda g: (0, 0)),
            ],
            out_specs=pl.BlockSpec((Bt, F2), lambda g: (g, 0)),
            scratch_shapes=[pltpu.VMEM((Bt, F1), jnp.float32)],
        ),
        compiler_params=pltpu.CompilerParams(
            # Batch-block axis is independent -> megacore sharding on v7x
            # (B // Bt >= 2 needed for both TensorCores to get work).
            dimension_semantics=("parallel",),
            # ~9 MiB needed (2 MiB h + 6 MiB double-buffered bf16 fc weight + misc);
            # 32 MiB is valid on v5e/v6e/v7x and leaves headroom.
            vmem_limit_bytes=32 * 1024 * 1024,
        ),
    )(x_bf, wconv_bf, bconv2d, wfc_bf, bfc2d)
    return out[:B]


def feature_extractor(x_nchw, wconv, bconv, wfc, bfc, *, block_batch=8):
    """Drop-in for FeatureExtractor.forward: NCHW input, (B, 768) f32 output.

    The NCHW -> channels-last layout change is host-side glue (one pass over x);
    callers that can supply channels-last activations should use
    feature_extractor_channels_last directly and skip it.
    """
    B, C, H, W = x_nchw.shape
    x_cl = jnp.transpose(x_nchw, (0, 2, 3, 1)).reshape(B, H * W, C)
    return feature_extractor_channels_last(x_cl, wconv, bconv, wfc, bfc,
                                           block_batch=block_batch)


def _reference(x_nchw, wconv, bconv, wfc, bfc):
    B, C, H, W = x_nchw.shape
    x = jnp.transpose(x_nchw, (0, 2, 3, 1)).reshape(B, H * W, C)
    h = jnp.maximum(jnp.einsum("bsc,cf->bsf", x, wconv) + bconv, 0.0)
    pooled = jnp.mean(h, axis=1)          # (B, 2048)
    return pooled @ wfc + bfc             # (B, 768)


if __name__ == "__main__":
    key = jax.random.PRNGKey(0)
    k_x, k_wc, k_bc, k_wf, k_bf = jax.random.split(key, 5)

    B, C, H, W = 2, 4, 16, 16  # small NCHW input
    x = jax.random.normal(k_x, (B, C, H, W), dtype=jnp.float32)

    # Synthetic parameters (shapes from the module's __init__ / backbone contract)
    wconv = jax.random.normal(k_wc, (C, 2048), dtype=jnp.float32) * 0.05   # 1x1 conv
    bconv = jax.random.normal(k_bc, (2048,), dtype=jnp.float32) * 0.05
    wfc = jax.random.normal(k_wf, (2048, 768), dtype=jnp.float32) * 0.02   # Linear(2048, 768), (in, out)
    bfc = jax.random.normal(k_bf, (768,), dtype=jnp.float32) * 0.02

    out = feature_extractor(x, wconv, bconv, wfc, bfc)
    out = jax.block_until_ready(out)

    ref = _reference(x, wconv, bconv, wfc, bfc)
    assert out.shape == (B, 768), out.shape
    max_err = float(jnp.max(jnp.abs(out - ref)))
    # bf16 weights/activations with f32 accumulation -> relaxed tolerance
    assert jnp.allclose(out, ref, atol=1e-2, rtol=1e-2), max_err

    print("KERNEL_OK")
</pallas_src>

<mosaic_0001>
module attributes {stable_mosaic.version = 11 : i64} {
  func.func @_feature_extractor_kernel(%arg0: i32, %arg1: memref<2x256x4xbf16, #tpu.memory_space<vmem>>, %arg2: memref<4x2048xbf16, #tpu.memory_space<vmem>>, %arg3: memref<1x2048xf32, #tpu.memory_space<vmem>>, %arg4: memref<2048x768xbf16, #tpu.memory_space<vmem>>, %arg5: memref<1x768xf32, #tpu.memory_space<vmem>>, %arg6: memref<2x768xf32, #tpu.memory_space<vmem>>, %arg7: memref<2x2048xf32, #tpu.memory_space<vmem>>) attributes {dimension_semantics = [#tpu.dimension_semantics<parallel>], iteration_bounds = array<i64: 1>, scalar_prefetch = 0 : i64, scratch_operands = 1 : i64, tpu.core_type = #tpu.core_type<tc>, window_params = [{transform_indices = @transform_0, window_bounds = array<i64: 2, 256, 4>}, {pipeline_mode = #tpu.pipeline_mode<synchronous>, transform_indices = @transform_1, window_bounds = array<i64: 4, 2048>}, {pipeline_mode = #tpu.pipeline_mode<synchronous>, transform_indices = @transform_2, window_bounds = array<i64: 1, 2048>}, {pipeline_mode = #tpu.pipeline_mode<synchronous>, transform_indices = @transform_3, window_bounds = array<i64: 2048, 768>}, {pipeline_mode = #tpu.pipeline_mode<synchronous>, transform_indices = @transform_4, window_bounds = array<i64: 1, 768>}, {transform_indices = @transform_5, window_bounds = array<i64: 2, 768>}]} {
    %c0 = arith.constant 0 : index
    %c0_0 = arith.constant 0 : index
    %c0_1 = arith.constant 0 : index
    %0 = vector.load %arg1[%c0, %c0_0, %c0_1] : memref<2x256x4xbf16, #tpu.memory_space<vmem>>, vector<1x256x4xbf16>
    %1 = vector.shape_cast %0 : vector<1x256x4xbf16> to vector<256x4xbf16>
    %c0_2 = arith.constant 0 : index
    %c0_3 = arith.constant 0 : index
    %2 = vector.load %arg2[%c0_2, %c0_3] : memref<4x2048xbf16, #tpu.memory_space<vmem>>, vector<4x2048xbf16>
    %cst = arith.constant dense<0.000000e+00> : vector<256x2048xf32>
    %3 = tpu.matmul %1, %2, %cst {dimension_numbers = #tpu.dot_dimension_numbers<[1], [0], [0], [1], [0, 0, 1, 1], [], []>} : vector<256x4xbf16>, vector<4x2048xbf16>, vector<256x2048xf32> -> vector<256x2048xf32>
    %c0_4 = arith.constant 0 : index
    %c0_5 = arith.constant 0 : index
    %4 = vector.load %arg3[%c0_4, %c0_5] : memref<1x2048xf32, #tpu.memory_space<vmem>>, vector<1x2048xf32>
    %5 = vector.broadcast %4 : vector<1x2048xf32> to vector<256x2048xf32>
    %6 = arith.addf %3, %5 : vector<256x2048xf32>
    %cst_6 = arith.constant 0.000000e+00 : f32
    %7 = vector.broadcast %cst_6 : f32 to vector<256x2048xf32>
    %8 = arith.maximumf %6, %7 : vector<256x2048xf32>
    %cst_7 = arith.constant dense<0.000000e+00> : vector<2048xf32>
    %9 = vector.multi_reduction <add>, %8, %cst_7 [0] : vector<256x2048xf32> to vector<2048xf32>
    %10 = vector.shape_cast %9 : vector<2048xf32> to vector<1x2048xf32>
    %c0_8 = arith.constant 0 : index
    %c0_9 = arith.constant 0 : index
    %11 = vector.load %arg7[%c0_8, %c0_9] : memref<2x2048xf32, #tpu.memory_space<vmem>>, vector<1x2048xf32>
    tpu.vector_store %arg7[%c0_8, %c0_9], %10 {strides = array<i32>} : memref<2x2048xf32, #tpu.memory_space<vmem>>, vector<1x2048xf32>,
    %c1 = arith.constant 1 : index
    %c0_10 = arith.constant 0 : index
    %c0_11 = arith.constant 0 : index
    %12 = vector.load %arg1[%c1, %c0_10, %c0_11] : memref<2x256x4xbf16, #tpu.memory_space<vmem>>, vector<1x256x4xbf16>
    %13 = vector.shape_cast %12 : vector<1x256x4xbf16> to vector<256x4xbf16>
    %c0_12 = arith.constant 0 : index
    %c0_13 = arith.constant 0 : index
    %14 = vector.load %arg2[%c0_12, %c0_13] : memref<4x2048xbf16, #tpu.memory_space<vmem>>, vector<4x2048xbf16>
    %cst_14 = arith.constant dense<0.000000e+00> : vector<256x2048xf32>
    %15 = tpu.matmul %13, %14, %cst_14 {dimension_numbers = #tpu.dot_dimension_numbers<[1], [0], [0], [1], [0, 0, 1, 1], [], []>} : vector<256x4xbf16>, vector<4x2048xbf16>, vector<256x2048xf32> -> vector<256x2048xf32>
    %c0_15 = arith.constant 0 : index
    %c0_16 = arith.constant 0 : index
    %16 = vector.load %arg3[%c0_15, %c0_16] : memref<1x2048xf32, #tpu.memory_space<vmem>>, vector<1x2048xf32>
    %17 = vector.broadcast %16 : vector<1x2048xf32> to vector<256x2048xf32>
    %18 = arith.addf %15, %17 : vector<256x2048xf32>
    %cst_17 = arith.constant 0.000000e+00 : f32
    %19 = vector.broadcast %cst_17 : f32 to vector<256x2048xf32>
    %20 = arith.maximumf %18, %19 : vector<256x2048xf32>
    %cst_18 = arith.constant dense<0.000000e+00> : vector<2048xf32>
    %21 = vector.multi_reduction <add>, %20, %cst_18 [0] : vector<256x2048xf32> to vector<2048xf32>
    %22 = vector.shape_cast %21 : vector<2048xf32> to vector<1x2048xf32>
    %c1_19 = arith.constant 1 : index
    %c0_20 = arith.constant 0 : index
    %23 = vector.load %arg7[%c1_19, %c0_20] : memref<2x2048xf32, #tpu.memory_space<vmem>>, vector<1x2048xf32>
    tpu.vector_store %arg7[%c1_19, %c0_20], %22 {strides = array<i32>} : memref<2x2048xf32, #tpu.memory_space<vmem>>, vector<1x2048xf32>,
    %c0_21 = arith.constant 0 : index
    %c0_22 = arith.constant 0 : index
    %24 = vector.load %arg7[%c0_21, %c0_22] : memref<2x2048xf32, #tpu.memory_space<vmem>>, vector<2x2048xf32>
    %25 = arith.truncf %24 : vector<2x2048xf32> to vector<2x2048xbf16>
    %c0_23 = arith.constant 0 : index
    %c0_24 = arith.constant 0 : index
    %26 = vector.load %arg4[%c0_23, %c0_24] : memref<2048x768xbf16, #tpu.memory_space<vmem>>, vector<2048x768xbf16>
    %cst_25 = arith.constant dense<0.000000e+00> : vector<2x768xf32>
    %27 = tpu.matmul %25, %26, %cst_25 {dimension_numbers = #tpu.dot_dimension_numbers<[1], [0], [0], [1], [0, 0, 1, 1], [], []>} : vector<2x2048xbf16>, vector<2048x768xbf16>, vector<2x768xf32> -> vector<2x768xf32>
    %c0_26 = arith.constant 0 : index
    %c0_27 = arith.constant 0 : index
    %28 = vector.load %arg5[%c0_26, %c0_27] : memref<1x768xf32, #tpu.memory_space<vmem>>, vector<1x768xf32>
    %29 = vector.broadcast %28 : vector<1x768xf32> to vector<2x768xf32>
    %30 = arith.addf %27, %29 : vector<2x768xf32>
    %c0_28 = arith.constant 0 : index
    %c0_29 = arith.constant 0 : index
    %31 = vector.load %arg6[%c0_28, %c0_29] : memref<2x768xf32, #tpu.memory_space<vmem>>, vector<2x768xf32>
    tpu.vector_store %arg6[%c0_28, %c0_29], %30 {strides = array<i32>} : memref<2x768xf32, #tpu.memory_space<vmem>>, vector<2x768xf32>,
    return
  }
  func.func @transform_0(%arg0: i32) -> (i32, i32, i32) {
    %c0_i32 = arith.constant 0 : i32
    %c0_i32_0 = arith.constant 0 : i32
    %c0_i32_1 = arith.constant 0 : i32
    return %arg0, %c0_i32, %c0_i32_0 : i32, i32, i32
  }
  func.func @transform_1(%arg0: i32) -> (i32, i32) {
    %c0_i32 = arith.constant 0 : i32
    %c0_i32_0 = arith.constant 0 : i32
    %c0_i32_1 = arith.constant 0 : i32
    return %c0_i32, %c0_i32_0 : i32, i32
  }
  func.func @transform_2(%arg0: i32) -> (i32, i32) {
    %c0_i32 = arith.constant 0 : i32
    %c0_i32_0 = arith.constant 0 : i32
    %c0_i32_1 = arith.constant 0 : i32
    return %c0_i32, %c0_i32_0 : i32, i32
  }
  func.func @transform_3(%arg0: i32) -> (i32, i32) {
    %c0_i32 = arith.constant 0 : i32
    %c0_i32_0 = arith.constant 0 : i32
    %c0_i32_1 = arith.constant 0 : i32
    return %c0_i32, %c0_i32_0 : i32, i32
  }
  func.func @transform_4(%arg0: i32) -> (i32, i32) {
    %c0_i32 = arith.constant 0 : i32
    %c0_i32_0 = arith.constant 0 : i32
    %c0_i32_1 = arith.constant 0 : i32
    return %c0_i32, %c0_i32_0 : i32, i32
  }
  func.func @transform_5(%arg0: i32) -> (i32, i32) {
    %c0_i32 = arith.constant 0 : i32
    %c0_i32_0 = arith.constant 0 : i32
    return %arg0, %c0_i32 : i32, i32
  }
}

</mosaic_0001>

<llo_original>
// kernel: tpu_custom_call.1
$region0: #{tpu_custom_call.1}
  #allocation0 [shape = 'u32[]', space=smem, size = 0x4, offset = 0x4, fixed_abs, tag = 'smem constant byte address 0x4 - core index']
  #allocation1 [shape = 'u32[144,128]{1,0:T(1,128)}', space=vmem, size = 0x12000, scoped, tag = 'internal scratch']
  #allocation2 [shape = 'f32[2,2048]{1,0:T(2,128)}', space=vmem, size = 0x4000, scoped, tag = 'scratch operand']
  %s0 = inlined_call_operand.vmem [shape: bf16[2,256,4], index: 0, kind: input, shape index: {}]
  %s1 = inlined_call_operand.hbm [shape: bf16[4,2048], index: 1, kind: input, shape index: {}]
  %s2 = inlined_call_operand.hbm [shape: f32[1,2048], index: 2, kind: input, shape index: {}]
  %s3 = inlined_call_operand.hbm [shape: bf16[2048,768], index: 3, kind: input, shape index: {}]
  %s4 = inlined_call_operand.hbm [shape: f32[1,768], index: 4, kind: input, shape index: {}]
  %s5 = inlined_call_operand.hbm [shape: f32[2,768], index: 5, kind: output, shape index: {}]
  %s6 = sld [smem:[#allocation0]]
  $region46: #{tpu_custom_call.1} parent=0
    _
  %s8 = ssub.s32 1, %s6
  %s9 = scalar_select 0, %s8, %s6
  $region1: #{tpu_custom_call.1} parent=0
    #allocation3 [shape = 'u8[16384]{0}', space=vmem, size = 0x4000, scoped, tag = 'input window, operand 1, single buffered']
    #allocation4 [shape = 's32[1]{0}', space=sflag, size = 0x4, scoped, tag = 'scoped memory for tpu_custom_call.1']
    #allocation5 [shape = 's32[1]{0}', space=sflag, size = 0x4, scoped, tag = 'scoped memory for tpu_custom_call.1']
    #allocation6 [shape = 'u8[8192]{0}', space=vmem, size = 0x2000, scoped, tag = 'input window, operand 2, single buffered']
    #allocation7 [shape = 's32[1]{0}', space=sflag, size = 0x4, scoped, tag = 'scoped memory for tpu_custom_call.1']
    #allocation8 [shape = 'u8[3145728]{0}', space=vmem, size = 0x300000, scoped, tag = 'input window, operand 3, single buffered']
    #allocation9 [shape = 'u8[3072]{0}', space=vmem, size = 0xc00, scoped, tag = 'input window, operand 4, single buffered']
    #allocation10 [shape = 's32[1]{0}', space=sflag, size = 0x4, scoped, tag = 'scoped memory for tpu_custom_call.1']
    #allocation11 [shape = 'u8[6144]{0}', space=vmem, size = 0x1800, scoped, tag = 'output window, operand 0, single buffered']
    %10 = vsyncpa [#allocation4], 0
    %11 = vsyncpa [#allocation7], 0
    %12 = vsyncpa [#allocation10], 0
    %13 = vsyncpa [#allocation5], 0
    // Predicated region
    $region2: #{tpu_custom_call.1} parent=1 // pred_check
      _
    $region3: #{tpu_custom_call.1} parent=1 // pred_check_branch
      %15 = sbr.rel (0) target = $region5
    $region4: #{tpu_custom_call.1} parent=1 // pred_region
      _
    $region5: #{tpu_custom_call.1} parent=1 // pred_fallthru
      _
    // Predicated region
    $region6: #{tpu_custom_call.1} parent=1 // pred_check
      _
    $region7: #{tpu_custom_call.1} parent=1 // pred_check_branch
      %17 = sbr.rel (0) target = $region9
    $region8: #{tpu_custom_call.1} parent=1 // pred_region
      %s19 = ssub.s32 512, 512
      %20 = vsyncadd [#allocation4], %s19
      %s22 = sshll.u32 [#allocation3], 4
      %s23 = int_to_ptr.vmem [resolvable:$true] %s22
      %25 = dma.hbm_to_vmem [thread:$0]  %s1, 512, %s23, [#allocation4]
    $region9: #{tpu_custom_call.1} parent=1 // pred_fallthru
      _
    // Predicated region
    $region10: #{tpu_custom_call.1} parent=1 // pred_check
      _
    $region11: #{tpu_custom_call.1} parent=1 // pred_check_branch
      %27 = sbr.rel (0) target = $region13
    $region12: #{tpu_custom_call.1} parent=1 // pred_region
      %s29 = ssub.s32 256, 256
      %30 = vsyncadd [#allocation7], %s29
      %s32 = sshll.u32 [#allocation6], 4
      %s33 = int_to_ptr.vmem [resolvable:$true] %s32
      %35 = dma.hbm_to_vmem [thread:$0]  %s2, 256, %s33, [#allocation7]
    $region13: #{tpu_custom_call.1} parent=1 // pred_fallthru
      _
    // Predicated region
    $region14: #{tpu_custom_call.1} parent=1 // pred_check
      _
    $region15: #{tpu_custom_call.1} parent=1 // pred_check_branch
      %37 = sbr.rel (0) target = $region17
    $region16: #{tpu_custom_call.1} parent=1 // pred_region
      %s39 = ssub.s32 98304, 98304
      %40 = vsyncadd [#allocation7], %s39
      %s41 = sshll.u32 [#allocation8], 4
      %s42 = int_to_ptr.vmem [resolvable:$true] %s41
      %47 = dma.hbm_to_vmem [thread:$0]  %s3, 98304, %s42, [#allocation7], 384, 384, 24
    $region17: #{tpu_custom_call.1} parent=1 // pred_fallthru
      _
    // Predicated region
    $region18: #{tpu_custom_call.1} parent=1 // pred_check
      _
    $region19: #{tpu_custom_call.1} parent=1 // pred_check_branch
      %49 = sbr.rel (0) target = $region21
    $region20: #{tpu_custom_call.1} parent=1 // pred_region
      %s51 = ssub.s32 96, 96
      %52 = vsyncadd [#allocation10], %s51
      %s54 = sshll.u32 [#allocation9], 4
      %s55 = int_to_ptr.vmem [resolvable:$true] %s54
      %57 = dma.hbm_to_vmem [thread:$0]  %s4, 96, %s55, [#allocation10]
    $region21: #{tpu_custom_call.1} parent=1 // pred_fallthru
      _
    // Predicated region
    $region22: #{tpu_custom_call.1} parent=1 // pred_check
      _
    $region23: #{tpu_custom_call.1} parent=1 // pred_check_branch
      %59 = sbr.rel (0) target = $region25
    $region24: #{tpu_custom_call.1} parent=1 // pred_region
      %60 = dma.done [#allocation4], 512
    $region25: #{tpu_custom_call.1} parent=1 // pred_fallthru
      _
    // Predicated region
    $region26: #{tpu_custom_call.1} parent=1 // pred_check
      _
    $region27: #{tpu_custom_call.1} parent=1 // pred_check_branch
      %62 = sbr.rel (0) target = $region29
    $region28: #{tpu_custom_call.1} parent=1 // pred_region
      %63 = dma.done [#allocation7], 256
    $region29: #{tpu_custom_call.1} parent=1 // pred_fallthru
      _
    // Predicated region
    $region30: #{tpu_custom_call.1} parent=1 // pred_check
      _
    $region31: #{tpu_custom_call.1} parent=1 // pred_check_branch
      %65 = sbr.rel (0) target = $region33
    $region32: #{tpu_custom_call.1} parent=1 // pred_region
      %66 = dma.done [#allocation7], 98304
    $region33: #{tpu_custom_call.1} parent=1 // pred_fallthru
      _
    // Predicated region
    $region34: #{tpu_custom_call.1} parent=1 // pred_check
      _
    $region35: #{tpu_custom_call.1} parent=1 // pred_check_branch
      %68 = sbr.rel (0) target = $region37
    $region36: #{tpu_custom_call.1} parent=1 // pred_region
      %69 = dma.done [#allocation10], 96
    $region37: #{tpu_custom_call.1} parent=1 // pred_fallthru
      _
    %v71 = vld [vmem:[%s0] sm:$0xf]
    %v72 = vld [vmem:[%s0 + $0x4] sm:$0xf]
    %v73 = vld [vmem:[%s0 + $0x8] sm:$0xf]
    %v74 = vld [vmem:[%s0 + $0xc] sm:$0xf]
    %v75 = vld [vmem:[%s0 + $0x10] sm:$0xf]
    %v76 = vld [vmem:[%s0 + $0x14] sm:$0xf]
    %v77 = vld [vmem:[%s0 + $0x18] sm:$0xf]
    %v78 = vld [vmem:[%s0 + $0x1c] sm:$0xf]
    %v79 = vld [vmem:[%s0 + $0x20] sm:$0xf]
    %v80 = vld [vmem:[%s0 + $0x24] sm:$0xf]
    %v81 = vld [vmem:[%s0 + $0x28] sm:$0xf]
    %v82 = vld [vmem:[%s0 + $0x2c] sm:$0xf]
    %v83 = vld [vmem:[%s0 + $0x30] sm:$0xf]
    %v84 = vld [vmem:[%s0 + $0x34] sm:$0xf]
    %v85 = vld [vmem:[%s0 + $0x38] sm:$0xf]
    %v86 = vld [vmem:[%s0 + $0x3c] sm:$0xf]
    %v87 = vld [vmem:[%s0 + $0x40] sm:$0xf]
    %v88 = vld [vmem:[%s0 + $0x44] sm:$0xf]
    %v89 = vld [vmem:[%s0 + $0x48] sm:$0xf]
    %v90 = vld [vmem:[%s0 + $0x4c] sm:$0xf]
    %v91 = vld [vmem:[%s0 + $0x50] sm:$0xf]
    %v92 = vld [vmem:[%s0 + $0x54] sm:$0xf]
    %v93 = vld [vmem:[%s0 + $0x58] sm:$0xf]
    %v94 = vld [vmem:[%s0 + $0x5c] sm:$0xf]
    %v95 = vld [vmem:[%s0 + $0x60] sm:$0xf]
    %v96 = vld [vmem:[%s0 + $0x64] sm:$0xf]
    %v97 = vld [vmem:[%s0 + $0x68] sm:$0xf]
    %v98 = vld [vmem:[%s0 + $0x6c] sm:$0xf]
    %v99 = vld [vmem:[%s0 + $0x70] sm:$0xf]
    %v100 = vld [vmem:[%s0 + $0x74] sm:$0xf]
    %v101 = vld [vmem:[%s0 + $0x78] sm:$0xf]
    %v102 = vld [vmem:[%s0 + $0x7c] sm:$0xf]
    %v103 = vld [vmem:[#allocation3] sm:$0xff]
    %v104 = vld [vmem:[#allocation3 + $0x8] sm:$0xff]
    %v105 = vld [vmem:[#allocation3 + $0x10] sm:$0xff]
    %v106 = vld [vmem:[#allocation3 + $0x18] sm:$0xff]
    %v107 = vld [vmem:[#allocation6] sm:$0xff]
    %v108 = vld [vmem:[#allocation6 + $0x8] sm:$0xff]
    %v111 = vlaneseq
    %v112 = vshrl.u32 %v111, 7
    %v113 = vsub.s32 0, %v112
    %v114 = vrot.slane %v107, %v113
    %v115 = vlaneseq
    %v116 = vshrl.u32 %v115, 7
    %v117 = vsub.s32 1, %v116
    %v118 = vrot.slane %v107, %v117
    %v119 = vlaneseq
    %v120 = vshrl.u32 %v119, 7
    %v121 = vsub.s32 2, %v120
    %v122 = vrot.slane %v107, %v121
    %v123 = vlaneseq
    %v124 = vshrl.u32 %v123, 7
    %v125 = vsub.s32 3, %v124
    %v126 = vrot.slane %v107, %v125
    %v127 = vlaneseq
    %v128 = vshrl.u32 %v127, 7
    %v129 = vsub.s32 4, %v128
    %v130 = vrot.slane %v107, %v129
    %v131 = vlaneseq
    %v132 = vshrl.u32 %v131, 7
    %v133 = vsub.s32 5, %v132
    %v134 = vrot.slane %v107, %v133
    %v135 = vlaneseq
    %v136 = vshrl.u32 %v135, 7
    %v137 = vsub.s32 6, %v136
    %v138 = vrot.slane %v107, %v137
    %v139 = vlaneseq
    %v140 = vshrl.u32 %v139, 7
    %v141 = vsub.s32 7, %v140
    %v142 = vrot.slane %v107, %v141
    %v143 = vlaneseq
    %v144 = vshrl.u32 %v143, 7
    %v145 = vsub.s32 0, %v144
    %v146 = vrot.slane %v108, %v145
    %v147 = vlaneseq
    %v148 = vshrl.u32 %v147, 7
    %v149 = vsub.s32 1, %v148
    %v150 = vrot.slane %v108, %v149
    %v151 = vlaneseq
    %v152 = vshrl.u32 %v151, 7
    %v153 = vsub.s32 2, %v152
    %v154 = vrot.slane %v108, %v153
    %v155 = vlaneseq
    %v156 = vshrl.u32 %v155, 7
    %v157 = vsub.s32 3, %v156
    %v158 = vrot.slane %v108, %v157
    %v159 = vlaneseq
    %v160 = vshrl.u32 %v159, 7
    %v161 = vsub.s32 4, %v160
    %v162 = vrot.slane %v108, %v161
    %v163 = vlaneseq
    %v164 = vshrl.u32 %v163, 7
    %v165 = vsub.s32 5, %v164
    %v166 = vrot.slane %v108, %v165
    %v167 = vlaneseq
    %v168 = vshrl.u32 %v167, 7
    %v169 = vsub.s32 6, %v168
    %v170 = vrot.slane %v108, %v169
    %v171 = vlaneseq
    %v172 = vshrl.u32 %v171, 7
    %v173 = vsub.s32 7, %v172
    %v174 = vrot.slane %v108, %v173
    %v223 = vunpack.c.l.b16 %v71
    %v224 = vunpack.c.l.b16 %v72
    %v225 = vunpack.c.l.b16 %v73
    %v226 = vunpack.c.l.b16 %v74
    %v227 = vunpack.c.l.b16 %v75
    %v228 = vunpack.c.l.b16 %v76
    %v229 = vunpack.c.l.b16 %v77
    %v230 = vunpack.c.l.b16 %v78
    %v231 = vunpack.c.l.b16 %v79
    %v232 = vunpack.c.l.b16 %v80
    %v233 = vunpack.c.l.b16 %v81
    %v234 = vunpack.c.l.b16 %v82
    %v235 = vunpack.c.l.b16 %v83
    %v236 = vunpack.c.l.b16 %v84
    %v237 = vunpack.c.l.b16 %v85
    %v238 = vunpack.c.l.b16 %v86
    %v239 = vunpack.c.l.b16 %v87
    %v240 = vunpack.c.l.b16 %v88
    %v241 = vunpack.c.l.b16 %v89
    %v242 = vunpack.c.l.b16 %v90
    %v243 = vunpack.c.l.b16 %v91
    %v244 = vunpack.c.l.b16 %v92
    %v245 = vunpack.c.l.b16 %v93
    %v246 = vunpack.c.l.b16 %v94
    %v247 = vunpack.c.l.b16 %v95
    %v248 = vunpack.c.l.b16 %v96
    %v249 = vunpack.c.l.b16 %v97
    %v250 = vunpack.c.l.b16 %v98
    %v251 = vunpack.c.l.b16 %v99
    %v252 = vunpack.c.l.b16 %v100
    %v253 = vunpack.c.l.b16 %v101
    %v254 = vunpack.c.l.b16 %v102
    %v255 = vpack.c.b16 %v224, %v223
    %v256 = vpack.c.b16 %v226, %v225
    %v257 = vpack.c.b16 %v228, %v227
    %v258 = vpack.c.b16 %v230, %v229
    %v259 = vpack.c.b16 %v232, %v231
    %v260 = vpack.c.b16 %v234, %v233
    %v261 = vpack.c.b16 %v236, %v235
    %v262 = vpack.c.b16 %v238, %v237
    %v263 = vpack.c.b16 %v240, %v239
    %v264 = vpack.c.b16 %v242, %v241
    %v265 = vpack.c.b16 %v244, %v243
    %v266 = vpack.c.b16 %v246, %v245
    %v267 = vpack.c.b16 %v248, %v247
    %v268 = vpack.c.b16 %v250, %v249
    %v269 = vpack.c.b16 %v252, %v251
    %v270 = vpack.c.b16 %v254, %v253
    %v275 = vcombine.high %v103, %v103
    %v277 = vunpack.c.l.s4 1983009808
    %v278 = vunpack.c.0.s8 %v277
    %v279 = vlaneseq
    %v280 = vshrl.u32 %v279, 7
    %v281 = vsub.s32 %v278, %v280
    %v282 = vrot.slane %v103, %v281
    %v284 = vunpack.c.l.s4 1983009808
    %v285 = vunpack.c.0.s8 %v284
    %v286 = vlaneseq
    %v287 = vshrl.u32 %v286, 7
    %v288 = vsub.s32 %v285, %v287
    %v289 = vrot.slane %v275, %v288
    %v290 = vcombine.high %v282, %v282
    %v291 = vcombine.high %v289, %v289
    %v292 = vcombine.high %v104, %v104
    %v294 = vunpack.c.l.s4 1983009808
    %v295 = vunpack.c.0.s8 %v294
    %v296 = vlaneseq
    %v297 = vshrl.u32 %v296, 7
    %v298 = vsub.s32 %v295, %v297
    %v299 = vrot.slane %v104, %v298
    %v301 = vunpack.c.l.s4 1983009808
    %v302 = vunpack.c.0.s8 %v301
    %v303 = vlaneseq
    %v304 = vshrl.u32 %v303, 7
    %v305 = vsub.s32 %v302, %v304
    %v306 = vrot.slane %v292, %v305
    %v307 = vcombine.high %v299, %v299
    %v308 = vcombine.high %v306, %v306
    %v309 = vcombine.high %v105, %v105
    %v311 = vunpack.c.l.s4 1983009808
    %v312 = vunpack.c.0.s8 %v311
    %v313 = vlaneseq
    %v314 = vshrl.u32 %v313, 7
    %v315 = vsub.s32 %v312, %v314
    %v316 = vrot.slane %v105, %v315
    %v318 = vunpack.c.l.s4 1983009808
    %v319 = vunpack.c.0.s8 %v318
    %v320 = vlaneseq
    %v321 = vshrl.u32 %v320, 7
    %v322 = vsub.s32 %v319, %v321
    %v323 = vrot.slane %v309, %v322
    %v324 = vcombine.high %v316, %v316
    %v325 = vcombine.high %v323, %v323
    %v326 = vcombine.high %v106, %v106
    %v328 = vunpack.c.l.s4 1983009808
    %v329 = vunpack.c.0.s8 %v328
    %v330 = vlaneseq
    %v331 = vshrl.u32 %v330, 7
    %v332 = vsub.s32 %v329, %v331
    %v333 = vrot.slane %v106, %v332
    %v335 = vunpack.c.l.s4 1983009808
    %v336 = vunpack.c.0.s8 %v335
    %v337 = vlaneseq
    %v338 = vshrl.u32 %v337, 7
    %v339 = vsub.s32 %v336, %v338
    %v340 = vrot.slane %v326, %v339
    %v341 = vcombine.high %v333, %v333
    %v342 = vcombine.high %v340, %v340
    %vm343 = vcmask 31744
    %v345 = vsel %vm343, %v255, 0
    %v348 = vsel %vm343, %v256, 0
    %v351 = vsel %vm343, %v257, 0
    %v354 = vsel %vm343, %v258, 0
    %v357 = vsel %vm343, %v259, 0
    %v360 = vsel %vm343, %v260, 0
    %v363 = vsel %vm343, %v261, 0
    %v366 = vsel %vm343, %v262, 0
    %v369 = vsel %vm343, %v263, 0
    %v372 = vsel %vm343, %v264, 0
    %v375 = vsel %vm343, %v265, 0
    %v378 = vsel %vm343, %v266, 0
    %v381 = vsel %vm343, %v267, 0
    %v384 = vsel %vm343, %v268, 0
    %v387 = vsel %vm343, %v269, 0
    %v390 = vsel %vm343, %v270, 0
    %vm392 = vcmask 1041408
    %v394 = vsel %vm392, %v282, 0
    %v397 = vsel %vm392, %v290, 0
    %v400 = vsel %vm392, %v289, 0
    %v403 = vsel %vm392, %v291, 0
    %v406 = vsel %vm392, %v299, 0
    %v409 = vsel %vm392, %v307, 0
    %v412 = vsel %vm392, %v306, 0
    %v415 = vsel %vm392, %v308, 0
    %v418 = vsel %vm392, %v316, 0
    %v421 = vsel %vm392, %v324, 0
    %v424 = vsel %vm392, %v323, 0
    %v427 = vsel %vm392, %v325, 0
    %v430 = vsel %vm392, %v333, 0
    %v433 = vsel %vm392, %v341, 0
    %v436 = vsel %vm392, %v340, 0
    %v439 = vsel %vm392, %v342, 0
    %441 = vmatprep.subr.bf16.mxu0 %v397
    %442 = vmatpush1.bf16.msra.mxu0 %v394
    %443 = vmatprep.subr.bf16.mxu0 0
    %444 = vmatpush1.bf16.msra.mxu0 0
    %445 = vmatprep.subr.bf16.mxu0 0
    %446 = vmatpush1.bf16.msra.mxu0 0
    %447 = vmatprep.subr.bf16.mxu0 0
    %448 = vmatpush1.bf16.msra.mxu0 0
    %449 = vmatprep.subr.bf16.mxu0 0
    %450 = vmatpush1.bf16.msra.mxu0 0
    %451 = vmatprep.subr.bf16.mxu0 0
    %452 = vmatpush1.bf16.msra.mxu0 0
    %453 = vmatprep.subr.bf16.mxu0 0
    %454 = vmatpush1.bf16.msra.mxu0 0
    %455 = vmatprep.subr.bf16.mxu0 0
    %456 = vmatpush1.bf16.msra.mxu0 0
    %457 = vmatprep.subr.bf16.mxu0 0
    %458 = vmatpush1.bf16.msra.mxu0 0
    %459 = vmatprep.subr.bf16.mxu0 0
    %460 = vmatpush1.bf16.msra.mxu0 0
    %461 = vmatprep.subr.bf16.mxu0 0
    %462 = vmatpush1.bf16.msra.mxu0 0
    %463 = vmatprep.subr.bf16.mxu0 0
    %464 = vmatpush1.bf16.msra.mxu0 0
    %465 = vmatprep.subr.bf16.mxu0 0
    %466 = vmatpush1.bf16.msra.mxu0 0
    %467 = vmatprep.subr.bf16.mxu0 0
    %468 = vmatpush1.bf16.msra.mxu0 0
    %469 = vmatprep.subr.bf16.mxu0 0
    %470 = vmatpush1.bf16.msra.mxu0 0
    %471 = vmatprep.subr.bf16.mxu0 0
    %472 = vmatpush1.bf16.msra.mxu0 0
    %473 = vmatprep.mubr.bf16.mxu0 0
    %474 = vmatmul.mubr.bf16.gmra.mrb[0].mxu0 %v345
    %v475 = vpop.f32.mrb[0].mxu0
    %v476 = vadd.f32 %v114, %v475
    %v477 = vpop.f32.mrb[0].mxu0
    %v478 = vadd.f32 %v118, %v477
    %v479 = vpop.f32.mrb[0].mxu0
    %v480 = vadd.f32 %v114, %v479
    %v481 = vpop.f32.mrb[0].mxu0
    %v482 = vadd.f32 %v118, %v481
    %483 = vmatprep.mubr.bf16.mxu0 0
    %484 = vmatmul.mubr.bf16.gmra.mrb[0].mxu0 %v348
    %v485 = vpop.f32.mrb[0].mxu0
    %v486 = vadd.f32 %v114, %v485
    %v487 = vpop.f32.mrb[0].mxu0
    %v488 = vadd.f32 %v118, %v487
    %v489 = vpop.f32.mrb[0].mxu0
    %v490 = vadd.f32 %v114, %v489
    %v491 = vpop.f32.mrb[0].mxu0
    %v492 = vadd.f32 %v118, %v491
    %493 = vmatprep.mubr.bf16.mxu0 0
    %494 = vmatmul.mubr.bf16.gmra.mrb[0].mxu0 %v351
    %v495 = vpop.f32.mrb[0].mxu0
    %v496 = vadd.f32 %v114, %v495
    %v497 = vpop.f32.mrb[0].mxu0
    %v498 = vadd.f32 %v118, %v497
    %v499 = vpop.f32.mrb[0].mxu0
    %v500 = vadd.f32 %v114, %v499
    %v501 = vpop.f32.mrb[0].mxu0
    %v502 = vadd.f32 %v118, %v501
    %503 = vmatprep.mubr.bf16.mxu0 0
    %504 = vmatmul.mubr.bf16.gmra.mrb[0].mxu0 %v354
    %v505 = vpop.f32.mrb[0].mxu0
    %v506 = vadd.f32 %v114, %v505
    %v507 = vpop.f32.mrb[0].mxu0
    %v508 = vadd.f32 %v118, %v507
    %v509 = vpop.f32.mrb[0].mxu0
    %v510 = vadd.f32 %v114, %v509
    %v511 = vpop.f32.mrb[0].mxu0
    %v512 = vadd.f32 %v118, %v511
    %513 = vmatprep.mubr.bf16.mxu0 0
    %514 = vmatmul.mubr.bf16.gmra.mrb[0].mxu0 %v357
    %v515 = vpop.f32.mrb[0].mxu0
    %v516 = vadd.f32 %v114, %v515
    %v517 = vpop.f32.mrb[0].mxu0
    %v518 = vadd.f32 %v118, %v517
    %v519 = vpop.f32.mrb[0].mxu0
    %v520 = vadd.f32 %v114, %v519
    %v521 = vpop.f32.mrb[0].mxu0
    %v522 = vadd.f32 %v118, %v521
    %523 = vmatprep.mubr.bf16.mxu0 0
    %524 = vmatmul.mubr.bf16.gmra.mrb[0].mxu0 %v360
    %v525 = vpop.f32.mrb[0].mxu0
    %v526 = vadd.f32 %v114, %v525
    %v527 = vpop.f32.mrb[0].mxu0
    %v528 = vadd.f32 %v118, %v527
    %v529 = vpop.f32.mrb[0].mxu0
    %v530 = vadd.f32 %v114, %v529
    %v531 = vpop.f32.mrb[0].mxu0
    %v532 = vadd.f32 %v118, %v531
    %533 = vmatprep.mubr.bf16.mxu0 0
    %534 = vmatmul.mubr.bf16.gmra.mrb[0].mxu0 %v363
    %v535 = vpop.f32.mrb[0].mxu0
    %v536 = vadd.f32 %v114, %v535
    %v537 = vpop.f32.mrb[0].mxu0
    %v538 = vadd.f32 %v118, %v537
    %v539 = vpop.f32.mrb[0].mxu0
    %v540 = vadd.f32 %v114, %v539
    %v541 = vpop.f32.mrb[0].mxu0
    %v542 = vadd.f32 %v118, %v541
    %543 = vmatprep.mubr.bf16.mxu0 0
    %544 = vmatmul.mubr.bf16.gmra.mrb[0].mxu0 %v366
    %v545 = vpop.f32.mrb[0].mxu0
    %v546 = vadd.f32 %v114, %v545
    %v547 = vpop.f32.mrb[0].mxu0
    %v548 = vadd.f32 %v118, %v547
    %v549 = vpop.f32.mrb[0].mxu0
    %v550 = vadd.f32 %v114, %v549
    %v551 = vpop.f32.mrb[0].mxu0
    %v552 = vadd.f32 %v118, %v551
    %553 = vmatprep.mubr.bf16.mxu0 0
    %554 = vmatmul.mubr.bf16.gmra.mrb[0].mxu0 %v369
    %v555 = vpop.f32.mrb[0].mxu0
    %v556 = vadd.f32 %v114, %v555
    %v557 = vpop.f32.mrb[0].mxu0
    %v558 = vadd.f32 %v118, %v557
    %v559 = vpop.f32.mrb[0].mxu0
    %v560 = vadd.f32 %v114, %v559
    %v561 = vpop.f32.mrb[0].mxu0
    %v562 = vadd.f32 %v118, %v561
    %563 = vmatprep.mubr.bf16.mxu0 0
    %564 = vmatmul.mubr.bf16.gmra.mrb[0].mxu0 %v372
    %v565 = vpop.f32.mrb[0].mxu0
    %v566 = vadd.f32 %v114, %v565
    %v567 = vpop.f32.mrb[0].mxu0
    %v568 = vadd.f32 %v118, %v567
    %v569 = vpop.f32.mrb[0].mxu0
    %v570 = vadd.f32 %v114, %v569
    %v571 = vpop.f32.mrb[0].mxu0
    %v572 = vadd.f32 %v118, %v571
    %573 = vmatprep.mubr.bf16.mxu0 0
    %574 = vmatmul.mubr.bf16.gmra.mrb[0].mxu0 %v375
    %v575 = vpop.f32.mrb[0].mxu0
    %v576 = vadd.f32 %v114, %v575
    %v577 = vpop.f32.mrb[0].mxu0
    %v578 = vadd.f32 %v118, %v577
    %v579 = vpop.f32.mrb[0].mxu0
    %v580 = vadd.f32 %v114, %v579
    %v581 = vpop.f32.mrb[0].mxu0
    %v582 = vadd.f32 %v118, %v581
    %583 = vmatprep.mubr.bf16.mxu0 0
    %584 = vmatmul.mubr.bf16.gmra.mrb[0].mxu0 %v378
    %v585 = vpop.f32.mrb[0].mxu0
    %v586 = vadd.f32 %v114, %v585
    %v587 = vpop.f32.mrb[0].mxu0
    %v588 = vadd.f32 %v118, %v587
    %v589 = vpop.f32.mrb[0].mxu0
    %v590 = vadd.f32 %v114, %v589
    %v591 = vpop.f32.mrb[0].mxu0
    %v592 = vadd.f32 %v118, %v591
    %593 = vmatprep.mubr.bf16.mxu0 0
    %594 = vmatmul.mubr.bf16.gmra.mrb[0].mxu0 %v381
    %v595 = vpop.f32.mrb[0].mxu0
    %v596 = vadd.f32 %v114, %v595
    %v597 = vpop.f32.mrb[0].mxu0
    %v598 = vadd.f32 %v118, %v597
    %v599 = vpop.f32.mrb[0].mxu0
    %v600 = vadd.f32 %v114, %v599
    %v601 = vpop.f32.mrb[0].mxu0
    %v602 = vadd.f32 %v118, %v601
    %603 = vmatprep.mubr.bf16.mxu0 0
    %604 = vmatmul.mubr.bf16.gmra.mrb[0].mxu0 %v384
    %v605 = vpop.f32.mrb[0].mxu0
    %v606 = vadd.f32 %v114, %v605
    %v607 = vpop.f32.mrb[0].mxu0
    %v608 = vadd.f32 %v118, %v607
    %v609 = vpop.f32.mrb[0].mxu0
    %v610 = vadd.f32 %v114, %v609
    %v611 = vpop.f32.mrb[0].mxu0
    %v612 = vadd.f32 %v118, %v611
    %613 = vmatprep.mubr.bf16.mxu0 0
    %614 = vmatmul.mubr.bf16.gmra.mrb[0].mxu0 %v387
    %v615 = vpop.f32.mrb[0].mxu0
    %v616 = vadd.f32 %v114, %v615
    %v617 = vpop.f32.mrb[0].mxu0
    %v618 = vadd.f32 %v118, %v617
    %v619 = vpop.f32.mrb[0].mxu0
    %v620 = vadd.f32 %v114, %v619
    %v621 = vpop.f32.mrb[0].mxu0
    %v622 = vadd.f32 %v118, %v621
    %623 = vmatprep.mubr.bf16.mxu0 0
    %624 = vmatmul.mubr.bf16.gmra.mrb[0].mxu0 %v390
    %v625 = vpop.f32.mrb[0].mxu0
    %v626 = vadd.f32 %v114, %v625
    %v627 = vpop.f32.mrb[0].mxu0
    %v628 = vadd.f32 %v118, %v627
    %v629 = vpop.f32.mrb[0].mxu0
    %v630 = vadd.f32 %v114, %v629
    %v631 = vpop.f32.mrb[0].mxu0
    %v632 = vadd.f32 %v118, %v631
    %633 = vdwg.mxu0
    %634 = vmatprep.subr.bf16.mxu0 %v403
    %635 = vmatpush1.bf16.msra.mxu0 %v400
    %636 = vmatprep.subr.bf16.mxu0 0
    %637 = vmatpush1.bf16.msra.mxu0 0
    %638 = vmatprep.subr.bf16.mxu0 0
    %639 = vmatpush1.bf16.msra.mxu0 0
    %640 = vmatprep.subr.bf16.mxu0 0
    %641 = vmatpush1.bf16.msra.mxu0 0
    %642 = vmatprep.subr.bf16.mxu0 0
    %643 = vmatpush1.bf16.msra.mxu0 0
    %644 = vmatprep.subr.bf16.mxu0 0
    %645 = vmatpush1.bf16.msra.mxu0 0
    %646 = vmatprep.subr.bf16.mxu0 0
    %647 = vmatpush1.bf16.msra.mxu0 0
    %648 = vmatprep.subr.bf16.mxu0 0
    %649 = vmatpush1.bf16.msra.mxu0 0
    %650 = vmatprep.subr.bf16.mxu0 0
    %651 = vmatpush1.bf16.msra.mxu0 0
    %652 = vmatprep.subr.bf16.mxu0 0
    %653 = vmatpush1.bf16.msra.mxu0 0
    %654 = vmatprep.subr.bf16.mxu0 0
    %655 = vmatpush1.bf16.msra.mxu0 0
    %656 = vmatprep.subr.bf16.mxu0 0
    %657 = vmatpush1.bf16.msra.mxu0 0
    %658 = vmatprep.subr.bf16.mxu0 0
    %659 = vmatpush1.bf16.msra.mxu0 0
    %660 = vmatprep.subr.bf16.mxu0 0
    %661 = vmatpush1.bf16.msra.mxu0 0
    %662 = vmatprep.subr.bf16.mxu0 0
    %663 = vmatpush1.bf16.msra.mxu0 0
    %664 = vmatprep.subr.bf16.mxu0 0
    %665 = vmatpush1.bf16.msra.mxu0 0
    %666 = vmatprep.mubr.bf16.mxu0 0
    %667 = vmatmul.mubr.bf16.gmra.mrb[0].mxu0 %v345
    %v668 = vpop.f32.mrb[0].mxu0
    %v669 = vadd.f32 %v122, %v668
    %v670 = vpop.f32.mrb[0].mxu0
    %v671 = vadd.f32 %v126, %v670
    %v672 = vpop.f32.mrb[0].mxu0
    %v673 = vadd.f32 %v122, %v672
    %v674 = vpop.f32.mrb[0].mxu0
    %v675 = vadd.f32 %v126, %v674
    %676 = vmatprep.mubr.bf16.mxu0 0
    %677 = vmatmul.mubr.bf16.gmra.mrb[0].mxu0 %v348
    %v678 = vpop.f32.mrb[0].mxu0
    %v679 = vadd.f32 %v122, %v678
    %v680 = vpop.f32.mrb[0].mxu0
    %v681 = vadd.f32 %v126, %v680
    %v682 = vpop.f32.mrb[0].mxu0
    %v683 = vadd.f32 %v122, %v682
    %v684 = vpop.f32.mrb[0].mxu0
    %v685 = vadd.f32 %v126, %v684
    %686 = vmatprep.mubr.bf16.mxu0 0
    %687 = vmatmul.mubr.bf16.gmra.mrb[0].mxu0 %v351
    %v688 = vpop.f32.mrb[0].mxu0
    %v689 = vadd.f32 %v122, %v688
    %v690 = vpop.f32.mrb[0].mxu0
    %v691 = vadd.f32 %v126, %v690
    %v692 = vpop.f32.mrb[0].mxu0
    %v693 = vadd.f32 %v122, %v692
    %v694 = vpop.f32.mrb[0].mxu0
    %v695 = vadd.f32 %v126, %v694
    %696 = vmatprep.mubr.bf16.mxu0 0
    %697 = vmatmul.mubr.bf16.gmra.mrb[0].mxu0 %v354
    %v698 = vpop.f32.mrb[0].mxu0
    %v699 = vadd.f32 %v122, %v698
    %v700 = vpop.f32.mrb[0].mxu0
    %v701 = vadd.f32 %v126, %v700
    %v702 = vpop.f32.mrb[0].mxu0
    %v703 = vadd.f32 %v122, %v702
    %v704 = vpop.f32.mrb[0].mxu0
    %v705 = vadd.f32 %v126, %v704
    %706 = vmatprep.mubr.bf16.mxu0 0
    %707 = vmatmul.mubr.bf16.gmra.mrb[0].mxu0 %v357
    %v708 = vpop.f32.mrb[0].mxu0
    %v709 = vadd.f32 %v122, %v708
    %v710 = vpop.f32.mrb[0].mxu0
    %v711 = vadd.f32 %v126, %v710
    %v712 = vpop.f32.mrb[0].mxu0
    %v713 = vadd.f32 %v122, %v712
    %v714 = vpop.f32.mrb[0].mxu0
    %v715 = vadd.f32 %v126, %v714
    %716 = vmatprep.mubr.bf16.mxu0 0
    %717 = vmatmul.mubr.bf16.gmra.mrb[0].mxu0 %v360
    %v718 = vpop.f32.mrb[0].mxu0
    %v719 = vadd.f32 %v122, %v718
    %v720 = vpop.f32.mrb[0].mxu0
    %v721 = vadd.f32 %v126, %v720
    %v722 = vpop.f32.mrb[0].mxu0
    %v723 = vadd.f32 %v122, %v722
    %v724 = vpop.f32.mrb[0].mxu0
    %v725 = vadd.f32 %v126, %v724
    %726 = vmatprep.mubr.bf16.mxu0 0
    %727 = vmatmul.mubr.bf16.gmra.mrb[0].mxu0 %v363
    %v728 = vpop.f32.mrb[0].mxu0
    %v729 = vadd.f32 %v122, %v728
    %v730 = vpop.f32.mrb[0].mxu0
    %v731 = vadd.f32 %v126, %v730
    %v732 = vpop.f32.mrb[0].mxu0
    %v733 = vadd.f32 %v122, %v732
    %v734 = vpop.f32.mrb[0].mxu0
    %v735 = vadd.f32 %v126, %v734
    %736 = vmatprep.mubr.bf16.mxu0 0
    %737 = vmatmul.mubr.bf16.gmra.mrb[0].mxu0 %v366
    %v738 = vpop.f32.mrb[0].mxu0
    %v739 = vadd.f32 %v122, %v738
    %v740 = vpop.f32.mrb[0].mxu0
    %v741 = vadd.f32 %v126, %v740
    %v742 = vpop.f32.mrb[0].mxu0
    %v743 = vadd.f32 %v122, %v742
    %v744 = vpop.f32.mrb[0].mxu0
    %v745 = vadd.f32 %v126, %v744
    %746 = vmatprep.mubr.bf16.mxu0 0
    %747 = vmatmul.mubr.bf16.gmra.mrb[0].mxu0 %v369
    %v748 = vpop.f32.mrb[0].mxu0
    %v749 = vadd.f32 %v122, %v748
    %v750 = vpop.f32.mrb[0].mxu0
    %v751 = vadd.f32 %v126, %v750
    %v752 = vpop.f32.mrb[0].mxu0
    %v753 = vadd.f32 %v122, %v752
    %v754 = vpop.f32.mrb[0].mxu0
    %v755 = vadd.f32 %v126, %v754
    %756 = vmatprep.mubr.bf16.mxu0 0
    %757 = vmatmul.mubr.bf16.gmra.mrb[0].mxu0 %v372
    %v758 = vpop.f32.mrb[0].mxu0
    %v759 = vadd.f32 %v122, %v758
    %v760 = vpop.f32.mrb[0].mxu0
    %v761 = vadd.f32 %v126, %v760
    %v762 = vpop.f32.mrb[0].mxu0
    %v763 = vadd.f32 %v122, %v762
    %v764 = vpop.f32.mrb[0].mxu0
    %v765 = vadd.f32 %v126, %v764
    %766 = vmatprep.mubr.bf16.mxu0 0
    %767 = vmatmul.mubr.bf16.gmra.mrb[0].mxu0 %v375
    %v768 = vpop.f32.mrb[0].mxu0
    %v769 = vadd.f32 %v122, %v768
    %v770 = vpop.f32.mrb[0].mxu0
    %v771 = vadd.f32 %v126, %v770
    %v772 = vpop.f32.mrb[0].mxu0
    %v773 = vadd.f32 %v122, %v772
    %v774 = vpop.f32.mrb[0].mxu0
    %v775 = vadd.f32 %v126, %v774
    %776 = vmatprep.mubr.bf16.mxu0 0
    %777 = vmatmul.mubr.bf16.gmra.mrb[0].mxu0 %v378
    %v778 = vpop.f32.mrb[0].mxu0
    %v779 = vadd.f32 %v122, %v778
    %v780 = vpop.f32.mrb[0].mxu0
    %v781 = vadd.f32 %v126, %v780
    %v782 = vpop.f32.mrb[0].mxu0
    %v783 = vadd.f32 %v122, %v782
    %v784 = vpop.f32.mrb[0].mxu0
    %v785 = vadd.f32 %v126, %v784
    %786 = vmatprep.mubr.bf16.mxu0 0
    %787 = vmatmul.mubr.bf16.gmra.mrb[0].mxu0 %v381
    %v788 = vpop.f32.mrb[0].mxu0
    %v789 = vadd.f32 %v122, %v788
    %v790 = vpop.f32.mrb[0].mxu0
    %v791 = vadd.f32 %v126, %v790
    %v792 = vpop.f32.mrb[0].mxu0
    %v793 = vadd.f32 %v122, %v792
    %v794 = vpop.f32.mrb[0].mxu0
    %v795 = vadd.f32 %v126, %v794
    %796 = vmatprep.mubr.bf16.mxu0 0
    %797 = vmatmul.mubr.bf16.gmra.mrb[0].mxu0 %v384
    %v798 = vpop.f32.mrb[0].mxu0
    %v799 = vadd.f32 %v122, %v798
    %v800 = vpop.f32.mrb[0].mxu0
    %v801 = vadd.f32 %v126, %v800
    %v802 = vpop.f32.mrb[0].mxu0
    %v803 = vadd.f32 %v122, %v802
    %v804 = vpop.f32.mrb[0].mxu0
    %v805 = vadd.f32 %v126, %v804
    %806 = vmatprep.mubr.bf16.mxu0 0
    %807 = vmatmul.mubr.bf16.gmra.mrb[0].mxu0 %v387
    %v808 = vpop.f32.mrb[0].mxu0
    %v809 = vadd.f32 %v122, %v808
    %v810 = vpop.f32.mrb[0].mxu0
    %v811 = vadd.f32 %v126, %v810
    %v812 = vpop.f32.mrb[0].mxu0
    %v813 = vadd.f32 %v122, %v812
    %v814 = vpop.f32.mrb[0].mxu0
    %v815 = vadd.f32 %v126, %v814
    %816 = vmatprep.mubr.bf16.mxu0 0
    %817 = vmatmul.mubr.bf16.gmra.mrb[0].mxu0 %v390
    %v818 = vpop.f32.mrb[0].mxu0
    %v819 = vadd.f32 %v122, %v818
    %v820 = vpop.f32.mrb[0].mxu0
    %v821 = vadd.f32 %v126, %v820
    %v822 = vpop.f32.mrb[0].mxu0
    %v823 = vadd.f32 %v122, %v822
    %v824 = vpop.f32.mrb[0].mxu0
    %v825 = vadd.f32 %v126, %v824
    %826 = vdwg.mxu0
    %827 = vmatprep.subr.bf16.mxu0 %v409
    %828 = vmatpush1.bf16.msra.mxu0 %v406
    %829 = vmatprep.subr.bf16.mxu0 0
    %830 = vmatpush1.bf16.msra.mxu0 0
    %831 = vmatprep.subr.bf16.mxu0 0
    %832 = vmatpush1.bf16.msra.mxu0 0
    %833 = vmatprep.subr.bf16.mxu0 0
    %834 = vmatpush1.bf16.msra.mxu0 0
    %835 = vmatprep.subr.bf16.mxu0 0
    %836 = vmatpush1.bf16.msra.mxu0 0
    %837 = vmatprep.subr.bf16.mxu0 0
    %838 = vmatpush1.bf16.msra.mxu0 0
    %839 = vmatprep.subr.bf16.mxu0 0
    %840 = vmatpush1.bf16.msra.mxu0 0
    %841 = vmatprep.subr.bf16.mxu0 0
    %842 = vmatpush1.bf16.msra.mxu0 0
    %843 = vmatprep.subr.bf16.mxu0 0
    %844 = vmatpush1.bf16.msra.mxu0 0
    %845 = vmatprep.subr.bf16.mxu0 0
    %846 = vmatpush1.bf16.msra.mxu0 0
    %847 = vmatprep.subr.bf16.mxu0 0
    %848 = vmatpush1.bf16.msra.mxu0 0
    %849 = vmatprep.subr.bf16.mxu0 0
    %850 = vmatpush1.bf16.msra.mxu0 0
    %851 = vmatprep.subr.bf16.mxu0 0
    %852 = vmatpush1.bf16.msra.mxu0 0
    %853 = vmatprep.subr.bf16.mxu0 0
    %854 = vmatpush1.bf16.msra.mxu0 0
    %855 = vmatprep.subr.bf16.mxu0 0
    %856 = vmatpush1.bf16.msra.mxu0 0
    %857 = vmatprep.subr.bf16.mxu0 0
    %858 = vmatpush1.bf16.msra.mxu0 0
    %859 = vmatprep.mubr.bf16.mxu0 0
    %860 = vmatmul.mubr.bf16.gmra.mrb[0].mxu0 %v345
    %v861 = vpop.f32.mrb[0].mxu0
    %v862 = vadd.f32 %v130, %v861
    %v863 = vpop.f32.mrb[0].mxu0
    %v864 = vadd.f32 %v134, %v863
    %v865 = vpop.f32.mrb[0].mxu0
    %v866 = vadd.f32 %v130, %v865
    %v867 = vpop.f32.mrb[0].mxu0
    %v868 = vadd.f32 %v134, %v867
    %869 = vmatprep.mubr.bf16.mxu0 0
    %870 = vmatmul.mubr.bf16.gmra.mrb[0].mxu0 %v348
    %v871 = vpop.f32.mrb[0].mxu0
    %v872 = vadd.f32 %v130, %v871
    %v873 = vpop.f32.mrb[0].mxu0
    %v874 = vadd.f32 %v134, %v873
    %v875 = vpop.f32.mrb[0].mxu0
    %v876 = vadd.f32 %v130, %v875
    %v877 = vpop.f32.mrb[0].mxu0
    %v878 = vadd.f32 %v134, %v877
    %879 = vmatprep.mubr.bf16.mxu0 0
    %880 = vmatmul.mubr.bf16.gmra.mrb[0].mxu0 %v351
    %v881 = vpop.f32.mrb[0].mxu0
    %v882 = vadd.f32 %v130, %v881
    %v883 = vpop.f32.mrb[0].mxu0
    %v884 = vadd.f32 %v134, %v883
    %v885 = vpop.f32.mrb[0].mxu0
    %v886 = vadd.f32 %v130, %v885
    %v887 = vpop.f32.mrb[0].mxu0
    %v888 = vadd.f32 %v134, %v887
    %889 = vmatprep.mubr.bf16.mxu0 0
    %890 = vmatmul.mubr.bf16.gmra.mrb[0].mxu0 %v354
    %v891 = vpop.f32.mrb[0].mxu0
    %v892 = vadd.f32 %v130, %v891
    %v893 = vpop.f32.mrb[0].mxu0
    %v894 = vadd.f32 %v134, %v893
    %v895 = vpop.f32.mrb[0].mxu0
    %v896 = vadd.f32 %v130, %v895
    %v897 = vpop.f32.mrb[0].mxu0
    %v898 = vadd.f32 %v134, %v897
    %899 = vmatprep.mubr.bf16.mxu0 0
    %900 = vmatmul.mubr.bf16.gmra.mrb[0].mxu0 %v357
    %v901 = vpop.f32.mrb[0].mxu0
    %v902 = vadd.f32 %v130, %v901
    %v903 = vpop.f32.mrb[0].mxu0
    %v904 = vadd.f32 %v134, %v903
    %v905 = vpop.f32.mrb[0].mxu0
    %v906 = vadd.f32 %v130, %v905
    %v907 = vpop.f32.mrb[0].mxu0
    %v908 = vadd.f32 %v134, %v907
    %909 = vmatprep.mubr.bf16.mxu0 0
    %910 = vmatmul.mubr.bf16.gmra.mrb[0].mxu0 %v360
    %v911 = vpop.f32.mrb[0].mxu0
    %v912 = vadd.f32 %v130, %v911
    %v913 = vpop.f32.mrb[0].mxu0
    %v914 = vadd.f32 %v134, %v913
    %v915 = vpop.f32.mrb[0].mxu0
    %v916 = vadd.f32 %v130, %v915
    %v917 = vpop.f32.mrb[0].mxu0
    %v918 = vadd.f32 %v134, %v917
    %919 = vmatprep.mubr.bf16.mxu0 0
    %920 = vmatmul.mubr.bf16.gmra.mrb[0].mxu0 %v363
    %v921 = vpop.f32.mrb[0].mxu0
    %v922 = vadd.f32 %v130, %v921
    %v923 = vpop.f32.mrb[0].mxu0
    %v924 = vadd.f32 %v134, %v923
    %v925 = vpop.f32.mrb[0].mxu0
    %v926 = vadd.f32 %v130, %v925
    %v927 = vpop.f32.mrb[0].mxu0
    %v928 = vadd.f32 %v134, %v927
    %929 = vmatprep.mubr.bf16.mxu0 0
    %930 = vmatmul.mubr.bf16.gmra.mrb[0].mxu0 %v366
    %v931 = vpop.f32.mrb[0].mxu0
    %v932 = vadd.f32 %v130, %v931
    %v933 = vpop.f32.mrb[0].mxu0
    %v934 = vadd.f32 %v134, %v933
    %v935 = vpop.f32.mrb[0].mxu0
    %v936 = vadd.f32 %v130, %v935
    %v937 = vpop.f32.mrb[0].mxu0
    %v938 = vadd.f32 %v134, %v937
    %939 = vmatprep.mubr.bf16.mxu0 0
    %940 = vmatmul.mubr.bf16.gmra.mrb[0].mxu0 %v369
    %v941 = vpop.f32.mrb[0].mxu0
    %v942 = vadd.f32 %v130, %v941
    %v943 = vpop.f32.mrb[0].mxu0
    %v944 = vadd.f32 %v134, %v943
    %v945 = vpop.f32.mrb[0].mxu0
    %v946 = vadd.f32 %v130, %v945
    %v947 = vpop.f32.mrb[0].mxu0
    %v948 = vadd.f32 %v134, %v947
    %949 = vmatprep.mubr.bf16.mxu0 0
    %950 = vmatmul.mubr.bf16.gmra.mrb[0].mxu0 %v372
    %v951 = vpop.f32.mrb[0].mxu0
    %v952 = vadd.f32 %v130, %v951
    %v953 = vpop.f32.mrb[0].mxu0
    %v954 = vadd.f32 %v134, %v953
    %v955 = vpop.f32.mrb[0].mxu0
    %v956 = vadd.f32 %v130, %v955
    %v957 = vpop.f32.mrb[0].mxu0
    %v958 = vadd.f32 %v134, %v957
    %959 = vmatprep.mubr.bf16.mxu0 0
    %960 = vmatmul.mubr.bf16.gmra.mrb[0].mxu0 %v375
    %v961 = vpop.f32.mrb[0].mxu0
    %v962 = vadd.f32 %v130, %v961
    %v963 = vpop.f32.mrb[0].mxu0
    %v964 = vadd.f32 %v134, %v963
    %v965 = vpop.f32.mrb[0].mxu0
    %v966 = vadd.f32 %v130, %v965
    %v967 = vpop.f32.mrb[0].mxu0
    %v968 = vadd.f32 %v134, %v967
    %969 = vmatprep.mubr.bf16.mxu0 0
    %970 = vmatmul.mubr.bf16.gmra.mrb[0].mxu0 %v378
    %v971 = vpop.f32.mrb[0].mxu0
    %v972 = vadd.f32 %v130, %v971
    %v973 = vpop.f32.mrb[0].mxu0
    %v974 = vadd.f32 %v134, %v973
    %v975 = vpop.f32.mrb[0].mxu0
    %v976 = vadd.f32 %v130, %v975
    %v977 = vpop.f32.mrb[0].mxu0
    %v978 = vadd.f32 %v134, %v977
    %979 = vmatprep.mubr.bf16.mxu0 0
    %980 = vmatmul.mubr.bf16.gmra.mrb[0].mxu0 %v381
    %v981 = vpop.f32.mrb[0].mxu0
    %v982 = vadd.f32 %v130, %v981
    %v983 = vpop.f32.mrb[0].mxu0
    %v984 = vadd.f32 %v134, %v983
    %v985 = vpop.f32.mrb[0].mxu0
    %v986 = vadd.f32 %v130, %v985
    %v987 = vpop.f32.mrb[0].mxu0
    %v988 = vadd.f32 %v134, %v987
    %989 = vmatprep.mubr.bf16.mxu0 0
    %990 = vmatmul.mubr.bf16.gmra.mrb[0].mxu0 %v384
    %v991 = vpop.f32.mrb[0].mxu0
    %v992 = vadd.f32 %v130, %v991
    %v993 = vpop.f32.mrb[0].mxu0
    %v994 = vadd.f32 %v134, %v993
    %v995 = vpop.f32.mrb[0].mxu0
    %v996 = vadd.f32 %v130, %v995
    %v997 = vpop.f32.mrb[0].mxu0
    %v998 = vadd.f32 %v134, %v997
    %999 = vmatprep.mubr.bf16.mxu0 0
    %1000 = vmatmul.mubr.bf16.gmra.mrb[0].mxu0 %v387
    %v1001 = vpop.f32.mrb[0].mxu0
    %v1002 = vadd.f32 %v130, %v1001
    %v1003 = vpop.f32.mrb[0].mxu0
    %v1004 = vadd.f32 %v134, %v1003
    %v1005 = vpop.f32.mrb[0].mxu0
    %v1006 = vadd.f32 %v130, %v1005
    %v1007 = vpop.f32.mrb[0].mxu0
    %v1008 = vadd.f32 %v134, %v1007
    %1009 = vmatprep.mubr.bf16.mxu0 0
    %1010 = vmatmul.mubr.bf16.gmra.mrb[0].mxu0 %v390
    %v1011 = vpop.f32.mrb[0].mxu0
    %v1012 = vadd.f32 %v130, %v1011
    %v1013 = vpop.f32.mrb[0].mxu0
    %v1014 = vadd.f32 %v134, %v1013
    %v1015 = vpop.f32.mrb[0].mxu0
    %v1016 = vadd.f32 %v130, %v1015
    %v1017 = vpop.f32.mrb[0].mxu0
    %v1018 = vadd.f32 %v134, %v1017
    %1019 = vdwg.mxu0
    %1020 = vmatprep.subr.bf16.mxu0 %v415
    %1021 = vmatpush1.bf16.msra.mxu0 %v412
    %1022 = vmatprep.subr.bf16.mxu0 0
    %1023 = vmatpush1.bf16.msra.mxu0 0
    %1024 = vmatprep.subr.bf16.mxu0 0
    %1025 = vmatpush1.bf16.msra.mxu0 0
    %1026 = vmatprep.subr.bf16.mxu0 0
    %1027 = vmatpush1.bf16.msra.mxu0 0
    %1028 = vmatprep.subr.bf16.mxu0 0
    %1029 = vmatpush1.bf16.msra.mxu0 0
    %1030 = vmatprep.subr.bf16.mxu0 0
    %1031 = vmatpush1.bf16.msra.mxu0 0
    %1032 = vmatprep.subr.bf16.mxu0 0
    %1033 = vmatpush1.bf16.msra.mxu0 0
    %1034 = vmatprep.subr.bf16.mxu0 0
    %1035 = vmatpush1.bf16.msra.mxu0 0
    %1036 = vmatprep.subr.bf16.mxu0 0
    %1037 = vmatpush1.bf16.msra.mxu0 0
    %1038 = vmatprep.subr.bf16.mxu0 0
    %1039 = vmatpush1.bf16.msra.mxu0 0
    %1040 = vmatprep.subr.bf16.mxu0 0
    %1041 = vmatpush1.bf16.msra.mxu0 0
    %1042 = vmatprep.subr.bf16.mxu0 0
    %1043 = vmatpush1.bf16.msra.mxu0 0
    %1044 = vmatprep.subr.bf16.mxu0 0
    %1045 = vmatpush1.bf16.msra.mxu0 0
    %1046 = vmatprep.subr.bf16.mxu0 0
    %1047 = vmatpush1.bf16.msra.mxu0 0
    %1048 = vmatprep.subr.bf16.mxu0 0
    %1049 = vmatpush1.bf16.msra.mxu0 0
    %1050 = vmatprep.subr.bf16.mxu0 0
    %1051 = vmatpush1.bf16.msra.mxu0 0
    %1052 = vmatprep.mubr.bf16.mxu0 0
    %1053 = vmatmul.mubr.bf16.gmra.mrb[0].mxu0 %v345
    %v1054 = vpop.f32.mrb[0].mxu0
    %v1055 = vadd.f32 %v138, %v1054
    %v1056 = vpop.f32.mrb[0].mxu0
    %v1057 = vadd.f32 %v142, %v1056
    %v1058 = vpop.f32.mrb[0].mxu0
    %v1059 = vadd.f32 %v138, %v1058
    %v1060 = vpop.f32.mrb[0].mxu0
    %v1061 = vadd.f32 %v142, %v1060
    %1062 = vmatprep.mubr.bf16.mxu0 0
    %1063 = vmatmul.mubr.bf16.gmra.mrb[0].mxu0 %v348
    %v1064 = vpop.f32.mrb[0].mxu0
    %v1065 = vadd.f32 %v138, %v1064
    %v1066 = vpop.f32.mrb[0].mxu0
    %v1067 = vadd.f32 %v142, %v1066
    %v1068 = vpop.f32.mrb[0].mxu0
    %v1069 = vadd.f32 %v138, %v1068
    %v1070 = vpop.f32.mrb[0].mxu0
    %v1071 = vadd.f32 %v142, %v1070
    %1072 = vmatprep.mubr.bf16.mxu0 0
    %1073 = vmatmul.mubr.bf16.gmra.mrb[0].mxu0 %v351
    %v1074 = vpop.f32.mrb[0].mxu0
    %v1075 = vadd.f32 %v138, %v1074
    %v1076 = vpop.f32.mrb[0].mxu0
    %v1077 = vadd.f32 %v142, %v1076
    %v1078 = vpop.f32.mrb[0].mxu0
    %v1079 = vadd.f32 %v138, %v1078
    %v1080 = vpop.f32.mrb[0].mxu0
    %v1081 = vadd.f32 %v142, %v1080
    %1082 = vmatprep.mubr.bf16.mxu0 0
    %1083 = vmatmul.mubr.bf16.gmra.mrb[0].mxu0 %v354
    %v1084 = vpop.f32.mrb[0].mxu0
    %v1085 = vadd.f32 %v138, %v1084
    %v1086 = vpop.f32.mrb[0].mxu0
    %v1087 = vadd.f32 %v142, %v1086
    %v1088 = vpop.f32.mrb[0].mxu0
    %v1089 = vadd.f32 %v138, %v1088
    %v1090 = vpop.f32.mrb[0].mxu0
    %v1091 = vadd.f32 %v142, %v1090
    %1092 = vmatprep.mubr.bf16.mxu0 0
    %1093 = vmatmul.mubr.bf16.gmra.mrb[0].mxu0 %v357
    %v1094 = vpop.f32.mrb[0].mxu0
    %v1095 = vadd.f32 %v138, %v1094
    %v1096 = vpop.f32.mrb[0].mxu0
    %v1097 = vadd.f32 %v142, %v1096
    %v1098 = vpop.f32.mrb[0].mxu0
    %v1099 = vadd.f32 %v138, %v1098
    %v1100 = vpop.f32.mrb[0].mxu0
    %v1101 = vadd.f32 %v142, %v1100
    %1102 = vmatprep.mubr.bf16.mxu0 0
    %1103 = vmatmul.mubr.bf16.gmra.mrb[0].mxu0 %v360
    %v1104 = vpop.f32.mrb[0].mxu0
    %v1105 = vadd.f32 %v138, %v1104
    %v1106 = vpop.f32.mrb[0].mxu0
    %v1107 = vadd.f32 %v142, %v1106
    %v1108 = vpop.f32.mrb[0].mxu0
    %v1109 = vadd.f32 %v138, %v1108
    %v1110 = vpop.f32.mrb[0].mxu0
    %v1111 = vadd.f32 %v142, %v1110
    %1112 = vmatprep.mubr.bf16.mxu0 0
    %1113 = vmatmul.mubr.bf16.gmra.mrb[0].mxu0 %v363
    %v1114 = vpop.f32.mrb[0].mxu0
    %v1115 = vadd.f32 %v138, %v1114
    %v1116 = vpop.f32.mrb[0].mxu0
    %v1117 = vadd.f32 %v142, %v1116
    %v1118 = vpop.f32.mrb[0].mxu0
    %v1119 = vadd.f32 %v138, %v1118
    %v1120 = vpop.f32.mrb[0].mxu0
    %v1121 = vadd.f32 %v142, %v1120
    %1122 = vmatprep.mubr.bf16.mxu0 0
    %1123 = vmatmul.mubr.bf16.gmra.mrb[0].mxu0 %v366
    %v1124 = vpop.f32.mrb[0].mxu0
    %v1125 = vadd.f32 %v138, %v1124
    %v1126 = vpop.f32.mrb[0].mxu0
    %v1127 = vadd.f32 %v142, %v1126
    %v1128 = vpop.f32.mrb[0].mxu0
    %v1129 = vadd.f32 %v138, %v1128
    %v1130 = vpop.f32.mrb[0].mxu0
    %v1131 = vadd.f32 %v142, %v1130
    %1132 = vmatprep.mubr.bf16.mxu0 0
    %1133 = vmatmul.mubr.bf16.gmra.mrb[0].mxu0 %v369
    %v1134 = vpop.f32.mrb[0].mxu0
    %v1135 = vadd.f32 %v138, %v1134
    %v1136 = vpop.f32.mrb[0].mxu0
    %v1137 = vadd.f32 %v142, %v1136
    %v1138 = vpop.f32.mrb[0].mxu0
    %v1139 = vadd.f32 %v138, %v1138
    %v1140 = vpop.f32.mrb[0].mxu0
    %v1141 = vadd.f32 %v142, %v1140
    %1142 = vmatprep.mubr.bf16.mxu0 0
    %1143 = vmatmul.mubr.bf16.gmra.mrb[0].mxu0 %v372
    %v1144 = vpop.f32.mrb[0].mxu0
    %v1145 = vadd.f32 %v138, %v1144
    %v1146 = vpop.f32.mrb[0].mxu0
    %v1147 = vadd.f32 %v142, %v1146
    %v1148 = vpop.f32.mrb[0].mxu0
    %v1149 = vadd.f32 %v138, %v1148
    %v1150 = vpop.f32.mrb[0].mxu0
    %v1151 = vadd.f32 %v142, %v1150
    %1152 = vmatprep.mubr.bf16.mxu0 0
    %1153 = vmatmul.mubr.bf16.gmra.mrb[0].mxu0 %v375
    %v1154 = vpop.f32.mrb[0].mxu0
    %v1155 = vadd.f32 %v138, %v1154
    %v1156 = vpop.f32.mrb[0].mxu0
    %v1157 = vadd.f32 %v142, %v1156
    %v1158 = vpop.f32.mrb[0].mxu0
    %v1159 = vadd.f32 %v138, %v1158
    %v1160 = vpop.f32.mrb[0].mxu0
    %v1161 = vadd.f32 %v142, %v1160
    %1162 = vmatprep.mubr.bf16.mxu0 0
    %1163 = vmatmul.mubr.bf16.gmra.mrb[0].mxu0 %v378
    %v1164 = vpop.f32.mrb[0].mxu0
    %v1165 = vadd.f32 %v138, %v1164
    %v1166 = vpop.f32.mrb[0].mxu0
    %v1167 = vadd.f32 %v142, %v1166
    %v1168 = vpop.f32.mrb[0].mxu0
    %v1169 = vadd.f32 %v138, %v1168
    %v1170 = vpop.f32.mrb[0].mxu0
    %v1171 = vadd.f32 %v142, %v1170
    %1172 = vmatprep.mubr.bf16.mxu0 0
    %1173 = vmatmul.mubr.bf16.gmra.mrb[0].mxu0 %v381
    %v1174 = vpop.f32.mrb[0].mxu0
    %v1175 = vadd.f32 %v138, %v1174
    %v1176 = vpop.f32.mrb[0].mxu0
    %v1177 = vadd.f32 %v142, %v1176
    %v1178 = vpop.f32.mrb[0].mxu0
    %v1179 = vadd.f32 %v138, %v1178
    %v1180 = vpop.f32.mrb[0].mxu0
    %v1181 = vadd.f32 %v142, %v1180
    %1182 = vmatprep.mubr.bf16.mxu0 0
    %1183 = vmatmul.mubr.bf16.gmra.mrb[0].mxu0 %v384
    %v1184 = vpop.f32.mrb[0].mxu0
    %v1185 = vadd.f32 %v138, %v1184
    %v1186 = vpop.f32.mrb[0].mxu0
    %v1187 = vadd.f32 %v142, %v1186
    %v1188 = vpop.f32.mrb[0].mxu0
    %v1189 = vadd.f32 %v138, %v1188
    %v1190 = vpop.f32.mrb[0].mxu0
    %v1191 = vadd.f32 %v142, %v1190
    %1192 = vmatprep.mubr.bf16.mxu0 0
    %1193 = vmatmul.mubr.bf16.gmra.mrb[0].mxu0 %v387
    %v1194 = vpop.f32.mrb[0].mxu0
    %v1195 = vadd.f32 %v138, %v1194
    %v1196 = vpop.f32.mrb[0].mxu0
    %v1197 = vadd.f32 %v142, %v1196
    %v1198 = vpop.f32.mrb[0].mxu0
    %v1199 = vadd.f32 %v138, %v1198
    %v1200 = vpop.f32.mrb[0].mxu0
    %v1201 = vadd.f32 %v142, %v1200
    %1202 = vmatprep.mubr.bf16.mxu0 0
    %1203 = vmatmul.mubr.bf16.gmra.mrb[0].mxu0 %v390
    %v1204 = vpop.f32.mrb[0].mxu0
    %v1205 = vadd.f32 %v138, %v1204
    %v1206 = vpop.f32.mrb[0].mxu0
    %v1207 = vadd.f32 %v142, %v1206
    %v1208 = vpop.f32.mrb[0].mxu0
    %v1209 = vadd.f32 %v138, %v1208
    %v1210 = vpop.f32.mrb[0].mxu0
    %v1211 = vadd.f32 %v142, %v1210
    %1212 = vdwg.mxu0
    %1213 = vmatprep.subr.bf16.mxu0 %v421
    %1214 = vmatpush1.bf16.msra.mxu0 %v418
    %1215 = vmatprep.subr.bf16.mxu0 0
    %1216 = vmatpush1.bf16.msra.mxu0 0
    %1217 = vmatprep.subr.bf16.mxu0 0
    %1218 = vmatpush1.bf16.msra.mxu0 0
    %1219 = vmatprep.subr.bf16.mxu0 0
    %1220 = vmatpush1.bf16.msra.mxu0 0
    %1221 = vmatprep.subr.bf16.mxu0 0
    %1222 = vmatpush1.bf16.msra.mxu0 0
    %1223 = vmatprep.subr.bf16.mxu0 0
    %1224 = vmatpush1.bf16.msra.mxu0 0
    %1225 = vmatprep.subr.bf16.mxu0 0
    %1226 = vmatpush1.bf16.msra.mxu0 0
    %1227 = vmatprep.subr.bf16.mxu0 0
    %1228 = vmatpush1.bf16.msra.mxu0 0
    %1229 = vmatprep.subr.bf16.mxu0 0
    %1230 = vmatpush1.bf16.msra.mxu0 0
    %1231 = vmatprep.subr.bf16.mxu0 0
    %1232 = vmatpush1.bf16.msra.mxu0 0
    %1233 = vmatprep.subr.bf16.mxu0 0
    %1234 = vmatpush1.bf16.msra.mxu0 0
    %1235 = vmatprep.subr.bf16.mxu0 0
    %1236 = vmatpush1.bf16.msra.mxu0 0
    %1237 = vmatprep.subr.bf16.mxu0 0
    %1238 = vmatpush1.bf16.msra.mxu0 0
    %1239 = vmatprep.subr.bf16.mxu0 0
    %1240 = vmatpush1.bf16.msra.mxu0 0
    %1241 = vmatprep.subr.bf16.mxu0 0
    %1242 = vmatpush1.bf16.msra.mxu0 0
    %1243 = vmatprep.subr.bf16.mxu0 0
    %1244 = vmatpush1.bf16.msra.mxu0 0
    %1245 = vmatprep.mubr.bf16.mxu0 0
    %1246 = vmatmul.mubr.bf16.gmra.mrb[0].mxu0 %v345
    %v1247 = vpop.f32.mrb[0].mxu0
    %v1248 = vadd.f32 %v146, %v1247
    %v1249 = vpop.f32.mrb[0].mxu0
    %v1250 = vadd.f32 %v150, %v1249
    %v1251 = vpop.f32.mrb[0].mxu0
    %v1252 = vadd.f32 %v146, %v1251
    %v1253 = vpop.f32.mrb[0].mxu0
    %v1254 = vadd.f32 %v150, %v1253
    %1255 = vmatprep.mubr.bf16.mxu0 0
    %1256 = vmatmul.mubr.bf16.gmra.mrb[0].mxu0 %v348
    %v1257 = vpop.f32.mrb[0].mxu0
    %v1258 = vadd.f32 %v146, %v1257
    %v1259 = vpop.f32.mrb[0].mxu0
    %v1260 = vadd.f32 %v150, %v1259
    %v1261 = vpop.f32.mrb[0].mxu0
    %v1262 = vadd.f32 %v146, %v1261
    %v1263 = vpop.f32.mrb[0].mxu0
    %v1264 = vadd.f32 %v150, %v1263
    %1265 = vmatprep.mubr.bf16.mxu0 0
    %1266 = vmatmul.mubr.bf16.gmra.mrb[0].mxu0 %v351
    %v1267 = vpop.f32.mrb[0].mxu0
    %v1268 = vadd.f32 %v146, %v1267
    %v1269 = vpop.f32.mrb[0].mxu0
    %v1270 = vadd.f32 %v150, %v1269
    %v1271 = vpop.f32.mrb[0].mxu0
    %v1272 = vadd.f32 %v146, %v1271
    %v1273 = vpop.f32.mrb[0].mxu0
    %v1274 = vadd.f32 %v150, %v1273
    %1275 = vmatprep.mubr.bf16.mxu0 0
    %1276 = vmatmul.mubr.bf16.gmra.mrb[0].mxu0 %v354
    %v1277 = vpop.f32.mrb[0].mxu0
    %v1278 = vadd.f32 %v146, %v1277
    %v1279 = vpop.f32.mrb[0].mxu0
    %v1280 = vadd.f32 %v150, %v1279
    %v1281 = vpop.f32.mrb[0].mxu0
    %v1282 = vadd.f32 %v146, %v1281
    %v1283 = vpop.f32.mrb[0].mxu0
    %v1284 = vadd.f32 %v150, %v1283
    %1285 = vmatprep.mubr.bf16.mxu0 0
    %1286 = vmatmul.mubr.bf16.gmra.mrb[0].mxu0 %v357
    %v1287 = vpop.f32.mrb[0].mxu0
    %v1288 = vadd.f32 %v146, %v1287
    %v1289 = vpop.f32.mrb[0].mxu0
    %v1290 = vadd.f32 %v150, %v1289
    %v1291 = vpop.f32.mrb[0].mxu0
    %v1292 = vadd.f32 %v146, %v1291
    %v1293 = vpop.f32.mrb[0].mxu0
    %v1294 = vadd.f32 %v150, %v1293
    %1295 = vmatprep.mubr.bf16.mxu0 0
    %1296 = vmatmul.mubr.bf16.gmra.mrb[0].mxu0 %v360
    %v1297 = vpop.f32.mrb[0].mxu0
    %v1298 = vadd.f32 %v146, %v1297
    %v1299 = vpop.f32.mrb[0].mxu0
    %v1300 = vadd.f32 %v150, %v1299
    %v1301 = vpop.f32.mrb[0].mxu0
    %v1302 = vadd.f32 %v146, %v1301
    %v1303 = vpop.f32.mrb[0].mxu0
    %v1304 = vadd.f32 %v150, %v1303
    %1305 = vmatprep.mubr.bf16.mxu0 0
    %1306 = vmatmul.mubr.bf16.gmra.mrb[0].mxu0 %v363
    %v1307 = vpop.f32.mrb[0].mxu0
    %v1308 = vadd.f32 %v146, %v1307
    %v1309 = vpop.f32.mrb[0].mxu0
    %v1310 = vadd.f32 %v150, %v1309
    %v1311 = vpop.f32.mrb[0].mxu0
    %v1312 = vadd.f32 %v146, %v1311
    %v1313 = vpop.f32.mrb[0].mxu0
    %v1314 = vadd.f32 %v150, %v1313
    %1315 = vmatprep.mubr.bf16.mxu0 0
    %1316 = vmatmul.mubr.bf16.gmra.mrb[0].mxu0 %v366
    %v1317 = vpop.f32.mrb[0].mxu0
    %v1318 = vadd.f32 %v146, %v1317
    %v1319 = vpop.f32.mrb[0].mxu0
    %v1320 = vadd.f32 %v150, %v1319
    %v1321 = vpop.f32.mrb[0].mxu0
    %v1322 = vadd.f32 %v146, %v1321
    %v1323 = vpop.f32.mrb[0].mxu0
    %v1324 = vadd.f32 %v150, %v1323
    %1325 = vmatprep.mubr.bf16.mxu0 0
    %1326 = vmatmul.mubr.bf16.gmra.mrb[0].mxu0 %v369
    %v1327 = vpop.f32.mrb[0].mxu0
    %v1328 = vadd.f32 %v146, %v1327
    %v1329 = vpop.f32.mrb[0].mxu0
    %v1330 = vadd.f32 %v150, %v1329
    %v1331 = vpop.f32.mrb[0].mxu0
    %v1332 = vadd.f32 %v146, %v1331
    %v1333 = vpop.f32.mrb[0].mxu0
    %v1334 = vadd.f32 %v150, %v1333
    %1335 = vmatprep.mubr.bf16.mxu0 0
    %1336 = vmatmul.mubr.bf16.gmra.mrb[0].mxu0 %v372
    %v1337 = vpop.f32.mrb[0].mxu0
    %v1338 = vadd.f32 %v146, %v1337
    %v1339 = vpop.f32.mrb[0].mxu0
    %v1340 = vadd.f32 %v150, %v1339
    %v1341 = vpop.f32.mrb[0].mxu0
    %v1342 = vadd.f32 %v146, %v1341
    %v1343 = vpop.f32.mrb[0].mxu0
    %v1344 = vadd.f32 %v150, %v1343
    %1345 = vmatprep.mubr.bf16.mxu0 0
    %1346 = vmatmul.mubr.bf16.gmra.mrb[0].mxu0 %v375
    %v1347 = vpop.f32.mrb[0].mxu0
    %v1348 = vadd.f32 %v146, %v1347
    %v1349 = vpop.f32.mrb[0].mxu0
    %v1350 = vadd.f32 %v150, %v1349
    %v1351 = vpop.f32.mrb[0].mxu0
    %v1352 = vadd.f32 %v146, %v1351
    %v1353 = vpop.f32.mrb[0].mxu0
    %v1354 = vadd.f32 %v150, %v1353
    %1355 = vmatprep.mubr.bf16.mxu0 0
    %1356 = vmatmul.mubr.bf16.gmra.mrb[0].mxu0 %v378
    %v1357 = vpop.f32.mrb[0].mxu0
    %v1358 = vadd.f32 %v146, %v1357
    %v1359 = vpop.f32.mrb[0].mxu0
    %v1360 = vadd.f32 %v150, %v1359
    %v1361 = vpop.f32.mrb[0].mxu0
    %v1362 = vadd.f32 %v146, %v1361
    %v1363 = vpop.f32.mrb[0].mxu0
    %v1364 = vadd.f32 %v150, %v1363
    %1365 = vmatprep.mubr.bf16.mxu0 0
    %1366 = vmatmul.mubr.bf16.gmra.mrb[0].mxu0 %v381
    %v1367 = vpop.f32.mrb[0].mxu0
    %v1368 = vadd.f32 %v146, %v1367
    %v1369 = vpop.f32.mrb[0].mxu0
    %v1370 = vadd.f32 %v150, %v1369
    %v1371 = vpop.f32.mrb[0].mxu0
    %v1372 = vadd.f32 %v146, %v1371
    %v1373 = vpop.f32.mrb[0].mxu0
    %v1374 = vadd.f32 %v150, %v1373
    %1375 = vmatprep.mubr.bf16.mxu0 0
    %1376 = vmatmul.mubr.bf16.gmra.mrb[0].mxu0 %v384
    %v1377 = vpop.f32.mrb[0].mxu0
    %v1378 = vadd.f32 %v146, %v1377
    %v1379 = vpop.f32.mrb[0].mxu0
    %v1380 = vadd.f32 %v150, %v1379
    %v1381 = vpop.f32.mrb[0].mxu0
    %v1382 = vadd.f32 %v146, %v1381
    %v1383 = vpop.f32.mrb[0].mxu0
    %v1384 = vadd.f32 %v150, %v1383
    %1385 = vmatprep.mubr.bf16.mxu0 0
    %1386 = vmatmul.mubr.bf16.gmra.mrb[0].mxu0 %v387
    %v1387 = vpop.f32.mrb[0].mxu0
    %v1388 = vadd.f32 %v146, %v1387
    %v1389 = vpop.f32.mrb[0].mxu0
    %v1390 = vadd.f32 %v150, %v1389
    %v1391 = vpop.f32.mrb[0].mxu0
    %v1392 = vadd.f32 %v146, %v1391
    %v1393 = vpop.f32.mrb[0].mxu0
    %v1394 = vadd.f32 %v150, %v1393
    %1395 = vmatprep.mubr.bf16.mxu0 0
    %1396 = vmatmul.mubr.bf16.gmra.mrb[0].mxu0 %v390
    %v1397 = vpop.f32.mrb[0].mxu0
    %v1398 = vadd.f32 %v146, %v1397
    %v1399 = vpop.f32.mrb[0].mxu0
    %v1400 = vadd.f32 %v150, %v1399
    %v1401 = vpop.f32.mrb[0].mxu0
    %v1402 = vadd.f32 %v146, %v1401
    %v1403 = vpop.f32.mrb[0].mxu0
    %v1404 = vadd.f32 %v150, %v1403
    %1405 = vdwg.mxu0
    %1406 = vmatprep.subr.bf16.mxu0 %v427
    %1407 = vmatpush1.bf16.msra.mxu0 %v424
    %1408 = vmatprep.subr.bf16.mxu0 0
    %1409 = vmatpush1.bf16.msra.mxu0 0
    %1410 = vmatprep.subr.bf16.mxu0 0
    %1411 = vmatpush1.bf16.msra.mxu0 0
    %1412 = vmatprep.subr.bf16.mxu0 0
    %1413 = vmatpush1.bf16.msra.mxu0 0
    %1414 = vmatprep.subr.bf16.mxu0 0
    %1415 = vmatpush1.bf16.msra.mxu0 0
    %1416 = vmatprep.subr.bf16.mxu0 0
    %1417 = vmatpush1.bf16.msra.mxu0 0
    %1418 = vmatprep.subr.bf16.mxu0 0
    %1419 = vmatpush1.bf16.msra.mxu0 0
    %1420 = vmatprep.subr.bf16.mxu0 0
    %1421 = vmatpush1.bf16.msra.mxu0 0
    %1422 = vmatprep.subr.bf16.mxu0 0
    %1423 = vmatpush1.bf16.msra.mxu0 0
    %1424 = vmatprep.subr.bf16.mxu0 0
    %1425 = vmatpush1.bf16.msra.mxu0 0
    %1426 = vmatprep.subr.bf16.mxu0 0
    %1427 = vmatpush1.bf16.msra.mxu0 0
    %1428 = vmatprep.subr.bf16.mxu0 0
    %1429 = vmatpush1.bf16.msra.mxu0 0
    %1430 = vmatprep.subr.bf16.mxu0 0
    %1431 = vmatpush1.bf16.msra.mxu0 0
    %1432 = vmatprep.subr.bf16.mxu0 0
    %1433 = vmatpush1.bf16.msra.mxu0 0
    %1434 = vmatprep.subr.bf16.mxu0 0
    %1435 = vmatpush1.bf16.msra.mxu0 0
    %1436 = vmatprep.subr.bf16.mxu0 0
    %1437 = vmatpush1.bf16.msra.mxu0 0
    %1438 = vmatprep.mubr.bf16.mxu0 0
    %1439 = vmatmul.mubr.bf16.gmra.mrb[0].mxu0 %v345
    %v1440 = vpop.f32.mrb[0].mxu0
    %v1441 = vadd.f32 %v154, %v1440
    %v1442 = vpop.f32.mrb[0].mxu0
    %v1443 = vadd.f32 %v158, %v1442
    %v1444 = vpop.f32.mrb[0].mxu0
    %v1445 = vadd.f32 %v154, %v1444
    %v1446 = vpop.f32.mrb[0].mxu0
    %v1447 = vadd.f32 %v158, %v1446
    %1448 = vmatprep.mubr.bf16.mxu0 0
    %1449 = vmatmul.mubr.bf16.gmra.mrb[0].mxu0 %v348
    %v1450 = vpop.f32.mrb[0].mxu0
    %v1451 = vadd.f32 %v154, %v1450
    %v1452 = vpop.f32.mrb[0].mxu0
    %v1453 = vadd.f32 %v158, %v1452
    %v1454 = vpop.f32.mrb[0].mxu0
    %v1455 = vadd.f32 %v154, %v1454
    %v1456 = vpop.f32.mrb[0].mxu0
    %v1457 = vadd.f32 %v158, %v1456
    %1458 = vmatprep.mubr.bf16.mxu0 0
    %1459 = vmatmul.mubr.bf16.gmra.mrb[0].mxu0 %v351
    %v1460 = vpop.f32.mrb[0].mxu0
    %v1461 = vadd.f32 %v154, %v1460
    %v1462 = vpop.f32.mrb[0].mxu0
    %v1463 = vadd.f32 %v158, %v1462
    %v1464 = vpop.f32.mrb[0].mxu0
    %v1465 = vadd.f32 %v154, %v1464
    %v1466 = vpop.f32.mrb[0].mxu0
    %v1467 = vadd.f32 %v158, %v1466
    %1468 = vmatprep.mubr.bf16.mxu0 0
    %1469 = vmatmul.mubr.bf16.gmra.mrb[0].mxu0 %v354
    %v1470 = vpop.f32.mrb[0].mxu0
    %v1471 = vadd.f32 %v154, %v1470
    %v1472 = vpop.f32.mrb[0].mxu0
    %v1473 = vadd.f32 %v158, %v1472
    %v1474 = vpop.f32.mrb[0].mxu0
    %v1475 = vadd.f32 %v154, %v1474
    %v1476 = vpop.f32.mrb[0].mxu0
    %v1477 = vadd.f32 %v158, %v1476
    %1478 = vmatprep.mubr.bf16.mxu0 0
    %1479 = vmatmul.mubr.bf16.gmra.mrb[0].mxu0 %v357
    %v1480 = vpop.f32.mrb[0].mxu0
    %v1481 = vadd.f32 %v154, %v1480
    %v1482 = vpop.f32.mrb[0].mxu0
    %v1483 = vadd.f32 %v158, %v1482
    %v1484 = vpop.f32.mrb[0].mxu0
    %v1485 = vadd.f32 %v154, %v1484
    %v1486 = vpop.f32.mrb[0].mxu0
    %v1487 = vadd.f32 %v158, %v1486
    %1488 = vmatprep.mubr.bf16.mxu0 0
    %1489 = vmatmul.mubr.bf16.gmra.mrb[0].mxu0 %v360
    %v1490 = vpop.f32.mrb[0].mxu0
    %v1491 = vadd.f32 %v154, %v1490
    %v1492 = vpop.f32.mrb[0].mxu0
    %v1493 = vadd.f32 %v158, %v1492
    %v1494 = vpop.f32.mrb[0].mxu0
    %v1495 = vadd.f32 %v154, %v1494
    %v1496 = vpop.f32.mrb[0].mxu0
    %v1497 = vadd.f32 %v158, %v1496
    %1498 = vmatprep.mubr.bf16.mxu0 0
    %1499 = vmatmul.mubr.bf16.gmra.mrb[0].mxu0 %v363
    %v1500 = vpop.f32.mrb[0].mxu0
    %v1501 = vadd.f32 %v154, %v1500
    %v1502 = vpop.f32.mrb[0].mxu0
    %v1503 = vadd.f32 %v158, %v1502
    %v1504 = vpop.f32.mrb[0].mxu0
    %v1505 = vadd.f32 %v154, %v1504
    %v1506 = vpop.f32.mrb[0].mxu0
    %v1507 = vadd.f32 %v158, %v1506
    %1508 = vmatprep.mubr.bf16.mxu0 0
    %1509 = vmatmul.mubr.bf16.gmra.mrb[0].mxu0 %v366
    %v1510 = vpop.f32.mrb[0].mxu0
    %v1511 = vadd.f32 %v154, %v1510
    %v1512 = vpop.f32.mrb[0].mxu0
    %v1513 = vadd.f32 %v158, %v1512
    %v1514 = vpop.f32.mrb[0].mxu0
    %v1515 = vadd.f32 %v154, %v1514
    %v1516 = vpop.f32.mrb[0].mxu0
    %v1517 = vadd.f32 %v158, %v1516
    %1518 = vmatprep.mubr.bf16.mxu0 0
    %1519 = vmatmul.mubr.bf16.gmra.mrb[0].mxu0 %v369
    %v1520 = vpop.f32.mrb[0].mxu0
    %v1521 = vadd.f32 %v154, %v1520
    %v1522 = vpop.f32.mrb[0].mxu0
    %v1523 = vadd.f32 %v158, %v1522
    %v1524 = vpop.f32.mrb[0].mxu0
    %v1525 = vadd.f32 %v154, %v1524
    %v1526 = vpop.f32.mrb[0].mxu0
    %v1527 = vadd.f32 %v158, %v1526
    %1528 = vmatprep.mubr.bf16.mxu0 0
    %1529 = vmatmul.mubr.bf16.gmra.mrb[0].mxu0 %v372
    %v1530 = vpop.f32.mrb[0].mxu0
    %v1531 = vadd.f32 %v154, %v1530
    %v1532 = vpop.f32.mrb[0].mxu0
    %v1533 = vadd.f32 %v158, %v1532
    %v1534 = vpop.f32.mrb[0].mxu0
    %v1535 = vadd.f32 %v154, %v1534
    %v1536 = vpop.f32.mrb[0].mxu0
    %v1537 = vadd.f32 %v158, %v1536
    %1538 = vmatprep.mubr.bf16.mxu0 0
    %1539 = vmatmul.mubr.bf16.gmra.mrb[0].mxu0 %v375
    %v1540 = vpop.f32.mrb[0].mxu0
    %v1541 = vadd.f32 %v154, %v1540
    %v1542 = vpop.f32.mrb[0].mxu0
    %v1543 = vadd.f32 %v158, %v1542
    %v1544 = vpop.f32.mrb[0].mxu0
    %v1545 = vadd.f32 %v154, %v1544
    %v1546 = vpop.f32.mrb[0].mxu0
    %v1547 = vadd.f32 %v158, %v1546
    %1548 = vmatprep.mubr.bf16.mxu0 0
    %1549 = vmatmul.mubr.bf16.gmra.mrb[0].mxu0 %v378
    %v1550 = vpop.f32.mrb[0].mxu0
    %v1551 = vadd.f32 %v154, %v1550
    %v1552 = vpop.f32.mrb[0].mxu0
    %v1553 = vadd.f32 %v158, %v1552
    %v1554 = vpop.f32.mrb[0].mxu0
    %v1555 = vadd.f32 %v154, %v1554
    %v1556 = vpop.f32.mrb[0].mxu0
    %v1557 = vadd.f32 %v158, %v1556
    %1558 = vmatprep.mubr.bf16.mxu0 0
    %1559 = vmatmul.mubr.bf16.gmra.mrb[0].mxu0 %v381
    %v1560 = vpop.f32.mrb[0].mxu0
    %v1561 = vadd.f32 %v154, %v1560
    %v1562 = vpop.f32.mrb[0].mxu0
    %v1563 = vadd.f32 %v158, %v1562
    %v1564 = vpop.f32.mrb[0].mxu0
    %v1565 = vadd.f32 %v154, %v1564
    %v1566 = vpop.f32.mrb[0].mxu0
    %v1567 = vadd.f32 %v158, %v1566
    %1568 = vmatprep.mubr.bf16.mxu0 0
    %1569 = vmatmul.mubr.bf16.gmra.mrb[0].mxu0 %v384
    %v1570 = vpop.f32.mrb[0].mxu0
    %v1571 = vadd.f32 %v154, %v1570
    %v1572 = vpop.f32.mrb[0].mxu0
    %v1573 = vadd.f32 %v158, %v1572
    %v1574 = vpop.f32.mrb[0].mxu0
    %v1575 = vadd.f32 %v154, %v1574
    %v1576 = vpop.f32.mrb[0].mxu0
    %v1577 = vadd.f32 %v158, %v1576
    %1578 = vmatprep.mubr.bf16.mxu0 0
    %1579 = vmatmul.mubr.bf16.gmra.mrb[0].mxu0 %v387
    %v1580 = vpop.f32.mrb[0].mxu0
    %v1581 = vadd.f32 %v154, %v1580
    %v1582 = vpop.f32.mrb[0].mxu0
    %v1583 = vadd.f32 %v158, %v1582
    %v1584 = vpop.f32.mrb[0].mxu0
    %v1585 = vadd.f32 %v154, %v1584
    %v1586 = vpop.f32.mrb[0].mxu0
    %v1587 = vadd.f32 %v158, %v1586
    %1588 = vmatprep.mubr.bf16.mxu0 0
    %1589 = vmatmul.mubr.bf16.gmra.mrb[0].mxu0 %v390
    %v1590 = vpop.f32.mrb[0].mxu0
    %v1591 = vadd.f32 %v154, %v1590
    %v1592 = vpop.f32.mrb[0].mxu0
    %v1593 = vadd.f32 %v158, %v1592
    %v1594 = vpop.f32.mrb[0].mxu0
    %v1595 = vadd.f32 %v154, %v1594
    %v1596 = vpop.f32.mrb[0].mxu0
    %v1597 = vadd.f32 %v158, %v1596
    %1598 = vdwg.mxu0
    %1599 = vmatprep.subr.bf16.mxu0 %v433
    %1600 = vmatpush1.bf16.msra.mxu0 %v430
    %1601 = vmatprep.subr.bf16.mxu0 0
    %1602 = vmatpush1.bf16.msra.mxu0 0
    %1603 = vmatprep.subr.bf16.mxu0 0
    %1604 = vmatpush1.bf16.msra.mxu0 0
    %1605 = vmatprep.subr.bf16.mxu0 0
    %1606 = vmatpush1.bf16.msra.mxu0 0
    %1607 = vmatprep.subr.bf16.mxu0 0
    %1608 = vmatpush1.bf16.msra.mxu0 0
    %1609 = vmatprep.subr.bf16.mxu0 0
    %1610 = vmatpush1.bf16.msra.mxu0 0
    %1611 = vmatprep.subr.bf16.mxu0 0
    %1612 = vmatpush1.bf16.msra.mxu0 0
    %1613 = vmatprep.subr.bf16.mxu0 0
    %1614 = vmatpush1.bf16.msra.mxu0 0
    %1615 = vmatprep.subr.bf16.mxu0 0
    %1616 = vmatpush1.bf16.msra.mxu0 0
    %1617 = vmatprep.subr.bf16.mxu0 0
    %1618 = vmatpush1.bf16.msra.mxu0 0
    %1619 = vmatprep.subr.bf16.mxu0 0
    %1620 = vmatpush1.bf16.msra.mxu0 0
    %1621 = vmatprep.subr.bf16.mxu0 0
    %1622 = vmatpush1.bf16.msra.mxu0 0
    %1623 = vmatprep.subr.bf16.mxu0 0
    %1624 = vmatpush1.bf16.msra.mxu0 0
    %1625 = vmatprep.subr.bf16.mxu0 0
    %1626 = vmatpush1.bf16.msra.mxu0 0
    %1627 = vmatprep.subr.bf16.mxu0 0
    %1628 = vmatpush1.bf16.msra.mxu0 0
    %1629 = vmatprep.subr.bf16.mxu0 0
    %1630 = vmatpush1.bf16.msra.mxu0 0
    %1631 = vmatprep.mubr.bf16.mxu0 0
    %1632 = vmatmul.mubr.bf16.gmra.mrb[0].mxu0 %v345
    %v1633 = vpop.f32.mrb[0].mxu0
    %v1634 = vadd.f32 %v162, %v1633
    %v1635 = vpop.f32.mrb[0].mxu0
    %v1636 = vadd.f32 %v166, %v1635
    %v1637 = vpop.f32.mrb[0].mxu0
    %v1638 = vadd.f32 %v162, %v1637
    %v1639 = vpop.f32.mrb[0].mxu0
    %v1640 = vadd.f32 %v166, %v1639
    %1641 = vmatprep.mubr.bf16.mxu0 0
    %1642 = vmatmul.mubr.bf16.gmra.mrb[0].mxu0 %v348
    %v1643 = vpop.f32.mrb[0].mxu0
    %v1644 = vadd.f32 %v162, %v1643
    %v1645 = vpop.f32.mrb[0].mxu0
    %v1646 = vadd.f32 %v166, %v1645
    %v1647 = vpop.f32.mrb[0].mxu0
    %v1648 = vadd.f32 %v162, %v1647
    %v1649 = vpop.f32.mrb[0].mxu0
    %v1650 = vadd.f32 %v166, %v1649
    %1651 = vmatprep.mubr.bf16.mxu0 0
    %1652 = vmatmul.mubr.bf16.gmra.mrb[0].mxu0 %v351
    %v1653 = vpop.f32.mrb[0].mxu0
    %v1654 = vadd.f32 %v162, %v1653
    %v1655 = vpop.f32.mrb[0].mxu0
    %v1656 = vadd.f32 %v166, %v1655
    %v1657 = vpop.f32.mrb[0].mxu0
    %v1658 = vadd.f32 %v162, %v1657
    %v1659 = vpop.f32.mrb[0].mxu0
    %v1660 = vadd.f32 %v166, %v1659
    %1661 = vmatprep.mubr.bf16.mxu0 0
    %1662 = vmatmul.mubr.bf16.gmra.mrb[0].mxu0 %v354
    %v1663 = vpop.f32.mrb[0].mxu0
    %v1664 = vadd.f32 %v162, %v1663
    %v1665 = vpop.f32.mrb[0].mxu0
    %v1666 = vadd.f32 %v166, %v1665
    %v1667 = vpop.f32.mrb[0].mxu0
    %v1668 = vadd.f32 %v162, %v1667
    %v1669 = vpop.f32.mrb[0].mxu0
    %v1670 = vadd.f32 %v166, %v1669
    %1671 = vmatprep.mubr.bf16.mxu0 0
    %1672 = vmatmul.mubr.bf16.gmra.mrb[0].mxu0 %v357
    %v1673 = vpop.f32.mrb[0].mxu0
    %v1674 = vadd.f32 %v162, %v1673
    %v1675 = vpop.f32.mrb[0].mxu0
    %v1676 = vadd.f32 %v166, %v1675
    %v1677 = vpop.f32.mrb[0].mxu0
    %v1678 = vadd.f32 %v162, %v1677
    %v1679 = vpop.f32.mrb[0].mxu0
    %v1680 = vadd.f32 %v166, %v1679
    %1681 = vmatprep.mubr.bf16.mxu0 0
    %1682 = vmatmul.mubr.bf16.gmra.mrb[0].mxu0 %v360
    %v1683 = vpop.f32.mrb[0].mxu0
    %v1684 = vadd.f32 %v162, %v1683
    %v1685 = vpop.f32.mrb[0].mxu0
    %v1686 = vadd.f32 %v166, %v1685
    %v1687 = vpop.f32.mrb[0].mxu0
    %v1688 = vadd.f32 %v162, %v1687
    %v1689 = vpop.f32.mrb[0].mxu0
    %v1690 = vadd.f32 %v166, %v1689
    %1691 = vmatprep.mubr.bf16.mxu0 0
    %1692 = vmatmul.mubr.bf16.gmra.mrb[0].mxu0 %v363
    %v1693 = vpop.f32.mrb[0].mxu0
    %v1694 = vadd.f32 %v162, %v1693
    %v1695 = vpop.f32.mrb[0].mxu0
    %v1696 = vadd.f32 %v166, %v1695
    %v1697 = vpop.f32.mrb[0].mxu0
    %v1698 = vadd.f32 %v162, %v1697
    %v1699 = vpop.f32.mrb[0].mxu0
    %v1700 = vadd.f32 %v166, %v1699
    %1701 = vmatprep.mubr.bf16.mxu0 0
    %1702 = vmatmul.mubr.bf16.gmra.mrb[0].mxu0 %v366
    %v1703 = vpop.f32.mrb[0].mxu0
    %v1704 = vadd.f32 %v162, %v1703
    %v1705 = vpop.f32.mrb[0].mxu0
    %v1706 = vadd.f32 %v166, %v1705
    %v1707 = vpop.f32.mrb[0].mxu0
    %v1708 = vadd.f32 %v162, %v1707
    %v1709 = vpop.f32.mrb[0].mxu0
    %v1710 = vadd.f32 %v166, %v1709
    %1711 = vmatprep.mubr.bf16.mxu0 0
    %1712 = vmatmul.mubr.bf16.gmra.mrb[0].mxu0 %v369
    %v1713 = vpop.f32.mrb[0].mxu0
    %v1714 = vadd.f32 %v162, %v1713
    %v1715 = vpop.f32.mrb[0].mxu0
    %v1716 = vadd.f32 %v166, %v1715
    %v1717 = vpop.f32.mrb[0].mxu0
    %v1718 = vadd.f32 %v162, %v1717
    %v1719 = vpop.f32.mrb[0].mxu0
    %v1720 = vadd.f32 %v166, %v1719
    %1721 = vmatprep.mubr.bf16.mxu0 0
    %1722 = vmatmul.mubr.bf16.gmra.mrb[0].mxu0 %v372
    %v1723 = vpop.f32.mrb[0].mxu0
    %v1724 = vadd.f32 %v162, %v1723
    %v1725 = vpop.f32.mrb[0].mxu0
    %v1726 = vadd.f32 %v166, %v1725
    %v1727 = vpop.f32.mrb[0].mxu0
    %v1728 = vadd.f32 %v162, %v1727
    %v1729 = vpop.f32.mrb[0].mxu0
    %v1730 = vadd.f32 %v166, %v1729
    %1731 = vmatprep.mubr.bf16.mxu0 0
    %1732 = vmatmul.mubr.bf16.gmra.mrb[0].mxu0 %v375
    %v1733 = vpop.f32.mrb[0].mxu0
    %v1734 = vadd.f32 %v162, %v1733
    %v1735 = vpop.f32.mrb[0].mxu0
    %v1736 = vadd.f32 %v166, %v1735
    %v1737 = vpop.f32.mrb[0].mxu0
    %v1738 = vadd.f32 %v162, %v1737
    %v1739 = vpop.f32.mrb[0].mxu0
    %v1740 = vadd.f32 %v166, %v1739
    %1741 = vmatprep.mubr.bf16.mxu0 0
    %1742 = vmatmul.mubr.bf16.gmra.mrb[0].mxu0 %v378
    %v1743 = vpop.f32.mrb[0].mxu0
    %v1744 = vadd.f32 %v162, %v1743
    %v1745 = vpop.f32.mrb[0].mxu0
    %v1746 = vadd.f32 %v166, %v1745
    %v1747 = vpop.f32.mrb[0].mxu0
    %v1748 = vadd.f32 %v162, %v1747
    %v1749 = vpop.f32.mrb[0].mxu0
    %v1750 = vadd.f32 %v166, %v1749
    %1751 = vmatprep.mubr.bf16.mxu0 0
    %1752 = vmatmul.mubr.bf16.gmra.mrb[0].mxu0 %v381
    %v1753 = vpop.f32.mrb[0].mxu0
    %v1754 = vadd.f32 %v162, %v1753
    %v1755 = vpop.f32.mrb[0].mxu0
    %v1756 = vadd.f32 %v166, %v1755
    %v1757 = vpop.f32.mrb[0].mxu0
    %v1758 = vadd.f32 %v162, %v1757
    %v1759 = vpop.f32.mrb[0].mxu0
    %v1760 = vadd.f32 %v166, %v1759
    %1761 = vmatprep.mubr.bf16.mxu0 0
    %1762 = vmatmul.mubr.bf16.gmra.mrb[0].mxu0 %v384
    %v1763 = vpop.f32.mrb[0].mxu0
    %v1764 = vadd.f32 %v162, %v1763
    %v1765 = vpop.f32.mrb[0].mxu0
    %v1766 = vadd.f32 %v166, %v1765
    %v1767 = vpop.f32.mrb[0].mxu0
    %v1768 = vadd.f32 %v162, %v1767
    %v1769 = vpop.f32.mrb[0].mxu0
    %v1770 = vadd.f32 %v166, %v1769
    %1771 = vmatprep.mubr.bf16.mxu0 0
    %1772 = vmatmul.mubr.bf16.gmra.mrb[0].mxu0 %v387
    %v1773 = vpop.f32.mrb[0].mxu0
    %v1774 = vadd.f32 %v162, %v1773
    %v1775 = vpop.f32.mrb[0].mxu0
    %v1776 = vadd.f32 %v166, %v1775
    %v1777 = vpop.f32.mrb[0].mxu0
    %v1778 = vadd.f32 %v162, %v1777
    %v1779 = vpop.f32.mrb[0].mxu0
    %v1780 = vadd.f32 %v166, %v1779
    %1781 = vmatprep.mubr.bf16.mxu0 0
    %1782 = vmatmul.mubr.bf16.gmra.mrb[0].mxu0 %v390
    %v1783 = vpop.f32.mrb[0].mxu0
    %v1784 = vadd.f32 %v162, %v1783
    %v1785 = vpop.f32.mrb[0].mxu0
    %v1786 = vadd.f32 %v166, %v1785
    %v1787 = vpop.f32.mrb[0].mxu0
    %v1788 = vadd.f32 %v162, %v1787
    %v1789 = vpop.f32.mrb[0].mxu0
    %v1790 = vadd.f32 %v166, %v1789
    %1791 = vdwg.mxu0
    %1792 = vmatprep.subr.bf16.mxu0 %v439
    %1793 = vmatpush1.bf16.msra.mxu0 %v436
    %1794 = vmatprep.subr.bf16.mxu0 0
    %1795 = vmatpush1.bf16.msra.mxu0 0
    %1796 = vmatprep.subr.bf16.mxu0 0
    %1797 = vmatpush1.bf16.msra.mxu0 0
    %1798 = vmatprep.subr.bf16.mxu0 0
    %1799 = vmatpush1.bf16.msra.mxu0 0
    %1800 = vmatprep.subr.bf16.mxu0 0
    %1801 = vmatpush1.bf16.msra.mxu0 0
    %1802 = vmatprep.subr.bf16.mxu0 0
    %1803 = vmatpush1.bf16.msra.mxu0 0
    %1804 = vmatprep.subr.bf16.mxu0 0
    %1805 = vmatpush1.bf16.msra.mxu0 0
    %1806 = vmatprep.subr.bf16.mxu0 0
    %1807 = vmatpush1.bf16.msra.mxu0 0
    %1808 = vmatprep.subr.bf16.mxu0 0
    %1809 = vmatpush1.bf16.msra.mxu0 0
    %1810 = vmatprep.subr.bf16.mxu0 0
    %1811 = vmatpush1.bf16.msra.mxu0 0
    %1812 = vmatprep.subr.bf16.mxu0 0
    %1813 = vmatpush1.bf16.msra.mxu0 0
    %1814 = vmatprep.subr.bf16.mxu0 0
    %1815 = vmatpush1.bf16.msra.mxu0 0
    %1816 = vmatprep.subr.bf16.mxu0 0
    %1817 = vmatpush1.bf16.msra.mxu0 0
    %1818 = vmatprep.subr.bf16.mxu0 0
    %1819 = vmatpush1.bf16.msra.mxu0 0
    %1820 = vmatprep.subr.bf16.mxu0 0
    %1821 = vmatpush1.bf16.msra.mxu0 0
    %1822 = vmatprep.subr.bf16.mxu0 0
    %1823 = vmatpush1.bf16.msra.mxu0 0
    %1824 = vmatprep.mubr.bf16.mxu0 0
    %1825 = vmatmul.mubr.bf16.gmra.mrb[0].mxu0 %v345
    %v1826 = vpop.f32.mrb[0].mxu0
    %v1827 = vadd.f32 %v170, %v1826
    %v1828 = vpop.f32.mrb[0].mxu0
    %v1829 = vadd.f32 %v174, %v1828
    %v1830 = vpop.f32.mrb[0].mxu0
    %v1831 = vadd.f32 %v170, %v1830
    %v1832 = vpop.f32.mrb[0].mxu0
    %v1833 = vadd.f32 %v174, %v1832
    %1834 = vmatprep.mubr.bf16.mxu0 0
    %1835 = vmatmul.mubr.bf16.gmra.mrb[0].mxu0 %v348
    %v1836 = vpop.f32.mrb[0].mxu0
    %v1837 = vadd.f32 %v170, %v1836
    %v1838 = vpop.f32.mrb[0].mxu0
    %v1839 = vadd.f32 %v174, %v1838
    %v1840 = vpop.f32.mrb[0].mxu0
    %v1841 = vadd.f32 %v170, %v1840
    %v1842 = vpop.f32.mrb[0].mxu0
    %v1843 = vadd.f32 %v174, %v1842
    %1844 = vmatprep.mubr.bf16.mxu0 0
    %1845 = vmatmul.mubr.bf16.gmra.mrb[0].mxu0 %v351
    %v1846 = vpop.f32.mrb[0].mxu0
    %v1847 = vadd.f32 %v170, %v1846
    %v1848 = vpop.f32.mrb[0].mxu0
    %v1849 = vadd.f32 %v174, %v1848
    %v1850 = vpop.f32.mrb[0].mxu0
    %v1851 = vadd.f32 %v170, %v1850
    %v1852 = vpop.f32.mrb[0].mxu0
    %v1853 = vadd.f32 %v174, %v1852
    %1854 = vmatprep.mubr.bf16.mxu0 0
    %1855 = vmatmul.mubr.bf16.gmra.mrb[0].mxu0 %v354
    %v1856 = vpop.f32.mrb[0].mxu0
    %v1857 = vadd.f32 %v170, %v1856
    %v1858 = vpop.f32.mrb[0].mxu0
    %v1859 = vadd.f32 %v174, %v1858
    %v1860 = vpop.f32.mrb[0].mxu0
    %v1861 = vadd.f32 %v170, %v1860
    %v1862 = vpop.f32.mrb[0].mxu0
    %v1863 = vadd.f32 %v174, %v1862
    %1864 = vmatprep.mubr.bf16.mxu0 0
    %1865 = vmatmul.mubr.bf16.gmra.mrb[0].mxu0 %v357
    %v1866 = vpop.f32.mrb[0].mxu0
    %v1867 = vadd.f32 %v170, %v1866
    %v1868 = vpop.f32.mrb[0].mxu0
    %v1869 = vadd.f32 %v174, %v1868
    %v1870 = vpop.f32.mrb[0].mxu0
    %v1871 = vadd.f32 %v170, %v1870
    %v1872 = vpop.f32.mrb[0].mxu0
    %v1873 = vadd.f32 %v174, %v1872
    %1874 = vmatprep.mubr.bf16.mxu0 0
    %1875 = vmatmul.mubr.bf16.gmra.mrb[0].mxu0 %v360
    %v1876 = vpop.f32.mrb[0].mxu0
    %v1877 = vadd.f32 %v170, %v1876
    %v1878 = vpop.f32.mrb[0].mxu0
    %v1879 = vadd.f32 %v174, %v1878
    %v1880 = vpop.f32.mrb[0].mxu0
    %v1881 = vadd.f32 %v170, %v1880
    %v1882 = vpop.f32.mrb[0].mxu0
    %v1883 = vadd.f32 %v174, %v1882
    %1884 = vmatprep.mubr.bf16.mxu0 0
    %1885 = vmatmul.mubr.bf16.gmra.mrb[0].mxu0 %v363
    %v1886 = vpop.f32.mrb[0].mxu0
    %v1887 = vadd.f32 %v170, %v1886
    %v1888 = vpop.f32.mrb[0].mxu0
    %v1889 = vadd.f32 %v174, %v1888
    %v1890 = vpop.f32.mrb[0].mxu0
    %v1891 = vadd.f32 %v170, %v1890
    %v1892 = vpop.f32.mrb[0].mxu0
    %v1893 = vadd.f32 %v174, %v1892
    %1894 = vmatprep.mubr.bf16.mxu0 0
    %1895 = vmatmul.mubr.bf16.gmra.mrb[0].mxu0 %v366
    %v1896 = vpop.f32.mrb[0].mxu0
    %v1897 = vadd.f32 %v170, %v1896
    %v1898 = vpop.f32.mrb[0].mxu0
    %v1899 = vadd.f32 %v174, %v1898
    %v1900 = vpop.f32.mrb[0].mxu0
    %v1901 = vadd.f32 %v170, %v1900
    %v1902 = vpop.f32.mrb[0].mxu0
    %v1903 = vadd.f32 %v174, %v1902
    %1904 = vmatprep.mubr.bf16.mxu0 0
    %1905 = vmatmul.mubr.bf16.gmra.mrb[0].mxu0 %v369
    %v1906 = vpop.f32.mrb[0].mxu0
    %v1907 = vadd.f32 %v170, %v1906
    %v1908 = vpop.f32.mrb[0].mxu0
    %v1909 = vadd.f32 %v174, %v1908
    %v1910 = vpop.f32.mrb[0].mxu0
    %v1911 = vadd.f32 %v170, %v1910
    %v1912 = vpop.f32.mrb[0].mxu0
    %v1913 = vadd.f32 %v174, %v1912
    %1914 = vmatprep.mubr.bf16.mxu0 0
    %1915 = vmatmul.mubr.bf16.gmra.mrb[0].mxu0 %v372
    %v1916 = vpop.f32.mrb[0].mxu0
    %v1917 = vadd.f32 %v170, %v1916
    %v1918 = vpop.f32.mrb[0].mxu0
    %v1919 = vadd.f32 %v174, %v1918
    %v1920 = vpop.f32.mrb[0].mxu0
    %v1921 = vadd.f32 %v170, %v1920
    %v1922 = vpop.f32.mrb[0].mxu0
    %v1923 = vadd.f32 %v174, %v1922
    %1924 = vmatprep.mubr.bf16.mxu0 0
    %1925 = vmatmul.mubr.bf16.gmra.mrb[0].mxu0 %v375
    %v1926 = vpop.f32.mrb[0].mxu0
    %v1927 = vadd.f32 %v170, %v1926
    %v1928 = vpop.f32.mrb[0].mxu0
    %v1929 = vadd.f32 %v174, %v1928
    %v1930 = vpop.f32.mrb[0].mxu0
    %v1931 = vadd.f32 %v170, %v1930
    %v1932 = vpop.f32.mrb[0].mxu0
    %v1933 = vadd.f32 %v174, %v1932
    %1934 = vmatprep.mubr.bf16.mxu0 0
    %1935 = vmatmul.mubr.bf16.gmra.mrb[0].mxu0 %v378
    %v1936 = vpop.f32.mrb[0].mxu0
    %v1937 = vadd.f32 %v170, %v1936
    %v1938 = vpop.f32.mrb[0].mxu0
    %v1939 = vadd.f32 %v174, %v1938
    %v1940 = vpop.f32.mrb[0].mxu0
    %v1941 = vadd.f32 %v170, %v1940
    %v1942 = vpop.f32.mrb[0].mxu0
    %v1943 = vadd.f32 %v174, %v1942
    %1944 = vmatprep.mubr.bf16.mxu0 0
    %1945 = vmatmul.mubr.bf16.gmra.mrb[0].mxu0 %v381
    %v1946 = vpop.f32.mrb[0].mxu0
    %v1947 = vadd.f32 %v170, %v1946
    %v1948 = vpop.f32.mrb[0].mxu0
    %v1949 = vadd.f32 %v174, %v1948
    %v1950 = vpop.f32.mrb[0].mxu0
    %v1951 = vadd.f32 %v170, %v1950
    %v1952 = vpop.f32.mrb[0].mxu0
    %v1953 = vadd.f32 %v174, %v1952
    %1954 = vmatprep.mubr.bf16.mxu0 0
    %1955 = vmatmul.mubr.bf16.gmra.mrb[0].mxu0 %v384
    %v1956 = vpop.f32.mrb[0].mxu0
    %v1957 = vadd.f32 %v170, %v1956
    %v1958 = vpop.f32.mrb[0].mxu0
    %v1959 = vadd.f32 %v174, %v1958
    %v1960 = vpop.f32.mrb[0].mxu0
    %v1961 = vadd.f32 %v170, %v1960
    %v1962 = vpop.f32.mrb[0].mxu0
    %v1963 = vadd.f32 %v174, %v1962
    %1964 = vmatprep.mubr.bf16.mxu0 0
    %1965 = vmatmul.mubr.bf16.gmra.mrb[0].mxu0 %v387
    %v1966 = vpop.f32.mrb[0].mxu0
    %v1967 = vadd.f32 %v170, %v1966
    %v1968 = vpop.f32.mrb[0].mxu0
    %v1969 = vadd.f32 %v174, %v1968
    %v1970 = vpop.f32.mrb[0].mxu0
    %v1971 = vadd.f32 %v170, %v1970
    %v1972 = vpop.f32.mrb[0].mxu0
    %v1973 = vadd.f32 %v174, %v1972
    %1974 = vmatprep.mubr.bf16.mxu0 0
    %1975 = vmatmul.mubr.bf16.gmra.mrb[0].mxu0 %v390
    %v1976 = vpop.f32.mrb[0].mxu0
    %v1977 = vadd.f32 %v170, %v1976
    %v1978 = vpop.f32.mrb[0].mxu0
    %v1979 = vadd.f32 %v174, %v1978
    %v1980 = vpop.f32.mrb[0].mxu0
    %v1981 = vadd.f32 %v170, %v1980
    %v1982 = vpop.f32.mrb[0].mxu0
    %v1983 = vadd.f32 %v174, %v1982
    %1984 = vdwg.mxu0
    %v1985 = vmax.f32 %v476, 0.0
    %v1986 = vmax.f32 %v478, 0.0
    %v1987 = vmax.f32 %v669, 0.0
    %v1988 = vmax.f32 %v671, 0.0
    %v1989 = vmax.f32 %v862, 0.0
    %v1990 = vmax.f32 %v864, 0.0
    %v1991 = vmax.f32 %v1055, 0.0
    %v1992 = vmax.f32 %v1057, 0.0
    %v1993 = vmax.f32 %v1248, 0.0
    %v1994 = vmax.f32 %v1250, 0.0
    %v1995 = vmax.f32 %v1441, 0.0
    %v1996 = vmax.f32 %v1443, 0.0
    %v1997 = vmax.f32 %v1634, 0.0
    %v1998 = vmax.f32 %v1636, 0.0
    %v1999 = vmax.f32 %v1827, 0.0
    %v2000 = vmax.f32 %v1829, 0.0
    %v2001 = vmax.f32 %v480, 0.0
    %v2002 = vmax.f32 %v482, 0.0
    %v2003 = vmax.f32 %v673, 0.0
    %v2004 = vmax.f32 %v675, 0.0
    %v2005 = vmax.f32 %v866, 0.0
    %v2006 = vmax.f32 %v868, 0.0
    %v2007 = vmax.f32 %v1059, 0.0
    %v2008 = vmax.f32 %v1061, 0.0
    %v2009 = vmax.f32 %v1252, 0.0
    %v2010 = vmax.f32 %v1254, 0.0
    %v2011 = vmax.f32 %v1445, 0.0
    %v2012 = vmax.f32 %v1447, 0.0
    %v2013 = vmax.f32 %v1638, 0.0
    %v2014 = vmax.f32 %v1640, 0.0
    %v2015 = vmax.f32 %v1831, 0.0
    %v2016 = vmax.f32 %v1833, 0.0
    %v2017 = vmax.f32 %v486, 0.0
    %v2018 = vmax.f32 %v488, 0.0
    %v2019 = vmax.f32 %v679, 0.0
    %v2020 = vmax.f32 %v681, 0.0
    %v2021 = vmax.f32 %v872, 0.0
    %v2022 = vmax.f32 %v874, 0.0
    %v2023 = vmax.f32 %v1065, 0.0
    %v2024 = vmax.f32 %v1067, 0.0
    %v2025 = vmax.f32 %v1258, 0.0
    %v2026 = vmax.f32 %v1260, 0.0
    %v2027 = vmax.f32 %v1451, 0.0
    %v2028 = vmax.f32 %v1453, 0.0
    %v2029 = vmax.f32 %v1644, 0.0
    %v2030 = vmax.f32 %v1646, 0.0
    %v2031 = vmax.f32 %v1837, 0.0
    %v2032 = vmax.f32 %v1839, 0.0
    %v2033 = vmax.f32 %v490, 0.0
    %v2034 = vmax.f32 %v492, 0.0
    %v2035 = vmax.f32 %v683, 0.0
    %v2036 = vmax.f32 %v685, 0.0
    %v2037 = vmax.f32 %v876, 0.0
    %v2038 = vmax.f32 %v878, 0.0
    %v2039 = vmax.f32 %v1069, 0.0
    %v2040 = vmax.f32 %v1071, 0.0
    %v2041 = vmax.f32 %v1262, 0.0
    %v2042 = vmax.f32 %v1264, 0.0
    %v2043 = vmax.f32 %v1455, 0.0
    %v2044 = vmax.f32 %v1457, 0.0
    %v2045 = vmax.f32 %v1648, 0.0
    %v2046 = vmax.f32 %v1650, 0.0
    %v2047 = vmax.f32 %v1841, 0.0
    %v2048 = vmax.f32 %v1843, 0.0
    %v2049 = vmax.f32 %v496, 0.0
    %v2050 = vmax.f32 %v498, 0.0
    %v2051 = vmax.f32 %v689, 0.0
    %v2052 = vmax.f32 %v691, 0.0
    %v2053 = vmax.f32 %v882, 0.0
    %v2054 = vmax.f32 %v884, 0.0
    %v2055 = vmax.f32 %v1075, 0.0
    %v2056 = vmax.f32 %v1077, 0.0
    %v2057 = vmax.f32 %v1268, 0.0
    %v2058 = vmax.f32 %v1270, 0.0
    %v2059 = vmax.f32 %v1461, 0.0
    %v2060 = vmax.f32 %v1463, 0.0
    %v2061 = vmax.f32 %v1654, 0.0
    %v2062 = vmax.f32 %v1656, 0.0
    %v2063 = vmax.f32 %v1847, 0.0
    %v2064 = vmax.f32 %v1849, 0.0
    %v2065 = vmax.f32 %v500, 0.0
    %v2066 = vmax.f32 %v502, 0.0
    %v2067 = vmax.f32 %v693, 0.0
    %v2068 = vmax.f32 %v695, 0.0
    %v2069 = vmax.f32 %v886, 0.0
    %v2070 = vmax.f32 %v888, 0.0
    %v2071 = vmax.f32 %v1079, 0.0
    %v2072 = vmax.f32 %v1081, 0.0
    %v2073 = vmax.f32 %v1272, 0.0
    %v2074 = vmax.f32 %v1274, 0.0
    %v2075 = vmax.f32 %v1465, 0.0
    %v2076 = vmax.f32 %v1467, 0.0
    %v2077 = vmax.f32 %v1658, 0.0
    %v2078 = vmax.f32 %v1660, 0.0
    %v2079 = vmax.f32 %v1851, 0.0
    %v2080 = vmax.f32 %v1853, 0.0
    %v2081 = vmax.f32 %v506, 0.0
    %v2082 = vmax.f32 %v508, 0.0
    %v2083 = vmax.f32 %v699, 0.0
    %v2084 = vmax.f32 %v701, 0.0
    %v2085 = vmax.f32 %v892, 0.0
    %v2086 = vmax.f32 %v894, 0.0
    %v2087 = vmax.f32 %v1085, 0.0
    %v2088 = vmax.f32 %v1087, 0.0
    %v2089 = vmax.f32 %v1278, 0.0
    %v2090 = vmax.f32 %v1280, 0.0
    %v2091 = vmax.f32 %v1471, 0.0
    %v2092 = vmax.f32 %v1473, 0.0
    %v2093 = vmax.f32 %v1664, 0.0
    %v2094 = vmax.f32 %v1666, 0.0
    %v2095 = vmax.f32 %v1857, 0.0
    %v2096 = vmax.f32 %v1859, 0.0
    %v2097 = vmax.f32 %v510, 0.0
    %v2098 = vmax.f32 %v512, 0.0
    %v2099 = vmax.f32 %v703, 0.0
    %v2100 = vmax.f32 %v705, 0.0
    %v2101 = vmax.f32 %v896, 0.0
    %v2102 = vmax.f32 %v898, 0.0
    %v2103 = vmax.f32 %v1089, 0.0
    %v2104 = vmax.f32 %v1091, 0.0
    %v2105 = vmax.f32 %v1282, 0.0
    %v2106 = vmax.f32 %v1284, 0.0
    %v2107 = vmax.f32 %v1475, 0.0
    %v2108 = vmax.f32 %v1477, 0.0
    %v2109 = vmax.f32 %v1668, 0.0
    %v2110 = vmax.f32 %v1670, 0.0
    %v2111 = vmax.f32 %v1861, 0.0
    %v2112 = vmax.f32 %v1863, 0.0
    %v2113 = vmax.f32 %v516, 0.0
    %v2114 = vmax.f32 %v518, 0.0
    %v2115 = vmax.f32 %v709, 0.0
    %v2116 = vmax.f32 %v711, 0.0
    %v2117 = vmax.f32 %v902, 0.0
    %v2118 = vmax.f32 %v904, 0.0
    %v2119 = vmax.f32 %v1095, 0.0
    %v2120 = vmax.f32 %v1097, 0.0
    %v2121 = vmax.f32 %v1288, 0.0
    %v2122 = vmax.f32 %v1290, 0.0
    %v2123 = vmax.f32 %v1481, 0.0
    %v2124 = vmax.f32 %v1483, 0.0
    %v2125 = vmax.f32 %v1674, 0.0
    %v2126 = vmax.f32 %v1676, 0.0
    %v2127 = vmax.f32 %v1867, 0.0
    %v2128 = vmax.f32 %v1869, 0.0
    %v2129 = vmax.f32 %v520, 0.0
    %v2130 = vmax.f32 %v522, 0.0
    %v2131 = vmax.f32 %v713, 0.0
    %v2132 = vmax.f32 %v715, 0.0
    %v2133 = vmax.f32 %v906, 0.0
    %v2134 = vmax.f32 %v908, 0.0
    %v2135 = vmax.f32 %v1099, 0.0
    %v2136 = vmax.f32 %v1101, 0.0
    %v2137 = vmax.f32 %v1292, 0.0
    %v2138 = vmax.f32 %v1294, 0.0
    %v2139 = vmax.f32 %v1485, 0.0
    %v2140 = vmax.f32 %v1487, 0.0
    %v2141 = vmax.f32 %v1678, 0.0
    %v2142 = vmax.f32 %v1680, 0.0
    %v2143 = vmax.f32 %v1871, 0.0
    %v2144 = vmax.f32 %v1873, 0.0
    %v2145 = vmax.f32 %v526, 0.0
    %v2146 = vmax.f32 %v528, 0.0
    %v2147 = vmax.f32 %v719, 0.0
    %v2148 = vmax.f32 %v721, 0.0
    %v2149 = vmax.f32 %v912, 0.0
    %v2150 = vmax.f32 %v914, 0.0
    %v2151 = vmax.f32 %v1105, 0.0
    %v2152 = vmax.f32 %v1107, 0.0
    %v2153 = vmax.f32 %v1298, 0.0
    %v2154 = vmax.f32 %v1300, 0.0
    %v2155 = vmax.f32 %v1491, 0.0
    %v2156 = vmax.f32 %v1493, 0.0
    %v2157 = vmax.f32 %v1684, 0.0
    %v2158 = vmax.f32 %v1686, 0.0
    %v2159 = vmax.f32 %v1877, 0.0
    %v2160 = vmax.f32 %v1879, 0.0
    %v2161 = vmax.f32 %v530, 0.0
    %v2162 = vmax.f32 %v532, 0.0
    %v2163 = vmax.f32 %v723, 0.0
    %v2164 = vmax.f32 %v725, 0.0
    %v2165 = vmax.f32 %v916, 0.0
    %v2166 = vmax.f32 %v918, 0.0
    %v2167 = vmax.f32 %v1109, 0.0
    %v2168 = vmax.f32 %v1111, 0.0
    %v2169 = vmax.f32 %v1302, 0.0
    %v2170 = vmax.f32 %v1304, 0.0
    %v2171 = vmax.f32 %v1495, 0.0
    %v2172 = vmax.f32 %v1497, 0.0
    %v2173 = vmax.f32 %v1688, 0.0
    %v2174 = vmax.f32 %v1690, 0.0
    %v2175 = vmax.f32 %v1881, 0.0
    %v2176 = vmax.f32 %v1883, 0.0
    %v2177 = vmax.f32 %v536, 0.0
    %v2178 = vmax.f32 %v538, 0.0
    %v2179 = vmax.f32 %v729, 0.0
    %v2180 = vmax.f32 %v731, 0.0
    %v2181 = vmax.f32 %v922, 0.0
    %v2182 = vmax.f32 %v924, 0.0
    %v2183 = vmax.f32 %v1115, 0.0
    %v2184 = vmax.f32 %v1117, 0.0
    %v2185 = vmax.f32 %v1308, 0.0
    %v2186 = vmax.f32 %v1310, 0.0
    %v2187 = vmax.f32 %v1501, 0.0
    %v2188 = vmax.f32 %v1503, 0.0
    %v2189 = vmax.f32 %v1694, 0.0
    %v2190 = vmax.f32 %v1696, 0.0
    %v2191 = vmax.f32 %v1887, 0.0
    %v2192 = vmax.f32 %v1889, 0.0
    %v2193 = vmax.f32 %v540, 0.0
    %v2194 = vmax.f32 %v542, 0.0
    %v2195 = vmax.f32 %v733, 0.0
    %v2196 = vmax.f32 %v735, 0.0
    %v2197 = vmax.f32 %v926, 0.0
    %v2198 = vmax.f32 %v928, 0.0
    %v2199 = vmax.f32 %v1119, 0.0
    %v2200 = vmax.f32 %v1121, 0.0
    %v2201 = vmax.f32 %v1312, 0.0
    %v2202 = vmax.f32 %v1314, 0.0
    %v2203 = vmax.f32 %v1505, 0.0
    %v2204 = vmax.f32 %v1507, 0.0
    %v2205 = vmax.f32 %v1698, 0.0
    %v2206 = vmax.f32 %v1700, 0.0
    %v2207 = vmax.f32 %v1891, 0.0
    %v2208 = vmax.f32 %v1893, 0.0
    %v2209 = vmax.f32 %v546, 0.0
    %v2210 = vmax.f32 %v548, 0.0
    %v2211 = vmax.f32 %v739, 0.0
    %v2212 = vmax.f32 %v741, 0.0
    %v2213 = vmax.f32 %v932, 0.0
    %v2214 = vmax.f32 %v934, 0.0
    %v2215 = vmax.f32 %v1125, 0.0
    %v2216 = vmax.f32 %v1127, 0.0
    %v2217 = vmax.f32 %v1318, 0.0
    %v2218 = vmax.f32 %v1320, 0.0
    %v2219 = vmax.f32 %v1511, 0.0
    %v2220 = vmax.f32 %v1513, 0.0
    %v2221 = vmax.f32 %v1704, 0.0
    %v2222 = vmax.f32 %v1706, 0.0
    %v2223 = vmax.f32 %v1897, 0.0
    %v2224 = vmax.f32 %v1899, 0.0
    %v2225 = vmax.f32 %v550, 0.0
    %v2226 = vmax.f32 %v552, 0.0
    %v2227 = vmax.f32 %v743, 0.0
    %v2228 = vmax.f32 %v745, 0.0
    %v2229 = vmax.f32 %v936, 0.0
    %v2230 = vmax.f32 %v938, 0.0
    %v2231 = vmax.f32 %v1129, 0.0
    %v2232 = vmax.f32 %v1131, 0.0
    %v2233 = vmax.f32 %v1322, 0.0
    %v2234 = vmax.f32 %v1324, 0.0
    %v2235 = vmax.f32 %v1515, 0.0
    %v2236 = vmax.f32 %v1517, 0.0
    %v2237 = vmax.f32 %v1708, 0.0
    %v2238 = vmax.f32 %v1710, 0.0
    %v2239 = vmax.f32 %v1901, 0.0
    %v2240 = vmax.f32 %v1903, 0.0
    %v2241 = vmax.f32 %v556, 0.0
    %v2242 = vmax.f32 %v558, 0.0
    %v2243 = vmax.f32 %v749, 0.0
    %v2244 = vmax.f32 %v751, 0.0
    %v2245 = vmax.f32 %v942, 0.0
    %v2246 = vmax.f32 %v944, 0.0
    %v2247 = vmax.f32 %v1135, 0.0
    %v2248 = vmax.f32 %v1137, 0.0
    %v2249 = vmax.f32 %v1328, 0.0
    %v2250 = vmax.f32 %v1330, 0.0
    %v2251 = vmax.f32 %v1521, 0.0
    %v2252 = vmax.f32 %v1523, 0.0
    %v2253 = vmax.f32 %v1714, 0.0
    %v2254 = vmax.f32 %v1716, 0.0
    %v2255 = vmax.f32 %v1907, 0.0
    %v2256 = vmax.f32 %v1909, 0.0
    %v2257 = vmax.f32 %v560, 0.0
    %v2258 = vmax.f32 %v562, 0.0
    %v2259 = vmax.f32 %v753, 0.0
    %v2260 = vmax.f32 %v755, 0.0
    %v2261 = vmax.f32 %v946, 0.0
    %v2262 = vmax.f32 %v948, 0.0
    %v2263 = vmax.f32 %v1139, 0.0
    %v2264 = vmax.f32 %v1141, 0.0
    %v2265 = vmax.f32 %v1332, 0.0
    %v2266 = vmax.f32 %v1334, 0.0
    %v2267 = vmax.f32 %v1525, 0.0
    %v2268 = vmax.f32 %v1527, 0.0
    %v2269 = vmax.f32 %v1718, 0.0
    %v2270 = vmax.f32 %v1720, 0.0
    %v2271 = vmax.f32 %v1911, 0.0
    %v2272 = vmax.f32 %v1913, 0.0
    %v2273 = vmax.f32 %v566, 0.0
    %v2274 = vmax.f32 %v568, 0.0
    %v2275 = vmax.f32 %v759, 0.0
    %v2276 = vmax.f32 %v761, 0.0
    %v2277 = vmax.f32 %v952, 0.0
    %v2278 = vmax.f32 %v954, 0.0
    %v2279 = vmax.f32 %v1145, 0.0
    %v2280 = vmax.f32 %v1147, 0.0
    %v2281 = vmax.f32 %v1338, 0.0
    %v2282 = vmax.f32 %v1340, 0.0
    %v2283 = vmax.f32 %v1531, 0.0
    %v2284 = vmax.f32 %v1533, 0.0
    %v2285 = vmax.f32 %v1724, 0.0
    %v2286 = vmax.f32 %v1726, 0.0
    %v2287 = vmax.f32 %v1917, 0.0
    %v2288 = vmax.f32 %v1919, 0.0
    %v2289 = vmax.f32 %v570, 0.0
    %v2290 = vmax.f32 %v572, 0.0
    %v2291 = vmax.f32 %v763, 0.0
    %v2292 = vmax.f32 %v765, 0.0
    %v2293 = vmax.f32 %v956, 0.0
    %v2294 = vmax.f32 %v958, 0.0
    %v2295 = vmax.f32 %v1149, 0.0
    %v2296 = vmax.f32 %v1151, 0.0
    %v2297 = vmax.f32 %v1342, 0.0
    %v2298 = vmax.f32 %v1344, 0.0
    %v2299 = vmax.f32 %v1535, 0.0
    %v2300 = vmax.f32 %v1537, 0.0
    %v2301 = vmax.f32 %v1728, 0.0
    %v2302 = vmax.f32 %v1730, 0.0
    %v2303 = vmax.f32 %v1921, 0.0
    %v2304 = vmax.f32 %v1923, 0.0
    %v2305 = vmax.f32 %v576, 0.0
    %v2306 = vmax.f32 %v578, 0.0
    %v2307 = vmax.f32 %v769, 0.0
    %v2308 = vmax.f32 %v771, 0.0
    %v2309 = vmax.f32 %v962, 0.0
    %v2310 = vmax.f32 %v964, 0.0
    %v2311 = vmax.f32 %v1155, 0.0
    %v2312 = vmax.f32 %v1157, 0.0
    %v2313 = vmax.f32 %v1348, 0.0
    %v2314 = vmax.f32 %v1350, 0.0
    %v2315 = vmax.f32 %v1541, 0.0
    %v2316 = vmax.f32 %v1543, 0.0
    %v2317 = vmax.f32 %v1734, 0.0
    %v2318 = vmax.f32 %v1736, 0.0
    %v2319 = vmax.f32 %v1927, 0.0
    %v2320 = vmax.f32 %v1929, 0.0
    %v2321 = vmax.f32 %v580, 0.0
    %v2322 = vmax.f32 %v582, 0.0
    %v2323 = vmax.f32 %v773, 0.0
    %v2324 = vmax.f32 %v775, 0.0
    %v2325 = vmax.f32 %v966, 0.0
    %v2326 = vmax.f32 %v968, 0.0
    %v2327 = vmax.f32 %v1159, 0.0
    %v2328 = vmax.f32 %v1161, 0.0
    %v2329 = vmax.f32 %v1352, 0.0
    %v2330 = vmax.f32 %v1354, 0.0
    %v2331 = vmax.f32 %v1545, 0.0
    %v2332 = vmax.f32 %v1547, 0.0
    %v2333 = vmax.f32 %v1738, 0.0
    %v2334 = vmax.f32 %v1740, 0.0
    %v2335 = vmax.f32 %v1931, 0.0
    %v2336 = vmax.f32 %v1933, 0.0
    %v2337 = vmax.f32 %v586, 0.0
    %v2338 = vmax.f32 %v588, 0.0
    %v2339 = vmax.f32 %v779, 0.0
    %v2340 = vmax.f32 %v781, 0.0
    %v2341 = vmax.f32 %v972, 0.0
    %v2342 = vmax.f32 %v974, 0.0
    %v2343 = vmax.f32 %v1165, 0.0
    %v2344 = vmax.f32 %v1167, 0.0
    %v2345 = vmax.f32 %v1358, 0.0
    %v2346 = vmax.f32 %v1360, 0.0
    %v2347 = vmax.f32 %v1551, 0.0
    %v2348 = vmax.f32 %v1553, 0.0
    %v2349 = vmax.f32 %v1744, 0.0
    %v2350 = vmax.f32 %v1746, 0.0
    %v2351 = vmax.f32 %v1937, 0.0
    %v2352 = vmax.f32 %v1939, 0.0
    %v2353 = vmax.f32 %v590, 0.0
    %v2354 = vmax.f32 %v592, 0.0
    %v2355 = vmax.f32 %v783, 0.0
    %v2356 = vmax.f32 %v785, 0.0
    %v2357 = vmax.f32 %v976, 0.0
    %v2358 = vmax.f32 %v978, 0.0
    %v2359 = vmax.f32 %v1169, 0.0
    %v2360 = vmax.f32 %v1171, 0.0
    %v2361 = vmax.f32 %v1362, 0.0
    %v2362 = vmax.f32 %v1364, 0.0
    %v2363 = vmax.f32 %v1555, 0.0
    %v2364 = vmax.f32 %v1557, 0.0
    %v2365 = vmax.f32 %v1748, 0.0
    %v2366 = vmax.f32 %v1750, 0.0
    %v2367 = vmax.f32 %v1941, 0.0
    %v2368 = vmax.f32 %v1943, 0.0
    %v2369 = vmax.f32 %v596, 0.0
    %v2370 = vmax.f32 %v598, 0.0
    %v2371 = vmax.f32 %v789, 0.0
    %v2372 = vmax.f32 %v791, 0.0
    %v2373 = vmax.f32 %v982, 0.0
    %v2374 = vmax.f32 %v984, 0.0
    %v2375 = vmax.f32 %v1175, 0.0
    %v2376 = vmax.f32 %v1177, 0.0
    %v2377 = vmax.f32 %v1368, 0.0
    %v2378 = vmax.f32 %v1370, 0.0
    %v2379 = vmax.f32 %v1561, 0.0
    %v2380 = vmax.f32 %v1563, 0.0
    %v2381 = vmax.f32 %v1754, 0.0
    %v2382 = vmax.f32 %v1756, 0.0
    %v2383 = vmax.f32 %v1947, 0.0
    %v2384 = vmax.f32 %v1949, 0.0
    %v2385 = vmax.f32 %v600, 0.0
    %v2386 = vmax.f32 %v602, 0.0
    %v2387 = vmax.f32 %v793, 0.0
    %v2388 = vmax.f32 %v795, 0.0
    %v2389 = vmax.f32 %v986, 0.0
    %v2390 = vmax.f32 %v988, 0.0
    %v2391 = vmax.f32 %v1179, 0.0
    %v2392 = vmax.f32 %v1181, 0.0
    %v2393 = vmax.f32 %v1372, 0.0
    %v2394 = vmax.f32 %v1374, 0.0
    %v2395 = vmax.f32 %v1565, 0.0
    %v2396 = vmax.f32 %v1567, 0.0
    %v2397 = vmax.f32 %v1758, 0.0
    %v2398 = vmax.f32 %v1760, 0.0
    %v2399 = vmax.f32 %v1951, 0.0
    %v2400 = vmax.f32 %v1953, 0.0
    %v2401 = vmax.f32 %v606, 0.0
    %v2402 = vmax.f32 %v608, 0.0
    %v2403 = vmax.f32 %v799, 0.0
    %v2404 = vmax.f32 %v801, 0.0
    %v2405 = vmax.f32 %v992, 0.0
    %v2406 = vmax.f32 %v994, 0.0
    %v2407 = vmax.f32 %v1185, 0.0
    %v2408 = vmax.f32 %v1187, 0.0
    %v2409 = vmax.f32 %v1378, 0.0
    %v2410 = vmax.f32 %v1380, 0.0
    %v2411 = vmax.f32 %v1571, 0.0
    %v2412 = vmax.f32 %v1573, 0.0
    %v2413 = vmax.f32 %v1764, 0.0
    %v2414 = vmax.f32 %v1766, 0.0
    %v2415 = vmax.f32 %v1957, 0.0
    %v2416 = vmax.f32 %v1959, 0.0
    %v2417 = vmax.f32 %v610, 0.0
    %v2418 = vmax.f32 %v612, 0.0
    %v2419 = vmax.f32 %v803, 0.0
    %v2420 = vmax.f32 %v805, 0.0
    %v2421 = vmax.f32 %v996, 0.0
    %v2422 = vmax.f32 %v998, 0.0
    %v2423 = vmax.f32 %v1189, 0.0
    %v2424 = vmax.f32 %v1191, 0.0
    %v2425 = vmax.f32 %v1382, 0.0
    %v2426 = vmax.f32 %v1384, 0.0
    %v2427 = vmax.f32 %v1575, 0.0
    %v2428 = vmax.f32 %v1577, 0.0
    %v2429 = vmax.f32 %v1768, 0.0
    %v2430 = vmax.f32 %v1770, 0.0
    %v2431 = vmax.f32 %v1961, 0.0
    %v2432 = vmax.f32 %v1963, 0.0
    %v2433 = vmax.f32 %v616, 0.0
    %v2434 = vmax.f32 %v618, 0.0
    %v2435 = vmax.f32 %v809, 0.0
    %v2436 = vmax.f32 %v811, 0.0
    %v2437 = vmax.f32 %v1002, 0.0
    %v2438 = vmax.f32 %v1004, 0.0
    %v2439 = vmax.f32 %v1195, 0.0
    %v2440 = vmax.f32 %v1197, 0.0
    %v2441 = vmax.f32 %v1388, 0.0
    %v2442 = vmax.f32 %v1390, 0.0
    %v2443 = vmax.f32 %v1581, 0.0
    %v2444 = vmax.f32 %v1583, 0.0
    %v2445 = vmax.f32 %v1774, 0.0
    %v2446 = vmax.f32 %v1776, 0.0
    %v2447 = vmax.f32 %v1967, 0.0
    %v2448 = vmax.f32 %v1969, 0.0
    %v2449 = vmax.f32 %v620, 0.0
    %v2450 = vmax.f32 %v622, 0.0
    %v2451 = vmax.f32 %v813, 0.0
    %v2452 = vmax.f32 %v815, 0.0
    %v2453 = vmax.f32 %v1006, 0.0
    %v2454 = vmax.f32 %v1008, 0.0
    %v2455 = vmax.f32 %v1199, 0.0
    %v2456 = vmax.f32 %v1201, 0.0
    %v2457 = vmax.f32 %v1392, 0.0
    %v2458 = vmax.f32 %v1394, 0.0
    %v2459 = vmax.f32 %v1585, 0.0
    %v2460 = vmax.f32 %v1587, 0.0
    %v2461 = vmax.f32 %v1778, 0.0
    %v2462 = vmax.f32 %v1780, 0.0
    %v2463 = vmax.f32 %v1971, 0.0
    %v2464 = vmax.f32 %v1973, 0.0
    %v2465 = vmax.f32 %v626, 0.0
    %v2466 = vmax.f32 %v628, 0.0
    %v2467 = vmax.f32 %v819, 0.0
    %v2468 = vmax.f32 %v821, 0.0
    %v2469 = vmax.f32 %v1012, 0.0
    %v2470 = vmax.f32 %v1014, 0.0
    %v2471 = vmax.f32 %v1205, 0.0
    %v2472 = vmax.f32 %v1207, 0.0
    %v2473 = vmax.f32 %v1398, 0.0
    %v2474 = vmax.f32 %v1400, 0.0
    %v2475 = vmax.f32 %v1591, 0.0
    %v2476 = vmax.f32 %v1593, 0.0
    %v2477 = vmax.f32 %v1784, 0.0
    %v2478 = vmax.f32 %v1786, 0.0
    %v2479 = vmax.f32 %v1977, 0.0
    %v2480 = vmax.f32 %v1979, 0.0
    %v2481 = vmax.f32 %v630, 0.0
    %v2482 = vmax.f32 %v632, 0.0
    %v2483 = vmax.f32 %v823, 0.0
    %v2484 = vmax.f32 %v825, 0.0
    %v2485 = vmax.f32 %v1016, 0.0
    %v2486 = vmax.f32 %v1018, 0.0
    %v2487 = vmax.f32 %v1209, 0.0
    %v2488 = vmax.f32 %v1211, 0.0
    %v2489 = vmax.f32 %v1402, 0.0
    %v2490 = vmax.f32 %v1404, 0.0
    %v2491 = vmax.f32 %v1595, 0.0
    %v2492 = vmax.f32 %v1597, 0.0
    %v2493 = vmax.f32 %v1788, 0.0
    %v2494 = vmax.f32 %v1790, 0.0
    %v2495 = vmax.f32 %v1981, 0.0
    %v2496 = vmax.f32 %v1983, 0.0
    %v2497 = vadd.f32 %v1985, %v2001
    %v2498 = vadd.f32 %v2497, %v2017
    %v2499 = vadd.f32 %v2498, %v2033
    %v2500 = vadd.f32 %v2499, %v2049
    %v2501 = vadd.f32 %v2500, %v2065
    %v2502 = vadd.f32 %v2501, %v2081
    %v2503 = vadd.f32 %v2502, %v2097
    %v2504 = vadd.f32 %v2503, %v2113
    %v2505 = vadd.f32 %v2504, %v2129
    %v2506 = vadd.f32 %v2505, %v2145
    %v2507 = vadd.f32 %v2506, %v2161
    %v2508 = vadd.f32 %v2507, %v2177
    %v2509 = vadd.f32 %v2508, %v2193
    %v2510 = vadd.f32 %v2509, %v2209
    %v2511 = vadd.f32 %v2510, %v2225
    %v2512 = vadd.f32 %v2511, %v2241
    %v2513 = vadd.f32 %v2512, %v2257
    %v2514 = vadd.f32 %v2513, %v2273
    %v2515 = vadd.f32 %v2514, %v2289
    %v2516 = vadd.f32 %v2515, %v2305
    %v2517 = vadd.f32 %v2516, %v2321
    %v2518 = vadd.f32 %v2517, %v2337
    %v2519 = vadd.f32 %v2518, %v2353
    %v2520 = vadd.f32 %v2519, %v2369
    %v2521 = vadd.f32 %v2520, %v2385
    %v2522 = vadd.f32 %v2521, %v2401
    %v2523 = vadd.f32 %v2522, %v2417
    %v2524 = vadd.f32 %v2523, %v2433
    %v2525 = vadd.f32 %v2524, %v2449
    %v2526 = vadd.f32 %v2525, %v2465
    %v2527 = vadd.f32 %v2526, %v2481
    %v2528 = vrot.slane %v2527, 4
    %v2529 = vadd.f32 %v2527, %v2528
    %v2530 = vrot.slane %v2529, 2
    %v2531 = vadd.f32 %v2529, %v2530
    %v2532 = vrot.slane %v2531, 1
    %v2533 = vadd.f32 %v2531, %v2532
    %v2534 = vadd.f32 %v1986, %v2002
    %v2535 = vadd.f32 %v2534, %v2018
    %v2536 = vadd.f32 %v2535, %v2034
    %v2537 = vadd.f32 %v2536, %v2050
    %v2538 = vadd.f32 %v2537, %v2066
    %v2539 = vadd.f32 %v2538, %v2082
    %v2540 = vadd.f32 %v2539, %v2098
    %v2541 = vadd.f32 %v2540, %v2114
    %v2542 = vadd.f32 %v2541, %v2130
    %v2543 = vadd.f32 %v2542, %v2146
    %v2544 = vadd.f32 %v2543, %v2162
    %v2545 = vadd.f32 %v2544, %v2178
    %v2546 = vadd.f32 %v2545, %v2194
    %v2547 = vadd.f32 %v2546, %v2210
    %v2548 = vadd.f32 %v2547, %v2226
    %v2549 = vadd.f32 %v2548, %v2242
    %v2550 = vadd.f32 %v2549, %v2258
    %v2551 = vadd.f32 %v2550, %v2274
    %v2552 = vadd.f32 %v2551, %v2290
    %v2553 = vadd.f32 %v2552, %v2306
    %v2554 = vadd.f32 %v2553, %v2322
    %v2555 = vadd.f32 %v2554, %v2338
    %v2556 = vadd.f32 %v2555, %v2354
    %v2557 = vadd.f32 %v2556, %v2370
    %v2558 = vadd.f32 %v2557, %v2386
    %v2559 = vadd.f32 %v2558, %v2402
    %v2560 = vadd.f32 %v2559, %v2418
    %v2561 = vadd.f32 %v2560, %v2434
    %v2562 = vadd.f32 %v2561, %v2450
    %v2563 = vadd.f32 %v2562, %v2466
    %v2564 = vadd.f32 %v2563, %v2482
    %v2565 = vrot.slane %v2564, 4
    %v2566 = vadd.f32 %v2564, %v2565
    %v2567 = vrot.slane %v2566, 2
    %v2568 = vadd.f32 %v2566, %v2567
    %v2569 = vrot.slane %v2568, 1
    %v2570 = vadd.f32 %v2568, %v2569
    %v2571 = vadd.f32 %v1987, %v2003
    %v2572 = vadd.f32 %v2571, %v2019
    %v2573 = vadd.f32 %v2572, %v2035
    %v2574 = vadd.f32 %v2573, %v2051
    %v2575 = vadd.f32 %v2574, %v2067
    %v2576 = vadd.f32 %v2575, %v2083
    %v2577 = vadd.f32 %v2576, %v2099
    %v2578 = vadd.f32 %v2577, %v2115
    %v2579 = vadd.f32 %v2578, %v2131
    %v2580 = vadd.f32 %v2579, %v2147
    %v2581 = vadd.f32 %v2580, %v2163
    %v2582 = vadd.f32 %v2581, %v2179
    %v2583 = vadd.f32 %v2582, %v2195
    %v2584 = vadd.f32 %v2583, %v2211
    %v2585 = vadd.f32 %v2584, %v2227
    %v2586 = vadd.f32 %v2585, %v2243
    %v2587 = vadd.f32 %v2586, %v2259
    %v2588 = vadd.f32 %v2587, %v2275
    %v2589 = vadd.f32 %v2588, %v2291
    %v2590 = vadd.f32 %v2589, %v2307
    %v2591 = vadd.f32 %v2590, %v2323
    %v2592 = vadd.f32 %v2591, %v2339
    %v2593 = vadd.f32 %v2592, %v2355
    %v2594 = vadd.f32 %v2593, %v2371
    %v2595 = vadd.f32 %v2594, %v2387
    %v2596 = vadd.f32 %v2595, %v2403
    %v2597 = vadd.f32 %v2596, %v2419
    %v2598 = vadd.f32 %v2597, %v2435
    %v2599 = vadd.f32 %v2598, %v2451
    %v2600 = vadd.f32 %v2599, %v2467
    %v2601 = vadd.f32 %v2600, %v2483
    %v2602 = vrot.slane %v2601, 4
    %v2603 = vadd.f32 %v2601, %v2602
    %v2604 = vrot.slane %v2603, 2
    %v2605 = vadd.f32 %v2603, %v2604
    %v2606 = vrot.slane %v2605, 1
    %v2607 = vadd.f32 %v2605, %v2606
    %v2608 = vadd.f32 %v1988, %v2004
    %v2609 = vadd.f32 %v2608, %v2020
    %v2610 = vadd.f32 %v2609, %v2036
    %v2611 = vadd.f32 %v2610, %v2052
    %v2612 = vadd.f32 %v2611, %v2068
    %v2613 = vadd.f32 %v2612, %v2084
    %v2614 = vadd.f32 %v2613, %v2100
    %v2615 = vadd.f32 %v2614, %v2116
    %v2616 = vadd.f32 %v2615, %v2132
    %v2617 = vadd.f32 %v2616, %v2148
    %v2618 = vadd.f32 %v2617, %v2164
    %v2619 = vadd.f32 %v2618, %v2180
    %v2620 = vadd.f32 %v2619, %v2196
    %v2621 = vadd.f32 %v2620, %v2212
    %v2622 = vadd.f32 %v2621, %v2228
    %v2623 = vadd.f32 %v2622, %v2244
    %v2624 = vadd.f32 %v2623, %v2260
    %v2625 = vadd.f32 %v2624, %v2276
    %v2626 = vadd.f32 %v2625, %v2292
    %v2627 = vadd.f32 %v2626, %v2308
    %v2628 = vadd.f32 %v2627, %v2324
    %v2629 = vadd.f32 %v2628, %v2340
    %v2630 = vadd.f32 %v2629, %v2356
    %v2631 = vadd.f32 %v2630, %v2372
    %v2632 = vadd.f32 %v2631, %v2388
    %v2633 = vadd.f32 %v2632, %v2404
    %v2634 = vadd.f32 %v2633, %v2420
    %v2635 = vadd.f32 %v2634, %v2436
    %v2636 = vadd.f32 %v2635, %v2452
    %v2637 = vadd.f32 %v2636, %v2468
    %v2638 = vadd.f32 %v2637, %v2484
    %v2639 = vrot.slane %v2638, 4
    %v2640 = vadd.f32 %v2638, %v2639
    %v2641 = vrot.slane %v2640, 2
    %v2642 = vadd.f32 %v2640, %v2641
    %v2643 = vrot.slane %v2642, 1
    %v2644 = vadd.f32 %v2642, %v2643
    %v2645 = vadd.f32 %v1989, %v2005
    %v2646 = vadd.f32 %v2645, %v2021
    %v2647 = vadd.f32 %v2646, %v2037
    %v2648 = vadd.f32 %v2647, %v2053
    %v2649 = vadd.f32 %v2648, %v2069
    %v2650 = vadd.f32 %v2649, %v2085
    %v2651 = vadd.f32 %v2650, %v2101
    %v2652 = vadd.f32 %v2651, %v2117
    %v2653 = vadd.f32 %v2652, %v2133
    %v2654 = vadd.f32 %v2653, %v2149
    %v2655 = vadd.f32 %v2654, %v2165
    %v2656 = vadd.f32 %v2655, %v2181
    %v2657 = vadd.f32 %v2656, %v2197
    %v2658 = vadd.f32 %v2657, %v2213
    %v2659 = vadd.f32 %v2658, %v2229
    %v2660 = vadd.f32 %v2659, %v2245
    %v2661 = vadd.f32 %v2660, %v2261
    %v2662 = vadd.f32 %v2661, %v2277
    %v2663 = vadd.f32 %v2662, %v2293
    %v2664 = vadd.f32 %v2663, %v2309
    %v2665 = vadd.f32 %v2664, %v2325
    %v2666 = vadd.f32 %v2665, %v2341
    %v2667 = vadd.f32 %v2666, %v2357
    %v2668 = vadd.f32 %v2667, %v2373
    %v2669 = vadd.f32 %v2668, %v2389
    %v2670 = vadd.f32 %v2669, %v2405
    %v2671 = vadd.f32 %v2670, %v2421
    %v2672 = vadd.f32 %v2671, %v2437
    %v2673 = vadd.f32 %v2672, %v2453
    %v2674 = vadd.f32 %v2673, %v2469
    %v2675 = vadd.f32 %v2674, %v2485
    %v2676 = vrot.slane %v2675, 4
    %v2677 = vadd.f32 %v2675, %v2676
    %v2678 = vrot.slane %v2677, 2
    %v2679 = vadd.f32 %v2677, %v2678
    %v2680 = vrot.slane %v2679, 1
    %v2681 = vadd.f32 %v2679, %v2680
    %v2682 = vadd.f32 %v1990, %v2006
    %v2683 = vadd.f32 %v2682, %v2022
    %v2684 = vadd.f32 %v2683, %v2038
    %v2685 = vadd.f32 %v2684, %v2054
    %v2686 = vadd.f32 %v2685, %v2070
    %v2687 = vadd.f32 %v2686, %v2086
    %v2688 = vadd.f32 %v2687, %v2102
    %v2689 = vadd.f32 %v2688, %v2118
    %v2690 = vadd.f32 %v2689, %v2134
    %v2691 = vadd.f32 %v2690, %v2150
    %v2692 = vadd.f32 %v2691, %v2166
    %v2693 = vadd.f32 %v2692, %v2182
    %v2694 = vadd.f32 %v2693, %v2198
    %v2695 = vadd.f32 %v2694, %v2214
    %v2696 = vadd.f32 %v2695, %v2230
    %v2697 = vadd.f32 %v2696, %v2246
    %v2698 = vadd.f32 %v2697, %v2262
    %v2699 = vadd.f32 %v2698, %v2278
    %v2700 = vadd.f32 %v2699, %v2294
    %v2701 = vadd.f32 %v2700, %v2310
    %v2702 = vadd.f32 %v2701, %v2326
    %v2703 = vadd.f32 %v2702, %v2342
    %v2704 = vadd.f32 %v2703, %v2358
    %v2705 = vadd.f32 %v2704, %v2374
    %v2706 = vadd.f32 %v2705, %v2390
    %v2707 = vadd.f32 %v2706, %v2406
    %v2708 = vadd.f32 %v2707, %v2422
    %v2709 = vadd.f32 %v2708, %v2438
    %v2710 = vadd.f32 %v2709, %v2454
    %v2711 = vadd.f32 %v2710, %v2470
    %v2712 = vadd.f32 %v2711, %v2486
    %v2713 = vrot.slane %v2712, 4
    %v2714 = vadd.f32 %v2712, %v2713
    %v2715 = vrot.slane %v2714, 2
    %v2716 = vadd.f32 %v2714, %v2715
    %v2717 = vrot.slane %v2716, 1
    %v2718 = vadd.f32 %v2716, %v2717
    %v2719 = vadd.f32 %v1991, %v2007
    %v2720 = vadd.f32 %v2719, %v2023
    %v2721 = vadd.f32 %v2720, %v2039
    %v2722 = vadd.f32 %v2721, %v2055
    %v2723 = vadd.f32 %v2722, %v2071
    %v2724 = vadd.f32 %v2723, %v2087
    %v2725 = vadd.f32 %v2724, %v2103
    %v2726 = vadd.f32 %v2725, %v2119
    %v2727 = vadd.f32 %v2726, %v2135
    %v2728 = vadd.f32 %v2727, %v2151
    %v2729 = vadd.f32 %v2728, %v2167
    %v2730 = vadd.f32 %v2729, %v2183
    %v2731 = vadd.f32 %v2730, %v2199
    %v2732 = vadd.f32 %v2731, %v2215
    %v2733 = vadd.f32 %v2732, %v2231
    %v2734 = vadd.f32 %v2733, %v2247
    %v2735 = vadd.f32 %v2734, %v2263
    %v2736 = vadd.f32 %v2735, %v2279
    %v2737 = vadd.f32 %v2736, %v2295
    %v2738 = vadd.f32 %v2737, %v2311
    %v2739 = vadd.f32 %v2738, %v2327
    %v2740 = vadd.f32 %v2739, %v2343
    %v2741 = vadd.f32 %v2740, %v2359
    %v2742 = vadd.f32 %v2741, %v2375
    %v2743 = vadd.f32 %v2742, %v2391
    %v2744 = vadd.f32 %v2743, %v2407
    %v2745 = vadd.f32 %v2744, %v2423
    %v2746 = vadd.f32 %v2745, %v2439
    %v2747 = vadd.f32 %v2746, %v2455
    %v2748 = vadd.f32 %v2747, %v2471
    %v2749 = vadd.f32 %v2748, %v2487
    %v2750 = vrot.slane %v2749, 4
    %v2751 = vadd.f32 %v2749, %v2750
    %v2752 = vrot.slane %v2751, 2
    %v2753 = vadd.f32 %v2751, %v2752
    %v2754 = vrot.slane %v2753, 1
    %v2755 = vadd.f32 %v2753, %v2754
    %v2756 = vadd.f32 %v1992, %v2008
    %v2757 = vadd.f32 %v2756, %v2024
    %v2758 = vadd.f32 %v2757, %v2040
    %v2759 = vadd.f32 %v2758, %v2056
    %v2760 = vadd.f32 %v2759, %v2072
    %v2761 = vadd.f32 %v2760, %v2088
    %v2762 = vadd.f32 %v2761, %v2104
    %v2763 = vadd.f32 %v2762, %v2120
    %v2764 = vadd.f32 %v2763, %v2136
    %v2765 = vadd.f32 %v2764, %v2152
    %v2766 = vadd.f32 %v2765, %v2168
    %v2767 = vadd.f32 %v2766, %v2184
    %v2768 = vadd.f32 %v2767, %v2200
    %v2769 = vadd.f32 %v2768, %v2216
    %v2770 = vadd.f32 %v2769, %v2232
    %v2771 = vadd.f32 %v2770, %v2248
    %v2772 = vadd.f32 %v2771, %v2264
    %v2773 = vadd.f32 %v2772, %v2280
    %v2774 = vadd.f32 %v2773, %v2296
    %v2775 = vadd.f32 %v2774, %v2312
    %v2776 = vadd.f32 %v2775, %v2328
    %v2777 = vadd.f32 %v2776, %v2344
    %v2778 = vadd.f32 %v2777, %v2360
    %v2779 = vadd.f32 %v2778, %v2376
    %v2780 = vadd.f32 %v2779, %v2392
    %v2781 = vadd.f32 %v2780, %v2408
    %v2782 = vadd.f32 %v2781, %v2424
    %v2783 = vadd.f32 %v2782, %v2440
    %v2784 = vadd.f32 %v2783, %v2456
    %v2785 = vadd.f32 %v2784, %v2472
    %v2786 = vadd.f32 %v2785, %v2488
    %v2787 = vrot.slane %v2786, 4
    %v2788 = vadd.f32 %v2786, %v2787
    %v2789 = vrot.slane %v2788, 2
    %v2790 = vadd.f32 %v2788, %v2789
    %v2791 = vrot.slane %v2790, 1
    %v2792 = vadd.f32 %v2790, %v2791
    %v2793 = vadd.f32 %v1993, %v2009
    %v2794 = vadd.f32 %v2793, %v2025
    %v2795 = vadd.f32 %v2794, %v2041
    %v2796 = vadd.f32 %v2795, %v2057
    %v2797 = vadd.f32 %v2796, %v2073
    %v2798 = vadd.f32 %v2797, %v2089
    %v2799 = vadd.f32 %v2798, %v2105
    %v2800 = vadd.f32 %v2799, %v2121
    %v2801 = vadd.f32 %v2800, %v2137
    %v2802 = vadd.f32 %v2801, %v2153
    %v2803 = vadd.f32 %v2802, %v2169
    %v2804 = vadd.f32 %v2803, %v2185
    %v2805 = vadd.f32 %v2804, %v2201
    %v2806 = vadd.f32 %v2805, %v2217
    %v2807 = vadd.f32 %v2806, %v2233
    %v2808 = vadd.f32 %v2807, %v2249
    %v2809 = vadd.f32 %v2808, %v2265
    %v2810 = vadd.f32 %v2809, %v2281
    %v2811 = vadd.f32 %v2810, %v2297
    %v2812 = vadd.f32 %v2811, %v2313
    %v2813 = vadd.f32 %v2812, %v2329
    %v2814 = vadd.f32 %v2813, %v2345
    %v2815 = vadd.f32 %v2814, %v2361
    %v2816 = vadd.f32 %v2815, %v2377
    %v2817 = vadd.f32 %v2816, %v2393
    %v2818 = vadd.f32 %v2817, %v2409
    %v2819 = vadd.f32 %v2818, %v2425
    %v2820 = vadd.f32 %v2819, %v2441
    %v2821 = vadd.f32 %v2820, %v2457
    %v2822 = vadd.f32 %v2821, %v2473
    %v2823 = vadd.f32 %v2822, %v2489
    %v2824 = vrot.slane %v2823, 4
    %v2825 = vadd.f32 %v2823, %v2824
    %v2826 = vrot.slane %v2825, 2
    %v2827 = vadd.f32 %v2825, %v2826
    %v2828 = vrot.slane %v2827, 1
    %v2829 = vadd.f32 %v2827, %v2828
    %v2830 = vadd.f32 %v1994, %v2010
    %v2831 = vadd.f32 %v2830, %v2026
    %v2832 = vadd.f32 %v2831, %v2042
    %v2833 = vadd.f32 %v2832, %v2058
    %v2834 = vadd.f32 %v2833, %v2074
    %v2835 = vadd.f32 %v2834, %v2090
    %v2836 = vadd.f32 %v2835, %v2106
    %v2837 = vadd.f32 %v2836, %v2122
    %v2838 = vadd.f32 %v2837, %v2138
    %v2839 = vadd.f32 %v2838, %v2154
    %v2840 = vadd.f32 %v2839, %v2170
    %v2841 = vadd.f32 %v2840, %v2186
    %v2842 = vadd.f32 %v2841, %v2202
    %v2843 = vadd.f32 %v2842, %v2218
    %v2844 = vadd.f32 %v2843, %v2234
    %v2845 = vadd.f32 %v2844, %v2250
    %v2846 = vadd.f32 %v2845, %v2266
    %v2847 = vadd.f32 %v2846, %v2282
    %v2848 = vadd.f32 %v2847, %v2298
    %v2849 = vadd.f32 %v2848, %v2314
    %v2850 = vadd.f32 %v2849, %v2330
    %v2851 = vadd.f32 %v2850, %v2346
    %v2852 = vadd.f32 %v2851, %v2362
    %v2853 = vadd.f32 %v2852, %v2378
    %v2854 = vadd.f32 %v2853, %v2394
    %v2855 = vadd.f32 %v2854, %v2410
    %v2856 = vadd.f32 %v2855, %v2426
    %v2857 = vadd.f32 %v2856, %v2442
    %v2858 = vadd.f32 %v2857, %v2458
    %v2859 = vadd.f32 %v2858, %v2474
    %v2860 = vadd.f32 %v2859, %v2490
    %v2861 = vrot.slane %v2860, 4
    %v2862 = vadd.f32 %v2860, %v2861
    %v2863 = vrot.slane %v2862, 2
    %v2864 = vadd.f32 %v2862, %v2863
    %v2865 = vrot.slane %v2864, 1
    %v2866 = vadd.f32 %v2864, %v2865
    %v2867 = vadd.f32 %v1995, %v2011
    %v2868 = vadd.f32 %v2867, %v2027
    %v2869 = vadd.f32 %v2868, %v2043
    %v2870 = vadd.f32 %v2869, %v2059
    %v2871 = vadd.f32 %v2870, %v2075
    %v2872 = vadd.f32 %v2871, %v2091
    %v2873 = vadd.f32 %v2872, %v2107
    %v2874 = vadd.f32 %v2873, %v2123
    %v2875 = vadd.f32 %v2874, %v2139
    %v2876 = vadd.f32 %v2875, %v2155
    %v2877 = vadd.f32 %v2876, %v2171
    %v2878 = vadd.f32 %v2877, %v2187
    %v2879 = vadd.f32 %v2878, %v2203
    %v2880 = vadd.f32 %v2879, %v2219
    %v2881 = vadd.f32 %v2880, %v2235
    %v2882 = vadd.f32 %v2881, %v2251
    %v2883 = vadd.f32 %v2882, %v2267
    %v2884 = vadd.f32 %v2883, %v2283
    %v2885 = vadd.f32 %v2884, %v2299
    %v2886 = vadd.f32 %v2885, %v2315
    %v2887 = vadd.f32 %v2886, %v2331
    %v2888 = vadd.f32 %v2887, %v2347
    %v2889 = vadd.f32 %v2888, %v2363
    %v2890 = vadd.f32 %v2889, %v2379
    %v2891 = vadd.f32 %v2890, %v2395
    %v2892 = vadd.f32 %v2891, %v2411
    %v2893 = vadd.f32 %v2892, %v2427
    %v2894 = vadd.f32 %v2893, %v2443
    %v2895 = vadd.f32 %v2894, %v2459
    %v2896 = vadd.f32 %v2895, %v2475
    %v2897 = vadd.f32 %v2896, %v2491
    %v2898 = vrot.slane %v2897, 4
    %v2899 = vadd.f32 %v2897, %v2898
    %v2900 = vrot.slane %v2899, 2
    %v2901 = vadd.f32 %v2899, %v2900
    %v2902 = vrot.slane %v2901, 1
    %v2903 = vadd.f32 %v2901, %v2902
    %v2904 = vadd.f32 %v1996, %v2012
    %v2905 = vadd.f32 %v2904, %v2028
    %v2906 = vadd.f32 %v2905, %v2044
    %v2907 = vadd.f32 %v2906, %v2060
    %v2908 = vadd.f32 %v2907, %v2076
    %v2909 = vadd.f32 %v2908, %v2092
    %v2910 = vadd.f32 %v2909, %v2108
    %v2911 = vadd.f32 %v2910, %v2124
    %v2912 = vadd.f32 %v2911, %v2140
    %v2913 = vadd.f32 %v2912, %v2156
    %v2914 = vadd.f32 %v2913, %v2172
    %v2915 = vadd.f32 %v2914, %v2188
    %v2916 = vadd.f32 %v2915, %v2204
    %v2917 = vadd.f32 %v2916, %v2220
    %v2918 = vadd.f32 %v2917, %v2236
    %v2919 = vadd.f32 %v2918, %v2252
    %v2920 = vadd.f32 %v2919, %v2268
    %v2921 = vadd.f32 %v2920, %v2284
    %v2922 = vadd.f32 %v2921, %v2300
    %v2923 = vadd.f32 %v2922, %v2316
    %v2924 = vadd.f32 %v2923, %v2332
    %v2925 = vadd.f32 %v2924, %v2348
    %v2926 = vadd.f32 %v2925, %v2364
    %v2927 = vadd.f32 %v2926, %v2380
    %v2928 = vadd.f32 %v2927, %v2396
    %v2929 = vadd.f32 %v2928, %v2412
    %v2930 = vadd.f32 %v2929, %v2428
    %v2931 = vadd.f32 %v2930, %v2444
    %v2932 = vadd.f32 %v2931, %v2460
    %v2933 = vadd.f32 %v2932, %v2476
    %v2934 = vadd.f32 %v2933, %v2492
    %v2935 = vrot.slane %v2934, 4
    %v2936 = vadd.f32 %v2934, %v2935
    %v2937 = vrot.slane %v2936, 2
    %v2938 = vadd.f32 %v2936, %v2937
    %v2939 = vrot.slane %v2938, 1
    %v2940 = vadd.f32 %v2938, %v2939
    %v2941 = vadd.f32 %v1997, %v2013
    %v2942 = vadd.f32 %v2941, %v2029
    %v2943 = vadd.f32 %v2942, %v2045
    %v2944 = vadd.f32 %v2943, %v2061
    %v2945 = vadd.f32 %v2944, %v2077
    %v2946 = vadd.f32 %v2945, %v2093
    %v2947 = vadd.f32 %v2946, %v2109
    %v2948 = vadd.f32 %v2947, %v2125
    %v2949 = vadd.f32 %v2948, %v2141
    %v2950 = vadd.f32 %v2949, %v2157
    %v2951 = vadd.f32 %v2950, %v2173
    %v2952 = vadd.f32 %v2951, %v2189
    %v2953 = vadd.f32 %v2952, %v2205
    %v2954 = vadd.f32 %v2953, %v2221
    %v2955 = vadd.f32 %v2954, %v2237
    %v2956 = vadd.f32 %v2955, %v2253
    %v2957 = vadd.f32 %v2956, %v2269
    %v2958 = vadd.f32 %v2957, %v2285
    %v2959 = vadd.f32 %v2958, %v2301
    %v2960 = vadd.f32 %v2959, %v2317
    %v2961 = vadd.f32 %v2960, %v2333
    %v2962 = vadd.f32 %v2961, %v2349
    %v2963 = vadd.f32 %v2962, %v2365
    %v2964 = vadd.f32 %v2963, %v2381
    %v2965 = vadd.f32 %v2964, %v2397
    %v2966 = vadd.f32 %v2965, %v2413
    %v2967 = vadd.f32 %v2966, %v2429
    %v2968 = vadd.f32 %v2967, %v2445
    %v2969 = vadd.f32 %v2968, %v2461
    %v2970 = vadd.f32 %v2969, %v2477
    %v2971 = vadd.f32 %v2970, %v2493
    %v2972 = vrot.slane %v2971, 4
    %v2973 = vadd.f32 %v2971, %v2972
    %v2974 = vrot.slane %v2973, 2
    %v2975 = vadd.f32 %v2973, %v2974
    %v2976 = vrot.slane %v2975, 1
    %v2977 = vadd.f32 %v2975, %v2976
    %v2978 = vadd.f32 %v1998, %v2014
    %v2979 = vadd.f32 %v2978, %v2030
    %v2980 = vadd.f32 %v2979, %v2046
    %v2981 = vadd.f32 %v2980, %v2062
    %v2982 = vadd.f32 %v2981, %v2078
    %v2983 = vadd.f32 %v2982, %v2094
    %v2984 = vadd.f32 %v2983, %v2110
    %v2985 = vadd.f32 %v2984, %v2126
    %v2986 = vadd.f32 %v2985, %v2142
    %v2987 = vadd.f32 %v2986, %v2158
    %v2988 = vadd.f32 %v2987, %v2174
    %v2989 = vadd.f32 %v2988, %v2190
    %v2990 = vadd.f32 %v2989, %v2206
    %v2991 = vadd.f32 %v2990, %v2222
    %v2992 = vadd.f32 %v2991, %v2238
    %v2993 = vadd.f32 %v2992, %v2254
    %v2994 = vadd.f32 %v2993, %v2270
    %v2995 = vadd.f32 %v2994, %v2286
    %v2996 = vadd.f32 %v2995, %v2302
    %v2997 = vadd.f32 %v2996, %v2318
    %v2998 = vadd.f32 %v2997, %v2334
    %v2999 = vadd.f32 %v2998, %v2350
    %v3000 = vadd.f32 %v2999, %v2366
    %v3001 = vadd.f32 %v3000, %v2382
    %v3002 = vadd.f32 %v3001, %v2398
    %v3003 = vadd.f32 %v3002, %v2414
    %v3004 = vadd.f32 %v3003, %v2430
    %v3005 = vadd.f32 %v3004, %v2446
    %v3006 = vadd.f32 %v3005, %v2462
    %v3007 = vadd.f32 %v3006, %v2478
    %v3008 = vadd.f32 %v3007, %v2494
    %v3009 = vrot.slane %v3008, 4
    %v3010 = vadd.f32 %v3008, %v3009
    %v3011 = vrot.slane %v3010, 2
    %v3012 = vadd.f32 %v3010, %v3011
    %v3013 = vrot.slane %v3012, 1
    %v3014 = vadd.f32 %v3012, %v3013
    %v3015 = vadd.f32 %v1999, %v2015
    %v3016 = vadd.f32 %v3015, %v2031
    %v3017 = vadd.f32 %v3016, %v2047
    %v3018 = vadd.f32 %v3017, %v2063
    %v3019 = vadd.f32 %v3018, %v2079
    %v3020 = vadd.f32 %v3019, %v2095
    %v3021 = vadd.f32 %v3020, %v2111
    %v3022 = vadd.f32 %v3021, %v2127
    %v3023 = vadd.f32 %v3022, %v2143
    %v3024 = vadd.f32 %v3023, %v2159
    %v3025 = vadd.f32 %v3024, %v2175
    %v3026 = vadd.f32 %v3025, %v2191
    %v3027 = vadd.f32 %v3026, %v2207
    %v3028 = vadd.f32 %v3027, %v2223
    %v3029 = vadd.f32 %v3028, %v2239
    %v3030 = vadd.f32 %v3029, %v2255
    %v3031 = vadd.f32 %v3030, %v2271
    %v3032 = vadd.f32 %v3031, %v2287
    %v3033 = vadd.f32 %v3032, %v2303
    %v3034 = vadd.f32 %v3033, %v2319
    %v3035 = vadd.f32 %v3034, %v2335
    %v3036 = vadd.f32 %v3035, %v2351
    %v3037 = vadd.f32 %v3036, %v2367
    %v3038 = vadd.f32 %v3037, %v2383
    %v3039 = vadd.f32 %v3038, %v2399
    %v3040 = vadd.f32 %v3039, %v2415
    %v3041 = vadd.f32 %v3040, %v2431
    %v3042 = vadd.f32 %v3041, %v2447
    %v3043 = vadd.f32 %v3042, %v2463
    %v3044 = vadd.f32 %v3043, %v2479
    %v3045 = vadd.f32 %v3044, %v2495
    %v3046 = vrot.slane %v3045, 4
    %v3047 = vadd.f32 %v3045, %v3046
    %v3048 = vrot.slane %v3047, 2
    %v3049 = vadd.f32 %v3047, %v3048
    %v3050 = vrot.slane %v3049, 1
    %v3051 = vadd.f32 %v3049, %v3050
    %v3052 = vadd.f32 %v2000, %v2016
    %v3053 = vadd.f32 %v3052, %v2032
    %v3054 = vadd.f32 %v3053, %v2048
    %v3055 = vadd.f32 %v3054, %v2064
    %v3056 = vadd.f32 %v3055, %v2080
    %v3057 = vadd.f32 %v3056, %v2096
    %v3058 = vadd.f32 %v3057, %v2112
    %v3059 = vadd.f32 %v3058, %v2128
    %v3060 = vadd.f32 %v3059, %v2144
    %v3061 = vadd.f32 %v3060, %v2160
    %v3062 = vadd.f32 %v3061, %v2176
    %v3063 = vadd.f32 %v3062, %v2192
    %v3064 = vadd.f32 %v3063, %v2208
    %v3065 = vadd.f32 %v3064, %v2224
    %v3066 = vadd.f32 %v3065, %v2240
    %v3067 = vadd.f32 %v3066, %v2256
    %v3068 = vadd.f32 %v3067, %v2272
    %v3069 = vadd.f32 %v3068, %v2288
    %v3070 = vadd.f32 %v3069, %v2304
    %v3071 = vadd.f32 %v3070, %v2320
    %v3072 = vadd.f32 %v3071, %v2336
    %v3073 = vadd.f32 %v3072, %v2352
    %v3074 = vadd.f32 %v3073, %v2368
    %v3075 = vadd.f32 %v3074, %v2384
    %v3076 = vadd.f32 %v3075, %v2400
    %v3077 = vadd.f32 %v3076, %v2416
    %v3078 = vadd.f32 %v3077, %v2432
    %v3079 = vadd.f32 %v3078, %v2448
    %v3080 = vadd.f32 %v3079, %v2464
    %v3081 = vadd.f32 %v3080, %v2480
    %v3082 = vadd.f32 %v3081, %v2496
    %v3083 = vrot.slane %v3082, 4
    %v3084 = vadd.f32 %v3082, %v3083
    %v3085 = vrot.slane %v3084, 2
    %v3086 = vadd.f32 %v3084, %v3085
    %v3087 = vrot.slane %v3086, 1
    %v3088 = vadd.f32 %v3086, %v3087
    %v3105 = vcombine.low %v2533, %v2570
    %v3106 = vcombine.low %v2607, %v2644
    %v3107 = vcombine.low %v2681, %v2718
    %v3108 = vcombine.low %v2755, %v2792
    %v3110 = vunpack.c.l.s4 1966171168
    %v3111 = vunpack.c.0.s8 %v3110
    %v3112 = vlaneseq
    %v3113 = vshrl.u32 %v3112, 7
    %v3114 = vsub.s32 %v3111, %v3113
    %v3115 = vrot.slane %v3105, %v3114
    %v3117 = vunpack.c.l.s4 1966171168
    %v3118 = vunpack.c.0.s8 %v3117
    %v3119 = vlaneseq
    %v3120 = vshrl.u32 %v3119, 7
    %v3121 = vsub.s32 %v3118, %v3120
    %v3122 = vrot.slane %v3106, %v3121
    %v3124 = vunpack.c.l.s4 1966171168
    %v3125 = vunpack.c.0.s8 %v3124
    %v3126 = vlaneseq
    %v3127 = vshrl.u32 %v3126, 7
    %v3128 = vsub.s32 %v3125, %v3127
    %v3129 = vrot.slane %v3107, %v3128
    %v3131 = vunpack.c.l.s4 1966171168
    %v3132 = vunpack.c.0.s8 %v3131
    %v3133 = vlaneseq
    %v3134 = vshrl.u32 %v3133, 7
    %v3135 = vsub.s32 %v3132, %v3134
    %v3136 = vrot.slane %v3108, %v3135
    %v3137 = vcombine.low %v3115, %v3122
    %v3138 = vcombine.low %v3129, %v3136
    %v3140 = vunpack.c.l.s4 1966171168
    %v3141 = vunpack.c.0.s8 %v3140
    %v3142 = vlaneseq
    %v3143 = vshrl.u32 %v3142, 7
    %v3144 = vsub.s32 %v3141, %v3143
    %v3145 = vrot.slane %v3137, %v3144
    %v3147 = vunpack.c.l.s4 1966171168
    %v3148 = vunpack.c.0.s8 %v3147
    %v3149 = vlaneseq
    %v3150 = vshrl.u32 %v3149, 7
    %v3151 = vsub.s32 %v3148, %v3150
    %v3152 = vrot.slane %v3138, %v3151
    %v3153 = vcombine.low %v3145, %v3152
    %v3154 = vcombine.low %v2829, %v2866
    %v3155 = vcombine.low %v2903, %v2940
    %v3156 = vcombine.low %v2977, %v3014
    %v3157 = vcombine.low %v3051, %v3088
    %v3159 = vunpack.c.l.s4 1966171168
    %v3160 = vunpack.c.0.s8 %v3159
    %v3161 = vlaneseq
    %v3162 = vshrl.u32 %v3161, 7
    %v3163 = vsub.s32 %v3160, %v3162
    %v3164 = vrot.slane %v3154, %v3163
    %v3166 = vunpack.c.l.s4 1966171168
    %v3167 = vunpack.c.0.s8 %v3166
    %v3168 = vlaneseq
    %v3169 = vshrl.u32 %v3168, 7
    %v3170 = vsub.s32 %v3167, %v3169
    %v3171 = vrot.slane %v3155, %v3170
    %v3173 = vunpack.c.l.s4 1966171168
    %v3174 = vunpack.c.0.s8 %v3173
    %v3175 = vlaneseq
    %v3176 = vshrl.u32 %v3175, 7
    %v3177 = vsub.s32 %v3174, %v3176
    %v3178 = vrot.slane %v3156, %v3177
    %v3180 = vunpack.c.l.s4 1966171168
    %v3181 = vunpack.c.0.s8 %v3180
    %v3182 = vlaneseq
    %v3183 = vshrl.u32 %v3182, 7
    %v3184 = vsub.s32 %v3181, %v3183
    %v3185 = vrot.slane %v3157, %v3184
    %v3186 = vcombine.low %v3164, %v3171
    %v3187 = vcombine.low %v3178, %v3185
    %v3189 = vunpack.c.l.s4 1966171168
    %v3190 = vunpack.c.0.s8 %v3189
    %v3191 = vlaneseq
    %v3192 = vshrl.u32 %v3191, 7
    %v3193 = vsub.s32 %v3190, %v3192
    %v3194 = vrot.slane %v3186, %v3193
    %v3196 = vunpack.c.l.s4 1966171168
    %v3197 = vunpack.c.0.s8 %v3196
    %v3198 = vlaneseq
    %v3199 = vshrl.u32 %v3198, 7
    %v3200 = vsub.s32 %v3197, %v3199
    %v3201 = vrot.slane %v3187, %v3200
    %v3202 = vcombine.low %v3194, %v3201
    %3205 = vst [vmem:[#allocation2] ss:$2 sm:$0xff] %v3153
    %s3206 = scalar_lea.vmem [#allocation2], 16
    %3207 = vst [vmem:[%s3206] ss:$2 sm:$0xff] %v3202
    %s3208 = scalar_lea.vmem %s0, 128
    %v3209 = vld [vmem:[%s3208] sm:$0xf]
    %v3210 = vld [vmem:[%s3208 + $0x4] sm:$0xf]
    %v3211 = vld [vmem:[%s3208 + $0x8] sm:$0xf]
    %v3212 = vld [vmem:[%s3208 + $0xc] sm:$0xf]
    %v3213 = vld [vmem:[%s3208 + $0x10] sm:$0xf]
    %v3214 = vld [vmem:[%s3208 + $0x14] sm:$0xf]
    %v3215 = vld [vmem:[%s3208 + $0x18] sm:$0xf]
    %v3216 = vld [vmem:[%s3208 + $0x1c] sm:$0xf]
    %v3217 = vld [vmem:[%s3208 + $0x20] sm:$0xf]
    %v3218 = vld [vmem:[%s3208 + $0x24] sm:$0xf]
    %v3219 = vld [vmem:[%s3208 + $0x28] sm:$0xf]
    %v3220 = vld [vmem:[%s3208 + $0x2c] sm:$0xf]
    %v3221 = vld [vmem:[%s3208 + $0x30] sm:$0xf]
    %v3222 = vld [vmem:[%s3208 + $0x34] sm:$0xf]
    %v3223 = vld [vmem:[%s3208 + $0x38] sm:$0xf]
    %v3224 = vld [vmem:[%s3208 + $0x3c] sm:$0xf]
    %v3225 = vld [vmem:[%s3208 + $0x40] sm:$0xf]
    %v3226 = vld [vmem:[%s3208 + $0x44] sm:$0xf]
    %v3227 = vld [vmem:[%s3208 + $0x48] sm:$0xf]
    %v3228 = vld [vmem:[%s3208 + $0x4c] sm:$0xf]
    %v3229 = vld [vmem:[%s3208 + $0x50] sm:$0xf]
    %v3230 = vld [vmem:[%s3208 + $0x54] sm:$0xf]
    %v3231 = vld [vmem:[%s3208 + $0x58] sm:$0xf]
    %v3232 = vld [vmem:[%s3208 + $0x5c] sm:$0xf]
    %v3233 = vld [vmem:[%s3208 + $0x60] sm:$0xf]
    %v3234 = vld [vmem:[%s3208 + $0x64] sm:$0xf]
    %v3235 = vld [vmem:[%s3208 + $0x68] sm:$0xf]
    %v3236 = vld [vmem:[%s3208 + $0x6c] sm:$0xf]
    %v3237 = vld [vmem:[%s3208 + $0x70] sm:$0xf]
    %v3238 = vld [vmem:[%s3208 + $0x74] sm:$0xf]
    %v3239 = vld [vmem:[%s3208 + $0x78] sm:$0xf]
    %v3240 = vld [vmem:[%s3208 + $0x7c] sm:$0xf]
    %v3241 = vld [vmem:[#allocation3] sm:$0xff]
    %v3242 = vld [vmem:[#allocation3 + $0x8] sm:$0xff]
    %v3243 = vld [vmem:[#allocation3 + $0x10] sm:$0xff]
    %v3244 = vld [vmem:[#allocation3 + $0x18] sm:$0xff]
    %v3245 = vld [vmem:[#allocation6] sm:$0xff]
    %v3246 = vld [vmem:[#allocation6 + $0x8] sm:$0xff]
    %v3249 = vlaneseq
    %v3250 = vshrl.u32 %v3249, 7
    %v3251 = vsub.s32 0, %v3250
    %v3252 = vrot.slane %v3245, %v3251
    %v3253 = vlaneseq
    %v3254 = vshrl.u32 %v3253, 7
    %v3255 = vsub.s32 1, %v3254
    %v3256 = vrot.slane %v3245, %v3255
    %v3257 = vlaneseq
    %v3258 = vshrl.u32 %v3257, 7
    %v3259 = vsub.s32 2, %v3258
    %v3260 = vrot.slane %v3245, %v3259
    %v3261 = vlaneseq
    %v3262 = vshrl.u32 %v3261, 7
    %v3263 = vsub.s32 3, %v3262
    %v3264 = vrot.slane %v3245, %v3263
    %v3265 = vlaneseq
    %v3266 = vshrl.u32 %v3265, 7
    %v3267 = vsub.s32 4, %v3266
    %v3268 = vrot.slane %v3245, %v3267
    %v3269 = vlaneseq
    %v3270 = vshrl.u32 %v3269, 7
    %v3271 = vsub.s32 5, %v3270
    %v3272 = vrot.slane %v3245, %v3271
    %v3273 = vlaneseq
    %v3274 = vshrl.u32 %v3273, 7
    %v3275 = vsub.s32 6, %v3274
    %v3276 = vrot.slane %v3245, %v3275
    %v3277 = vlaneseq
    %v3278 = vshrl.u32 %v3277, 7
    %v3279 = vsub.s32 7, %v3278
    %v3280 = vrot.slane %v3245, %v3279
    %v3281 = vlaneseq
    %v3282 = vshrl.u32 %v3281, 7
    %v3283 = vsub.s32 0, %v3282
    %v3284 = vrot.slane %v3246, %v3283
    %v3285 = vlaneseq
    %v3286 = vshrl.u32 %v3285, 7
    %v3287 = vsub.s32 1, %v3286
    %v3288 = vrot.slane %v3246, %v3287
    %v3289 = vlaneseq
    %v3290 = vshrl.u32 %v3289, 7
    %v3291 = vsub.s32 2, %v3290
    %v3292 = vrot.slane %v3246, %v3291
    %v3293 = vlaneseq
    %v3294 = vshrl.u32 %v3293, 7
    %v3295 = vsub.s32 3, %v3294
    %v3296 = vrot.slane %v3246, %v3295
    %v3297 = vlaneseq
    %v3298 = vshrl.u32 %v3297, 7
    %v3299 = vsub.s32 4, %v3298
    %v3300 = vrot.slane %v3246, %v3299
    %v3301 = vlaneseq
    %v3302 = vshrl.u32 %v3301, 7
    %v3303 = vsub.s32 5, %v3302
    %v3304 = vrot.slane %v3246, %v3303
    %v3305 = vlaneseq
    %v3306 = vshrl.u32 %v3305, 7
    %v3307 = vsub.s32 6, %v3306
    %v3308 = vrot.slane %v3246, %v3307
    %v3309 = vlaneseq
    %v3310 = vshrl.u32 %v3309, 7
    %v3311 = vsub.s32 7, %v3310
    %v3312 = vrot.slane %v3246, %v3311
    %v3361 = vunpack.c.l.b16 %v3209
    %v3362 = vunpack.c.l.b16 %v3210
    %v3363 = vunpack.c.l.b16 %v3211
    %v3364 = vunpack.c.l.b16 %v3212
    %v3365 = vunpack.c.l.b16 %v3213
    %v3366 = vunpack.c.l.b16 %v3214
    %v3367 = vunpack.c.l.b16 %v3215
    %v3368 = vunpack.c.l.b16 %v3216
    %v3369 = vunpack.c.l.b16 %v3217
    %v3370 = vunpack.c.l.b16 %v3218
    %v3371 = vunpack.c.l.b16 %v3219
    %v3372 = vunpack.c.l.b16 %v3220
    %v3373 = vunpack.c.l.b16 %v3221
    %v3374 = vunpack.c.l.b16 %v3222
    %v3375 = vunpack.c.l.b16 %v3223
    %v3376 = vunpack.c.l.b16 %v3224
    %v3377 = vunpack.c.l.b16 %v3225
    %v3378 = vunpack.c.l.b16 %v3226
    %v3379 = vunpack.c.l.b16 %v3227
    %v3380 = vunpack.c.l.b16 %v3228
    %v3381 = vunpack.c.l.b16 %v3229
    %v3382 = vunpack.c.l.b16 %v3230
    %v3383 = vunpack.c.l.b16 %v3231
    %v3384 = vunpack.c.l.b16 %v3232
    %v3385 = vunpack.c.l.b16 %v3233
    %v3386 = vunpack.c.l.b16 %v3234
    %v3387 = vunpack.c.l.b16 %v3235
    %v3388 = vunpack.c.l.b16 %v3236
    %v3389 = vunpack.c.l.b16 %v3237
    %v3390 = vunpack.c.l.b16 %v3238
    %v3391 = vunpack.c.l.b16 %v3239
    %v3392 = vunpack.c.l.b16 %v3240
    %v3393 = vpack.c.b16 %v3362, %v3361
    %v3394 = vpack.c.b16 %v3364, %v3363
    %v3395 = vpack.c.b16 %v3366, %v3365
    %v3396 = vpack.c.b16 %v3368, %v3367
    %v3397 = vpack.c.b16 %v3370, %v3369
    %v3398 = vpack.c.b16 %v3372, %v3371
    %v3399 = vpack.c.b16 %v3374, %v3373
    %v3400 = vpack.c.b16 %v3376, %v3375
    %v3401 = vpack.c.b16 %v3378, %v3377
    %v3402 = vpack.c.b16 %v3380, %v3379
    %v3403 = vpack.c.b16 %v3382, %v3381
    %v3404 = vpack.c.b16 %v3384, %v3383
    %v3405 = vpack.c.b16 %v3386, %v3385
    %v3406 = vpack.c.b16 %v3388, %v3387
    %v3407 = vpack.c.b16 %v3390, %v3389
    %v3408 = vpack.c.b16 %v3392, %v3391
    %v3413 = vcombine.high %v3241, %v3241
    %v3415 = vunpack.c.l.s4 1983009808
    %v3416 = vunpack.c.0.s8 %v3415
    %v3417 = vlaneseq
    %v3418 = vshrl.u32 %v3417, 7
    %v3419 = vsub.s32 %v3416, %v3418
    %v3420 = vrot.slane %v3241, %v3419
    %v3422 = vunpack.c.l.s4 1983009808
    %v3423 = vunpack.c.0.s8 %v3422
    %v3424 = vlaneseq
    %v3425 = vshrl.u32 %v3424, 7
    %v3426 = vsub.s32 %v3423, %v3425
    %v3427 = vrot.slane %v3413, %v3426
    %v3428 = vcombine.high %v3420, %v3420
    %v3429 = vcombine.high %v3427, %v3427
    %v3430 = vcombine.high %v3242, %v3242
    %v3432 = vunpack.c.l.s4 1983009808
    %v3433 = vunpack.c.0.s8 %v3432
    %v3434 = vlaneseq
    %v3435 = vshrl.u32 %v3434, 7
    %v3436 = vsub.s32 %v3433, %v3435
    %v3437 = vrot.slane %v3242, %v3436
    %v3439 = vunpack.c.l.s4 1983009808
    %v3440 = vunpack.c.0.s8 %v3439
    %v3441 = vlaneseq
    %v3442 = vshrl.u32 %v3441, 7
    %v3443 = vsub.s32 %v3440, %v3442
    %v3444 = vrot.slane %v3430, %v3443
    %v3445 = vcombine.high %v3437, %v3437
    %v3446 = vcombine.high %v3444, %v3444
    %v3447 = vcombine.high %v3243, %v3243
    %v3449 = vunpack.c.l.s4 1983009808
    %v3450 = vunpack.c.0.s8 %v3449
    %v3451 = vlaneseq
    %v3452 = vshrl.u32 %v3451, 7
    %v3453 = vsub.s32 %v3450, %v3452
    %v3454 = vrot.slane %v3243, %v3453
    %v3456 = vunpack.c.l.s4 1983009808
    %v3457 = vunpack.c.0.s8 %v3456
    %v3458 = vlaneseq
    %v3459 = vshrl.u32 %v3458, 7
    %v3460 = vsub.s32 %v3457, %v3459
    %v3461 = vrot.slane %v3447, %v3460
    %v3462 = vcombine.high %v3454, %v3454
    %v3463 = vcombine.high %v3461, %v3461
    %v3464 = vcombine.high %v3244, %v3244
    %v3466 = vunpack.c.l.s4 1983009808
    %v3467 = vunpack.c.0.s8 %v3466
    %v3468 = vlaneseq
    %v3469 = vshrl.u32 %v3468, 7
    %v3470 = vsub.s32 %v3467, %v3469
    %v3471 = vrot.slane %v3244, %v3470
    %v3473 = vunpack.c.l.s4 1983009808
    %v3474 = vunpack.c.0.s8 %v3473
    %v3475 = vlaneseq
    %v3476 = vshrl.u32 %v3475, 7
    %v3477 = vsub.s32 %v3474, %v3476
    %v3478 = vrot.slane %v3464, %v3477
    %v3479 = vcombine.high %v3471, %v3471
    %v3480 = vcombine.high %v3478, %v3478
    %v3482 = vsel %vm343, %v3393, 0
    %v3485 = vsel %vm343, %v3394, 0
    %v3488 = vsel %vm343, %v3395, 0
    %v3491 = vsel %vm343, %v3396, 0
    %v3494 = vsel %vm343, %v3397, 0
    %v3497 = vsel %vm343, %v3398, 0
    %v3500 = vsel %vm343, %v3399, 0
    %v3503 = vsel %vm343, %v3400, 0
    %v3506 = vsel %vm343, %v3401, 0
    %v3509 = vsel %vm343, %v3402, 0
    %v3512 = vsel %vm343, %v3403, 0
    %v3515 = vsel %vm343, %v3404, 0
    %v3518 = vsel %vm343, %v3405, 0
    %v3521 = vsel %vm343, %v3406, 0
    %v3524 = vsel %vm343, %v3407, 0
    %v3527 = vsel %vm343, %v3408, 0
    %v3530 = vsel %vm392, %v3420, 0
    %v3533 = vsel %vm392, %v3428, 0
    %v3536 = vsel %vm392, %v3427, 0
    %v3539 = vsel %vm392, %v3429, 0
    %v3542 = vsel %vm392, %v3437, 0
    %v3545 = vsel %vm392, %v3445, 0
    %v3548 = vsel %vm392, %v3444, 0
    %v3551 = vsel %vm392, %v3446, 0
    %v3554 = vsel %vm392, %v3454, 0
    %v3557 = vsel %vm392, %v3462, 0
    %v3560 = vsel %vm392, %v3461, 0
    %v3563 = vsel %vm392, %v3463, 0
    %v3566 = vsel %vm392, %v3471, 0
    %v3569 = vsel %vm392, %v3479, 0
    %v3572 = vsel %vm392, %v3478, 0
    %v3575 = vsel %vm392, %v3480, 0
    %3577 = vmatprep.subr.bf16.mxu0 %v3533
    %3578 = vmatpush1.bf16.msra.mxu0 %v3530
    %3579 = vmatprep.subr.bf16.mxu0 0
    %3580 = vmatpush1.bf16.msra.mxu0 0
    %3581 = vmatprep.subr.bf16.mxu0 0
    %3582 = vmatpush1.bf16.msra.mxu0 0
    %3583 = vmatprep.subr.bf16.mxu0 0
    %3584 = vmatpush1.bf16.msra.mxu0 0
    %3585 = vmatprep.subr.bf16.mxu0 0
    %3586 = vmatpush1.bf16.msra.mxu0 0
    %3587 = vmatprep.subr.bf16.mxu0 0
    %3588 = vmatpush1.bf16.msra.mxu0 0
    %3589 = vmatprep.subr.bf16.mxu0 0
    %3590 = vmatpush1.bf16.msra.mxu0 0
    %3591 = vmatprep.subr.bf16.mxu0 0
    %3592 = vmatpush1.bf16.msra.mxu0 0
    %3593 = vmatprep.subr.bf16.mxu0 0
    %3594 = vmatpush1.bf16.msra.mxu0 0
    %3595 = vmatprep.subr.bf16.mxu0 0
    %3596 = vmatpush1.bf16.msra.mxu0 0
    %3597 = vmatprep.subr.bf16.mxu0 0
    %3598 = vmatpush1.bf16.msra.mxu0 0
    %3599 = vmatprep.subr.bf16.mxu0 0
    %3600 = vmatpush1.bf16.msra.mxu0 0
    %3601 = vmatprep.subr.bf16.mxu0 0
    %3602 = vmatpush1.bf16.msra.mxu0 0
    %3603 = vmatprep.subr.bf16.mxu0 0
    %3604 = vmatpush1.bf16.msra.mxu0 0
    %3605 = vmatprep.subr.bf16.mxu0 0
    %3606 = vmatpush1.bf16.msra.mxu0 0
    %3607 = vmatprep.subr.bf16.mxu0 0
    %3608 = vmatpush1.bf16.msra.mxu0 0
    %3609 = vmatprep.mubr.bf16.mxu0 0
    %3610 = vmatmul.mubr.bf16.gmra.mrb[0].mxu0 %v3482
    %v3611 = vpop.f32.mrb[0].mxu0
    %v3612 = vadd.f32 %v3252, %v3611
    %v3613 = vpop.f32.mrb[0].mxu0
    %v3614 = vadd.f32 %v3256, %v3613
    %v3615 = vpop.f32.mrb[0].mxu0
    %v3616 = vadd.f32 %v3252, %v3615
    %v3617 = vpop.f32.mrb[0].mxu0
    %v3618 = vadd.f32 %v3256, %v3617
    %3619 = vmatprep.mubr.bf16.mxu0 0
    %3620 = vmatmul.mubr.bf16.gmra.mrb[0].mxu0 %v3485
    %v3621 = vpop.f32.mrb[0].mxu0
    %v3622 = vadd.f32 %v3252, %v3621
    %v3623 = vpop.f32.mrb[0].mxu0
    %v3624 = vadd.f32 %v3256, %v3623
    %v3625 = vpop.f32.mrb[0].mxu0
    %v3626 = vadd.f32 %v3252, %v3625
    %v3627 = vpop.f32.mrb[0].mxu0
    %v3628 = vadd.f32 %v3256, %v3627
    %3629 = vmatprep.mubr.bf16.mxu0 0
    %3630 = vmatmul.mubr.bf16.gmra.mrb[0].mxu0 %v3488
    %v3631 = vpop.f32.mrb[0].mxu0
    %v3632 = vadd.f32 %v3252, %v3631
    %v3633 = vpop.f32.mrb[0].mxu0
    %v3634 = vadd.f32 %v3256, %v3633
    %v3635 = vpop.f32.mrb[0].mxu0
    %v3636 = vadd.f32 %v3252, %v3635
    %v3637 = vpop.f32.mrb[0].mxu0
    %v3638 = vadd.f32 %v3256, %v3637
    %3639 = vmatprep.mubr.bf16.mxu0 0
    %3640 = vmatmul.mubr.bf16.gmra.mrb[0].mxu0 %v3491
    %v3641 = vpop.f32.mrb[0].mxu0
    %v3642 = vadd.f32 %v3252, %v3641
    %v3643 = vpop.f32.mrb[0].mxu0
    %v3644 = vadd.f32 %v3256, %v3643
    %v3645 = vpop.f32.mrb[0].mxu0
    %v3646 = vadd.f32 %v3252, %v3645
    %v3647 = vpop.f32.mrb[0].mxu0
    %v3648 = vadd.f32 %v3256, %v3647
    %3649 = vmatprep.mubr.bf16.mxu0 0
    %3650 = vmatmul.mubr.bf16.gmra.mrb[0].mxu0 %v3494
    %v3651 = vpop.f32.mrb[0].mxu0
    %v3652 = vadd.f32 %v3252, %v3651
    %v3653 = vpop.f32.mrb[0].mxu0
    %v3654 = vadd.f32 %v3256, %v3653
    %v3655 = vpop.f32.mrb[0].mxu0
    %v3656 = vadd.f32 %v3252, %v3655
    %v3657 = vpop.f32.mrb[0].mxu0
    %v3658 = vadd.f32 %v3256, %v3657
    %3659 = vmatprep.mubr.bf16.mxu0 0
    %3660 = vmatmul.mubr.bf16.gmra.mrb[0].mxu0 %v3497
    %v3661 = vpop.f32.mrb[0].mxu0
    %v3662 = vadd.f32 %v3252, %v3661
    %v3663 = vpop.f32.mrb[0].mxu0
    %v3664 = vadd.f32 %v3256, %v3663
    %v3665 = vpop.f32.mrb[0].mxu0
    %v3666 = vadd.f32 %v3252, %v3665
    %v3667 = vpop.f32.mrb[0].mxu0
    %v3668 = vadd.f32 %v3256, %v3667
    %3669 = vmatprep.mubr.bf16.mxu0 0
    %3670 = vmatmul.mubr.bf16.gmra.mrb[0].mxu0 %v3500
    %v3671 = vpop.f32.mrb[0].mxu0
    %v3672 = vadd.f32 %v3252, %v3671
    %v3673 = vpop.f32.mrb[0].mxu0
    %v3674 = vadd.f32 %v3256, %v3673
    %v3675 = vpop.f32.mrb[0].mxu0
    %v3676 = vadd.f32 %v3252, %v3675
    %v3677 = vpop.f32.mrb[0].mxu0
    %v3678 = vadd.f32 %v3256, %v3677
    %3679 = vmatprep.mubr.bf16.mxu0 0
    %3680 = vmatmul.mubr.bf16.gmra.mrb[0].mxu0 %v3503
    %v3681 = vpop.f32.mrb[0].mxu0
    %v3682 = vadd.f32 %v3252, %v3681
    %v3683 = vpop.f32.mrb[0].mxu0
    %v3684 = vadd.f32 %v3256, %v3683
    %v3685 = vpop.f32.mrb[0].mxu0
    %v3686 = vadd.f32 %v3252, %v3685
    %v3687 = vpop.f32.mrb[0].mxu0
    %v3688 = vadd.f32 %v3256, %v3687
    %3689 = vmatprep.mubr.bf16.mxu0 0
    %3690 = vmatmul.mubr.bf16.gmra.mrb[0].mxu0 %v3506
    %v3691 = vpop.f32.mrb[0].mxu0
    %v3692 = vadd.f32 %v3252, %v3691
    %v3693 = vpop.f32.mrb[0].mxu0
    %v3694 = vadd.f32 %v3256, %v3693
    %v3695 = vpop.f32.mrb[0].mxu0
    %v3696 = vadd.f32 %v3252, %v3695
    %v3697 = vpop.f32.mrb[0].mxu0
    %v3698 = vadd.f32 %v3256, %v3697
    %3699 = vmatprep.mubr.bf16.mxu0 0
    %3700 = vmatmul.mubr.bf16.gmra.mrb[0].mxu0 %v3509
    %v3701 = vpop.f32.mrb[0].mxu0
    %v3702 = vadd.f32 %v3252, %v3701
    %v3703 = vpop.f32.mrb[0].mxu0
    %v3704 = vadd.f32 %v3256, %v3703
    %v3705 = vpop.f32.mrb[0].mxu0
    %v3706 = vadd.f32 %v3252, %v3705
    %v3707 = vpop.f32.mrb[0].mxu0
    %v3708 = vadd.f32 %v3256, %v3707
    %3709 = vmatprep.mubr.bf16.mxu0 0
    %3710 = vmatmul.mubr.bf16.gmra.mrb[0].mxu0 %v3512
    %v3711 = vpop.f32.mrb[0].mxu0
    %v3712 = vadd.f32 %v3252, %v3711
    %v3713 = vpop.f32.mrb[0].mxu0
    %v3714 = vadd.f32 %v3256, %v3713
    %v3715 = vpop.f32.mrb[0].mxu0
    %v3716 = vadd.f32 %v3252, %v3715
    %v3717 = vpop.f32.mrb[0].mxu0
    %v3718 = vadd.f32 %v3256, %v3717
    %3719 = vmatprep.mubr.bf16.mxu0 0
    %3720 = vmatmul.mubr.bf16.gmra.mrb[0].mxu0 %v3515
    %v3721 = vpop.f32.mrb[0].mxu0
    %v3722 = vadd.f32 %v3252, %v3721
    %v3723 = vpop.f32.mrb[0].mxu0
    %v3724 = vadd.f32 %v3256, %v3723
    %v3725 = vpop.f32.mrb[0].mxu0
    %v3726 = vadd.f32 %v3252, %v3725
    %v3727 = vpop.f32.mrb[0].mxu0
    %v3728 = vadd.f32 %v3256, %v3727
    %3729 = vmatprep.mubr.bf16.mxu0 0
    %3730 = vmatmul.mubr.bf16.gmra.mrb[0].mxu0 %v3518
    %v3731 = vpop.f32.mrb[0].mxu0
    %v3732 = vadd.f32 %v3252, %v3731
    %v3733 = vpop.f32.mrb[0].mxu0
    %v3734 = vadd.f32 %v3256, %v3733
    %v3735 = vpop.f32.mrb[0].mxu0
    %v3736 = vadd.f32 %v3252, %v3735
    %v3737 = vpop.f32.mrb[0].mxu0
    %v3738 = vadd.f32 %v3256, %v3737
    %3739 = vmatprep.mubr.bf16.mxu0 0
    %3740 = vmatmul.mubr.bf16.gmra.mrb[0].mxu0 %v3521
    %v3741 = vpop.f32.mrb[0].mxu0
    %v3742 = vadd.f32 %v3252, %v3741
    %v3743 = vpop.f32.mrb[0].mxu0
    %v3744 = vadd.f32 %v3256, %v3743
    %v3745 = vpop.f32.mrb[0].mxu0
    %v3746 = vadd.f32 %v3252, %v3745
    %v3747 = vpop.f32.mrb[0].mxu0
    %v3748 = vadd.f32 %v3256, %v3747
    %3749 = vmatprep.mubr.bf16.mxu0 0
    %3750 = vmatmul.mubr.bf16.gmra.mrb[0].mxu0 %v3524
    %v3751 = vpop.f32.mrb[0].mxu0
    %v3752 = vadd.f32 %v3252, %v3751
    %v3753 = vpop.f32.mrb[0].mxu0
    %v3754 = vadd.f32 %v3256, %v3753
    %v3755 = vpop.f32.mrb[0].mxu0
    %v3756 = vadd.f32 %v3252, %v3755
    %v3757 = vpop.f32.mrb[0].mxu0
    %v3758 = vadd.f32 %v3256, %v3757
    %3759 = vmatprep.mubr.bf16.mxu0 0
    %3760 = vmatmul.mubr.bf16.gmra.mrb[0].mxu0 %v3527
    %v3761 = vpop.f32.mrb[0].mxu0
    %v3762 = vadd.f32 %v3252, %v3761
    %v3763 = vpop.f32.mrb[0].mxu0
    %v3764 = vadd.f32 %v3256, %v3763
    %v3765 = vpop.f32.mrb[0].mxu0
    %v3766 = vadd.f32 %v3252, %v3765
    %v3767 = vpop.f32.mrb[0].mxu0
    %v3768 = vadd.f32 %v3256, %v3767
    %3769 = vdwg.mxu0
    %3770 = vmatprep.subr.bf16.mxu0 %v3539
    %3771 = vmatpush1.bf16.msra.mxu0 %v3536
    %3772 = vmatprep.subr.bf16.mxu0 0
    %3773 = vmatpush1.bf16.msra.mxu0 0
    %3774 = vmatprep.subr.bf16.mxu0 0
    %3775 = vmatpush1.bf16.msra.mxu0 0
    %3776 = vmatprep.subr.bf16.mxu0 0
    %3777 = vmatpush1.bf16.msra.mxu0 0
    %3778 = vmatprep.subr.bf16.mxu0 0
    %3779 = vmatpush1.bf16.msra.mxu0 0
    %3780 = vmatprep.subr.bf16.mxu0 0
    %3781 = vmatpush1.bf16.msra.mxu0 0
    %3782 = vmatprep.subr.bf16.mxu0 0
    %3783 = vmatpush1.bf16.msra.mxu0 0
    %3784 = vmatprep.subr.bf16.mxu0 0
    %3785 = vmatpush1.bf16.msra.mxu0 0
    %3786 = vmatprep.subr.bf16.mxu0 0
    %3787 = vmatpush1.bf16.msra.mxu0 0
    %3788 = vmatprep.subr.bf16.mxu0 0
    %3789 = vmatpush1.bf16.msra.mxu0 0
    %3790 = vmatprep.subr.bf16.mxu0 0
    %3791 = vmatpush1.bf16.msra.mxu0 0
    %3792 = vmatprep.subr.bf16.mxu0 0
    %3793 = vmatpush1.bf16.msra.mxu0 0
    %3794 = vmatprep.subr.bf16.mxu0 0
    %3795 = vmatpush1.bf16.msra.mxu0 0
    %3796 = vmatprep.subr.bf16.mxu0 0
    %3797 = vmatpush1.bf16.msra.mxu0 0
    %3798 = vmatprep.subr.bf16.mxu0 0
    %3799 = vmatpush1.bf16.msra.mxu0 0
    %3800 = vmatprep.subr.bf16.mxu0 0
    %3801 = vmatpush1.bf16.msra.mxu0 0
    %3802 = vmatprep.mubr.bf16.mxu0 0
    %3803 = vmatmul.mubr.bf16.gmra.mrb[0].mxu0 %v3482
    %v3804 = vpop.f32.mrb[0].mxu0
    %v3805 = vadd.f32 %v3260, %v3804
    %v3806 = vpop.f32.mrb[0].mxu0
    %v3807 = vadd.f32 %v3264, %v3806
    %v3808 = vpop.f32.mrb[0].mxu0
    %v3809 = vadd.f32 %v3260, %v3808
    %v3810 = vpop.f32.mrb[0].mxu0
    %v3811 = vadd.f32 %v3264, %v3810
    %3812 = vmatprep.mubr.bf16.mxu0 0
    %3813 = vmatmul.mubr.bf16.gmra.mrb[0].mxu0 %v3485
    %v3814 = vpop.f32.mrb[0].mxu0
    %v3815 = vadd.f32 %v3260, %v3814
    %v3816 = vpop.f32.mrb[0].mxu0
    %v3817 = vadd.f32 %v3264, %v3816
    %v3818 = vpop.f32.mrb[0].mxu0
    %v3819 = vadd.f32 %v3260, %v3818
    %v3820 = vpop.f32.mrb[0].mxu0
    %v3821 = vadd.f32 %v3264, %v3820
    %3822 = vmatprep.mubr.bf16.mxu0 0
    %3823 = vmatmul.mubr.bf16.gmra.mrb[0].mxu0 %v3488
    %v3824 = vpop.f32.mrb[0].mxu0
    %v3825 = vadd.f32 %v3260, %v3824
    %v3826 = vpop.f32.mrb[0].mxu0
    %v3827 = vadd.f32 %v3264, %v3826
    %v3828 = vpop.f32.mrb[0].mxu0
    %v3829 = vadd.f32 %v3260, %v3828
    %v3830 = vpop.f32.mrb[0].mxu0
    %v3831 = vadd.f32 %v3264, %v3830
    %3832 = vmatprep.mubr.bf16.mxu0 0
    %3833 = vmatmul.mubr.bf16.gmra.mrb[0].mxu0 %v3491
    %v3834 = vpop.f32.mrb[0].mxu0
    %v3835 = vadd.f32 %v3260, %v3834
    %v3836 = vpop.f32.mrb[0].mxu0
    %v3837 = vadd.f32 %v3264, %v3836
    %v3838 = vpop.f32.mrb[0].mxu0
    %v3839 = vadd.f32 %v3260, %v3838
    %v3840 = vpop.f32.mrb[0].mxu0
    %v3841 = vadd.f32 %v3264, %v3840
    %3842 = vmatprep.mubr.bf16.mxu0 0
    %3843 = vmatmul.mubr.bf16.gmra.mrb[0].mxu0 %v3494
    %v3844 = vpop.f32.mrb[0].mxu0
    %v3845 = vadd.f32 %v3260, %v3844
    %v3846 = vpop.f32.mrb[0].mxu0
    %v3847 = vadd.f32 %v3264, %v3846
    %v3848 = vpop.f32.mrb[0].mxu0
    %v3849 = vadd.f32 %v3260, %v3848
    %v3850 = vpop.f32.mrb[0].mxu0
    %v3851 = vadd.f32 %v3264, %v3850
    %3852 = vmatprep.mubr.bf16.mxu0 0
    %3853 = vmatmul.mubr.bf16.gmra.mrb[0].mxu0 %v3497
    %v3854 = vpop.f32.mrb[0].mxu0
    %v3855 = vadd.f32 %v3260, %v3854
    %v3856 = vpop.f32.mrb[0].mxu0
    %v3857 = vadd.f32 %v3264, %v3856
    %v3858 = vpop.f32.mrb[0].mxu0
    %v3859 = vadd.f32 %v3260, %v3858
    %v3860 = vpop.f32.mrb[0].mxu0
    %v3861 = vadd.f32 %v3264, %v3860
    %3862 = vmatprep.mubr.bf16.mxu0 0
    %3863 = vmatmul.mubr.bf16.gmra.mrb[0].mxu0 %v3500
    %v3864 = vpop.f32.mrb[0].mxu0
    %v3865 = vadd.f32 %v3260, %v3864
    %v3866 = vpop.f32.mrb[0].mxu0
    %v3867 = vadd.f32 %v3264, %v3866
    %v3868 = vpop.f32.mrb[0].mxu0
    %v3869 = vadd.f32 %v3260, %v3868
    %v3870 = vpop.f32.mrb[0].mxu0
    %v3871 = vadd.f32 %v3264, %v3870
    %3872 = vmatprep.mubr.bf16.mxu0 0
    %3873 = vmatmul.mubr.bf16.gmra.mrb[0].mxu0 %v3503
    %v3874 = vpop.f32.mrb[0].mxu0
    %v3875 = vadd.f32 %v3260, %v3874
    %v3876 = vpop.f32.mrb[0].mxu0
    %v3877 = vadd.f32 %v3264, %v3876
    %v3878 = vpop.f32.mrb[0].mxu0
    %v3879 = vadd.f32 %v3260, %v3878
    %v3880 = vpop.f32.mrb[0].mxu0
    %v3881 = vadd.f32 %v3264, %v3880
    %3882 = vmatprep.mubr.bf16.mxu0 0
    %3883 = vmatmul.mubr.bf16.gmra.mrb[0].mxu0 %v3506
    %v3884 = vpop.f32.mrb[0].mxu0
    %v3885 = vadd.f32 %v3260, %v3884
    %v3886 = vpop.f32.mrb[0].mxu0
    %v3887 = vadd.f32 %v3264, %v3886
    %v3888 = vpop.f32.mrb[0].mxu0
    %v3889 = vadd.f32 %v3260, %v3888
    %v3890 = vpop.f32.mrb[0].mxu0
    %v3891 = vadd.f32 %v3264, %v3890
    %3892 = vmatprep.mubr.bf16.mxu0 0
    %3893 = vmatmul.mubr.bf16.gmra.mrb[0].mxu0 %v3509
    %v3894 = vpop.f32.mrb[0].mxu0
    %v3895 = vadd.f32 %v3260, %v3894
    %v3896 = vpop.f32.mrb[0].mxu0
    %v3897 = vadd.f32 %v3264, %v3896
    %v3898 = vpop.f32.mrb[0].mxu0
    %v3899 = vadd.f32 %v3260, %v3898
    %v3900 = vpop.f32.mrb[0].mxu0
    %v3901 = vadd.f32 %v3264, %v3900
    %3902 = vmatprep.mubr.bf16.mxu0 0
    %3903 = vmatmul.mubr.bf16.gmra.mrb[0].mxu0 %v3512
    %v3904 = vpop.f32.mrb[0].mxu0
    %v3905 = vadd.f32 %v3260, %v3904
    %v3906 = vpop.f32.mrb[0].mxu0
    %v3907 = vadd.f32 %v3264, %v3906
    %v3908 = vpop.f32.mrb[0].mxu0
    %v3909 = vadd.f32 %v3260, %v3908
    %v3910 = vpop.f32.mrb[0].mxu0
    %v3911 = vadd.f32 %v3264, %v3910
    %3912 = vmatprep.mubr.bf16.mxu0 0
    %3913 = vmatmul.mubr.bf16.gmra.mrb[0].mxu0 %v3515
    %v3914 = vpop.f32.mrb[0].mxu0
    %v3915 = vadd.f32 %v3260, %v3914
    %v3916 = vpop.f32.mrb[0].mxu0
    %v3917 = vadd.f32 %v3264, %v3916
    %v3918 = vpop.f32.mrb[0].mxu0
    %v3919 = vadd.f32 %v3260, %v3918
    %v3920 = vpop.f32.mrb[0].mxu0
    %v3921 = vadd.f32 %v3264, %v3920
    %3922 = vmatprep.mubr.bf16.mxu0 0
    %3923 = vmatmul.mubr.bf16.gmra.mrb[0].mxu0 %v3518
    %v3924 = vpop.f32.mrb[0].mxu0
    %v3925 = vadd.f32 %v3260, %v3924
    %v3926 = vpop.f32.mrb[0].mxu0
    %v3927 = vadd.f32 %v3264, %v3926
    %v3928 = vpop.f32.mrb[0].mxu0
    %v3929 = vadd.f32 %v3260, %v3928
    %v3930 = vpop.f32.mrb[0].mxu0
    %v3931 = vadd.f32 %v3264, %v3930
    %3932 = vmatprep.mubr.bf16.mxu0 0
    %3933 = vmatmul.mubr.bf16.gmra.mrb[0].mxu0 %v3521
    %v3934 = vpop.f32.mrb[0].mxu0
    %v3935 = vadd.f32 %v3260, %v3934
    %v3936 = vpop.f32.mrb[0].mxu0
    %v3937 = vadd.f32 %v3264, %v3936
    %v3938 = vpop.f32.mrb[0].mxu0
    %v3939 = vadd.f32 %v3260, %v3938
    %v3940 = vpop.f32.mrb[0].mxu0
    %v3941 = vadd.f32 %v3264, %v3940
    %3942 = vmatprep.mubr.bf16.mxu0 0
    %3943 = vmatmul.mubr.bf16.gmra.mrb[0].mxu0 %v3524
    %v3944 = vpop.f32.mrb[0].mxu0
    %v3945 = vadd.f32 %v3260, %v3944
    %v3946 = vpop.f32.mrb[0].mxu0
    %v3947 = vadd.f32 %v3264, %v3946
    %v3948 = vpop.f32.mrb[0].mxu0
    %v3949 = vadd.f32 %v3260, %v3948
    %v3950 = vpop.f32.mrb[0].mxu0
    %v3951 = vadd.f32 %v3264, %v3950
    %3952 = vmatprep.mubr.bf16.mxu0 0
    %3953 = vmatmul.mubr.bf16.gmra.mrb[0].mxu0 %v3527
    %v3954 = vpop.f32.mrb[0].mxu0
    %v3955 = vadd.f32 %v3260, %v3954
    %v3956 = vpop.f32.mrb[0].mxu0
    %v3957 = vadd.f32 %v3264, %v3956
    %v3958 = vpop.f32.mrb[0].mxu0
    %v3959 = vadd.f32 %v3260, %v3958
    %v3960 = vpop.f32.mrb[0].mxu0
    %v3961 = vadd.f32 %v3264, %v3960
    %3962 = vdwg.mxu0
    %3963 = vmatprep.subr.bf16.mxu0 %v3545
    %3964 = vmatpush1.bf16.msra.mxu0 %v3542
    %3965 = vmatprep.subr.bf16.mxu0 0
    %3966 = vmatpush1.bf16.msra.mxu0 0
    %3967 = vmatprep.subr.bf16.mxu0 0
    %3968 = vmatpush1.bf16.msra.mxu0 0
    %3969 = vmatprep.subr.bf16.mxu0 0
    %3970 = vmatpush1.bf16.msra.mxu0 0
    %3971 = vmatprep.subr.bf16.mxu0 0
    %3972 = vmatpush1.bf16.msra.mxu0 0
    %3973 = vmatprep.subr.bf16.mxu0 0
    %3974 = vmatpush1.bf16.msra.mxu0 0
    %3975 = vmatprep.subr.bf16.mxu0 0
    %3976 = vmatpush1.bf16.msra.mxu0 0
    %3977 = vmatprep.subr.bf16.mxu0 0
    %3978 = vmatpush1.bf16.msra.mxu0 0
    %3979 = vmatprep.subr.bf16.mxu0 0
    %3980 = vmatpush1.bf16.msra.mxu0 0
    %3981 = vmatprep.subr.bf16.mxu0 0
    %3982 = vmatpush1.bf16.msra.mxu0 0
    %3983 = vmatprep.subr.bf16.mxu0 0
    %3984 = vmatpush1.bf16.msra.mxu0 0
    %3985 = vmatprep.subr.bf16.mxu0 0
    %3986 = vmatpush1.bf16.msra.mxu0 0
    %3987 = vmatprep.subr.bf16.mxu0 0
    %3988 = vmatpush1.bf16.msra.mxu0 0
    %3989 = vmatprep.subr.bf16.mxu0 0
    %3990 = vmatpush1.bf16.msra.mxu0 0
    %3991 = vmatprep.subr.bf16.mxu0 0
    %3992 = vmatpush1.bf16.msra.mxu0 0
    %3993 = vmatprep.subr.bf16.mxu0 0
    %3994 = vmatpush1.bf16.msra.mxu0 0
    %3995 = vmatprep.mubr.bf16.mxu0 0
    %3996 = vmatmul.mubr.bf16.gmra.mrb[0].mxu0 %v3482
    %v3997 = vpop.f32.mrb[0].mxu0
    %v3998 = vadd.f32 %v3268, %v3997
    %v3999 = vpop.f32.mrb[0].mxu0
    %v4000 = vadd.f32 %v3272, %v3999
    %v4001 = vpop.f32.mrb[0].mxu0
    %v4002 = vadd.f32 %v3268, %v4001
    %v4003 = vpop.f32.mrb[0].mxu0
    %v4004 = vadd.f32 %v3272, %v4003
    %4005 = vmatprep.mubr.bf16.mxu0 0
    %4006 = vmatmul.mubr.bf16.gmra.mrb[0].mxu0 %v3485
    %v4007 = vpop.f32.mrb[0].mxu0
    %v4008 = vadd.f32 %v3268, %v4007
    %v4009 = vpop.f32.mrb[0].mxu0
    %v4010 = vadd.f32 %v3272, %v4009
    %v4011 = vpop.f32.mrb[0].mxu0
    %v4012 = vadd.f32 %v3268, %v4011
    %v4013 = vpop.f32.mrb[0].mxu0
    %v4014 = vadd.f32 %v3272, %v4013
    %4015 = vmatprep.mubr.bf16.mxu0 0
    %4016 = vmatmul.mubr.bf16.gmra.mrb[0].mxu0 %v3488
    %v4017 = vpop.f32.mrb[0].mxu0
    %v4018 = vadd.f32 %v3268, %v4017
    %v4019 = vpop.f32.mrb[0].mxu0
    %v4020 = vadd.f32 %v3272, %v4019
    %v4021 = vpop.f32.mrb[0].mxu0
    %v4022 = vadd.f32 %v3268, %v4021
    %v4023 = vpop.f32.mrb[0].mxu0
    %v4024 = vadd.f32 %v3272, %v4023
    %4025 = vmatprep.mubr.bf16.mxu0 0
    %4026 = vmatmul.mubr.bf16.gmra.mrb[0].mxu0 %v3491
    %v4027 = vpop.f32.mrb[0].mxu0
    %v4028 = vadd.f32 %v3268, %v4027
    %v4029 = vpop.f32.mrb[0].mxu0
    %v4030 = vadd.f32 %v3272, %v4029
    %v4031 = vpop.f32.mrb[0].mxu0
    %v4032 = vadd.f32 %v3268, %v4031
    %v4033 = vpop.f32.mrb[0].mxu0
    %v4034 = vadd.f32 %v3272, %v4033
    %4035 = vmatprep.mubr.bf16.mxu0 0
    %4036 = vmatmul.mubr.bf16.gmra.mrb[0].mxu0 %v3494
    %v4037 = vpop.f32.mrb[0].mxu0
    %v4038 = vadd.f32 %v3268, %v4037
    %v4039 = vpop.f32.mrb[0].mxu0
    %v4040 = vadd.f32 %v3272, %v4039
    %v4041 = vpop.f32.mrb[0].mxu0
    %v4042 = vadd.f32 %v3268, %v4041
    %v4043 = vpop.f32.mrb[0].mxu0
    %v4044 = vadd.f32 %v3272, %v4043
    %4045 = vmatprep.mubr.bf16.mxu0 0
    %4046 = vmatmul.mubr.bf16.gmra.mrb[0].mxu0 %v3497
    %v4047 = vpop.f32.mrb[0].mxu0
    %v4048 = vadd.f32 %v3268, %v4047
    %v4049 = vpop.f32.mrb[0].mxu0
    %v4050 = vadd.f32 %v3272, %v4049
    %v4051 = vpop.f32.mrb[0].mxu0
    %v4052 = vadd.f32 %v3268, %v4051
    %v4053 = vpop.f32.mrb[0].mxu0
    %v4054 = vadd.f32 %v3272, %v4053
    %4055 = vmatprep.mubr.bf16.mxu0 0
    %4056 = vmatmul.mubr.bf16.gmra.mrb[0].mxu0 %v3500
    %v4057 = vpop.f32.mrb[0].mxu0
    %v4058 = vadd.f32 %v3268, %v4057
    %v4059 = vpop.f32.mrb[0].mxu0
    %v4060 = vadd.f32 %v3272, %v4059
    %v4061 = vpop.f32.mrb[0].mxu0
    %v4062 = vadd.f32 %v3268, %v4061
    %v4063 = vpop.f32.mrb[0].mxu0
    %v4064 = vadd.f32 %v3272, %v4063
    %4065 = vmatprep.mubr.bf16.mxu0 0
    %4066 = vmatmul.mubr.bf16.gmra.mrb[0].mxu0 %v3503
    %v4067 = vpop.f32.mrb[0].mxu0
    %v4068 = vadd.f32 %v3268, %v4067
    %v4069 = vpop.f32.mrb[0].mxu0
    %v4070 = vadd.f32 %v3272, %v4069
    %v4071 = vpop.f32.mrb[0].mxu0
    %v4072 = vadd.f32 %v3268, %v4071
    %v4073 = vpop.f32.mrb[0].mxu0
    %v4074 = vadd.f32 %v3272, %v4073
    %4075 = vmatprep.mubr.bf16.mxu0 0
    %4076 = vmatmul.mubr.bf16.gmra.mrb[0].mxu0 %v3506
    %v4077 = vpop.f32.mrb[0].mxu0
    %v4078 = vadd.f32 %v3268, %v4077
    %v4079 = vpop.f32.mrb[0].mxu0
    %v4080 = vadd.f32 %v3272, %v4079
    %v4081 = vpop.f32.mrb[0].mxu0
    %v4082 = vadd.f32 %v3268, %v4081
    %v4083 = vpop.f32.mrb[0].mxu0
    %v4084 = vadd.f32 %v3272, %v4083
    %4085 = vmatprep.mubr.bf16.mxu0 0
    %4086 = vmatmul.mubr.bf16.gmra.mrb[0].mxu0 %v3509
    %v4087 = vpop.f32.mrb[0].mxu0
    %v4088 = vadd.f32 %v3268, %v4087
    %v4089 = vpop.f32.mrb[0].mxu0
    %v4090 = vadd.f32 %v3272, %v4089
    %v4091 = vpop.f32.mrb[0].mxu0
    %v4092 = vadd.f32 %v3268, %v4091
    %v4093 = vpop.f32.mrb[0].mxu0
    %v4094 = vadd.f32 %v3272, %v4093
    %4095 = vmatprep.mubr.bf16.mxu0 0
    %4096 = vmatmul.mubr.bf16.gmra.mrb[0].mxu0 %v3512
    %v4097 = vpop.f32.mrb[0].mxu0
    %v4098 = vadd.f32 %v3268, %v4097
    %v4099 = vpop.f32.mrb[0].mxu0
    %v4100 = vadd.f32 %v3272, %v4099
    %v4101 = vpop.f32.mrb[0].mxu0
    %v4102 = vadd.f32 %v3268, %v4101
    %v4103 = vpop.f32.mrb[0].mxu0
    %v4104 = vadd.f32 %v3272, %v4103
    %4105 = vmatprep.mubr.bf16.mxu0 0
    %4106 = vmatmul.mubr.bf16.gmra.mrb[0].mxu0 %v3515
    %v4107 = vpop.f32.mrb[0].mxu0
    %v4108 = vadd.f32 %v3268, %v4107
    %v4109 = vpop.f32.mrb[0].mxu0
    %v4110 = vadd.f32 %v3272, %v4109
    %v4111 = vpop.f32.mrb[0].mxu0
    %v4112 = vadd.f32 %v3268, %v4111
    %v4113 = vpop.f32.mrb[0].mxu0
    %v4114 = vadd.f32 %v3272, %v4113
    %4115 = vmatprep.mubr.bf16.mxu0 0
    %4116 = vmatmul.mubr.bf16.gmra.mrb[0].mxu0 %v3518
    %v4117 = vpop.f32.mrb[0].mxu0
    %v4118 = vadd.f32 %v3268, %v4117
    %v4119 = vpop.f32.mrb[0].mxu0
    %v4120 = vadd.f32 %v3272, %v4119
    %v4121 = vpop.f32.mrb[0].mxu0
    %v4122 = vadd.f32 %v3268, %v4121
    %v4123 = vpop.f32.mrb[0].mxu0
    %v4124 = vadd.f32 %v3272, %v4123
    %4125 = vmatprep.mubr.bf16.mxu0 0
    %4126 = vmatmul.mubr.bf16.gmra.mrb[0].mxu0 %v3521
    %v4127 = vpop.f32.mrb[0].mxu0
    %v4128 = vadd.f32 %v3268, %v4127
    %v4129 = vpop.f32.mrb[0].mxu0
    %v4130 = vadd.f32 %v3272, %v4129
    %v4131 = vpop.f32.mrb[0].mxu0
    %v4132 = vadd.f32 %v3268, %v4131
    %v4133 = vpop.f32.mrb[0].mxu0
    %v4134 = vadd.f32 %v3272, %v4133
    %4135 = vmatprep.mubr.bf16.mxu0 0
    %4136 = vmatmul.mubr.bf16.gmra.mrb[0].mxu0 %v3524
    %v4137 = vpop.f32.mrb[0].mxu0
    %v4138 = vadd.f32 %v3268, %v4137
    %v4139 = vpop.f32.mrb[0].mxu0
    %v4140 = vadd.f32 %v3272, %v4139
    %v4141 = vpop.f32.mrb[0].mxu0
    %v4142 = vadd.f32 %v3268, %v4141
    %v4143 = vpop.f32.mrb[0].mxu0
    %v4144 = vadd.f32 %v3272, %v4143
    %4145 = vmatprep.mubr.bf16.mxu0 0
    %4146 = vmatmul.mubr.bf16.gmra.mrb[0].mxu0 %v3527
    %v4147 = vpop.f32.mrb[0].mxu0
    %v4148 = vadd.f32 %v3268, %v4147
    %v4149 = vpop.f32.mrb[0].mxu0
    %v4150 = vadd.f32 %v3272, %v4149
    %v4151 = vpop.f32.mrb[0].mxu0
    %v4152 = vadd.f32 %v3268, %v4151
    %v4153 = vpop.f32.mrb[0].mxu0
    %v4154 = vadd.f32 %v3272, %v4153
    %4155 = vdwg.mxu0
    %4156 = vmatprep.subr.bf16.mxu0 %v3551
    %4157 = vmatpush1.bf16.msra.mxu0 %v3548
    %4158 = vmatprep.subr.bf16.mxu0 0
    %4159 = vmatpush1.bf16.msra.mxu0 0
    %4160 = vmatprep.subr.bf16.mxu0 0
    %4161 = vmatpush1.bf16.msra.mxu0 0
    %4162 = vmatprep.subr.bf16.mxu0 0
    %4163 = vmatpush1.bf16.msra.mxu0 0
    %4164 = vmatprep.subr.bf16.mxu0 0
    %4165 = vmatpush1.bf16.msra.mxu0 0
    %4166 = vmatprep.subr.bf16.mxu0 0
    %4167 = vmatpush1.bf16.msra.mxu0 0
    %4168 = vmatprep.subr.bf16.mxu0 0
    %4169 = vmatpush1.bf16.msra.mxu0 0
    %4170 = vmatprep.subr.bf16.mxu0 0
    %4171 = vmatpush1.bf16.msra.mxu0 0
    %4172 = vmatprep.subr.bf16.mxu0 0
    %4173 = vmatpush1.bf16.msra.mxu0 0
    %4174 = vmatprep.subr.bf16.mxu0 0
    %4175 = vmatpush1.bf16.msra.mxu0 0
    %4176 = vmatprep.subr.bf16.mxu0 0
    %4177 = vmatpush1.bf16.msra.mxu0 0
    %4178 = vmatprep.subr.bf16.mxu0 0
    %4179 = vmatpush1.bf16.msra.mxu0 0
    %4180 = vmatprep.subr.bf16.mxu0 0
    %4181 = vmatpush1.bf16.msra.mxu0 0
    %4182 = vmatprep.subr.bf16.mxu0 0
    %4183 = vmatpush1.bf16.msra.mxu0 0
    %4184 = vmatprep.subr.bf16.mxu0 0
    %4185 = vmatpush1.bf16.msra.mxu0 0
    %4186 = vmatprep.subr.bf16.mxu0 0
    %4187 = vmatpush1.bf16.msra.mxu0 0
    %4188 = vmatprep.mubr.bf16.mxu0 0
    %4189 = vmatmul.mubr.bf16.gmra.mrb[0].mxu0 %v3482
    %v4190 = vpop.f32.mrb[0].mxu0
    %v4191 = vadd.f32 %v3276, %v4190
    %v4192 = vpop.f32.mrb[0].mxu0
    %v4193 = vadd.f32 %v3280, %v4192
    %v4194 = vpop.f32.mrb[0].mxu0
    %v4195 = vadd.f32 %v3276, %v4194
    %v4196 = vpop.f32.mrb[0].mxu0
    %v4197 = vadd.f32 %v3280, %v4196
    %4198 = vmatprep.mubr.bf16.mxu0 0
    %4199 = vmatmul.mubr.bf16.gmra.mrb[0].mxu0 %v3485
    %v4200 = vpop.f32.mrb[0].mxu0
    %v4201 = vadd.f32 %v3276, %v4200
    %v4202 = vpop.f32.mrb[0].mxu0
    %v4203 = vadd.f32 %v3280, %v4202
    %v4204 = vpop.f32.mrb[0].mxu0
    %v4205 = vadd.f32 %v3276, %v4204
    %v4206 = vpop.f32.mrb[0].mxu0
    %v4207 = vadd.f32 %v3280, %v4206
    %4208 = vmatprep.mubr.bf16.mxu0 0
    %4209 = vmatmul.mubr.bf16.gmra.mrb[0].mxu0 %v3488
    %v4210 = vpop.f32.mrb[0].mxu0
    %v4211 = vadd.f32 %v3276, %v4210
    %v4212 = vpop.f32.mrb[0].mxu0
    %v4213 = vadd.f32 %v3280, %v4212
    %v4214 = vpop.f32.mrb[0].mxu0
    %v4215 = vadd.f32 %v3276, %v4214
    %v4216 = vpop.f32.mrb[0].mxu0
    %v4217 = vadd.f32 %v3280, %v4216
    %4218 = vmatprep.mubr.bf16.mxu0 0
    %4219 = vmatmul.mubr.bf16.gmra.mrb[0].mxu0 %v3491
    %v4220 = vpop.f32.mrb[0].mxu0
    %v4221 = vadd.f32 %v3276, %v4220
    %v4222 = vpop.f32.mrb[0].mxu0
    %v4223 = vadd.f32 %v3280, %v4222
    %v4224 = vpop.f32.mrb[0].mxu0
    %v4225 = vadd.f32 %v3276, %v4224
    %v4226 = vpop.f32.mrb[0].mxu0
    %v4227 = vadd.f32 %v3280, %v4226
    %4228 = vmatprep.mubr.bf16.mxu0 0
    %4229 = vmatmul.mubr.bf16.gmra.mrb[0].mxu0 %v3494
    %v4230 = vpop.f32.mrb[0].mxu0
    %v4231 = vadd.f32 %v3276, %v4230
    %v4232 = vpop.f32.mrb[0].mxu0
    %v4233 = vadd.f32 %v3280, %v4232
    %v4234 = vpop.f32.mrb[0].mxu0
    %v4235 = vadd.f32 %v3276, %v4234
    %v4236 = vpop.f32.mrb[0].mxu0
    %v4237 = vadd.f32 %v3280, %v4236
    %4238 = vmatprep.mubr.bf16.mxu0 0
    %4239 = vmatmul.mubr.bf16.gmra.mrb[0].mxu0 %v3497
    %v4240 = vpop.f32.mrb[0].mxu0
    %v4241 = vadd.f32 %v3276, %v4240
    %v4242 = vpop.f32.mrb[0].mxu0
    %v4243 = vadd.f32 %v3280, %v4242
    %v4244 = vpop.f32.mrb[0].mxu0
    %v4245 = vadd.f32 %v3276, %v4244
    %v4246 = vpop.f32.mrb[0].mxu0
    %v4247 = vadd.f32 %v3280, %v4246
    %4248 = vmatprep.mubr.bf16.mxu0 0
    %4249 = vmatmul.mubr.bf16.gmra.mrb[0].mxu0 %v3500
    %v4250 = vpop.f32.mrb[0].mxu0
    %v4251 = vadd.f32 %v3276, %v4250
    %v4252 = vpop.f32.mrb[0].mxu0
    %v4253 = vadd.f32 %v3280, %v4252
    %v4254 = vpop.f32.mrb[0].mxu0
    %v4255 = vadd.f32 %v3276, %v4254
    %v4256 = vpop.f32.mrb[0].mxu0
    %v4257 = vadd.f32 %v3280, %v4256
    %4258 = vmatprep.mubr.bf16.mxu0 0
    %4259 = vmatmul.mubr.bf16.gmra.mrb[0].mxu0 %v3503
    %v4260 = vpop.f32.mrb[0].mxu0
    %v4261 = vadd.f32 %v3276, %v4260
    %v4262 = vpop.f32.mrb[0].mxu0
    %v4263 = vadd.f32 %v3280, %v4262
    %v4264 = vpop.f32.mrb[0].mxu0
    %v4265 = vadd.f32 %v3276, %v4264
    %v4266 = vpop.f32.mrb[0].mxu0
    %v4267 = vadd.f32 %v3280, %v4266
    %4268 = vmatprep.mubr.bf16.mxu0 0
    %4269 = vmatmul.mubr.bf16.gmra.mrb[0].mxu0 %v3506
    %v4270 = vpop.f32.mrb[0].mxu0
    %v4271 = vadd.f32 %v3276, %v4270
    %v4272 = vpop.f32.mrb[0].mxu0
    %v4273 = vadd.f32 %v3280, %v4272
    %v4274 = vpop.f32.mrb[0].mxu0
    %v4275 = vadd.f32 %v3276, %v4274
    %v4276 = vpop.f32.mrb[0].mxu0
    %v4277 = vadd.f32 %v3280, %v4276
    %4278 = vmatprep.mubr.bf16.mxu0 0
    %4279 = vmatmul.mubr.bf16.gmra.mrb[0].mxu0 %v3509
    %v4280 = vpop.f32.mrb[0].mxu0
    %v4281 = vadd.f32 %v3276, %v4280
    %v4282 = vpop.f32.mrb[0].mxu0
    %v4283 = vadd.f32 %v3280, %v4282
    %v4284 = vpop.f32.mrb[0].mxu0
    %v4285 = vadd.f32 %v3276, %v4284
    %v4286 = vpop.f32.mrb[0].mxu0
    %v4287 = vadd.f32 %v3280, %v4286
    %4288 = vmatprep.mubr.bf16.mxu0 0
    %4289 = vmatmul.mubr.bf16.gmra.mrb[0].mxu0 %v3512
    %v4290 = vpop.f32.mrb[0].mxu0
    %v4291 = vadd.f32 %v3276, %v4290
    %v4292 = vpop.f32.mrb[0].mxu0
    %v4293 = vadd.f32 %v3280, %v4292
    %v4294 = vpop.f32.mrb[0].mxu0
    %v4295 = vadd.f32 %v3276, %v4294
    %v4296 = vpop.f32.mrb[0].mxu0
    %v4297 = vadd.f32 %v3280, %v4296
    %4298 = vmatprep.mubr.bf16.mxu0 0
    %4299 = vmatmul.mubr.bf16.gmra.mrb[0].mxu0 %v3515
    %v4300 = vpop.f32.mrb[0].mxu0
    %v4301 = vadd.f32 %v3276, %v4300
    %v4302 = vpop.f32.mrb[0].mxu0
    %v4303 = vadd.f32 %v3280, %v4302
    %v4304 = vpop.f32.mrb[0].mxu0
    %v4305 = vadd.f32 %v3276, %v4304
    %v4306 = vpop.f32.mrb[0].mxu0
    %v4307 = vadd.f32 %v3280, %v4306
    %4308 = vmatprep.mubr.bf16.mxu0 0
    %4309 = vmatmul.mubr.bf16.gmra.mrb[0].mxu0 %v3518
    %v4310 = vpop.f32.mrb[0].mxu0
    %v4311 = vadd.f32 %v3276, %v4310
    %v4312 = vpop.f32.mrb[0].mxu0
    %v4313 = vadd.f32 %v3280, %v4312
    %v4314 = vpop.f32.mrb[0].mxu0
    %v4315 = vadd.f32 %v3276, %v4314
    %v4316 = vpop.f32.mrb[0].mxu0
    %v4317 = vadd.f32 %v3280, %v4316
    %4318 = vmatprep.mubr.bf16.mxu0 0
    %4319 = vmatmul.mubr.bf16.gmra.mrb[0].mxu0 %v3521
    %v4320 = vpop.f32.mrb[0].mxu0
    %v4321 = vadd.f32 %v3276, %v4320
    %v4322 = vpop.f32.mrb[0].mxu0
    %v4323 = vadd.f32 %v3280, %v4322
    %v4324 = vpop.f32.mrb[0].mxu0
    %v4325 = vadd.f32 %v3276, %v4324
    %v4326 = vpop.f32.mrb[0].mxu0
    %v4327 = vadd.f32 %v3280, %v4326
    %4328 = vmatprep.mubr.bf16.mxu0 0
    %4329 = vmatmul.mubr.bf16.gmra.mrb[0].mxu0 %v3524
    %v4330 = vpop.f32.mrb[0].mxu0
    %v4331 = vadd.f32 %v3276, %v4330
    %v4332 = vpop.f32.mrb[0].mxu0
    %v4333 = vadd.f32 %v3280, %v4332
    %v4334 = vpop.f32.mrb[0].mxu0
    %v4335 = vadd.f32 %v3276, %v4334
    %v4336 = vpop.f32.mrb[0].mxu0
    %v4337 = vadd.f32 %v3280, %v4336
    %4338 = vmatprep.mubr.bf16.mxu0 0
    %4339 = vmatmul.mubr.bf16.gmra.mrb[0].mxu0 %v3527
    %v4340 = vpop.f32.mrb[0].mxu0
    %v4341 = vadd.f32 %v3276, %v4340
    %v4342 = vpop.f32.mrb[0].mxu0
    %v4343 = vadd.f32 %v3280, %v4342
    %v4344 = vpop.f32.mrb[0].mxu0
    %v4345 = vadd.f32 %v3276, %v4344
    %v4346 = vpop.f32.mrb[0].mxu0
    %v4347 = vadd.f32 %v3280, %v4346
    %4348 = vdwg.mxu0
    %4349 = vmatprep.subr.bf16.mxu0 %v3557
    %4350 = vmatpush1.bf16.msra.mxu0 %v3554
    %4351 = vmatprep.subr.bf16.mxu0 0
    %4352 = vmatpush1.bf16.msra.mxu0 0
    %4353 = vmatprep.subr.bf16.mxu0 0
    %4354 = vmatpush1.bf16.msra.mxu0 0
    %4355 = vmatprep.subr.bf16.mxu0 0
    %4356 = vmatpush1.bf16.msra.mxu0 0
    %4357 = vmatprep.subr.bf16.mxu0 0
    %4358 = vmatpush1.bf16.msra.mxu0 0
    %4359 = vmatprep.subr.bf16.mxu0 0
    %4360 = vmatpush1.bf16.msra.mxu0 0
    %4361 = vmatprep.subr.bf16.mxu0 0
    %4362 = vmatpush1.bf16.msra.mxu0 0
    %4363 = vmatprep.subr.bf16.mxu0 0
    %4364 = vmatpush1.bf16.msra.mxu0 0
    %4365 = vmatprep.subr.bf16.mxu0 0
    %4366 = vmatpush1.bf16.msra.mxu0 0
    %4367 = vmatprep.subr.bf16.mxu0 0
    %4368 = vmatpush1.bf16.msra.mxu0 0
    %4369 = vmatprep.subr.bf16.mxu0 0
    %4370 = vmatpush1.bf16.msra.mxu0 0
    %4371 = vmatprep.subr.bf16.mxu0 0
    %4372 = vmatpush1.bf16.msra.mxu0 0
    %4373 = vmatprep.subr.bf16.mxu0 0
    %4374 = vmatpush1.bf16.msra.mxu0 0
    %4375 = vmatprep.subr.bf16.mxu0 0
    %4376 = vmatpush1.bf16.msra.mxu0 0
    %4377 = vmatprep.subr.bf16.mxu0 0
    %4378 = vmatpush1.bf16.msra.mxu0 0
    %4379 = vmatprep.subr.bf16.mxu0 0
    %4380 = vmatpush1.bf16.msra.mxu0 0
    %4381 = vmatprep.mubr.bf16.mxu0 0
    %4382 = vmatmul.mubr.bf16.gmra.mrb[0].mxu0 %v3482
    %v4383 = vpop.f32.mrb[0].mxu0
    %v4384 = vadd.f32 %v3284, %v4383
    %v4385 = vpop.f32.mrb[0].mxu0
    %v4386 = vadd.f32 %v3288, %v4385
    %v4387 = vpop.f32.mrb[0].mxu0
    %v4388 = vadd.f32 %v3284, %v4387
    %v4389 = vpop.f32.mrb[0].mxu0
    %v4390 = vadd.f32 %v3288, %v4389
    %4391 = vmatprep.mubr.bf16.mxu0 0
    %4392 = vmatmul.mubr.bf16.gmra.mrb[0].mxu0 %v3485
    %v4393 = vpop.f32.mrb[0].mxu0
    %v4394 = vadd.f32 %v3284, %v4393
    %v4395 = vpop.f32.mrb[0].mxu0
    %v4396 = vadd.f32 %v3288, %v4395
    %v4397 = vpop.f32.mrb[0].mxu0
    %v4398 = vadd.f32 %v3284, %v4397
    %v4399 = vpop.f32.mrb[0].mxu0
    %v4400 = vadd.f32 %v3288, %v4399
    %4401 = vmatprep.mubr.bf16.mxu0 0
    %4402 = vmatmul.mubr.bf16.gmra.mrb[0].mxu0 %v3488
    %v4403 = vpop.f32.mrb[0].mxu0
    %v4404 = vadd.f32 %v3284, %v4403
    %v4405 = vpop.f32.mrb[0].mxu0
    %v4406 = vadd.f32 %v3288, %v4405
    %v4407 = vpop.f32.mrb[0].mxu0
    %v4408 = vadd.f32 %v3284, %v4407
    %v4409 = vpop.f32.mrb[0].mxu0
    %v4410 = vadd.f32 %v3288, %v4409
    %4411 = vmatprep.mubr.bf16.mxu0 0
    %4412 = vmatmul.mubr.bf16.gmra.mrb[0].mxu0 %v3491
    %v4413 = vpop.f32.mrb[0].mxu0
    %v4414 = vadd.f32 %v3284, %v4413
    %v4415 = vpop.f32.mrb[0].mxu0
    %v4416 = vadd.f32 %v3288, %v4415
    %v4417 = vpop.f32.mrb[0].mxu0
    %v4418 = vadd.f32 %v3284, %v4417
    %v4419 = vpop.f32.mrb[0].mxu0
    %v4420 = vadd.f32 %v3288, %v4419
    %4421 = vmatprep.mubr.bf16.mxu0 0
    %4422 = vmatmul.mubr.bf16.gmra.mrb[0].mxu0 %v3494
    %v4423 = vpop.f32.mrb[0].mxu0
    %v4424 = vadd.f32 %v3284, %v4423
    %v4425 = vpop.f32.mrb[0].mxu0
    %v4426 = vadd.f32 %v3288, %v4425
    %v4427 = vpop.f32.mrb[0].mxu0
    %v4428 = vadd.f32 %v3284, %v4427
    %v4429 = vpop.f32.mrb[0].mxu0
    %v4430 = vadd.f32 %v3288, %v4429
    %4431 = vmatprep.mubr.bf16.mxu0 0
    %4432 = vmatmul.mubr.bf16.gmra.mrb[0].mxu0 %v3497
    %v4433 = vpop.f32.mrb[0].mxu0
    %v4434 = vadd.f32 %v3284, %v4433
    %v4435 = vpop.f32.mrb[0].mxu0
    %v4436 = vadd.f32 %v3288, %v4435
    %v4437 = vpop.f32.mrb[0].mxu0
    %v4438 = vadd.f32 %v3284, %v4437
    %v4439 = vpop.f32.mrb[0].mxu0
    %v4440 = vadd.f32 %v3288, %v4439
    %4441 = vmatprep.mubr.bf16.mxu0 0
    %4442 = vmatmul.mubr.bf16.gmra.mrb[0].mxu0 %v3500
    %v4443 = vpop.f32.mrb[0].mxu0
    %v4444 = vadd.f32 %v3284, %v4443
    %v4445 = vpop.f32.mrb[0].mxu0
    %v4446 = vadd.f32 %v3288, %v4445
    %v4447 = vpop.f32.mrb[0].mxu0
    %v4448 = vadd.f32 %v3284, %v4447
    %v4449 = vpop.f32.mrb[0].mxu0
    %v4450 = vadd.f32 %v3288, %v4449
    %4451 = vmatprep.mubr.bf16.mxu0 0
    %4452 = vmatmul.mubr.bf16.gmra.mrb[0].mxu0 %v3503
    %v4453 = vpop.f32.mrb[0].mxu0
    %v4454 = vadd.f32 %v3284, %v4453
    %v4455 = vpop.f32.mrb[0].mxu0
    %v4456 = vadd.f32 %v3288, %v4455
    %v4457 = vpop.f32.mrb[0].mxu0
    %v4458 = vadd.f32 %v3284, %v4457
    %v4459 = vpop.f32.mrb[0].mxu0
    %v4460 = vadd.f32 %v3288, %v4459
    %4461 = vmatprep.mubr.bf16.mxu0 0
    %4462 = vmatmul.mubr.bf16.gmra.mrb[0].mxu0 %v3506
    %v4463 = vpop.f32.mrb[0].mxu0
    %v4464 = vadd.f32 %v3284, %v4463
    %v4465 = vpop.f32.mrb[0].mxu0
    %v4466 = vadd.f32 %v3288, %v4465
    %v4467 = vpop.f32.mrb[0].mxu0
    %v4468 = vadd.f32 %v3284, %v4467
    %v4469 = vpop.f32.mrb[0].mxu0
    %v4470 = vadd.f32 %v3288, %v4469
    %4471 = vmatprep.mubr.bf16.mxu0 0
    %4472 = vmatmul.mubr.bf16.gmra.mrb[0].mxu0 %v3509
    %v4473 = vpop.f32.mrb[0].mxu0
    %v4474 = vadd.f32 %v3284, %v4473
    %v4475 = vpop.f32.mrb[0].mxu0
    %v4476 = vadd.f32 %v3288, %v4475
    %v4477 = vpop.f32.mrb[0].mxu0
    %v4478 = vadd.f32 %v3284, %v4477
    %v4479 = vpop.f32.mrb[0].mxu0
    %v4480 = vadd.f32 %v3288, %v4479
    %4481 = vmatprep.mubr.bf16.mxu0 0
    %4482 = vmatmul.mubr.bf16.gmra.mrb[0].mxu0 %v3512
    %v4483 = vpop.f32.mrb[0].mxu0
    %v4484 = vadd.f32 %v3284, %v4483
    %v4485 = vpop.f32.mrb[0].mxu0
    %v4486 = vadd.f32 %v3288, %v4485
    %v4487 = vpop.f32.mrb[0].mxu0
    %v4488 = vadd.f32 %v3284, %v4487
    %v4489 = vpop.f32.mrb[0].mxu0
    %v4490 = vadd.f32 %v3288, %v4489
    %4491 = vmatprep.mubr.bf16.mxu0 0
    %4492 = vmatmul.mubr.bf16.gmra.mrb[0].mxu0 %v3515
    %v4493 = vpop.f32.mrb[0].mxu0
    %v4494 = vadd.f32 %v3284, %v4493
    %v4495 = vpop.f32.mrb[0].mxu0
    %v4496 = vadd.f32 %v3288, %v4495
    %v4497 = vpop.f32.mrb[0].mxu0
    %v4498 = vadd.f32 %v3284, %v4497
    %v4499 = vpop.f32.mrb[0].mxu0
    %v4500 = vadd.f32 %v3288, %v4499
    %4501 = vmatprep.mubr.bf16.mxu0 0
    %4502 = vmatmul.mubr.bf16.gmra.mrb[0].mxu0 %v3518
    %v4503 = vpop.f32.mrb[0].mxu0
    %v4504 = vadd.f32 %v3284, %v4503
    %v4505 = vpop.f32.mrb[0].mxu0
    %v4506 = vadd.f32 %v3288, %v4505
    %v4507 = vpop.f32.mrb[0].mxu0
    %v4508 = vadd.f32 %v3284, %v4507
    %v4509 = vpop.f32.mrb[0].mxu0
    %v4510 = vadd.f32 %v3288, %v4509
    %4511 = vmatprep.mubr.bf16.mxu0 0
    %4512 = vmatmul.mubr.bf16.gmra.mrb[0].mxu0 %v3521
    %v4513 = vpop.f32.mrb[0].mxu0
    %v4514 = vadd.f32 %v3284, %v4513
    %v4515 = vpop.f32.mrb[0].mxu0
    %v4516 = vadd.f32 %v3288, %v4515
    %v4517 = vpop.f32.mrb[0].mxu0
    %v4518 = vadd.f32 %v3284, %v4517
    %v4519 = vpop.f32.mrb[0].mxu0
    %v4520 = vadd.f32 %v3288, %v4519
    %4521 = vmatprep.mubr.bf16.mxu0 0
    %4522 = vmatmul.mubr.bf16.gmra.mrb[0].mxu0 %v3524
    %v4523 = vpop.f32.mrb[0].mxu0
    %v4524 = vadd.f32 %v3284, %v4523
    %v4525 = vpop.f32.mrb[0].mxu0
    %v4526 = vadd.f32 %v3288, %v4525
    %v4527 = vpop.f32.mrb[0].mxu0
    %v4528 = vadd.f32 %v3284, %v4527
    %v4529 = vpop.f32.mrb[0].mxu0
    %v4530 = vadd.f32 %v3288, %v4529
    %4531 = vmatprep.mubr.bf16.mxu0 0
    %4532 = vmatmul.mubr.bf16.gmra.mrb[0].mxu0 %v3527
    %v4533 = vpop.f32.mrb[0].mxu0
    %v4534 = vadd.f32 %v3284, %v4533
    %v4535 = vpop.f32.mrb[0].mxu0
    %v4536 = vadd.f32 %v3288, %v4535
    %v4537 = vpop.f32.mrb[0].mxu0
    %v4538 = vadd.f32 %v3284, %v4537
    %v4539 = vpop.f32.mrb[0].mxu0
    %v4540 = vadd.f32 %v3288, %v4539
    %4541 = vdwg.mxu0
    %4542 = vmatprep.subr.bf16.mxu0 %v3563
    %4543 = vmatpush1.bf16.msra.mxu0 %v3560
    %4544 = vmatprep.subr.bf16.mxu0 0
    %4545 = vmatpush1.bf16.msra.mxu0 0
    %4546 = vmatprep.subr.bf16.mxu0 0
    %4547 = vmatpush1.bf16.msra.mxu0 0
    %4548 = vmatprep.subr.bf16.mxu0 0
    %4549 = vmatpush1.bf16.msra.mxu0 0
    %4550 = vmatprep.subr.bf16.mxu0 0
    %4551 = vmatpush1.bf16.msra.mxu0 0
    %4552 = vmatprep.subr.bf16.mxu0 0
    %4553 = vmatpush1.bf16.msra.mxu0 0
    %4554 = vmatprep.subr.bf16.mxu0 0
    %4555 = vmatpush1.bf16.msra.mxu0 0
    %4556 = vmatprep.subr.bf16.mxu0 0
    %4557 = vmatpush1.bf16.msra.mxu0 0
    %4558 = vmatprep.subr.bf16.mxu0 0
    %4559 = vmatpush1.bf16.msra.mxu0 0
    %4560 = vmatprep.subr.bf16.mxu0 0
    %4561 = vmatpush1.bf16.msra.mxu0 0
    %4562 = vmatprep.subr.bf16.mxu0 0
    %4563 = vmatpush1.bf16.msra.mxu0 0
    %4564 = vmatprep.subr.bf16.mxu0 0
    %4565 = vmatpush1.bf16.msra.mxu0 0
    %4566 = vmatprep.subr.bf16.mxu0 0
    %4567 = vmatpush1.bf16.msra.mxu0 0
    %4568 = vmatprep.subr.bf16.mxu0 0
    %4569 = vmatpush1.bf16.msra.mxu0 0
    %4570 = vmatprep.subr.bf16.mxu0 0
    %4571 = vmatpush1.bf16.msra.mxu0 0
    %4572 = vmatprep.subr.bf16.mxu0 0
    %4573 = vmatpush1.bf16.msra.mxu0 0
    %4574 = vmatprep.mubr.bf16.mxu0 0
    %4575 = vmatmul.mubr.bf16.gmra.mrb[0].mxu0 %v3482
    %v4576 = vpop.f32.mrb[0].mxu0
    %v4577 = vadd.f32 %v3292, %v4576
    %v4578 = vpop.f32.mrb[0].mxu0
    %v4579 = vadd.f32 %v3296, %v4578
    %v4580 = vpop.f32.mrb[0].mxu0
    %v4581 = vadd.f32 %v3292, %v4580
    %v4582 = vpop.f32.mrb[0].mxu0
    %v4583 = vadd.f32 %v3296, %v4582
    %4584 = vmatprep.mubr.bf16.mxu0 0
    %4585 = vmatmul.mubr.bf16.gmra.mrb[0].mxu0 %v3485
    %v4586 = vpop.f32.mrb[0].mxu0
    %v4587 = vadd.f32 %v3292, %v4586
    %v4588 = vpop.f32.mrb[0].mxu0
    %v4589 = vadd.f32 %v3296, %v4588
    %v4590 = vpop.f32.mrb[0].mxu0
    %v4591 = vadd.f32 %v3292, %v4590
    %v4592 = vpop.f32.mrb[0].mxu0
    %v4593 = vadd.f32 %v3296, %v4592
    %4594 = vmatprep.mubr.bf16.mxu0 0
    %4595 = vmatmul.mubr.bf16.gmra.mrb[0].mxu0 %v3488
    %v4596 = vpop.f32.mrb[0].mxu0
    %v4597 = vadd.f32 %v3292, %v4596
    %v4598 = vpop.f32.mrb[0].mxu0
    %v4599 = vadd.f32 %v3296, %v4598
    %v4600 = vpop.f32.mrb[0].mxu0
    %v4601 = vadd.f32 %v3292, %v4600
    %v4602 = vpop.f32.mrb[0].mxu0
    %v4603 = vadd.f32 %v3296, %v4602
    %4604 = vmatprep.mubr.bf16.mxu0 0
    %4605 = vmatmul.mubr.bf16.gmra.mrb[0].mxu0 %v3491
    %v4606 = vpop.f32.mrb[0].mxu0
    %v4607 = vadd.f32 %v3292, %v4606
    %v4608 = vpop.f32.mrb[0].mxu0
    %v4609 = vadd.f32 %v3296, %v4608
    %v4610 = vpop.f32.mrb[0].mxu0
    %v4611 = vadd.f32 %v3292, %v4610
    %v4612 = vpop.f32.mrb[0].mxu0
    %v4613 = vadd.f32 %v3296, %v4612
    %4614 = vmatprep.mubr.bf16.mxu0 0
    %4615 = vmatmul.mubr.bf16.gmra.mrb[0].mxu0 %v3494
    %v4616 = vpop.f32.mrb[0].mxu0
    %v4617 = vadd.f32 %v3292, %v4616
    %v4618 = vpop.f32.mrb[0].mxu0
    %v4619 = vadd.f32 %v3296, %v4618
    %v4620 = vpop.f32.mrb[0].mxu0
    %v4621 = vadd.f32 %v3292, %v4620
    %v4622 = vpop.f32.mrb[0].mxu0
    %v4623 = vadd.f32 %v3296, %v4622
    %4624 = vmatprep.mubr.bf16.mxu0 0
    %4625 = vmatmul.mubr.bf16.gmra.mrb[0].mxu0 %v3497
    %v4626 = vpop.f32.mrb[0].mxu0
    %v4627 = vadd.f32 %v3292, %v4626
    %v4628 = vpop.f32.mrb[0].mxu0
    %v4629 = vadd.f32 %v3296, %v4628
    %v4630 = vpop.f32.mrb[0].mxu0
    %v4631 = vadd.f32 %v3292, %v4630
    %v4632 = vpop.f32.mrb[0].mxu0
    %v4633 = vadd.f32 %v3296, %v4632
    %4634 = vmatprep.mubr.bf16.mxu0 0
    %4635 = vmatmul.mubr.bf16.gmra.mrb[0].mxu0 %v3500
    %v4636 = vpop.f32.mrb[0].mxu0
    %v4637 = vadd.f32 %v3292, %v4636
    %v4638 = vpop.f32.mrb[0].mxu0
    %v4639 = vadd.f32 %v3296, %v4638
    %v4640 = vpop.f32.mrb[0].mxu0
    %v4641 = vadd.f32 %v3292, %v4640
    %v4642 = vpop.f32.mrb[0].mxu0
    %v4643 = vadd.f32 %v3296, %v4642
    %4644 = vmatprep.mubr.bf16.mxu0 0
    %4645 = vmatmul.mubr.bf16.gmra.mrb[0].mxu0 %v3503
    %v4646 = vpop.f32.mrb[0].mxu0
    %v4647 = vadd.f32 %v3292, %v4646
    %v4648 = vpop.f32.mrb[0].mxu0
    %v4649 = vadd.f32 %v3296, %v4648
    %v4650 = vpop.f32.mrb[0].mxu0
    %v4651 = vadd.f32 %v3292, %v4650
    %v4652 = vpop.f32.mrb[0].mxu0
    %v4653 = vadd.f32 %v3296, %v4652
    %4654 = vmatprep.mubr.bf16.mxu0 0
    %4655 = vmatmul.mubr.bf16.gmra.mrb[0].mxu0 %v3506
    %v4656 = vpop.f32.mrb[0].mxu0
    %v4657 = vadd.f32 %v3292, %v4656
    %v4658 = vpop.f32.mrb[0].mxu0
    %v4659 = vadd.f32 %v3296, %v4658
    %v4660 = vpop.f32.mrb[0].mxu0
    %v4661 = vadd.f32 %v3292, %v4660
    %v4662 = vpop.f32.mrb[0].mxu0
    %v4663 = vadd.f32 %v3296, %v4662
    %4664 = vmatprep.mubr.bf16.mxu0 0
    %4665 = vmatmul.mubr.bf16.gmra.mrb[0].mxu0 %v3509
    %v4666 = vpop.f32.mrb[0].mxu0
    %v4667 = vadd.f32 %v3292, %v4666
    %v4668 = vpop.f32.mrb[0].mxu0
    %v4669 = vadd.f32 %v3296, %v4668
    %v4670 = vpop.f32.mrb[0].mxu0
    %v4671 = vadd.f32 %v3292, %v4670
    %v4672 = vpop.f32.mrb[0].mxu0
    %v4673 = vadd.f32 %v3296, %v4672
    %4674 = vmatprep.mubr.bf16.mxu0 0
    %4675 = vmatmul.mubr.bf16.gmra.mrb[0].mxu0 %v3512
    %v4676 = vpop.f32.mrb[0].mxu0
    %v4677 = vadd.f32 %v3292, %v4676
    %v4678 = vpop.f32.mrb[0].mxu0
    %v4679 = vadd.f32 %v3296, %v4678
    %v4680 = vpop.f32.mrb[0].mxu0
    %v4681 = vadd.f32 %v3292, %v4680
    %v4682 = vpop.f32.mrb[0].mxu0
    %v4683 = vadd.f32 %v3296, %v4682
    %4684 = vmatprep.mubr.bf16.mxu0 0
    %4685 = vmatmul.mubr.bf16.gmra.mrb[0].mxu0 %v3515
    %v4686 = vpop.f32.mrb[0].mxu0
    %v4687 = vadd.f32 %v3292, %v4686
    %v4688 = vpop.f32.mrb[0].mxu0
    %v4689 = vadd.f32 %v3296, %v4688
    %v4690 = vpop.f32.mrb[0].mxu0
    %v4691 = vadd.f32 %v3292, %v4690
    %v4692 = vpop.f32.mrb[0].mxu0
    %v4693 = vadd.f32 %v3296, %v4692
    %4694 = vmatprep.mubr.bf16.mxu0 0
    %4695 = vmatmul.mubr.bf16.gmra.mrb[0].mxu0 %v3518
    %v4696 = vpop.f32.mrb[0].mxu0
    %v4697 = vadd.f32 %v3292, %v4696
    %v4698 = vpop.f32.mrb[0].mxu0
    %v4699 = vadd.f32 %v3296, %v4698
    %v4700 = vpop.f32.mrb[0].mxu0
    %v4701 = vadd.f32 %v3292, %v4700
    %v4702 = vpop.f32.mrb[0].mxu0
    %v4703 = vadd.f32 %v3296, %v4702
    %4704 = vmatprep.mubr.bf16.mxu0 0
    %4705 = vmatmul.mubr.bf16.gmra.mrb[0].mxu0 %v3521
    %v4706 = vpop.f32.mrb[0].mxu0
    %v4707 = vadd.f32 %v3292, %v4706
    %v4708 = vpop.f32.mrb[0].mxu0
    %v4709 = vadd.f32 %v3296, %v4708
    %v4710 = vpop.f32.mrb[0].mxu0
    %v4711 = vadd.f32 %v3292, %v4710
    %v4712 = vpop.f32.mrb[0].mxu0
    %v4713 = vadd.f32 %v3296, %v4712
    %4714 = vmatprep.mubr.bf16.mxu0 0
    %4715 = vmatmul.mubr.bf16.gmra.mrb[0].mxu0 %v3524
    %v4716 = vpop.f32.mrb[0].mxu0
    %v4717 = vadd.f32 %v3292, %v4716
    %v4718 = vpop.f32.mrb[0].mxu0
    %v4719 = vadd.f32 %v3296, %v4718
    %v4720 = vpop.f32.mrb[0].mxu0
    %v4721 = vadd.f32 %v3292, %v4720
    %v4722 = vpop.f32.mrb[0].mxu0
    %v4723 = vadd.f32 %v3296, %v4722
    %4724 = vmatprep.mubr.bf16.mxu0 0
    %4725 = vmatmul.mubr.bf16.gmra.mrb[0].mxu0 %v3527
    %v4726 = vpop.f32.mrb[0].mxu0
    %v4727 = vadd.f32 %v3292, %v4726
    %v4728 = vpop.f32.mrb[0].mxu0
    %v4729 = vadd.f32 %v3296, %v4728
    %v4730 = vpop.f32.mrb[0].mxu0
    %v4731 = vadd.f32 %v3292, %v4730
    %v4732 = vpop.f32.mrb[0].mxu0
    %v4733 = vadd.f32 %v3296, %v4732
    %4734 = vdwg.mxu0
    %4735 = vmatprep.subr.bf16.mxu0 %v3569
    %4736 = vmatpush1.bf16.msra.mxu0 %v3566
    %4737 = vmatprep.subr.bf16.mxu0 0
    %4738 = vmatpush1.bf16.msra.mxu0 0
    %4739 = vmatprep.subr.bf16.mxu0 0
    %4740 = vmatpush1.bf16.msra.mxu0 0
    %4741 = vmatprep.subr.bf16.mxu0 0
    %4742 = vmatpush1.bf16.msra.mxu0 0
    %4743 = vmatprep.subr.bf16.mxu0 0
    %4744 = vmatpush1.bf16.msra.mxu0 0
    %4745 = vmatprep.subr.bf16.mxu0 0
    %4746 = vmatpush1.bf16.msra.mxu0 0
    %4747 = vmatprep.subr.bf16.mxu0 0
    %4748 = vmatpush1.bf16.msra.mxu0 0
    %4749 = vmatprep.subr.bf16.mxu0 0
    %4750 = vmatpush1.bf16.msra.mxu0 0
    %4751 = vmatprep.subr.bf16.mxu0 0
    %4752 = vmatpush1.bf16.msra.mxu0 0
    %4753 = vmatprep.subr.bf16.mxu0 0
    %4754 = vmatpush1.bf16.msra.mxu0 0
    %4755 = vmatprep.subr.bf16.mxu0 0
    %4756 = vmatpush1.bf16.msra.mxu0 0
    %4757 = vmatprep.subr.bf16.mxu0 0
    %4758 = vmatpush1.bf16.msra.mxu0 0
    %4759 = vmatprep.subr.bf16.mxu0 0
    %4760 = vmatpush1.bf16.msra.mxu0 0
    %4761 = vmatprep.subr.bf16.mxu0 0
    %4762 = vmatpush1.bf16.msra.mxu0 0
    %4763 = vmatprep.subr.bf16.mxu0 0
    %4764 = vmatpush1.bf16.msra.mxu0 0
    %4765 = vmatprep.subr.bf16.mxu0 0
    %4766 = vmatpush1.bf16.msra.mxu0 0
    %4767 = vmatprep.mubr.bf16.mxu0 0
    %4768 = vmatmul.mubr.bf16.gmra.mrb[0].mxu0 %v3482
    %v4769 = vpop.f32.mrb[0].mxu0
    %v4770 = vadd.f32 %v3300, %v4769
    %v4771 = vpop.f32.mrb[0].mxu0
    %v4772 = vadd.f32 %v3304, %v4771
    %v4773 = vpop.f32.mrb[0].mxu0
    %v4774 = vadd.f32 %v3300, %v4773
    %v4775 = vpop.f32.mrb[0].mxu0
    %v4776 = vadd.f32 %v3304, %v4775
    %4777 = vmatprep.mubr.bf16.mxu0 0
    %4778 = vmatmul.mubr.bf16.gmra.mrb[0].mxu0 %v3485
    %v4779 = vpop.f32.mrb[0].mxu0
    %v4780 = vadd.f32 %v3300, %v4779
    %v4781 = vpop.f32.mrb[0].mxu0
    %v4782 = vadd.f32 %v3304, %v4781
    %v4783 = vpop.f32.mrb[0].mxu0
    %v4784 = vadd.f32 %v3300, %v4783
    %v4785 = vpop.f32.mrb[0].mxu0
    %v4786 = vadd.f32 %v3304, %v4785
    %4787 = vmatprep.mubr.bf16.mxu0 0
    %4788 = vmatmul.mubr.bf16.gmra.mrb[0].mxu0 %v3488
    %v4789 = vpop.f32.mrb[0].mxu0
    %v4790 = vadd.f32 %v3300, %v4789
    %v4791 = vpop.f32.mrb[0].mxu0
    %v4792 = vadd.f32 %v3304, %v4791
    %v4793 = vpop.f32.mrb[0].mxu0
    %v4794 = vadd.f32 %v3300, %v4793
    %v4795 = vpop.f32.mrb[0].mxu0
    %v4796 = vadd.f32 %v3304, %v4795
    %4797 = vmatprep.mubr.bf16.mxu0 0
    %4798 = vmatmul.mubr.bf16.gmra.mrb[0].mxu0 %v3491
    %v4799 = vpop.f32.mrb[0].mxu0
    %v4800 = vadd.f32 %v3300, %v4799
    %v4801 = vpop.f32.mrb[0].mxu0
    %v4802 = vadd.f32 %v3304, %v4801
    %v4803 = vpop.f32.mrb[0].mxu0
    %v4804 = vadd.f32 %v3300, %v4803
    %v4805 = vpop.f32.mrb[0].mxu0
    %v4806 = vadd.f32 %v3304, %v4805
    %4807 = vmatprep.mubr.bf16.mxu0 0
    %4808 = vmatmul.mubr.bf16.gmra.mrb[0].mxu0 %v3494
    %v4809 = vpop.f32.mrb[0].mxu0
    %v4810 = vadd.f32 %v3300, %v4809
    %v4811 = vpop.f32.mrb[0].mxu0
    %v4812 = vadd.f32 %v3304, %v4811
    %v4813 = vpop.f32.mrb[0].mxu0
    %v4814 = vadd.f32 %v3300, %v4813
    %v4815 = vpop.f32.mrb[0].mxu0
    %v4816 = vadd.f32 %v3304, %v4815
    %4817 = vmatprep.mubr.bf16.mxu0 0
    %4818 = vmatmul.mubr.bf16.gmra.mrb[0].mxu0 %v3497
    %v4819 = vpop.f32.mrb[0].mxu0
    %v4820 = vadd.f32 %v3300, %v4819
    %v4821 = vpop.f32.mrb[0].mxu0
    %v4822 = vadd.f32 %v3304, %v4821
    %v4823 = vpop.f32.mrb[0].mxu0
    %v4824 = vadd.f32 %v3300, %v4823
    %v4825 = vpop.f32.mrb[0].mxu0
    %v4826 = vadd.f32 %v3304, %v4825
    %4827 = vmatprep.mubr.bf16.mxu0 0
    %4828 = vmatmul.mubr.bf16.gmra.mrb[0].mxu0 %v3500
    %v4829 = vpop.f32.mrb[0].mxu0
    %v4830 = vadd.f32 %v3300, %v4829
    %v4831 = vpop.f32.mrb[0].mxu0
    %v4832 = vadd.f32 %v3304, %v4831
    %v4833 = vpop.f32.mrb[0].mxu0
    %v4834 = vadd.f32 %v3300, %v4833
    %v4835 = vpop.f32.mrb[0].mxu0
    %v4836 = vadd.f32 %v3304, %v4835
    %4837 = vmatprep.mubr.bf16.mxu0 0
    %4838 = vmatmul.mubr.bf16.gmra.mrb[0].mxu0 %v3503
    %v4839 = vpop.f32.mrb[0].mxu0
    %v4840 = vadd.f32 %v3300, %v4839
    %v4841 = vpop.f32.mrb[0].mxu0
    %v4842 = vadd.f32 %v3304, %v4841
    %v4843 = vpop.f32.mrb[0].mxu0
    %v4844 = vadd.f32 %v3300, %v4843
    %v4845 = vpop.f32.mrb[0].mxu0
    %v4846 = vadd.f32 %v3304, %v4845
    %4847 = vmatprep.mubr.bf16.mxu0 0
    %4848 = vmatmul.mubr.bf16.gmra.mrb[0].mxu0 %v3506
    %v4849 = vpop.f32.mrb[0].mxu0
    %v4850 = vadd.f32 %v3300, %v4849
    %v4851 = vpop.f32.mrb[0].mxu0
    %v4852 = vadd.f32 %v3304, %v4851
    %v4853 = vpop.f32.mrb[0].mxu0
    %v4854 = vadd.f32 %v3300, %v4853
    %v4855 = vpop.f32.mrb[0].mxu0
    %v4856 = vadd.f32 %v3304, %v4855
    %4857 = vmatprep.mubr.bf16.mxu0 0
    %4858 = vmatmul.mubr.bf16.gmra.mrb[0].mxu0 %v3509
    %v4859 = vpop.f32.mrb[0].mxu0
    %v4860 = vadd.f32 %v3300, %v4859
    %v4861 = vpop.f32.mrb[0].mxu0
    %v4862 = vadd.f32 %v3304, %v4861
    %v4863 = vpop.f32.mrb[0].mxu0
    %v4864 = vadd.f32 %v3300, %v4863
    %v4865 = vpop.f32.mrb[0].mxu0
    %v4866 = vadd.f32 %v3304, %v4865
    %4867 = vmatprep.mubr.bf16.mxu0 0
    %4868 = vmatmul.mubr.bf16.gmra.mrb[0].mxu0 %v3512
    %v4869 = vpop.f32.mrb[0].mxu0
    %v4870 = vadd.f32 %v3300, %v4869
    %v4871 = vpop.f32.mrb[0].mxu0
    %v4872 = vadd.f32 %v3304, %v4871
    %v4873 = vpop.f32.mrb[0].mxu0
    %v4874 = vadd.f32 %v3300, %v4873
    %v4875 = vpop.f32.mrb[0].mxu0
    %v4876 = vadd.f32 %v3304, %v4875
    %4877 = vmatprep.mubr.bf16.mxu0 0
    %4878 = vmatmul.mubr.bf16.gmra.mrb[0].mxu0 %v3515
    %v4879 = vpop.f32.mrb[0].mxu0
    %v4880 = vadd.f32 %v3300, %v4879
    %v4881 = vpop.f32.mrb[0].mxu0
    %v4882 = vadd.f32 %v3304, %v4881
    %v4883 = vpop.f32.mrb[0].mxu0
    %v4884 = vadd.f32 %v3300, %v4883
    %v4885 = vpop.f32.mrb[0].mxu0
    %v4886 = vadd.f32 %v3304, %v4885
    %4887 = vmatprep.mubr.bf16.mxu0 0
    %4888 = vmatmul.mubr.bf16.gmra.mrb[0].mxu0 %v3518
    %v4889 = vpop.f32.mrb[0].mxu0
    %v4890 = vadd.f32 %v3300, %v4889
    %v4891 = vpop.f32.mrb[0].mxu0
    %v4892 = vadd.f32 %v3304, %v4891
    %v4893 = vpop.f32.mrb[0].mxu0
    %v4894 = vadd.f32 %v3300, %v4893
    %v4895 = vpop.f32.mrb[0].mxu0
    %v4896 = vadd.f32 %v3304, %v4895
    %4897 = vmatprep.mubr.bf16.mxu0 0
    %4898 = vmatmul.mubr.bf16.gmra.mrb[0].mxu0 %v3521
    %v4899 = vpop.f32.mrb[0].mxu0
    %v4900 = vadd.f32 %v3300, %v4899
    %v4901 = vpop.f32.mrb[0].mxu0
    %v4902 = vadd.f32 %v3304, %v4901
    %v4903 = vpop.f32.mrb[0].mxu0
    %v4904 = vadd.f32 %v3300, %v4903
    %v4905 = vpop.f32.mrb[0].mxu0
    %v4906 = vadd.f32 %v3304, %v4905
    %4907 = vmatprep.mubr.bf16.mxu0 0
    %4908 = vmatmul.mubr.bf16.gmra.mrb[0].mxu0 %v3524
    %v4909 = vpop.f32.mrb[0].mxu0
    %v4910 = vadd.f32 %v3300, %v4909
    %v4911 = vpop.f32.mrb[0].mxu0
    %v4912 = vadd.f32 %v3304, %v4911
    %v4913 = vpop.f32.mrb[0].mxu0
    %v4914 = vadd.f32 %v3300, %v4913
    %v4915 = vpop.f32.mrb[0].mxu0
    %v4916 = vadd.f32 %v3304, %v4915
    %4917 = vmatprep.mubr.bf16.mxu0 0
    %4918 = vmatmul.mubr.bf16.gmra.mrb[0].mxu0 %v3527
    %v4919 = vpop.f32.mrb[0].mxu0
    %v4920 = vadd.f32 %v3300, %v4919
    %v4921 = vpop.f32.mrb[0].mxu0
    %v4922 = vadd.f32 %v3304, %v4921
    %v4923 = vpop.f32.mrb[0].mxu0
    %v4924 = vadd.f32 %v3300, %v4923
    %v4925 = vpop.f32.mrb[0].mxu0
    %v4926 = vadd.f32 %v3304, %v4925
    %4927 = vdwg.mxu0
    %4928 = vmatprep.subr.bf16.mxu0 %v3575
    %4929 = vmatpush1.bf16.msra.mxu0 %v3572
    %4930 = vmatprep.subr.bf16.mxu0 0
    %4931 = vmatpush1.bf16.msra.mxu0 0
    %4932 = vmatprep.subr.bf16.mxu0 0
    %4933 = vmatpush1.bf16.msra.mxu0 0
    %4934 = vmatprep.subr.bf16.mxu0 0
    %4935 = vmatpush1.bf16.msra.mxu0 0
    %4936 = vmatprep.subr.bf16.mxu0 0
    %4937 = vmatpush1.bf16.msra.mxu0 0
    %4938 = vmatprep.subr.bf16.mxu0 0
    %4939 = vmatpush1.bf16.msra.mxu0 0
    %4940 = vmatprep.subr.bf16.mxu0 0
    %4941 = vmatpush1.bf16.msra.mxu0 0
    %4942 = vmatprep.subr.bf16.mxu0 0
    %4943 = vmatpush1.bf16.msra.mxu0 0
    %4944 = vmatprep.subr.bf16.mxu0 0
    %4945 = vmatpush1.bf16.msra.mxu0 0
    %4946 = vmatprep.subr.bf16.mxu0 0
    %4947 = vmatpush1.bf16.msra.mxu0 0
    %4948 = vmatprep.subr.bf16.mxu0 0
    %4949 = vmatpush1.bf16.msra.mxu0 0
    %4950 = vmatprep.subr.bf16.mxu0 0
    %4951 = vmatpush1.bf16.msra.mxu0 0
    %4952 = vmatprep.subr.bf16.mxu0 0
    %4953 = vmatpush1.bf16.msra.mxu0 0
    %4954 = vmatprep.subr.bf16.mxu0 0
    %4955 = vmatpush1.bf16.msra.mxu0 0
    %4956 = vmatprep.subr.bf16.mxu0 0
    %4957 = vmatpush1.bf16.msra.mxu0 0
    %4958 = vmatprep.subr.bf16.mxu0 0
    %4959 = vmatpush1.bf16.msra.mxu0 0
    %4960 = vmatprep.mubr.bf16.mxu0 0
    %4961 = vmatmul.mubr.bf16.gmra.mrb[0].mxu0 %v3482
    %v4962 = vpop.f32.mrb[0].mxu0
    %v4963 = vadd.f32 %v3308, %v4962
    %v4964 = vpop.f32.mrb[0].mxu0
    %v4965 = vadd.f32 %v3312, %v4964
    %v4966 = vpop.f32.mrb[0].mxu0
    %v4967 = vadd.f32 %v3308, %v4966
    %v4968 = vpop.f32.mrb[0].mxu0
    %v4969 = vadd.f32 %v3312, %v4968
    %4970 = vmatprep.mubr.bf16.mxu0 0
    %4971 = vmatmul.mubr.bf16.gmra.mrb[0].mxu0 %v3485
    %v4972 = vpop.f32.mrb[0].mxu0
    %v4973 = vadd.f32 %v3308, %v4972
    %v4974 = vpop.f32.mrb[0].mxu0
    %v4975 = vadd.f32 %v3312, %v4974
    %v4976 = vpop.f32.mrb[0].mxu0
    %v4977 = vadd.f32 %v3308, %v4976
    %v4978 = vpop.f32.mrb[0].mxu0
    %v4979 = vadd.f32 %v3312, %v4978
    %4980 = vmatprep.mubr.bf16.mxu0 0
    %4981 = vmatmul.mubr.bf16.gmra.mrb[0].mxu0 %v3488
    %v4982 = vpop.f32.mrb[0].mxu0
    %v4983 = vadd.f32 %v3308, %v4982
    %v4984 = vpop.f32.mrb[0].mxu0
    %v4985 = vadd.f32 %v3312, %v4984
    %v4986 = vpop.f32.mrb[0].mxu0
    %v4987 = vadd.f32 %v3308, %v4986
    %v4988 = vpop.f32.mrb[0].mxu0
    %v4989 = vadd.f32 %v3312, %v4988
    %4990 = vmatprep.mubr.bf16.mxu0 0
    %4991 = vmatmul.mubr.bf16.gmra.mrb[0].mxu0 %v3491
    %v4992 = vpop.f32.mrb[0].mxu0
    %v4993 = vadd.f32 %v3308, %v4992
    %v4994 = vpop.f32.mrb[0].mxu0
    %v4995 = vadd.f32 %v3312, %v4994
    %v4996 = vpop.f32.mrb[0].mxu0
    %v4997 = vadd.f32 %v3308, %v4996
    %v4998 = vpop.f32.mrb[0].mxu0
    %v4999 = vadd.f32 %v3312, %v4998
    %5000 = vmatprep.mubr.bf16.mxu0 0
    %5001 = vmatmul.mubr.bf16.gmra.mrb[0].mxu0 %v3494
    %v5002 = vpop.f32.mrb[0].mxu0
    %v5003 = vadd.f32 %v3308, %v5002
    %v5004 = vpop.f32.mrb[0].mxu0
    %v5005 = vadd.f32 %v3312, %v5004
    %v5006 = vpop.f32.mrb[0].mxu0
    %v5007 = vadd.f32 %v3308, %v5006
    %v5008 = vpop.f32.mrb[0].mxu0
    %v5009 = vadd.f32 %v3312, %v5008
    %5010 = vmatprep.mubr.bf16.mxu0 0
    %5011 = vmatmul.mubr.bf16.gmra.mrb[0].mxu0 %v3497
    %v5012 = vpop.f32.mrb[0].mxu0
    %v5013 = vadd.f32 %v3308, %v5012
    %v5014 = vpop.f32.mrb[0].mxu0
    %v5015 = vadd.f32 %v3312, %v5014
    %v5016 = vpop.f32.mrb[0].mxu0
    %v5017 = vadd.f32 %v3308, %v5016
    %v5018 = vpop.f32.mrb[0].mxu0
    %v5019 = vadd.f32 %v3312, %v5018
    %5020 = vmatprep.mubr.bf16.mxu0 0
    %5021 = vmatmul.mubr.bf16.gmra.mrb[0].mxu0 %v3500
    %v5022 = vpop.f32.mrb[0].mxu0
    %v5023 = vadd.f32 %v3308, %v5022
    %v5024 = vpop.f32.mrb[0].mxu0
    %v5025 = vadd.f32 %v3312, %v5024
    %v5026 = vpop.f32.mrb[0].mxu0
    %v5027 = vadd.f32 %v3308, %v5026
    %v5028 = vpop.f32.mrb[0].mxu0
    %v5029 = vadd.f32 %v3312, %v5028
    %5030 = vmatprep.mubr.bf16.mxu0 0
    %5031 = vmatmul.mubr.bf16.gmra.mrb[0].mxu0 %v3503
    %v5032 = vpop.f32.mrb[0].mxu0
    %v5033 = vadd.f32 %v3308, %v5032
    %v5034 = vpop.f32.mrb[0].mxu0
    %v5035 = vadd.f32 %v3312, %v5034
    %v5036 = vpop.f32.mrb[0].mxu0
    %v5037 = vadd.f32 %v3308, %v5036
    %v5038 = vpop.f32.mrb[0].mxu0
    %v5039 = vadd.f32 %v3312, %v5038
    %5040 = vmatprep.mubr.bf16.mxu0 0
    %5041 = vmatmul.mubr.bf16.gmra.mrb[0].mxu0 %v3506
    %v5042 = vpop.f32.mrb[0].mxu0
    %v5043 = vadd.f32 %v3308, %v5042
    %v5044 = vpop.f32.mrb[0].mxu0
    %v5045 = vadd.f32 %v3312, %v5044
    %v5046 = vpop.f32.mrb[0].mxu0
    %v5047 = vadd.f32 %v3308, %v5046
    %v5048 = vpop.f32.mrb[0].mxu0
    %v5049 = vadd.f32 %v3312, %v5048
    %5050 = vmatprep.mubr.bf16.mxu0 0
    %5051 = vmatmul.mubr.bf16.gmra.mrb[0].mxu0 %v3509
    %v5052 = vpop.f32.mrb[0].mxu0
    %v5053 = vadd.f32 %v3308, %v5052
    %v5054 = vpop.f32.mrb[0].mxu0
    %v5055 = vadd.f32 %v3312, %v5054
    %v5056 = vpop.f32.mrb[0].mxu0
    %v5057 = vadd.f32 %v3308, %v5056
    %v5058 = vpop.f32.mrb[0].mxu0
    %v5059 = vadd.f32 %v3312, %v5058
    %5060 = vmatprep.mubr.bf16.mxu0 0
    %5061 = vmatmul.mubr.bf16.gmra.mrb[0].mxu0 %v3512
    %v5062 = vpop.f32.mrb[0].mxu0
    %v5063 = vadd.f32 %v3308, %v5062
    %v5064 = vpop.f32.mrb[0].mxu0
    %v5065 = vadd.f32 %v3312, %v5064
    %v5066 = vpop.f32.mrb[0].mxu0
    %v5067 = vadd.f32 %v3308, %v5066
    %v5068 = vpop.f32.mrb[0].mxu0
    %v5069 = vadd.f32 %v3312, %v5068
    %5070 = vmatprep.mubr.bf16.mxu0 0
    %5071 = vmatmul.mubr.bf16.gmra.mrb[0].mxu0 %v3515
    %v5072 = vpop.f32.mrb[0].mxu0
    %v5073 = vadd.f32 %v3308, %v5072
    %v5074 = vpop.f32.mrb[0].mxu0
    %v5075 = vadd.f32 %v3312, %v5074
    %v5076 = vpop.f32.mrb[0].mxu0
    %v5077 = vadd.f32 %v3308, %v5076
    %v5078 = vpop.f32.mrb[0].mxu0
    %v5079 = vadd.f32 %v3312, %v5078
    %5080 = vmatprep.mubr.bf16.mxu0 0
    %5081 = vmatmul.mubr.bf16.gmra.mrb[0].mxu0 %v3518
    %v5082 = vpop.f32.mrb[0].mxu0
    %v5083 = vadd.f32 %v3308, %v5082
    %v5084 = vpop.f32.mrb[0].mxu0
    %v5085 = vadd.f32 %v3312, %v5084
    %v5086 = vpop.f32.mrb[0].mxu0
    %v5087 = vadd.f32 %v3308, %v5086
    %v5088 = vpop.f32.mrb[0].mxu0
    %v5089 = vadd.f32 %v3312, %v5088
    %5090 = vmatprep.mubr.bf16.mxu0 0
    %5091 = vmatmul.mubr.bf16.gmra.mrb[0].mxu0 %v3521
    %v5092 = vpop.f32.mrb[0].mxu0
    %v5093 = vadd.f32 %v3308, %v5092
    %v5094 = vpop.f32.mrb[0].mxu0
    %v5095 = vadd.f32 %v3312, %v5094
    %v5096 = vpop.f32.mrb[0].mxu0
    %v5097 = vadd.f32 %v3308, %v5096
    %v5098 = vpop.f32.mrb[0].mxu0
    %v5099 = vadd.f32 %v3312, %v5098
    %5100 = vmatprep.mubr.bf16.mxu0 0
    %5101 = vmatmul.mubr.bf16.gmra.mrb[0].mxu0 %v3524
    %v5102 = vpop.f32.mrb[0].mxu0
    %v5103 = vadd.f32 %v3308, %v5102
    %v5104 = vpop.f32.mrb[0].mxu0
    %v5105 = vadd.f32 %v3312, %v5104
    %v5106 = vpop.f32.mrb[0].mxu0
    %v5107 = vadd.f32 %v3308, %v5106
    %v5108 = vpop.f32.mrb[0].mxu0
    %v5109 = vadd.f32 %v3312, %v5108
    %5110 = vmatprep.mubr.bf16.mxu0 0
    %5111 = vmatmul.mubr.bf16.gmra.mrb[0].mxu0 %v3527
    %v5112 = vpop.f32.mrb[0].mxu0
    %v5113 = vadd.f32 %v3308, %v5112
    %v5114 = vpop.f32.mrb[0].mxu0
    %v5115 = vadd.f32 %v3312, %v5114
    %v5116 = vpop.f32.mrb[0].mxu0
    %v5117 = vadd.f32 %v3308, %v5116
    %v5118 = vpop.f32.mrb[0].mxu0
    %v5119 = vadd.f32 %v3312, %v5118
    %5120 = vdwg.mxu0
    %v5121 = vmax.f32 %v3612, 0.0
    %v5122 = vmax.f32 %v3614, 0.0
    %v5123 = vmax.f32 %v3805, 0.0
    %v5124 = vmax.f32 %v3807, 0.0
    %v5125 = vmax.f32 %v3998, 0.0
    %v5126 = vmax.f32 %v4000, 0.0
    %v5127 = vmax.f32 %v4191, 0.0
    %v5128 = vmax.f32 %v4193, 0.0
    %v5129 = vmax.f32 %v4384, 0.0
    %v5130 = vmax.f32 %v4386, 0.0
    %v5131 = vmax.f32 %v4577, 0.0
    %v5132 = vmax.f32 %v4579, 0.0
    %v5133 = vmax.f32 %v4770, 0.0
    %v5134 = vmax.f32 %v4772, 0.0
    %v5135 = vmax.f32 %v4963, 0.0
    %v5136 = vmax.f32 %v4965, 0.0
    %v5137 = vmax.f32 %v3616, 0.0
    %v5138 = vmax.f32 %v3618, 0.0
    %v5139 = vmax.f32 %v3809, 0.0
    %v5140 = vmax.f32 %v3811, 0.0
    %v5141 = vmax.f32 %v4002, 0.0
    %v5142 = vmax.f32 %v4004, 0.0
    %v5143 = vmax.f32 %v4195, 0.0
    %v5144 = vmax.f32 %v4197, 0.0
    %v5145 = vmax.f32 %v4388, 0.0
    %v5146 = vmax.f32 %v4390, 0.0
    %v5147 = vmax.f32 %v4581, 0.0
    %v5148 = vmax.f32 %v4583, 0.0
    %v5149 = vmax.f32 %v4774, 0.0
    %v5150 = vmax.f32 %v4776, 0.0
    %v5151 = vmax.f32 %v4967, 0.0
    %v5152 = vmax.f32 %v4969, 0.0
    %v5153 = vmax.f32 %v3622, 0.0
    %v5154 = vmax.f32 %v3624, 0.0
    %v5155 = vmax.f32 %v3815, 0.0
    %v5156 = vmax.f32 %v3817, 0.0
    %v5157 = vmax.f32 %v4008, 0.0
    %v5158 = vmax.f32 %v4010, 0.0
    %v5159 = vmax.f32 %v4201, 0.0
    %v5160 = vmax.f32 %v4203, 0.0
    %v5161 = vmax.f32 %v4394, 0.0
    %v5162 = vmax.f32 %v4396, 0.0
    %v5163 = vmax.f32 %v4587, 0.0
    %v5164 = vmax.f32 %v4589, 0.0
    %v5165 = vmax.f32 %v4780, 0.0
    %v5166 = vmax.f32 %v4782, 0.0
    %v5167 = vmax.f32 %v4973, 0.0
    %v5168 = vmax.f32 %v4975, 0.0
    %v5169 = vmax.f32 %v3626, 0.0
    %v5170 = vmax.f32 %v3628, 0.0
    %v5171 = vmax.f32 %v3819, 0.0
    %v5172 = vmax.f32 %v3821, 0.0
    %v5173 = vmax.f32 %v4012, 0.0
    %v5174 = vmax.f32 %v4014, 0.0
    %v5175 = vmax.f32 %v4205, 0.0
    %v5176 = vmax.f32 %v4207, 0.0
    %v5177 = vmax.f32 %v4398, 0.0
    %v5178 = vmax.f32 %v4400, 0.0
    %v5179 = vmax.f32 %v4591, 0.0
    %v5180 = vmax.f32 %v4593, 0.0
    %v5181 = vmax.f32 %v4784, 0.0
    %v5182 = vmax.f32 %v4786, 0.0
    %v5183 = vmax.f32 %v4977, 0.0
    %v5184 = vmax.f32 %v4979, 0.0
    %v5185 = vmax.f32 %v3632, 0.0
    %v5186 = vmax.f32 %v3634, 0.0
    %v5187 = vmax.f32 %v3825, 0.0
    %v5188 = vmax.f32 %v3827, 0.0
    %v5189 = vmax.f32 %v4018, 0.0
    %v5190 = vmax.f32 %v4020, 0.0
    %v5191 = vmax.f32 %v4211, 0.0
    %v5192 = vmax.f32 %v4213, 0.0
    %v5193 = vmax.f32 %v4404, 0.0
    %v5194 = vmax.f32 %v4406, 0.0
    %v5195 = vmax.f32 %v4597, 0.0
    %v5196 = vmax.f32 %v4599, 0.0
    %v5197 = vmax.f32 %v4790, 0.0
    %v5198 = vmax.f32 %v4792, 0.0
    %v5199 = vmax.f32 %v4983, 0.0
    %v5200 = vmax.f32 %v4985, 0.0
    %v5201 = vmax.f32 %v3636, 0.0
    %v5202 = vmax.f32 %v3638, 0.0
    %v5203 = vmax.f32 %v3829, 0.0
    %v5204 = vmax.f32 %v3831, 0.0
    %v5205 = vmax.f32 %v4022, 0.0
    %v5206 = vmax.f32 %v4024, 0.0
    %v5207 = vmax.f32 %v4215, 0.0
    %v5208 = vmax.f32 %v4217, 0.0
    %v5209 = vmax.f32 %v4408, 0.0
    %v5210 = vmax.f32 %v4410, 0.0
    %v5211 = vmax.f32 %v4601, 0.0
    %v5212 = vmax.f32 %v4603, 0.0
    %v5213 = vmax.f32 %v4794, 0.0
    %v5214 = vmax.f32 %v4796, 0.0
    %v5215 = vmax.f32 %v4987, 0.0
    %v5216 = vmax.f32 %v4989, 0.0
    %v5217 = vmax.f32 %v3642, 0.0
    %v5218 = vmax.f32 %v3644, 0.0
    %v5219 = vmax.f32 %v3835, 0.0
    %v5220 = vmax.f32 %v3837, 0.0
    %v5221 = vmax.f32 %v4028, 0.0
    %v5222 = vmax.f32 %v4030, 0.0
    %v5223 = vmax.f32 %v4221, 0.0
    %v5224 = vmax.f32 %v4223, 0.0
    %v5225 = vmax.f32 %v4414, 0.0
    %v5226 = vmax.f32 %v4416, 0.0
    %v5227 = vmax.f32 %v4607, 0.0
    %v5228 = vmax.f32 %v4609, 0.0
    %v5229 = vmax.f32 %v4800, 0.0
    %v5230 = vmax.f32 %v4802, 0.0
    %v5231 = vmax.f32 %v4993, 0.0
    %v5232 = vmax.f32 %v4995, 0.0
    %v5233 = vmax.f32 %v3646, 0.0
    %v5234 = vmax.f32 %v3648, 0.0
    %v5235 = vmax.f32 %v3839, 0.0
    %v5236 = vmax.f32 %v3841, 0.0
    %v5237 = vmax.f32 %v4032, 0.0
    %v5238 = vmax.f32 %v4034, 0.0
    %v5239 = vmax.f32 %v4225, 0.0
    %v5240 = vmax.f32 %v4227, 0.0
    %v5241 = vmax.f32 %v4418, 0.0
    %v5242 = vmax.f32 %v4420, 0.0
    %v5243 = vmax.f32 %v4611, 0.0
    %v5244 = vmax.f32 %v4613, 0.0
    %v5245 = vmax.f32 %v4804, 0.0
    %v5246 = vmax.f32 %v4806, 0.0
    %v5247 = vmax.f32 %v4997, 0.0
    %v5248 = vmax.f32 %v4999, 0.0
    %v5249 = vmax.f32 %v3652, 0.0
    %v5250 = vmax.f32 %v3654, 0.0
    %v5251 = vmax.f32 %v3845, 0.0
    %v5252 = vmax.f32 %v3847, 0.0
    %v5253 = vmax.f32 %v4038, 0.0
    %v5254 = vmax.f32 %v4040, 0.0
    %v5255 = vmax.f32 %v4231, 0.0
    %v5256 = vmax.f32 %v4233, 0.0
    %v5257 = vmax.f32 %v4424, 0.0
    %v5258 = vmax.f32 %v4426, 0.0
    %v5259 = vmax.f32 %v4617, 0.0
    %v5260 = vmax.f32 %v4619, 0.0
    %v5261 = vmax.f32 %v4810, 0.0
    %v5262 = vmax.f32 %v4812, 0.0
    %v5263 = vmax.f32 %v5003, 0.0
    %v5264 = vmax.f32 %v5005, 0.0
    %v5265 = vmax.f32 %v3656, 0.0
    %v5266 = vmax.f32 %v3658, 0.0
    %v5267 = vmax.f32 %v3849, 0.0
    %v5268 = vmax.f32 %v3851, 0.0
    %v5269 = vmax.f32 %v4042, 0.0
    %v5270 = vmax.f32 %v4044, 0.0
    %v5271 = vmax.f32 %v4235, 0.0
    %v5272 = vmax.f32 %v4237, 0.0
    %v5273 = vmax.f32 %v4428, 0.0
    %v5274 = vmax.f32 %v4430, 0.0
    %v5275 = vmax.f32 %v4621, 0.0
    %v5276 = vmax.f32 %v4623, 0.0
    %v5277 = vmax.f32 %v4814, 0.0
    %v5278 = vmax.f32 %v4816, 0.0
    %v5279 = vmax.f32 %v5007, 0.0
    %v5280 = vmax.f32 %v5009, 0.0
    %v5281 = vmax.f32 %v3662, 0.0
    %v5282 = vmax.f32 %v3664, 0.0
    %v5283 = vmax.f32 %v3855, 0.0
    %v5284 = vmax.f32 %v3857, 0.0
    %v5285 = vmax.f32 %v4048, 0.0
    %v5286 = vmax.f32 %v4050, 0.0
    %v5287 = vmax.f32 %v4241, 0.0
    %v5288 = vmax.f32 %v4243, 0.0
    %v5289 = vmax.f32 %v4434, 0.0
    %v5290 = vmax.f32 %v4436, 0.0
    %v5291 = vmax.f32 %v4627, 0.0
    %v5292 = vmax.f32 %v4629, 0.0
    %v5293 = vmax.f32 %v4820, 0.0
    %v5294 = vmax.f32 %v4822, 0.0
    %v5295 = vmax.f32 %v5013, 0.0
    %v5296 = vmax.f32 %v5015, 0.0
    %v5297 = vmax.f32 %v3666, 0.0
    %v5298 = vmax.f32 %v3668, 0.0
    %v5299 = vmax.f32 %v3859, 0.0
    %v5300 = vmax.f32 %v3861, 0.0
    %v5301 = vmax.f32 %v4052, 0.0
    %v5302 = vmax.f32 %v4054, 0.0
    %v5303 = vmax.f32 %v4245, 0.0
    %v5304 = vmax.f32 %v4247, 0.0
    %v5305 = vmax.f32 %v4438, 0.0
    %v5306 = vmax.f32 %v4440, 0.0
    %v5307 = vmax.f32 %v4631, 0.0
    %v5308 = vmax.f32 %v4633, 0.0
    %v5309 = vmax.f32 %v4824, 0.0
    %v5310 = vmax.f32 %v4826, 0.0
    %v5311 = vmax.f32 %v5017, 0.0
    %v5312 = vmax.f32 %v5019, 0.0
    %v5313 = vmax.f32 %v3672, 0.0
    %v5314 = vmax.f32 %v3674, 0.0
    %v5315 = vmax.f32 %v3865, 0.0
    %v5316 = vmax.f32 %v3867, 0.0
    %v5317 = vmax.f32 %v4058, 0.0
    %v5318 = vmax.f32 %v4060, 0.0
    %v5319 = vmax.f32 %v4251, 0.0
    %v5320 = vmax.f32 %v4253, 0.0
    %v5321 = vmax.f32 %v4444, 0.0
    %v5322 = vmax.f32 %v4446, 0.0
    %v5323 = vmax.f32 %v4637, 0.0
    %v5324 = vmax.f32 %v4639, 0.0
    %v5325 = vmax.f32 %v4830, 0.0
    %v5326 = vmax.f32 %v4832, 0.0
    %v5327 = vmax.f32 %v5023, 0.0
    %v5328 = vmax.f32 %v5025, 0.0
    %v5329 = vmax.f32 %v3676, 0.0
    %v5330 = vmax.f32 %v3678, 0.0
    %v5331 = vmax.f32 %v3869, 0.0
    %v5332 = vmax.f32 %v3871, 0.0
    %v5333 = vmax.f32 %v4062, 0.0
    %v5334 = vmax.f32 %v4064, 0.0
    %v5335 = vmax.f32 %v4255, 0.0
    %v5336 = vmax.f32 %v4257, 0.0
    %v5337 = vmax.f32 %v4448, 0.0
    %v5338 = vmax.f32 %v4450, 0.0
    %v5339 = vmax.f32 %v4641, 0.0
    %v5340 = vmax.f32 %v4643, 0.0
    %v5341 = vmax.f32 %v4834, 0.0
    %v5342 = vmax.f32 %v4836, 0.0
    %v5343 = vmax.f32 %v5027, 0.0
    %v5344 = vmax.f32 %v5029, 0.0
    %v5345 = vmax.f32 %v3682, 0.0
    %v5346 = vmax.f32 %v3684, 0.0
    %v5347 = vmax.f32 %v3875, 0.0
    %v5348 = vmax.f32 %v3877, 0.0
    %v5349 = vmax.f32 %v4068, 0.0
    %v5350 = vmax.f32 %v4070, 0.0
    %v5351 = vmax.f32 %v4261, 0.0
    %v5352 = vmax.f32 %v4263, 0.0
    %v5353 = vmax.f32 %v4454, 0.0
    %v5354 = vmax.f32 %v4456, 0.0
    %v5355 = vmax.f32 %v4647, 0.0
    %v5356 = vmax.f32 %v4649, 0.0
    %v5357 = vmax.f32 %v4840, 0.0
    %v5358 = vmax.f32 %v4842, 0.0
    %v5359 = vmax.f32 %v5033, 0.0
    %v5360 = vmax.f32 %v5035, 0.0
    %v5361 = vmax.f32 %v3686, 0.0
    %v5362 = vmax.f32 %v3688, 0.0
    %v5363 = vmax.f32 %v3879, 0.0
    %v5364 = vmax.f32 %v3881, 0.0
    %v5365 = vmax.f32 %v4072, 0.0
    %v5366 = vmax.f32 %v4074, 0.0
    %v5367 = vmax.f32 %v4265, 0.0
    %v5368 = vmax.f32 %v4267, 0.0
    %v5369 = vmax.f32 %v4458, 0.0
    %v5370 = vmax.f32 %v4460, 0.0
    %v5371 = vmax.f32 %v4651, 0.0
    %v5372 = vmax.f32 %v4653, 0.0
    %v5373 = vmax.f32 %v4844, 0.0
    %v5374 = vmax.f32 %v4846, 0.0
    %v5375 = vmax.f32 %v5037, 0.0
    %v5376 = vmax.f32 %v5039, 0.0
    %v5377 = vmax.f32 %v3692, 0.0
    %v5378 = vmax.f32 %v3694, 0.0
    %v5379 = vmax.f32 %v3885, 0.0
    %v5380 = vmax.f32 %v3887, 0.0
    %v5381 = vmax.f32 %v4078, 0.0
    %v5382 = vmax.f32 %v4080, 0.0
    %v5383 = vmax.f32 %v4271, 0.0
    %v5384 = vmax.f32 %v4273, 0.0
    %v5385 = vmax.f32 %v4464, 0.0
    %v5386 = vmax.f32 %v4466, 0.0
    %v5387 = vmax.f32 %v4657, 0.0
    %v5388 = vmax.f32 %v4659, 0.0
    %v5389 = vmax.f32 %v4850, 0.0
    %v5390 = vmax.f32 %v4852, 0.0
    %v5391 = vmax.f32 %v5043, 0.0
    %v5392 = vmax.f32 %v5045, 0.0
    %v5393 = vmax.f32 %v3696, 0.0
    %v5394 = vmax.f32 %v3698, 0.0
    %v5395 = vmax.f32 %v3889, 0.0
    %v5396 = vmax.f32 %v3891, 0.0
    %v5397 = vmax.f32 %v4082, 0.0
    %v5398 = vmax.f32 %v4084, 0.0
    %v5399 = vmax.f32 %v4275, 0.0
    %v5400 = vmax.f32 %v4277, 0.0
    %v5401 = vmax.f32 %v4468, 0.0
    %v5402 = vmax.f32 %v4470, 0.0
    %v5403 = vmax.f32 %v4661, 0.0
    %v5404 = vmax.f32 %v4663, 0.0
    %v5405 = vmax.f32 %v4854, 0.0
    %v5406 = vmax.f32 %v4856, 0.0
    %v5407 = vmax.f32 %v5047, 0.0
    %v5408 = vmax.f32 %v5049, 0.0
    %v5409 = vmax.f32 %v3702, 0.0
    %v5410 = vmax.f32 %v3704, 0.0
    %v5411 = vmax.f32 %v3895, 0.0
    %v5412 = vmax.f32 %v3897, 0.0
    %v5413 = vmax.f32 %v4088, 0.0
    %v5414 = vmax.f32 %v4090, 0.0
    %v5415 = vmax.f32 %v4281, 0.0
    %v5416 = vmax.f32 %v4283, 0.0
    %v5417 = vmax.f32 %v4474, 0.0
    %v5418 = vmax.f32 %v4476, 0.0
    %v5419 = vmax.f32 %v4667, 0.0
    %v5420 = vmax.f32 %v4669, 0.0
    %v5421 = vmax.f32 %v4860, 0.0
    %v5422 = vmax.f32 %v4862, 0.0
    %v5423 = vmax.f32 %v5053, 0.0
    %v5424 = vmax.f32 %v5055, 0.0
    %v5425 = vmax.f32 %v3706, 0.0
    %v5426 = vmax.f32 %v3708, 0.0
    %v5427 = vmax.f32 %v3899, 0.0
    %v5428 = vmax.f32 %v3901, 0.0
    %v5429 = vmax.f32 %v4092, 0.0
    %v5430 = vmax.f32 %v4094, 0.0
    %v5431 = vmax.f32 %v4285, 0.0
    %v5432 = vmax.f32 %v4287, 0.0
    %v5433 = vmax.f32 %v4478, 0.0
    %v5434 = vmax.f32 %v4480, 0.0
    %v5435 = vmax.f32 %v4671, 0.0
    %v5436 = vmax.f32 %v4673, 0.0
    %v5437 = vmax.f32 %v4864, 0.0
    %v5438 = vmax.f32 %v4866, 0.0
    %v5439 = vmax.f32 %v5057, 0.0
    %v5440 = vmax.f32 %v5059, 0.0
    %v5441 = vmax.f32 %v3712, 0.0
    %v5442 = vmax.f32 %v3714, 0.0
    %v5443 = vmax.f32 %v3905, 0.0
    %v5444 = vmax.f32 %v3907, 0.0
    %v5445 = vmax.f32 %v4098, 0.0
    %v5446 = vmax.f32 %v4100, 0.0
    %v5447 = vmax.f32 %v4291, 0.0
    %v5448 = vmax.f32 %v4293, 0.0
    %v5449 = vmax.f32 %v4484, 0.0
    %v5450 = vmax.f32 %v4486, 0.0
    %v5451 = vmax.f32 %v4677, 0.0
    %v5452 = vmax.f32 %v4679, 0.0
    %v5453 = vmax.f32 %v4870, 0.0
    %v5454 = vmax.f32 %v4872, 0.0
    %v5455 = vmax.f32 %v5063, 0.0
    %v5456 = vmax.f32 %v5065, 0.0
    %v5457 = vmax.f32 %v3716, 0.0
    %v5458 = vmax.f32 %v3718, 0.0
    %v5459 = vmax.f32 %v3909, 0.0
    %v5460 = vmax.f32 %v3911, 0.0
    %v5461 = vmax.f32 %v4102, 0.0
    %v5462 = vmax.f32 %v4104, 0.0
    %v5463 = vmax.f32 %v4295, 0.0
    %v5464 = vmax.f32 %v4297, 0.0
    %v5465 = vmax.f32 %v4488, 0.0
    %v5466 = vmax.f32 %v4490, 0.0
    %v5467 = vmax.f32 %v4681, 0.0
    %v5468 = vmax.f32 %v4683, 0.0
    %v5469 = vmax.f32 %v4874, 0.0
    %v5470 = vmax.f32 %v4876, 0.0
    %v5471 = vmax.f32 %v5067, 0.0
    %v5472 = vmax.f32 %v5069, 0.0
    %v5473 = vmax.f32 %v3722, 0.0
    %v5474 = vmax.f32 %v3724, 0.0
    %v5475 = vmax.f32 %v3915, 0.0
    %v5476 = vmax.f32 %v3917, 0.0
    %v5477 = vmax.f32 %v4108, 0.0
    %v5478 = vmax.f32 %v4110, 0.0
    %v5479 = vmax.f32 %v4301, 0.0
    %v5480 = vmax.f32 %v4303, 0.0
    %v5481 = vmax.f32 %v4494, 0.0
    %v5482 = vmax.f32 %v4496, 0.0
    %v5483 = vmax.f32 %v4687, 0.0
    %v5484 = vmax.f32 %v4689, 0.0
    %v5485 = vmax.f32 %v4880, 0.0
    %v5486 = vmax.f32 %v4882, 0.0
    %v5487 = vmax.f32 %v5073, 0.0
    %v5488 = vmax.f32 %v5075, 0.0
    %v5489 = vmax.f32 %v3726, 0.0
    %v5490 = vmax.f32 %v3728, 0.0
    %v5491 = vmax.f32 %v3919, 0.0
    %v5492 = vmax.f32 %v3921, 0.0
    %v5493 = vmax.f32 %v4112, 0.0
    %v5494 = vmax.f32 %v4114, 0.0
    %v5495 = vmax.f32 %v4305, 0.0
    %v5496 = vmax.f32 %v4307, 0.0
    %v5497 = vmax.f32 %v4498, 0.0
    %v5498 = vmax.f32 %v4500, 0.0
    %v5499 = vmax.f32 %v4691, 0.0
    %v5500 = vmax.f32 %v4693, 0.0
    %v5501 = vmax.f32 %v4884, 0.0
    %v5502 = vmax.f32 %v4886, 0.0
    %v5503 = vmax.f32 %v5077, 0.0
    %v5504 = vmax.f32 %v5079, 0.0
    %v5505 = vmax.f32 %v3732, 0.0
    %v5506 = vmax.f32 %v3734, 0.0
    %v5507 = vmax.f32 %v3925, 0.0
    %v5508 = vmax.f32 %v3927, 0.0
    %v5509 = vmax.f32 %v4118, 0.0
    %v5510 = vmax.f32 %v4120, 0.0
    %v5511 = vmax.f32 %v4311, 0.0
    %v5512 = vmax.f32 %v4313, 0.0
    %v5513 = vmax.f32 %v4504, 0.0
    %v5514 = vmax.f32 %v4506, 0.0
    %v5515 = vmax.f32 %v4697, 0.0
    %v5516 = vmax.f32 %v4699, 0.0
    %v5517 = vmax.f32 %v4890, 0.0
    %v5518 = vmax.f32 %v4892, 0.0
    %v5519 = vmax.f32 %v5083, 0.0
    %v5520 = vmax.f32 %v5085, 0.0
    %v5521 = vmax.f32 %v3736, 0.0
    %v5522 = vmax.f32 %v3738, 0.0
    %v5523 = vmax.f32 %v3929, 0.0
    %v5524 = vmax.f32 %v3931, 0.0
    %v5525 = vmax.f32 %v4122, 0.0
    %v5526 = vmax.f32 %v4124, 0.0
    %v5527 = vmax.f32 %v4315, 0.0
    %v5528 = vmax.f32 %v4317, 0.0
    %v5529 = vmax.f32 %v4508, 0.0
    %v5530 = vmax.f32 %v4510, 0.0
    %v5531 = vmax.f32 %v4701, 0.0
    %v5532 = vmax.f32 %v4703, 0.0
    %v5533 = vmax.f32 %v4894, 0.0
    %v5534 = vmax.f32 %v4896, 0.0
    %v5535 = vmax.f32 %v5087, 0.0
    %v5536 = vmax.f32 %v5089, 0.0
    %v5537 = vmax.f32 %v3742, 0.0
    %v5538 = vmax.f32 %v3744, 0.0
    %v5539 = vmax.f32 %v3935, 0.0
    %v5540 = vmax.f32 %v3937, 0.0
    %v5541 = vmax.f32 %v4128, 0.0
    %v5542 = vmax.f32 %v4130, 0.0
    %v5543 = vmax.f32 %v4321, 0.0
    %v5544 = vmax.f32 %v4323, 0.0
    %v5545 = vmax.f32 %v4514, 0.0
    %v5546 = vmax.f32 %v4516, 0.0
    %v5547 = vmax.f32 %v4707, 0.0
    %v5548 = vmax.f32 %v4709, 0.0
    %v5549 = vmax.f32 %v4900, 0.0
    %v5550 = vmax.f32 %v4902, 0.0
    %v5551 = vmax.f32 %v5093, 0.0
    %v5552 = vmax.f32 %v5095, 0.0
    %v5553 = vmax.f32 %v3746, 0.0
    %v5554 = vmax.f32 %v3748, 0.0
    %v5555 = vmax.f32 %v3939, 0.0
    %v5556 = vmax.f32 %v3941, 0.0
    %v5557 = vmax.f32 %v4132, 0.0
    %v5558 = vmax.f32 %v4134, 0.0
    %v5559 = vmax.f32 %v4325, 0.0
    %v5560 = vmax.f32 %v4327, 0.0
    %v5561 = vmax.f32 %v4518, 0.0
    %v5562 = vmax.f32 %v4520, 0.0
    %v5563 = vmax.f32 %v4711, 0.0
    %v5564 = vmax.f32 %v4713, 0.0
    %v5565 = vmax.f32 %v4904, 0.0
    %v5566 = vmax.f32 %v4906, 0.0
    %v5567 = vmax.f32 %v5097, 0.0
    %v5568 = vmax.f32 %v5099, 0.0
    %v5569 = vmax.f32 %v3752, 0.0
    %v5570 = vmax.f32 %v3754, 0.0
    %v5571 = vmax.f32 %v3945, 0.0
    %v5572 = vmax.f32 %v3947, 0.0
    %v5573 = vmax.f32 %v4138, 0.0
    %v5574 = vmax.f32 %v4140, 0.0
    %v5575 = vmax.f32 %v4331, 0.0
    %v5576 = vmax.f32 %v4333, 0.0
    %v5577 = vmax.f32 %v4524, 0.0
    %v5578 = vmax.f32 %v4526, 0.0
    %v5579 = vmax.f32 %v4717, 0.0
    %v5580 = vmax.f32 %v4719, 0.0
    %v5581 = vmax.f32 %v4910, 0.0
    %v5582 = vmax.f32 %v4912, 0.0
    %v5583 = vmax.f32 %v5103, 0.0
    %v5584 = vmax.f32 %v5105, 0.0
    %v5585 = vmax.f32 %v3756, 0.0
    %v5586 = vmax.f32 %v3758, 0.0
    %v5587 = vmax.f32 %v3949, 0.0
    %v5588 = vmax.f32 %v3951, 0.0
    %v5589 = vmax.f32 %v4142, 0.0
    %v5590 = vmax.f32 %v4144, 0.0
    %v5591 = vmax.f32 %v4335, 0.0
    %v5592 = vmax.f32 %v4337, 0.0
    %v5593 = vmax.f32 %v4528, 0.0
    %v5594 = vmax.f32 %v4530, 0.0
    %v5595 = vmax.f32 %v4721, 0.0
    %v5596 = vmax.f32 %v4723, 0.0
    %v5597 = vmax.f32 %v4914, 0.0
    %v5598 = vmax.f32 %v4916, 0.0
    %v5599 = vmax.f32 %v5107, 0.0
    %v5600 = vmax.f32 %v5109, 0.0
    %v5601 = vmax.f32 %v3762, 0.0
    %v5602 = vmax.f32 %v3764, 0.0
    %v5603 = vmax.f32 %v3955, 0.0
    %v5604 = vmax.f32 %v3957, 0.0
    %v5605 = vmax.f32 %v4148, 0.0
    %v5606 = vmax.f32 %v4150, 0.0
    %v5607 = vmax.f32 %v4341, 0.0
    %v5608 = vmax.f32 %v4343, 0.0
    %v5609 = vmax.f32 %v4534, 0.0
    %v5610 = vmax.f32 %v4536, 0.0
    %v5611 = vmax.f32 %v4727, 0.0
    %v5612 = vmax.f32 %v4729, 0.0
    %v5613 = vmax.f32 %v4920, 0.0
    %v5614 = vmax.f32 %v4922, 0.0
    %v5615 = vmax.f32 %v5113, 0.0
    %v5616 = vmax.f32 %v5115, 0.0
    %v5617 = vmax.f32 %v3766, 0.0
    %v5618 = vmax.f32 %v3768, 0.0
    %v5619 = vmax.f32 %v3959, 0.0
    %v5620 = vmax.f32 %v3961, 0.0
    %v5621 = vmax.f32 %v4152, 0.0
    %v5622 = vmax.f32 %v4154, 0.0
    %v5623 = vmax.f32 %v4345, 0.0
    %v5624 = vmax.f32 %v4347, 0.0
    %v5625 = vmax.f32 %v4538, 0.0
    %v5626 = vmax.f32 %v4540, 0.0
    %v5627 = vmax.f32 %v4731, 0.0
    %v5628 = vmax.f32 %v4733, 0.0
    %v5629 = vmax.f32 %v4924, 0.0
    %v5630 = vmax.f32 %v4926, 0.0
    %v5631 = vmax.f32 %v5117, 0.0
    %v5632 = vmax.f32 %v5119, 0.0
    %v5633 = vadd.f32 %v5121, %v5137
    %v5634 = vadd.f32 %v5633, %v5153
    %v5635 = vadd.f32 %v5634, %v5169
    %v5636 = vadd.f32 %v5635, %v5185
    %v5637 = vadd.f32 %v5636, %v5201
    %v5638 = vadd.f32 %v5637, %v5217
    %v5639 = vadd.f32 %v5638, %v5233
    %v5640 = vadd.f32 %v5639, %v5249
    %v5641 = vadd.f32 %v5640, %v5265
    %v5642 = vadd.f32 %v5641, %v5281
    %v5643 = vadd.f32 %v5642, %v5297
    %v5644 = vadd.f32 %v5643, %v5313
    %v5645 = vadd.f32 %v5644, %v5329
    %v5646 = vadd.f32 %v5645, %v5345
    %v5647 = vadd.f32 %v5646, %v5361
    %v5648 = vadd.f32 %v5647, %v5377
    %v5649 = vadd.f32 %v5648, %v5393
    %v5650 = vadd.f32 %v5649, %v5409
    %v5651 = vadd.f32 %v5650, %v5425
    %v5652 = vadd.f32 %v5651, %v5441
    %v5653 = vadd.f32 %v5652, %v5457
    %v5654 = vadd.f32 %v5653, %v5473
    %v5655 = vadd.f32 %v5654, %v5489
    %v5656 = vadd.f32 %v5655, %v5505
    %v5657 = vadd.f32 %v5656, %v5521
    %v5658 = vadd.f32 %v5657, %v5537
    %v5659 = vadd.f32 %v5658, %v5553
    %v5660 = vadd.f32 %v5659, %v5569
    %v5661 = vadd.f32 %v5660, %v5585
    %v5662 = vadd.f32 %v5661, %v5601
    %v5663 = vadd.f32 %v5662, %v5617
    %v5664 = vrot.slane %v5663, 4
    %v5665 = vadd.f32 %v5663, %v5664
    %v5666 = vrot.slane %v5665, 2
    %v5667 = vadd.f32 %v5665, %v5666
    %v5668 = vrot.slane %v5667, 1
    %v5669 = vadd.f32 %v5667, %v5668
    %v5670 = vadd.f32 %v5122, %v5138
    %v5671 = vadd.f32 %v5670, %v5154
    %v5672 = vadd.f32 %v5671, %v5170
    %v5673 = vadd.f32 %v5672, %v5186
    %v5674 = vadd.f32 %v5673, %v5202
    %v5675 = vadd.f32 %v5674, %v5218
    %v5676 = vadd.f32 %v5675, %v5234
    %v5677 = vadd.f32 %v5676, %v5250
    %v5678 = vadd.f32 %v5677, %v5266
    %v5679 = vadd.f32 %v5678, %v5282
    %v5680 = vadd.f32 %v5679, %v5298
    %v5681 = vadd.f32 %v5680, %v5314
    %v5682 = vadd.f32 %v5681, %v5330
    %v5683 = vadd.f32 %v5682, %v5346
    %v5684 = vadd.f32 %v5683, %v5362
    %v5685 = vadd.f32 %v5684, %v5378
    %v5686 = vadd.f32 %v5685, %v5394
    %v5687 = vadd.f32 %v5686, %v5410
    %v5688 = vadd.f32 %v5687, %v5426
    %v5689 = vadd.f32 %v5688, %v5442
    %v5690 = vadd.f32 %v5689, %v5458
    %v5691 = vadd.f32 %v5690, %v5474
    %v5692 = vadd.f32 %v5691, %v5490
    %v5693 = vadd.f32 %v5692, %v5506
    %v5694 = vadd.f32 %v5693, %v5522
    %v5695 = vadd.f32 %v5694, %v5538
    %v5696 = vadd.f32 %v5695, %v5554
    %v5697 = vadd.f32 %v5696, %v5570
    %v5698 = vadd.f32 %v5697, %v5586
    %v5699 = vadd.f32 %v5698, %v5602
    %v5700 = vadd.f32 %v5699, %v5618
    %v5701 = vrot.slane %v5700, 4
    %v5702 = vadd.f32 %v5700, %v5701
    %v5703 = vrot.slane %v5702, 2
    %v5704 = vadd.f32 %v5702, %v5703
    %v5705 = vrot.slane %v5704, 1
    %v5706 = vadd.f32 %v5704, %v5705
    %v5707 = vadd.f32 %v5123, %v5139
    %v5708 = vadd.f32 %v5707, %v5155
    %v5709 = vadd.f32 %v5708, %v5171
    %v5710 = vadd.f32 %v5709, %v5187
    %v5711 = vadd.f32 %v5710, %v5203
    %v5712 = vadd.f32 %v5711, %v5219
    %v5713 = vadd.f32 %v5712, %v5235
    %v5714 = vadd.f32 %v5713, %v5251
    %v5715 = vadd.f32 %v5714, %v5267
    %v5716 = vadd.f32 %v5715, %v5283
    %v5717 = vadd.f32 %v5716, %v5299
    %v5718 = vadd.f32 %v5717, %v5315
    %v5719 = vadd.f32 %v5718, %v5331
    %v5720 = vadd.f32 %v5719, %v5347
    %v5721 = vadd.f32 %v5720, %v5363
    %v5722 = vadd.f32 %v5721, %v5379
    %v5723 = vadd.f32 %v5722, %v5395
    %v5724 = vadd.f32 %v5723, %v5411
    %v5725 = vadd.f32 %v5724, %v5427
    %v5726 = vadd.f32 %v5725, %v5443
    %v5727 = vadd.f32 %v5726, %v5459
    %v5728 = vadd.f32 %v5727, %v5475
    %v5729 = vadd.f32 %v5728, %v5491
    %v5730 = vadd.f32 %v5729, %v5507
    %v5731 = vadd.f32 %v5730, %v5523
    %v5732 = vadd.f32 %v5731, %v5539
    %v5733 = vadd.f32 %v5732, %v5555
    %v5734 = vadd.f32 %v5733, %v5571
    %v5735 = vadd.f32 %v5734, %v5587
    %v5736 = vadd.f32 %v5735, %v5603
    %v5737 = vadd.f32 %v5736, %v5619
    %v5738 = vrot.slane %v5737, 4
    %v5739 = vadd.f32 %v5737, %v5738
    %v5740 = vrot.slane %v5739, 2
    %v5741 = vadd.f32 %v5739, %v5740
    %v5742 = vrot.slane %v5741, 1
    %v5743 = vadd.f32 %v5741, %v5742
    %v5744 = vadd.f32 %v5124, %v5140
    %v5745 = vadd.f32 %v5744, %v5156
    %v5746 = vadd.f32 %v5745, %v5172
    %v5747 = vadd.f32 %v5746, %v5188
    %v5748 = vadd.f32 %v5747, %v5204
    %v5749 = vadd.f32 %v5748, %v5220
    %v5750 = vadd.f32 %v5749, %v5236
    %v5751 = vadd.f32 %v5750, %v5252
    %v5752 = vadd.f32 %v5751, %v5268
    %v5753 = vadd.f32 %v5752, %v5284
    %v5754 = vadd.f32 %v5753, %v5300
    %v5755 = vadd.f32 %v5754, %v5316
    %v5756 = vadd.f32 %v5755, %v5332
    %v5757 = vadd.f32 %v5756, %v5348
    %v5758 = vadd.f32 %v5757, %v5364
    %v5759 = vadd.f32 %v5758, %v5380
    %v5760 = vadd.f32 %v5759, %v5396
    %v5761 = vadd.f32 %v5760, %v5412
    %v5762 = vadd.f32 %v5761, %v5428
    %v5763 = vadd.f32 %v5762, %v5444
    %v5764 = vadd.f32 %v5763, %v5460
    %v5765 = vadd.f32 %v5764, %v5476
    %v5766 = vadd.f32 %v5765, %v5492
    %v5767 = vadd.f32 %v5766, %v5508
    %v5768 = vadd.f32 %v5767, %v5524
    %v5769 = vadd.f32 %v5768, %v5540
    %v5770 = vadd.f32 %v5769, %v5556
    %v5771 = vadd.f32 %v5770, %v5572
    %v5772 = vadd.f32 %v5771, %v5588
    %v5773 = vadd.f32 %v5772, %v5604
    %v5774 = vadd.f32 %v5773, %v5620
    %v5775 = vrot.slane %v5774, 4
    %v5776 = vadd.f32 %v5774, %v5775
    %v5777 = vrot.slane %v5776, 2
    %v5778 = vadd.f32 %v5776, %v5777
    %v5779 = vrot.slane %v5778, 1
    %v5780 = vadd.f32 %v5778, %v5779
    %v5781 = vadd.f32 %v5125, %v5141
    %v5782 = vadd.f32 %v5781, %v5157
    %v5783 = vadd.f32 %v5782, %v5173
    %v5784 = vadd.f32 %v5783, %v5189
    %v5785 = vadd.f32 %v5784, %v5205
    %v5786 = vadd.f32 %v5785, %v5221
    %v5787 = vadd.f32 %v5786, %v5237
    %v5788 = vadd.f32 %v5787, %v5253
    %v5789 = vadd.f32 %v5788, %v5269
    %v5790 = vadd.f32 %v5789, %v5285
    %v5791 = vadd.f32 %v5790, %v5301
    %v5792 = vadd.f32 %v5791, %v5317
    %v5793 = vadd.f32 %v5792, %v5333
    %v5794 = vadd.f32 %v5793, %v5349
    %v5795 = vadd.f32 %v5794, %v5365
    %v5796 = vadd.f32 %v5795, %v5381
    %v5797 = vadd.f32 %v5796, %v5397
    %v5798 = vadd.f32 %v5797, %v5413
    %v5799 = vadd.f32 %v5798, %v5429
    %v5800 = vadd.f32 %v5799, %v5445
    %v5801 = vadd.f32 %v5800, %v5461
    %v5802 = vadd.f32 %v5801, %v5477
    %v5803 = vadd.f32 %v5802, %v5493
    %v5804 = vadd.f32 %v5803, %v5509
    %v5805 = vadd.f32 %v5804, %v5525
    %v5806 = vadd.f32 %v5805, %v5541
    %v5807 = vadd.f32 %v5806, %v5557
    %v5808 = vadd.f32 %v5807, %v5573
    %v5809 = vadd.f32 %v5808, %v5589
    %v5810 = vadd.f32 %v5809, %v5605
    %v5811 = vadd.f32 %v5810, %v5621
    %v5812 = vrot.slane %v5811, 4
    %v5813 = vadd.f32 %v5811, %v5812
    %v5814 = vrot.slane %v5813, 2
    %v5815 = vadd.f32 %v5813, %v5814
    %v5816 = vrot.slane %v5815, 1
    %v5817 = vadd.f32 %v5815, %v5816
    %v5818 = vadd.f32 %v5126, %v5142
    %v5819 = vadd.f32 %v5818, %v5158
    %v5820 = vadd.f32 %v5819, %v5174
    %v5821 = vadd.f32 %v5820, %v5190
    %v5822 = vadd.f32 %v5821, %v5206
    %v5823 = vadd.f32 %v5822, %v5222
    %v5824 = vadd.f32 %v5823, %v5238
    %v5825 = vadd.f32 %v5824, %v5254
    %v5826 = vadd.f32 %v5825, %v5270
    %v5827 = vadd.f32 %v5826, %v5286
    %v5828 = vadd.f32 %v5827, %v5302
    %v5829 = vadd.f32 %v5828, %v5318
    %v5830 = vadd.f32 %v5829, %v5334
    %v5831 = vadd.f32 %v5830, %v5350
    %v5832 = vadd.f32 %v5831, %v5366
    %v5833 = vadd.f32 %v5832, %v5382
    %v5834 = vadd.f32 %v5833, %v5398
    %v5835 = vadd.f32 %v5834, %v5414
    %v5836 = vadd.f32 %v5835, %v5430
    %v5837 = vadd.f32 %v5836, %v5446
    %v5838 = vadd.f32 %v5837, %v5462
    %v5839 = vadd.f32 %v5838, %v5478
    %v5840 = vadd.f32 %v5839, %v5494
    %v5841 = vadd.f32 %v5840, %v5510
    %v5842 = vadd.f32 %v5841, %v5526
    %v5843 = vadd.f32 %v5842, %v5542
    %v5844 = vadd.f32 %v5843, %v5558
    %v5845 = vadd.f32 %v5844, %v5574
    %v5846 = vadd.f32 %v5845, %v5590
    %v5847 = vadd.f32 %v5846, %v5606
    %v5848 = vadd.f32 %v5847, %v5622
    %v5849 = vrot.slane %v5848, 4
    %v5850 = vadd.f32 %v5848, %v5849
    %v5851 = vrot.slane %v5850, 2
    %v5852 = vadd.f32 %v5850, %v5851
    %v5853 = vrot.slane %v5852, 1
    %v5854 = vadd.f32 %v5852, %v5853
    %v5855 = vadd.f32 %v5127, %v5143
    %v5856 = vadd.f32 %v5855, %v5159
    %v5857 = vadd.f32 %v5856, %v5175
    %v5858 = vadd.f32 %v5857, %v5191
    %v5859 = vadd.f32 %v5858, %v5207
    %v5860 = vadd.f32 %v5859, %v5223
    %v5861 = vadd.f32 %v5860, %v5239
    %v5862 = vadd.f32 %v5861, %v5255
    %v5863 = vadd.f32 %v5862, %v5271
    %v5864 = vadd.f32 %v5863, %v5287
    %v5865 = vadd.f32 %v5864, %v5303
    %v5866 = vadd.f32 %v5865, %v5319
    %v5867 = vadd.f32 %v5866, %v5335
    %v5868 = vadd.f32 %v5867, %v5351
    %v5869 = vadd.f32 %v5868, %v5367
    %v5870 = vadd.f32 %v5869, %v5383
    %v5871 = vadd.f32 %v5870, %v5399
    %v5872 = vadd.f32 %v5871, %v5415
    %v5873 = vadd.f32 %v5872, %v5431
    %v5874 = vadd.f32 %v5873, %v5447
    %v5875 = vadd.f32 %v5874, %v5463
    %v5876 = vadd.f32 %v5875, %v5479
    %v5877 = vadd.f32 %v5876, %v5495
    %v5878 = vadd.f32 %v5877, %v5511
    %v5879 = vadd.f32 %v5878, %v5527
    %v5880 = vadd.f32 %v5879, %v5543
    %v5881 = vadd.f32 %v5880, %v5559
    %v5882 = vadd.f32 %v5881, %v5575
    %v5883 = vadd.f32 %v5882, %v5591
    %v5884 = vadd.f32 %v5883, %v5607
    %v5885 = vadd.f32 %v5884, %v5623
    %v5886 = vrot.slane %v5885, 4
    %v5887 = vadd.f32 %v5885, %v5886
    %v5888 = vrot.slane %v5887, 2
    %v5889 = vadd.f32 %v5887, %v5888
    %v5890 = vrot.slane %v5889, 1
    %v5891 = vadd.f32 %v5889, %v5890
    %v5892 = vadd.f32 %v5128, %v5144
    %v5893 = vadd.f32 %v5892, %v5160
    %v5894 = vadd.f32 %v5893, %v5176
    %v5895 = vadd.f32 %v5894, %v5192
    %v5896 = vadd.f32 %v5895, %v5208
    %v5897 = vadd.f32 %v5896, %v5224
    %v5898 = vadd.f32 %v5897, %v5240
    %v5899 = vadd.f32 %v5898, %v5256
    %v5900 = vadd.f32 %v5899, %v5272
    %v5901 = vadd.f32 %v5900, %v5288
    %v5902 = vadd.f32 %v5901, %v5304
    %v5903 = vadd.f32 %v5902, %v5320
    %v5904 = vadd.f32 %v5903, %v5336
    %v5905 = vadd.f32 %v5904, %v5352
    %v5906 = vadd.f32 %v5905, %v5368
    %v5907 = vadd.f32 %v5906, %v5384
    %v5908 = vadd.f32 %v5907, %v5400
    %v5909 = vadd.f32 %v5908, %v5416
    %v5910 = vadd.f32 %v5909, %v5432
    %v5911 = vadd.f32 %v5910, %v5448
    %v5912 = vadd.f32 %v5911, %v5464
    %v5913 = vadd.f32 %v5912, %v5480
    %v5914 = vadd.f32 %v5913, %v5496
    %v5915 = vadd.f32 %v5914, %v5512
    %v5916 = vadd.f32 %v5915, %v5528
    %v5917 = vadd.f32 %v5916, %v5544
    %v5918 = vadd.f32 %v5917, %v5560
    %v5919 = vadd.f32 %v5918, %v5576
    %v5920 = vadd.f32 %v5919, %v5592
    %v5921 = vadd.f32 %v5920, %v5608
    %v5922 = vadd.f32 %v5921, %v5624
    %v5923 = vrot.slane %v5922, 4
    %v5924 = vadd.f32 %v5922, %v5923
    %v5925 = vrot.slane %v5924, 2
    %v5926 = vadd.f32 %v5924, %v5925
    %v5927 = vrot.slane %v5926, 1
    %v5928 = vadd.f32 %v5926, %v5927
    %v5929 = vadd.f32 %v5129, %v5145
    %v5930 = vadd.f32 %v5929, %v5161
    %v5931 = vadd.f32 %v5930, %v5177
    %v5932 = vadd.f32 %v5931, %v5193
    %v5933 = vadd.f32 %v5932, %v5209
    %v5934 = vadd.f32 %v5933, %v5225
    %v5935 = vadd.f32 %v5934, %v5241
    %v5936 = vadd.f32 %v5935, %v5257
    %v5937 = vadd.f32 %v5936, %v5273
    %v5938 = vadd.f32 %v5937, %v5289
    %v5939 = vadd.f32 %v5938, %v5305
    %v5940 = vadd.f32 %v5939, %v5321
    %v5941 = vadd.f32 %v5940, %v5337
    %v5942 = vadd.f32 %v5941, %v5353
    %v5943 = vadd.f32 %v5942, %v5369
    %v5944 = vadd.f32 %v5943, %v5385
    %v5945 = vadd.f32 %v5944, %v5401
    %v5946 = vadd.f32 %v5945, %v5417
    %v5947 = vadd.f32 %v5946, %v5433
    %v5948 = vadd.f32 %v5947, %v5449
    %v5949 = vadd.f32 %v5948, %v5465
    %v5950 = vadd.f32 %v5949, %v5481
    %v5951 = vadd.f32 %v5950, %v5497
    %v5952 = vadd.f32 %v5951, %v5513
    %v5953 = vadd.f32 %v5952, %v5529
    %v5954 = vadd.f32 %v5953, %v5545
    %v5955 = vadd.f32 %v5954, %v5561
    %v5956 = vadd.f32 %v5955, %v5577
    %v5957 = vadd.f32 %v5956, %v5593
    %v5958 = vadd.f32 %v5957, %v5609
    %v5959 = vadd.f32 %v5958, %v5625
    %v5960 = vrot.slane %v5959, 4
    %v5961 = vadd.f32 %v5959, %v5960
    %v5962 = vrot.slane %v5961, 2
    %v5963 = vadd.f32 %v5961, %v5962
    %v5964 = vrot.slane %v5963, 1
    %v5965 = vadd.f32 %v5963, %v5964
    %v5966 = vadd.f32 %v5130, %v5146
    %v5967 = vadd.f32 %v5966, %v5162
    %v5968 = vadd.f32 %v5967, %v5178
    %v5969 = vadd.f32 %v5968, %v5194
    %v5970 = vadd.f32 %v5969, %v5210
    %v5971 = vadd.f32 %v5970, %v5226
    %v5972 = vadd.f32 %v5971, %v5242
    %v5973 = vadd.f32 %v5972, %v5258
    %v5974 = vadd.f32 %v5973, %v5274
    %v5975 = vadd.f32 %v5974, %v5290
    %v5976 = vadd.f32 %v5975, %v5306
    %v5977 = vadd.f32 %v5976, %v5322
    %v5978 = vadd.f32 %v5977, %v5338
    %v5979 = vadd.f32 %v5978, %v5354
    %v5980 = vadd.f32 %v5979, %v5370
    %v5981 = vadd.f32 %v5980, %v5386
    %v5982 = vadd.f32 %v5981, %v5402
    %v5983 = vadd.f32 %v5982, %v5418
    %v5984 = vadd.f32 %v5983, %v5434
    %v5985 = vadd.f32 %v5984, %v5450
    %v5986 = vadd.f32 %v5985, %v5466
    %v5987 = vadd.f32 %v5986, %v5482
    %v5988 = vadd.f32 %v5987, %v5498
    %v5989 = vadd.f32 %v5988, %v5514
    %v5990 = vadd.f32 %v5989, %v5530
    %v5991 = vadd.f32 %v5990, %v5546
    %v5992 = vadd.f32 %v5991, %v5562
    %v5993 = vadd.f32 %v5992, %v5578
    %v5994 = vadd.f32 %v5993, %v5594
    %v5995 = vadd.f32 %v5994, %v5610
    %v5996 = vadd.f32 %v5995, %v5626
    %v5997 = vrot.slane %v5996, 4
    %v5998 = vadd.f32 %v5996, %v5997
    %v5999 = vrot.slane %v5998, 2
    %v6000 = vadd.f32 %v5998, %v5999
    %v6001 = vrot.slane %v6000, 1
    %v6002 = vadd.f32 %v6000, %v6001
    %v6003 = vadd.f32 %v5131, %v5147
    %v6004 = vadd.f32 %v6003, %v5163
    %v6005 = vadd.f32 %v6004, %v5179
    %v6006 = vadd.f32 %v6005, %v5195
    %v6007 = vadd.f32 %v6006, %v5211
    %v6008 = vadd.f32 %v6007, %v5227
    %v6009 = vadd.f32 %v6008, %v5243
    %v6010 = vadd.f32 %v6009, %v5259
    %v6011 = vadd.f32 %v6010, %v5275
    %v6012 = vadd.f32 %v6011, %v5291
    %v6013 = vadd.f32 %v6012, %v5307
    %v6014 = vadd.f32 %v6013, %v5323
    %v6015 = vadd.f32 %v6014, %v5339
    %v6016 = vadd.f32 %v6015, %v5355
    %v6017 = vadd.f32 %v6016, %v5371
    %v6018 = vadd.f32 %v6017, %v5387
    %v6019 = vadd.f32 %v6018, %v5403
    %v6020 = vadd.f32 %v6019, %v5419
    %v6021 = vadd.f32 %v6020, %v5435
    %v6022 = vadd.f32 %v6021, %v5451
    %v6023 = vadd.f32 %v6022, %v5467
    %v6024 = vadd.f32 %v6023, %v5483
    %v6025 = vadd.f32 %v6024, %v5499
    %v6026 = vadd.f32 %v6025, %v5515
    %v6027 = vadd.f32 %v6026, %v5531
    %v6028 = vadd.f32 %v6027, %v5547
    %v6029 = vadd.f32 %v6028, %v5563
    %v6030 = vadd.f32 %v6029, %v5579
    %v6031 = vadd.f32 %v6030, %v5595
    %v6032 = vadd.f32 %v6031, %v5611
    %v6033 = vadd.f32 %v6032, %v5627
    %v6034 = vrot.slane %v6033, 4
    %v6035 = vadd.f32 %v6033, %v6034
    %v6036 = vrot.slane %v6035, 2
    %v6037 = vadd.f32 %v6035, %v6036
    %v6038 = vrot.slane %v6037, 1
    %v6039 = vadd.f32 %v6037, %v6038
    %v6040 = vadd.f32 %v5132, %v5148
    %v6041 = vadd.f32 %v6040, %v5164
    %v6042 = vadd.f32 %v6041, %v5180
    %v6043 = vadd.f32 %v6042, %v5196
    %v6044 = vadd.f32 %v6043, %v5212
    %v6045 = vadd.f32 %v6044, %v5228
    %v6046 = vadd.f32 %v6045, %v5244
    %v6047 = vadd.f32 %v6046, %v5260
    %v6048 = vadd.f32 %v6047, %v5276
    %v6049 = vadd.f32 %v6048, %v5292
    %v6050 = vadd.f32 %v6049, %v5308
    %v6051 = vadd.f32 %v6050, %v5324
    %v6052 = vadd.f32 %v6051, %v5340
    %v6053 = vadd.f32 %v6052, %v5356
    %v6054 = vadd.f32 %v6053, %v5372
    %v6055 = vadd.f32 %v6054, %v5388
    %v6056 = vadd.f32 %v6055, %v5404
    %v6057 = vadd.f32 %v6056, %v5420
    %v6058 = vadd.f32 %v6057, %v5436
    %v6059 = vadd.f32 %v6058, %v5452
    %v6060 = vadd.f32 %v6059, %v5468
    %v6061 = vadd.f32 %v6060, %v5484
    %v6062 = vadd.f32 %v6061, %v5500
    %v6063 = vadd.f32 %v6062, %v5516
    %v6064 = vadd.f32 %v6063, %v5532
    %v6065 = vadd.f32 %v6064, %v5548
    %v6066 = vadd.f32 %v6065, %v5564
    %v6067 = vadd.f32 %v6066, %v5580
    %v6068 = vadd.f32 %v6067, %v5596
    %v6069 = vadd.f32 %v6068, %v5612
    %v6070 = vadd.f32 %v6069, %v5628
    %v6071 = vrot.slane %v6070, 4
    %v6072 = vadd.f32 %v6070, %v6071
    %v6073 = vrot.slane %v6072, 2
    %v6074 = vadd.f32 %v6072, %v6073
    %v6075 = vrot.slane %v6074, 1
    %v6076 = vadd.f32 %v6074, %v6075
    %v6077 = vadd.f32 %v5133, %v5149
    %v6078 = vadd.f32 %v6077, %v5165
    %v6079 = vadd.f32 %v6078, %v5181
    %v6080 = vadd.f32 %v6079, %v5197
    %v6081 = vadd.f32 %v6080, %v5213
    %v6082 = vadd.f32 %v6081, %v5229
    %v6083 = vadd.f32 %v6082, %v5245
    %v6084 = vadd.f32 %v6083, %v5261
    %v6085 = vadd.f32 %v6084, %v5277
    %v6086 = vadd.f32 %v6085, %v5293
    %v6087 = vadd.f32 %v6086, %v5309
    %v6088 = vadd.f32 %v6087, %v5325
    %v6089 = vadd.f32 %v6088, %v5341
    %v6090 = vadd.f32 %v6089, %v5357
    %v6091 = vadd.f32 %v6090, %v5373
    %v6092 = vadd.f32 %v6091, %v5389
    %v6093 = vadd.f32 %v6092, %v5405
    %v6094 = vadd.f32 %v6093, %v5421
    %v6095 = vadd.f32 %v6094, %v5437
    %v6096 = vadd.f32 %v6095, %v5453
    %v6097 = vadd.f32 %v6096, %v5469
    %v6098 = vadd.f32 %v6097, %v5485
    %v6099 = vadd.f32 %v6098, %v5501
    %v6100 = vadd.f32 %v6099, %v5517
    %v6101 = vadd.f32 %v6100, %v5533
    %v6102 = vadd.f32 %v6101, %v5549
    %v6103 = vadd.f32 %v6102, %v5565
    %v6104 = vadd.f32 %v6103, %v5581
    %v6105 = vadd.f32 %v6104, %v5597
    %v6106 = vadd.f32 %v6105, %v5613
    %v6107 = vadd.f32 %v6106, %v5629
    %v6108 = vrot.slane %v6107, 4
    %v6109 = vadd.f32 %v6107, %v6108
    %v6110 = vrot.slane %v6109, 2
    %v6111 = vadd.f32 %v6109, %v6110
    %v6112 = vrot.slane %v6111, 1
    %v6113 = vadd.f32 %v6111, %v6112
    %v6114 = vadd.f32 %v5134, %v5150
    %v6115 = vadd.f32 %v6114, %v5166
    %v6116 = vadd.f32 %v6115, %v5182
    %v6117 = vadd.f32 %v6116, %v5198
    %v6118 = vadd.f32 %v6117, %v5214
    %v6119 = vadd.f32 %v6118, %v5230
    %v6120 = vadd.f32 %v6119, %v5246
    %v6121 = vadd.f32 %v6120, %v5262
    %v6122 = vadd.f32 %v6121, %v5278
    %v6123 = vadd.f32 %v6122, %v5294
    %v6124 = vadd.f32 %v6123, %v5310
    %v6125 = vadd.f32 %v6124, %v5326
    %v6126 = vadd.f32 %v6125, %v5342
    %v6127 = vadd.f32 %v6126, %v5358
    %v6128 = vadd.f32 %v6127, %v5374
    %v6129 = vadd.f32 %v6128, %v5390
    %v6130 = vadd.f32 %v6129, %v5406
    %v6131 = vadd.f32 %v6130, %v5422
    %v6132 = vadd.f32 %v6131, %v5438
    %v6133 = vadd.f32 %v6132, %v5454
    %v6134 = vadd.f32 %v6133, %v5470
    %v6135 = vadd.f32 %v6134, %v5486
    %v6136 = vadd.f32 %v6135, %v5502
    %v6137 = vadd.f32 %v6136, %v5518
    %v6138 = vadd.f32 %v6137, %v5534
    %v6139 = vadd.f32 %v6138, %v5550
    %v6140 = vadd.f32 %v6139, %v5566
    %v6141 = vadd.f32 %v6140, %v5582
    %v6142 = vadd.f32 %v6141, %v5598
    %v6143 = vadd.f32 %v6142, %v5614
    %v6144 = vadd.f32 %v6143, %v5630
    %v6145 = vrot.slane %v6144, 4
    %v6146 = vadd.f32 %v6144, %v6145
    %v6147 = vrot.slane %v6146, 2
    %v6148 = vadd.f32 %v6146, %v6147
    %v6149 = vrot.slane %v6148, 1
    %v6150 = vadd.f32 %v6148, %v6149
    %v6151 = vadd.f32 %v5135, %v5151
    %v6152 = vadd.f32 %v6151, %v5167
    %v6153 = vadd.f32 %v6152, %v5183
    %v6154 = vadd.f32 %v6153, %v5199
    %v6155 = vadd.f32 %v6154, %v5215
    %v6156 = vadd.f32 %v6155, %v5231
    %v6157 = vadd.f32 %v6156, %v5247
    %v6158 = vadd.f32 %v6157, %v5263
    %v6159 = vadd.f32 %v6158, %v5279
    %v6160 = vadd.f32 %v6159, %v5295
    %v6161 = vadd.f32 %v6160, %v5311
    %v6162 = vadd.f32 %v6161, %v5327
    %v6163 = vadd.f32 %v6162, %v5343
    %v6164 = vadd.f32 %v6163, %v5359
    %v6165 = vadd.f32 %v6164, %v5375
    %v6166 = vadd.f32 %v6165, %v5391
    %v6167 = vadd.f32 %v6166, %v5407
    %v6168 = vadd.f32 %v6167, %v5423
    %v6169 = vadd.f32 %v6168, %v5439
    %v6170 = vadd.f32 %v6169, %v5455
    %v6171 = vadd.f32 %v6170, %v5471
    %v6172 = vadd.f32 %v6171, %v5487
    %v6173 = vadd.f32 %v6172, %v5503
    %v6174 = vadd.f32 %v6173, %v5519
    %v6175 = vadd.f32 %v6174, %v5535
    %v6176 = vadd.f32 %v6175, %v5551
    %v6177 = vadd.f32 %v6176, %v5567
    %v6178 = vadd.f32 %v6177, %v5583
    %v6179 = vadd.f32 %v6178, %v5599
    %v6180 = vadd.f32 %v6179, %v5615
    %v6181 = vadd.f32 %v6180, %v5631
    %v6182 = vrot.slane %v6181, 4
    %v6183 = vadd.f32 %v6181, %v6182
    %v6184 = vrot.slane %v6183, 2
    %v6185 = vadd.f32 %v6183, %v6184
    %v6186 = vrot.slane %v6185, 1
    %v6187 = vadd.f32 %v6185, %v6186
    %v6188 = vadd.f32 %v5136, %v5152
    %v6189 = vadd.f32 %v6188, %v5168
    %v6190 = vadd.f32 %v6189, %v5184
    %v6191 = vadd.f32 %v6190, %v5200
    %v6192 = vadd.f32 %v6191, %v5216
    %v6193 = vadd.f32 %v6192, %v5232
    %v6194 = vadd.f32 %v6193, %v5248
    %v6195 = vadd.f32 %v6194, %v5264
    %v6196 = vadd.f32 %v6195, %v5280
    %v6197 = vadd.f32 %v6196, %v5296
    %v6198 = vadd.f32 %v6197, %v5312
    %v6199 = vadd.f32 %v6198, %v5328
    %v6200 = vadd.f32 %v6199, %v5344
    %v6201 = vadd.f32 %v6200, %v5360
    %v6202 = vadd.f32 %v6201, %v5376
    %v6203 = vadd.f32 %v6202, %v5392
    %v6204 = vadd.f32 %v6203, %v5408
    %v6205 = vadd.f32 %v6204, %v5424
    %v6206 = vadd.f32 %v6205, %v5440
    %v6207 = vadd.f32 %v6206, %v5456
    %v6208 = vadd.f32 %v6207, %v5472
    %v6209 = vadd.f32 %v6208, %v5488
    %v6210 = vadd.f32 %v6209, %v5504
    %v6211 = vadd.f32 %v6210, %v5520
    %v6212 = vadd.f32 %v6211, %v5536
    %v6213 = vadd.f32 %v6212, %v5552
    %v6214 = vadd.f32 %v6213, %v5568
    %v6215 = vadd.f32 %v6214, %v5584
    %v6216 = vadd.f32 %v6215, %v5600
    %v6217 = vadd.f32 %v6216, %v5616
    %v6218 = vadd.f32 %v6217, %v5632
    %v6219 = vrot.slane %v6218, 4
    %v6220 = vadd.f32 %v6218, %v6219
    %v6221 = vrot.slane %v6220, 2
    %v6222 = vadd.f32 %v6220, %v6221
    %v6223 = vrot.slane %v6222, 1
    %v6224 = vadd.f32 %v6222, %v6223
    %v6241 = vcombine.low %v5669, %v5706
    %v6242 = vcombine.low %v5743, %v5780
    %v6243 = vcombine.low %v5817, %v5854
    %v6244 = vcombine.low %v5891, %v5928
    %v6246 = vunpack.c.l.s4 1966171168
    %v6247 = vunpack.c.0.s8 %v6246
    %v6248 = vlaneseq
    %v6249 = vshrl.u32 %v6248, 7
    %v6250 = vsub.s32 %v6247, %v6249
    %v6251 = vrot.slane %v6241, %v6250
    %v6253 = vunpack.c.l.s4 1966171168
    %v6254 = vunpack.c.0.s8 %v6253
    %v6255 = vlaneseq
    %v6256 = vshrl.u32 %v6255, 7
    %v6257 = vsub.s32 %v6254, %v6256
    %v6258 = vrot.slane %v6242, %v6257
    %v6260 = vunpack.c.l.s4 1966171168
    %v6261 = vunpack.c.0.s8 %v6260
    %v6262 = vlaneseq
    %v6263 = vshrl.u32 %v6262, 7
    %v6264 = vsub.s32 %v6261, %v6263
    %v6265 = vrot.slane %v6243, %v6264
    %v6267 = vunpack.c.l.s4 1966171168
    %v6268 = vunpack.c.0.s8 %v6267
    %v6269 = vlaneseq
    %v6270 = vshrl.u32 %v6269, 7
    %v6271 = vsub.s32 %v6268, %v6270
    %v6272 = vrot.slane %v6244, %v6271
    %v6273 = vcombine.low %v6251, %v6258
    %v6274 = vcombine.low %v6265, %v6272
    %v6276 = vunpack.c.l.s4 1966171168
    %v6277 = vunpack.c.0.s8 %v6276
    %v6278 = vlaneseq
    %v6279 = vshrl.u32 %v6278, 7
    %v6280 = vsub.s32 %v6277, %v6279
    %v6281 = vrot.slane %v6273, %v6280
    %v6283 = vunpack.c.l.s4 1966171168
    %v6284 = vunpack.c.0.s8 %v6283
    %v6285 = vlaneseq
    %v6286 = vshrl.u32 %v6285, 7
    %v6287 = vsub.s32 %v6284, %v6286
    %v6288 = vrot.slane %v6274, %v6287
    %v6289 = vcombine.low %v6281, %v6288
    %v6290 = vcombine.low %v5965, %v6002
    %v6291 = vcombine.low %v6039, %v6076
    %v6292 = vcombine.low %v6113, %v6150
    %v6293 = vcombine.low %v6187, %v6224
    %v6295 = vunpack.c.l.s4 1966171168
    %v6296 = vunpack.c.0.s8 %v6295
    %v6297 = vlaneseq
    %v6298 = vshrl.u32 %v6297, 7
    %v6299 = vsub.s32 %v6296, %v6298
    %v6300 = vrot.slane %v6290, %v6299
    %v6302 = vunpack.c.l.s4 1966171168
    %v6303 = vunpack.c.0.s8 %v6302
    %v6304 = vlaneseq
    %v6305 = vshrl.u32 %v6304, 7
    %v6306 = vsub.s32 %v6303, %v6305
    %v6307 = vrot.slane %v6291, %v6306
    %v6309 = vunpack.c.l.s4 1966171168
    %v6310 = vunpack.c.0.s8 %v6309
    %v6311 = vlaneseq
    %v6312 = vshrl.u32 %v6311, 7
    %v6313 = vsub.s32 %v6310, %v6312
    %v6314 = vrot.slane %v6292, %v6313
    %v6316 = vunpack.c.l.s4 1966171168
    %v6317 = vunpack.c.0.s8 %v6316
    %v6318 = vlaneseq
    %v6319 = vshrl.u32 %v6318, 7
    %v6320 = vsub.s32 %v6317, %v6319
    %v6321 = vrot.slane %v6293, %v6320
    %v6322 = vcombine.low %v6300, %v6307
    %v6323 = vcombine.low %v6314, %v6321
    %v6325 = vunpack.c.l.s4 1966171168
    %v6326 = vunpack.c.0.s8 %v6325
    %v6327 = vlaneseq
    %v6328 = vshrl.u32 %v6327, 7
    %v6329 = vsub.s32 %v6326, %v6328
    %v6330 = vrot.slane %v6322, %v6329
    %v6332 = vunpack.c.l.s4 1966171168
    %v6333 = vunpack.c.0.s8 %v6332
    %v6334 = vlaneseq
    %v6335 = vshrl.u32 %v6334, 7
    %v6336 = vsub.s32 %v6333, %v6335
    %v6337 = vrot.slane %v6323, %v6336
    %v6338 = vcombine.low %v6330, %v6337
    %s6341 = scalar_lea.vmem [#allocation2], 1
    %6342 = vst [vmem:[%s6341] ss:$2 sm:$0xff] %v6289
    %s6343 = scalar_lea.vmem [#allocation2], 17
    %6344 = vst [vmem:[%s6343] ss:$2 sm:$0xff] %v6338
    %v6345 = vld [vmem:[#allocation2] sm:$0xff]
    %v6346 = vld [vmem:[#allocation2 + $0x8] sm:$0xff]
    %v6347 = vld [vmem:[#allocation2 + $0x10] sm:$0xff]
    %v6348 = vld [vmem:[#allocation2 + $0x18] sm:$0xff]
    %v6353 = vcombine.high %v6345, %v6345
    %v6355 = vunpack.c.l.s4 1983009808
    %v6356 = vunpack.c.0.s8 %v6355
    %v6357 = vlaneseq
    %v6358 = vshrl.u32 %v6357, 7
    %v6359 = vsub.s32 %v6356, %v6358
    %v6360 = vrot.slane %v6345, %v6359
    %v6362 = vunpack.c.l.s4 1983009808
    %v6363 = vunpack.c.0.s8 %v6362
    %v6364 = vlaneseq
    %v6365 = vshrl.u32 %v6364, 7
    %v6366 = vsub.s32 %v6363, %v6365
    %v6367 = vrot.slane %v6353, %v6366
    %v6368 = vcombine.high %v6360, %v6360
    %v6369 = vcombine.high %v6367, %v6367
    %v6370 = vcombine.high %v6346, %v6346
    %v6372 = vunpack.c.l.s4 1983009808
    %v6373 = vunpack.c.0.s8 %v6372
    %v6374 = vlaneseq
    %v6375 = vshrl.u32 %v6374, 7
    %v6376 = vsub.s32 %v6373, %v6375
    %v6377 = vrot.slane %v6346, %v6376
    %v6379 = vunpack.c.l.s4 1983009808
    %v6380 = vunpack.c.0.s8 %v6379
    %v6381 = vlaneseq
    %v6382 = vshrl.u32 %v6381, 7
    %v6383 = vsub.s32 %v6380, %v6382
    %v6384 = vrot.slane %v6370, %v6383
    %v6385 = vcombine.high %v6377, %v6377
    %v6386 = vcombine.high %v6384, %v6384
    %v6387 = vcombine.high %v6347, %v6347
    %v6389 = vunpack.c.l.s4 1983009808
    %v6390 = vunpack.c.0.s8 %v6389
    %v6391 = vlaneseq
    %v6392 = vshrl.u32 %v6391, 7
    %v6393 = vsub.s32 %v6390, %v6392
    %v6394 = vrot.slane %v6347, %v6393
    %v6396 = vunpack.c.l.s4 1983009808
    %v6397 = vunpack.c.0.s8 %v6396
    %v6398 = vlaneseq
    %v6399 = vshrl.u32 %v6398, 7
    %v6400 = vsub.s32 %v6397, %v6399
    %v6401 = vrot.slane %v6387, %v6400
    %v6402 = vcombine.high %v6394, %v6394
    %v6403 = vcombine.high %v6401, %v6401
    %v6404 = vcombine.high %v6348, %v6348
    %v6406 = vunpack.c.l.s4 1983009808
    %v6407 = vunpack.c.0.s8 %v6406
    %v6408 = vlaneseq
    %v6409 = vshrl.u32 %v6408, 7
    %v6410 = vsub.s32 %v6407, %v6409
    %v6411 = vrot.slane %v6348, %v6410
    %v6413 = vunpack.c.l.s4 1983009808
    %v6414 = vunpack.c.0.s8 %v6413
    %v6415 = vlaneseq
    %v6416 = vshrl.u32 %v6415, 7
    %v6417 = vsub.s32 %v6414, %v6416
    %v6418 = vrot.slane %v6404, %v6417
    %v6419 = vcombine.high %v6411, %v6411
    %v6420 = vcombine.high %v6418, %v6418
    %v6437 = vpack.c.bf16 %v6360, %v6360
    %v6438 = vpack.c.bf16 %v6368, %v6368
    %v6439 = vpack.c.bf16 %v6367, %v6367
    %v6440 = vpack.c.bf16 %v6369, %v6369
    %v6441 = vpack.c.bf16 %v6377, %v6377
    %v6442 = vpack.c.bf16 %v6385, %v6385
    %v6443 = vpack.c.bf16 %v6384, %v6384
    %v6444 = vpack.c.bf16 %v6386, %v6386
    %v6445 = vpack.c.bf16 %v6394, %v6394
    %v6446 = vpack.c.bf16 %v6402, %v6402
    %v6447 = vpack.c.bf16 %v6401, %v6401
    %v6448 = vpack.c.bf16 %v6403, %v6403
    %v6449 = vpack.c.bf16 %v6411, %v6411
    %v6450 = vpack.c.bf16 %v6419, %v6419
    %v6451 = vpack.c.bf16 %v6418, %v6418
    %v6452 = vpack.c.bf16 %v6420, %v6420
    %v6453 = vld [vmem:[#allocation8] sm:$0xff]
    %v6454 = vld [vmem:[#allocation8 + $0x8] sm:$0xff]
    %v6455 = vld [vmem:[#allocation8 + $0x10] sm:$0xff]
    %v6456 = vld [vmem:[#allocation8 + $0x18] sm:$0xff]
    %v6457 = vld [vmem:[#allocation8 + $0x20] sm:$0xff]
    %v6458 = vld [vmem:[#allocation8 + $0x28] sm:$0xff]
    %v6459 = vld [vmem:[#allocation8 + $0x30] sm:$0xff]
    %v6460 = vld [vmem:[#allocation8 + $0x38] sm:$0xff]
    %v6461 = vld [vmem:[#allocation8 + $0x40] sm:$0xff]
    %v6462 = vld [vmem:[#allocation8 + $0x48] sm:$0xff]
    %v6463 = vld [vmem:[#allocation8 + $0x50] sm:$0xff]
    %v6464 = vld [vmem:[#allocation8 + $0x58] sm:$0xff]
    %v6465 = vld [vmem:[#allocation8 + $0x60] sm:$0xff]
    %v6466 = vld [vmem:[#allocation8 + $0x68] sm:$0xff]
    %v6467 = vld [vmem:[#allocation8 + $0x70] sm:$0xff]
    %v6468 = vld [vmem:[#allocation8 + $0x78] sm:$0xff]
    %v6469 = vld [vmem:[#allocation8 + $0x80] sm:$0xff]
    %v6470 = vld [vmem:[#allocation8 + $0x88] sm:$0xff]
    %v6471 = vld [vmem:[#allocation8 + $0x90] sm:$0xff]
    %v6472 = vld [vmem:[#allocation8 + $0x98] sm:$0xff]
    %v6473 = vld [vmem:[#allocation8 + $0xa0] sm:$0xff]
    %v6474 = vld [vmem:[#allocation8 + $0xa8] sm:$0xff]
    %v6475 = vld [vmem:[#allocation8 + $0xb0] sm:$0xff]
    %v6476 = vld [vmem:[#allocation8 + $0xb8] sm:$0xff]
    %v6477 = vld [vmem:[#allocation8 + $0xc0] sm:$0xff]
    %v6478 = vld [vmem:[#allocation8 + $0xc8] sm:$0xff]
    %v6479 = vld [vmem:[#allocation8 + $0xd0] sm:$0xff]
    %v6480 = vld [vmem:[#allocation8 + $0xd8] sm:$0xff]
    %v6481 = vld [vmem:[#allocation8 + $0xe0] sm:$0xff]
    %v6482 = vld [vmem:[#allocation8 + $0xe8] sm:$0xff]
    %v6483 = vld [vmem:[#allocation8 + $0xf0] sm:$0xff]
    %v6484 = vld [vmem:[#allocation8 + $0xf8] sm:$0xff]
    %v6485 = vld [vmem:[#allocation8 + $0x100] sm:$0xff]
    %v6486 = vld [vmem:[#allocation8 + $0x108] sm:$0xff]
    %v6487 = vld [vmem:[#allocation8 + $0x110] sm:$0xff]
    %v6488 = vld [vmem:[#allocation8 + $0x118] sm:$0xff]
    %v6489 = vld [vmem:[#allocation8 + $0x120] sm:$0xff]
    %v6490 = vld [vmem:[#allocation8 + $0x128] sm:$0xff]
    %v6491 = vld [vmem:[#allocation8 + $0x130] sm:$0xff]
    %v6492 = vld [vmem:[#allocation8 + $0x138] sm:$0xff]
    %v6493 = vld [vmem:[#allocation8 + $0x140] sm:$0xff]
    %v6494 = vld [vmem:[#allocation8 + $0x148] sm:$0xff]
    %v6495 = vld [vmem:[#allocation8 + $0x150] sm:$0xff]
    %v6496 = vld [vmem:[#allocation8 + $0x158] sm:$0xff]
    %v6497 = vld [vmem:[#allocation8 + $0x160] sm:$0xff]
    %v6498 = vld [vmem:[#allocation8 + $0x168] sm:$0xff]
    %v6499 = vld [vmem:[#allocation8 + $0x170] sm:$0xff]
    %v6500 = vld [vmem:[#allocation8 + $0x178] sm:$0xff]
    %v6501 = vld [vmem:[#allocation8 + $0x180] sm:$0xff]
    %v6502 = vld [vmem:[#allocation8 + $0x188] sm:$0xff]
    %v6503 = vld [vmem:[#allocation8 + $0x190] sm:$0xff]
    %v6504 = vld [vmem:[#allocation8 + $0x198] sm:$0xff]
    %v6505 = vld [vmem:[#allocation8 + $0x1a0] sm:$0xff]
    %v6506 = vld [vmem:[#allocation8 + $0x1a8] sm:$0xff]
    %v6507 = vld [vmem:[#allocation8 + $0x1b0] sm:$0xff]
    %v6508 = vld [vmem:[#allocation8 + $0x1b8] sm:$0xff]
    %v6509 = vld [vmem:[#allocation8 + $0x1c0] sm:$0xff]
    %v6510 = vld [vmem:[#allocation8 + $0x1c8] sm:$0xff]
    %v6511 = vld [vmem:[#allocation8 + $0x1d0] sm:$0xff]
    %v6512 = vld [vmem:[#allocation8 + $0x1d8] sm:$0xff]
    %v6513 = vld [vmem:[#allocation8 + $0x1e0] sm:$0xff]
    %v6514 = vld [vmem:[#allocation8 + $0x1e8] sm:$0xff]
    %v6515 = vld [vmem:[#allocation8 + $0x1f0] sm:$0xff]
    %v6516 = vld [vmem:[#allocation8 + $0x1f8] sm:$0xff]
    %v6517 = vld [vmem:[#allocation8 + $0x200] sm:$0xff]
    %v6518 = vld [vmem:[#allocation8 + $0x208] sm:$0xff]
    %v6519 = vld [vmem:[#allocation8 + $0x210] sm:$0xff]
    %v6520 = vld [vmem:[#allocation8 + $0x218] sm:$0xff]
    %v6521 = vld [vmem:[#allocation8 + $0x220] sm:$0xff]
    %v6522 = vld [vmem:[#allocation8 + $0x228] sm:$0xff]
    %v6523 = vld [vmem:[#allocation8 + $0x230] sm:$0xff]
    %v6524 = vld [vmem:[#allocation8 + $0x238] sm:$0xff]
    %v6525 = vld [vmem:[#allocation8 + $0x240] sm:$0xff]
    %v6526 = vld [vmem:[#allocation8 + $0x248] sm:$0xff]
    %v6527 = vld [vmem:[#allocation8 + $0x250] sm:$0xff]
    %v6528 = vld [vmem:[#allocation8 + $0x258] sm:$0xff]
    %v6529 = vld [vmem:[#allocation8 + $0x260] sm:$0xff]
    %v6530 = vld [vmem:[#allocation8 + $0x268] sm:$0xff]
    %v6531 = vld [vmem:[#allocation8 + $0x270] sm:$0xff]
    %v6532 = vld [vmem:[#allocation8 + $0x278] sm:$0xff]
    %v6533 = vld [vmem:[#allocation8 + $0x280] sm:$0xff]
    %v6534 = vld [vmem:[#allocation8 + $0x288] sm:$0xff]
    %v6535 = vld [vmem:[#allocation8 + $0x290] sm:$0xff]
    %v6536 = vld [vmem:[#allocation8 + $0x298] sm:$0xff]
    %v6537 = vld [vmem:[#allocation8 + $0x2a0] sm:$0xff]
    %v6538 = vld [vmem:[#allocation8 + $0x2a8] sm:$0xff]
    %v6539 = vld [vmem:[#allocation8 + $0x2b0] sm:$0xff]
    %v6540 = vld [vmem:[#allocation8 + $0x2b8] sm:$0xff]
    %v6541 = vld [vmem:[#allocation8 + $0x2c0] sm:$0xff]
    %v6542 = vld [vmem:[#allocation8 + $0x2c8] sm:$0xff]
    %v6543 = vld [vmem:[#allocation8 + $0x2d0] sm:$0xff]
    %v6544 = vld [vmem:[#allocation8 + $0x2d8] sm:$0xff]
    %v6545 = vld [vmem:[#allocation8 + $0x2e0] sm:$0xff]
    %v6546 = vld [vmem:[#allocation8 + $0x2e8] sm:$0xff]
    %v6547 = vld [vmem:[#allocation8 + $0x2f0] sm:$0xff]
    %v6548 = vld [vmem:[#allocation8 + $0x2f8] sm:$0xff]
    %v6549 = vld [vmem:[#allocation8 + $0x300] sm:$0xff]
    %v6550 = vld [vmem:[#allocation8 + $0x308] sm:$0xff]
    %v6551 = vld [vmem:[#allocation8 + $0x310] sm:$0xff]
    %v6552 = vld [vmem:[#allocation8 + $0x318] sm:$0xff]
    %v6553 = vld [vmem:[#allocation8 + $0x320] sm:$0xff]
    %v6554 = vld [vmem:[#allocation8 + $0x328] sm:$0xff]
    %v6555 = vld [vmem:[#allocation8 + $0x330] sm:$0xff]
    %v6556 = vld [vmem:[#allocation8 + $0x338] sm:$0xff]
    %v6557 = vld [vmem:[#allocation8 + $0x340] sm:$0xff]
    %v6558 = vld [vmem:[#allocation8 + $0x348] sm:$0xff]
    %v6559 = vld [vmem:[#allocation8 + $0x350] sm:$0xff]
    %v6560 = vld [vmem:[#allocation8 + $0x358] sm:$0xff]
    %v6561 = vld [vmem:[#allocation8 + $0x360] sm:$0xff]
    %v6562 = vld [vmem:[#allocation8 + $0x368] sm:$0xff]
    %v6563 = vld [vmem:[#allocation8 + $0x370] sm:$0xff]
    %v6564 = vld [vmem:[#allocation8 + $0x378] sm:$0xff]
    %v6565 = vld [vmem:[#allocation8 + $0x380] sm:$0xff]
    %v6566 = vld [vmem:[#allocation8 + $0x388] sm:$0xff]
    %v6567 = vld [vmem:[#allocation8 + $0x390] sm:$0xff]
    %v6568 = vld [vmem:[#allocation8 + $0x398] sm:$0xff]
    %v6569 = vld [vmem:[#allocation8 + $0x3a0] sm:$0xff]
    %v6570 = vld [vmem:[#allocation8 + $0x3a8] sm:$0xff]
    %v6571 = vld [vmem:[#allocation8 + $0x3b0] sm:$0xff]
    %v6572 = vld [vmem:[#allocation8 + $0x3b8] sm:$0xff]
    %v6573 = vld [vmem:[#allocation8 + $0x3c0] sm:$0xff]
    %v6574 = vld [vmem:[#allocation8 + $0x3c8] sm:$0xff]
    %v6575 = vld [vmem:[#allocation8 + $0x3d0] sm:$0xff]
    %v6576 = vld [vmem:[#allocation8 + $0x3d8] sm:$0xff]
    %v6577 = vld [vmem:[#allocation8 + $0x3e0] sm:$0xff]
    %v6578 = vld [vmem:[#allocation8 + $0x3e8] sm:$0xff]
    %v6579 = vld [vmem:[#allocation8 + $0x3f0] sm:$0xff]
    %v6580 = vld [vmem:[#allocation8 + $0x3f8] sm:$0xff]
    %v6581 = vld [vmem:[#allocation8 + $0x400] sm:$0xff]
    %v6582 = vld [vmem:[#allocation8 + $0x408] sm:$0xff]
    %v6583 = vld [vmem:[#allocation8 + $0x410] sm:$0xff]
    %v6584 = vld [vmem:[#allocation8 + $0x418] sm:$0xff]
    %v6585 = vld [vmem:[#allocation8 + $0x420] sm:$0xff]
    %v6586 = vld [vmem:[#allocation8 + $0x428] sm:$0xff]
    %v6587 = vld [vmem:[#allocation8 + $0x430] sm:$0xff]
    %v6588 = vld [vmem:[#allocation8 + $0x438] sm:$0xff]
    %v6589 = vld [vmem:[#allocation8 + $0x440] sm:$0xff]
    %v6590 = vld [vmem:[#allocation8 + $0x448] sm:$0xff]
    %v6591 = vld [vmem:[#allocation8 + $0x450] sm:$0xff]
    %v6592 = vld [vmem:[#allocation8 + $0x458] sm:$0xff]
    %v6593 = vld [vmem:[#allocation8 + $0x460] sm:$0xff]
    %v6594 = vld [vmem:[#allocation8 + $0x468] sm:$0xff]
    %v6595 = vld [vmem:[#allocation8 + $0x470] sm:$0xff]
    %v6596 = vld [vmem:[#allocation8 + $0x478] sm:$0xff]
    %v6597 = vld [vmem:[#allocation8 + $0x480] sm:$0xff]
    %v6598 = vld [vmem:[#allocation8 + $0x488] sm:$0xff]
    %v6599 = vld [vmem:[#allocation8 + $0x490] sm:$0xff]
    %v6600 = vld [vmem:[#allocation8 + $0x498] sm:$0xff]
    %v6601 = vld [vmem:[#allocation8 + $0x4a0] sm:$0xff]
    %v6602 = vld [vmem:[#allocation8 + $0x4a8] sm:$0xff]
    %v6603 = vld [vmem:[#allocation8 + $0x4b0] sm:$0xff]
    %v6604 = vld [vmem:[#allocation8 + $0x4b8] sm:$0xff]
    %v6605 = vld [vmem:[#allocation8 + $0x4c0] sm:$0xff]
    %v6606 = vld [vmem:[#allocation8 + $0x4c8] sm:$0xff]
    %v6607 = vld [vmem:[#allocation8 + $0x4d0] sm:$0xff]
    %v6608 = vld [vmem:[#allocation8 + $0x4d8] sm:$0xff]
    %v6609 = vld [vmem:[#allocation8 + $0x4e0] sm:$0xff]
    %v6610 = vld [vmem:[#allocation8 + $0x4e8] sm:$0xff]
    %v6611 = vld [vmem:[#allocation8 + $0x4f0] sm:$0xff]
    %v6612 = vld [vmem:[#allocation8 + $0x4f8] sm:$0xff]
    %v6613 = vld [vmem:[#allocation8 + $0x500] sm:$0xff]
    %v6614 = vld [vmem:[#allocation8 + $0x508] sm:$0xff]
    %v6615 = vld [vmem:[#allocation8 + $0x510] sm:$0xff]
    %v6616 = vld [vmem:[#allocation8 + $0x518] sm:$0xff]
    %v6617 = vld [vmem:[#allocation8 + $0x520] sm:$0xff]
    %v6618 = vld [vmem:[#allocation8 + $0x528] sm:$0xff]
    %v6619 = vld [vmem:[#allocation8 + $0x530] sm:$0xff]
    %v6620 = vld [vmem:[#allocation8 + $0x538] sm:$0xff]
    %v6621 = vld [vmem:[#allocation8 + $0x540] sm:$0xff]
    %v6622 = vld [vmem:[#allocation8 + $0x548] sm:$0xff]
    %v6623 = vld [vmem:[#allocation8 + $0x550] sm:$0xff]
    %v6624 = vld [vmem:[#allocation8 + $0x558] sm:$0xff]
    %v6625 = vld [vmem:[#allocation8 + $0x560] sm:$0xff]
    %v6626 = vld [vmem:[#allocation8 + $0x568] sm:$0xff]
    %v6627 = vld [vmem:[#allocation8 + $0x570] sm:$0xff]
    %v6628 = vld [vmem:[#allocation8 + $0x578] sm:$0xff]
    %v6629 = vld [vmem:[#allocation8 + $0x580] sm:$0xff]
    %v6630 = vld [vmem:[#allocation8 + $0x588] sm:$0xff]
    %v6631 = vld [vmem:[#allocation8 + $0x590] sm:$0xff]
    %v6632 = vld [vmem:[#allocation8 + $0x598] sm:$0xff]
    %v6633 = vld [vmem:[#allocation8 + $0x5a0] sm:$0xff]
    %v6634 = vld [vmem:[#allocation8 + $0x5a8] sm:$0xff]
    %v6635 = vld [vmem:[#allocation8 + $0x5b0] sm:$0xff]
    %v6636 = vld [vmem:[#allocation8 + $0x5b8] sm:$0xff]
    %v6637 = vld [vmem:[#allocation8 + $0x5c0] sm:$0xff]
    %v6638 = vld [vmem:[#allocation8 + $0x5c8] sm:$0xff]
    %v6639 = vld [vmem:[#allocation8 + $0x5d0] sm:$0xff]
    %v6640 = vld [vmem:[#allocation8 + $0x5d8] sm:$0xff]
    %v6641 = vld [vmem:[#allocation8 + $0x5e0] sm:$0xff]
    %v6642 = vld [vmem:[#allocation8 + $0x5e8] sm:$0xff]
    %v6643 = vld [vmem:[#allocation8 + $0x5f0] sm:$0xff]
    %v6644 = vld [vmem:[#allocation8 + $0x5f8] sm:$0xff]
    %v6645 = vld [vmem:[#allocation8 + $0x600] sm:$0xff]
    %v6646 = vld [vmem:[#allocation8 + $0x608] sm:$0xff]
    %v6647 = vld [vmem:[#allocation8 + $0x610] sm:$0xff]
    %v6648 = vld [vmem:[#allocation8 + $0x618] sm:$0xff]
    %v6649 = vld [vmem:[#allocation8 + $0x620] sm:$0xff]
    %v6650 = vld [vmem:[#allocation8 + $0x628] sm:$0xff]
    %v6651 = vld [vmem:[#allocation8 + $0x630] sm:$0xff]
    %v6652 = vld [vmem:[#allocation8 + $0x638] sm:$0xff]
    %v6653 = vld [vmem:[#allocation8 + $0x640] sm:$0xff]
    %v6654 = vld [vmem:[#allocation8 + $0x648] sm:$0xff]
    %v6655 = vld [vmem:[#allocation8 + $0x650] sm:$0xff]
    %v6656 = vld [vmem:[#allocation8 + $0x658] sm:$0xff]
    %v6657 = vld [vmem:[#allocation8 + $0x660] sm:$0xff]
    %v6658 = vld [vmem:[#allocation8 + $0x668] sm:$0xff]
    %v6659 = vld [vmem:[#allocation8 + $0x670] sm:$0xff]
    %v6660 = vld [vmem:[#allocation8 + $0x678] sm:$0xff]
    %v6661 = vld [vmem:[#allocation8 + $0x680] sm:$0xff]
    %v6662 = vld [vmem:[#allocation8 + $0x688] sm:$0xff]
    %v6663 = vld [vmem:[#allocation8 + $0x690] sm:$0xff]
    %v6664 = vld [vmem:[#allocation8 + $0x698] sm:$0xff]
    %v6665 = vld [vmem:[#allocation8 + $0x6a0] sm:$0xff]
    %v6666 = vld [vmem:[#allocation8 + $0x6a8] sm:$0xff]
    %v6667 = vld [vmem:[#allocation8 + $0x6b0] sm:$0xff]
    %v6668 = vld [vmem:[#allocation8 + $0x6b8] sm:$0xff]
    %v6669 = vld [vmem:[#allocation8 + $0x6c0] sm:$0xff]
    %v6670 = vld [vmem:[#allocation8 + $0x6c8] sm:$0xff]
    %v6671 = vld [vmem:[#allocation8 + $0x6d0] sm:$0xff]
    %v6672 = vld [vmem:[#allocation8 + $0x6d8] sm:$0xff]
    %v6673 = vld [vmem:[#allocation8 + $0x6e0] sm:$0xff]
    %v6674 = vld [vmem:[#allocation8 + $0x6e8] sm:$0xff]
    %v6675 = vld [vmem:[#allocation8 + $0x6f0] sm:$0xff]
    %v6676 = vld [vmem:[#allocation8 + $0x6f8] sm:$0xff]
    %v6677 = vld [vmem:[#allocation8 + $0x700] sm:$0xff]
    %v6678 = vld [vmem:[#allocation8 + $0x708] sm:$0xff]
    %v6679 = vld [vmem:[#allocation8 + $0x710] sm:$0xff]
    %v6680 = vld [vmem:[#allocation8 + $0x718] sm:$0xff]
    %v6681 = vld [vmem:[#allocation8 + $0x720] sm:$0xff]
    %v6682 = vld [vmem:[#allocation8 + $0x728] sm:$0xff]
    %v6683 = vld [vmem:[#allocation8 + $0x730] sm:$0xff]
    %v6684 = vld [vmem:[#allocation8 + $0x738] sm:$0xff]
    %v6685 = vld [vmem:[#allocation8 + $0x740] sm:$0xff]
    %v6686 = vld [vmem:[#allocation8 + $0x748] sm:$0xff]
    %v6687 = vld [vmem:[#allocation8 + $0x750] sm:$0xff]
    %v6688 = vld [vmem:[#allocation8 + $0x758] sm:$0xff]
    %v6689 = vld [vmem:[#allocation8 + $0x760] sm:$0xff]
    %v6690 = vld [vmem:[#allocation8 + $0x768] sm:$0xff]
    %v6691 = vld [vmem:[#allocation8 + $0x770] sm:$0xff]
    %v6692 = vld [vmem:[#allocation8 + $0x778] sm:$0xff]
    %v6693 = vld [vmem:[#allocation8 + $0x780] sm:$0xff]
    %v6694 = vld [vmem:[#allocation8 + $0x788] sm:$0xff]
    %v6695 = vld [vmem:[#allocation8 + $0x790] sm:$0xff]
    %v6696 = vld [vmem:[#allocation8 + $0x798] sm:$0xff]
    %v6697 = vld [vmem:[#allocation8 + $0x7a0] sm:$0xff]
    %v6698 = vld [vmem:[#allocation8 + $0x7a8] sm:$0xff]
    %v6699 = vld [vmem:[#allocation8 + $0x7b0] sm:$0xff]
    %v6700 = vld [vmem:[#allocation8 + $0x7b8] sm:$0xff]
    %v6701 = vld [vmem:[#allocation8 + $0x7c0] sm:$0xff]
    %v6702 = vld [vmem:[#allocation8 + $0x7c8] sm:$0xff]
    %v6703 = vld [vmem:[#allocation8 + $0x7d0] sm:$0xff]
    %v6704 = vld [vmem:[#allocation8 + $0x7d8] sm:$0xff]
    %v6705 = vld [vmem:[#allocation8 + $0x7e0] sm:$0xff]
    %v6706 = vld [vmem:[#allocation8 + $0x7e8] sm:$0xff]
    %v6707 = vld [vmem:[#allocation8 + $0x7f0] sm:$0xff]
    %v6708 = vld [vmem:[#allocation8 + $0x7f8] sm:$0xff]
    %v6709 = vld [vmem:[#allocation8 + $0x800] sm:$0xff]
    %v6710 = vld [vmem:[#allocation8 + $0x808] sm:$0xff]
    %v6711 = vld [vmem:[#allocation8 + $0x810] sm:$0xff]
    %v6712 = vld [vmem:[#allocation8 + $0x818] sm:$0xff]
    %v6713 = vld [vmem:[#allocation8 + $0x820] sm:$0xff]
    %v6714 = vld [vmem:[#allocation8 + $0x828] sm:$0xff]
    %v6715 = vld [vmem:[#allocation8 + $0x830] sm:$0xff]
    %v6716 = vld [vmem:[#allocation8 + $0x838] sm:$0xff]
    %v6717 = vld [vmem:[#allocation8 + $0x840] sm:$0xff]
    %v6718 = vld [vmem:[#allocation8 + $0x848] sm:$0xff]
    %v6719 = vld [vmem:[#allocation8 + $0x850] sm:$0xff]
    %v6720 = vld [vmem:[#allocation8 + $0x858] sm:$0xff]
    %v6721 = vld [vmem:[#allocation8 + $0x860] sm:$0xff]
    %v6722 = vld [vmem:[#allocation8 + $0x868] sm:$0xff]
    %v6723 = vld [vmem:[#allocation8 + $0x870] sm:$0xff]
    %v6724 = vld [vmem:[#allocation8 + $0x878] sm:$0xff]
    %v6725 = vld [vmem:[#allocation8 + $0x880] sm:$0xff]
    %v6726 = vld [vmem:[#allocation8 + $0x888] sm:$0xff]
    %v6727 = vld [vmem:[#allocation8 + $0x890] sm:$0xff]
    %v6728 = vld [vmem:[#allocation8 + $0x898] sm:$0xff]
    %v6729 = vld [vmem:[#allocation8 + $0x8a0] sm:$0xff]
    %v6730 = vld [vmem:[#allocation8 + $0x8a8] sm:$0xff]
    %v6731 = vld [vmem:[#allocation8 + $0x8b0] sm:$0xff]
    %v6732 = vld [vmem:[#allocation8 + $0x8b8] sm:$0xff]
    %v6733 = vld [vmem:[#allocation8 + $0x8c0] sm:$0xff]
    %v6734 = vld [vmem:[#allocation8 + $0x8c8] sm:$0xff]
    %v6735 = vld [vmem:[#allocation8 + $0x8d0] sm:$0xff]
    %v6736 = vld [vmem:[#allocation8 + $0x8d8] sm:$0xff]
    %v6737 = vld [vmem:[#allocation8 + $0x8e0] sm:$0xff]
    %v6738 = vld [vmem:[#allocation8 + $0x8e8] sm:$0xff]
    %v6739 = vld [vmem:[#allocation8 + $0x8f0] sm:$0xff]
    %v6740 = vld [vmem:[#allocation8 + $0x8f8] sm:$0xff]
    %v6741 = vld [vmem:[#allocation8 + $0x900] sm:$0xff]
    %v6742 = vld [vmem:[#allocation8 + $0x908] sm:$0xff]
    %v6743 = vld [vmem:[#allocation8 + $0x910] sm:$0xff]
    %v6744 = vld [vmem:[#allocation8 + $0x918] sm:$0xff]
    %v6745 = vld [vmem:[#allocation8 + $0x920] sm:$0xff]
    %v6746 = vld [vmem:[#allocation8 + $0x928] sm:$0xff]
    %v6747 = vld [vmem:[#allocation8 + $0x930] sm:$0xff]
    %v6748 = vld [vmem:[#allocation8 + $0x938] sm:$0xff]
    %v6749 = vld [vmem:[#allocation8 + $0x940] sm:$0xff]
    %v6750 = vld [vmem:[#allocation8 + $0x948] sm:$0xff]
    %v6751 = vld [vmem:[#allocation8 + $0x950] sm:$0xff]
    %v6752 = vld [vmem:[#allocation8 + $0x958] sm:$0xff]
    %v6753 = vld [vmem:[#allocation8 + $0x960] sm:$0xff]
    %v6754 = vld [vmem:[#allocation8 + $0x968] sm:$0xff]
    %v6755 = vld [vmem:[#allocation8 + $0x970] sm:$0xff]
    %v6756 = vld [vmem:[#allocation8 + $0x978] sm:$0xff]
    %v6757 = vld [vmem:[#allocation8 + $0x980] sm:$0xff]
    %v6758 = vld [vmem:[#allocation8 + $0x988] sm:$0xff]
    %v6759 = vld [vmem:[#allocation8 + $0x990] sm:$0xff]
    %v6760 = vld [vmem:[#allocation8 + $0x998] sm:$0xff]
    %v6761 = vld [vmem:[#allocation8 + $0x9a0] sm:$0xff]
    %v6762 = vld [vmem:[#allocation8 + $0x9a8] sm:$0xff]
    %v6763 = vld [vmem:[#allocation8 + $0x9b0] sm:$0xff]
    %v6764 = vld [vmem:[#allocation8 + $0x9b8] sm:$0xff]
    %v6765 = vld [vmem:[#allocation8 + $0x9c0] sm:$0xff]
    %v6766 = vld [vmem:[#allocation8 + $0x9c8] sm:$0xff]
    %v6767 = vld [vmem:[#allocation8 + $0x9d0] sm:$0xff]
    %v6768 = vld [vmem:[#allocation8 + $0x9d8] sm:$0xff]
    %v6769 = vld [vmem:[#allocation8 + $0x9e0] sm:$0xff]
    %v6770 = vld [vmem:[#allocation8 + $0x9e8] sm:$0xff]
    %v6771 = vld [vmem:[#allocation8 + $0x9f0] sm:$0xff]
    %v6772 = vld [vmem:[#allocation8 + $0x9f8] sm:$0xff]
    %v6773 = vld [vmem:[#allocation8 + $0xa00] sm:$0xff]
    %v6774 = vld [vmem:[#allocation8 + $0xa08] sm:$0xff]
    %v6775 = vld [vmem:[#allocation8 + $0xa10] sm:$0xff]
    %v6776 = vld [vmem:[#allocation8 + $0xa18] sm:$0xff]
    %v6777 = vld [vmem:[#allocation8 + $0xa20] sm:$0xff]
    %v6778 = vld [vmem:[#allocation8 + $0xa28] sm:$0xff]
    %v6779 = vld [vmem:[#allocation8 + $0xa30] sm:$0xff]
    %v6780 = vld [vmem:[#allocation8 + $0xa38] sm:$0xff]
    %v6781 = vld [vmem:[#allocation8 + $0xa40] sm:$0xff]
    %v6782 = vld [vmem:[#allocation8 + $0xa48] sm:$0xff]
    %v6783 = vld [vmem:[#allocation8 + $0xa50] sm:$0xff]
    %v6784 = vld [vmem:[#allocation8 + $0xa58] sm:$0xff]
    %v6785 = vld [vmem:[#allocation8 + $0xa60] sm:$0xff]
    %v6786 = vld [vmem:[#allocation8 + $0xa68] sm:$0xff]
    %v6787 = vld [vmem:[#allocation8 + $0xa70] sm:$0xff]
    %v6788 = vld [vmem:[#allocation8 + $0xa78] sm:$0xff]
    %v6789 = vld [vmem:[#allocation8 + $0xa80] sm:$0xff]
    %v6790 = vld [vmem:[#allocation8 + $0xa88] sm:$0xff]
    %v6791 = vld [vmem:[#allocation8 + $0xa90] sm:$0xff]
    %v6792 = vld [vmem:[#allocation8 + $0xa98] sm:$0xff]
    %v6793 = vld [vmem:[#allocation8 + $0xaa0] sm:$0xff]
    %v6794 = vld [vmem:[#allocation8 + $0xaa8] sm:$0xff]
    %v6795 = vld [vmem:[#allocation8 + $0xab0] sm:$0xff]
    %v6796 = vld [vmem:[#allocation8 + $0xab8] sm:$0xff]
    %v6797 = vld [vmem:[#allocation8 + $0xac0] sm:$0xff]
    %v6798 = vld [vmem:[#allocation8 + $0xac8] sm:$0xff]
    %v6799 = vld [vmem:[#allocation8 + $0xad0] sm:$0xff]
    %v6800 = vld [vmem:[#allocation8 + $0xad8] sm:$0xff]
    %v6801 = vld [vmem:[#allocation8 + $0xae0] sm:$0xff]
    %v6802 = vld [vmem:[#allocation8 + $0xae8] sm:$0xff]
    %v6803 = vld [vmem:[#allocation8 + $0xaf0] sm:$0xff]
    %v6804 = vld [vmem:[#allocation8 + $0xaf8] sm:$0xff]
    %v6805 = vld [vmem:[#allocation8 + $0xb00] sm:$0xff]
    %v6806 = vld [vmem:[#allocation8 + $0xb08] sm:$0xff]
    %v6807 = vld [vmem:[#allocation8 + $0xb10] sm:$0xff]
    %v6808 = vld [vmem:[#allocation8 + $0xb18] sm:$0xff]
    %v6809 = vld [vmem:[#allocation8 + $0xb20] sm:$0xff]
    %v6810 = vld [vmem:[#allocation8 + $0xb28] sm:$0xff]
    %v6811 = vld [vmem:[#allocation8 + $0xb30] sm:$0xff]
    %v6812 = vld [vmem:[#allocation8 + $0xb38] sm:$0xff]
    %v6813 = vld [vmem:[#allocation8 + $0xb40] sm:$0xff]
    %v6814 = vld [vmem:[#allocation8 + $0xb48] sm:$0xff]
    %v6815 = vld [vmem:[#allocation8 + $0xb50] sm:$0xff]
    %v6816 = vld [vmem:[#allocation8 + $0xb58] sm:$0xff]
    %v6817 = vld [vmem:[#allocation8 + $0xb60] sm:$0xff]
    %v6818 = vld [vmem:[#allocation8 + $0xb68] sm:$0xff]
    %v6819 = vld [vmem:[#allocation8 + $0xb70] sm:$0xff]
    %v6820 = vld [vmem:[#allocation8 + $0xb78] sm:$0xff]
    %v6821 = vld [vmem:[#allocation8 + $0xb80] sm:$0xff]
    %v6822 = vld [vmem:[#allocation8 + $0xb88] sm:$0xff]
    %v6823 = vld [vmem:[#allocation8 + $0xb90] sm:$0xff]
    %v6824 = vld [vmem:[#allocation8 + $0xb98] sm:$0xff]
    %v6825 = vld [vmem:[#allocation8 + $0xba0] sm:$0xff]
    %v6826 = vld [vmem:[#allocation8 + $0xba8] sm:$0xff]
    %v6827 = vld [vmem:[#allocation8 + $0xbb0] sm:$0xff]
    %v6828 = vld [vmem:[#allocation8 + $0xbb8] sm:$0xff]
    %v6829 = vld [vmem:[#allocation8 + $0xbc0] sm:$0xff]
    %v6830 = vld [vmem:[#allocation8 + $0xbc8] sm:$0xff]
    %v6831 = vld [vmem:[#allocation8 + $0xbd0] sm:$0xff]
    %v6832 = vld [vmem:[#allocation8 + $0xbd8] sm:$0xff]
    %v6833 = vld [vmem:[#allocation8 + $0xbe0] sm:$0xff]
    %v6834 = vld [vmem:[#allocation8 + $0xbe8] sm:$0xff]
    %v6835 = vld [vmem:[#allocation8 + $0xbf0] sm:$0xff]
    %v6836 = vld [vmem:[#allocation8 + $0xbf8] sm:$0xff]
    %v6837 = vld [vmem:[#allocation8 + $0xc00] sm:$0xff]
    %v6838 = vld [vmem:[#allocation8 + $0xc08] sm:$0xff]
    %v6839 = vld [vmem:[#allocation8 + $0xc10] sm:$0xff]
    %v6840 = vld [vmem:[#allocation8 + $0xc18] sm:$0xff]
    %v6841 = vld [vmem:[#allocation8 + $0xc20] sm:$0xff]
    %v6842 = vld [vmem:[#allocation8 + $0xc28] sm:$0xff]
    %v6843 = vld [vmem:[#allocation8 + $0xc30] sm:$0xff]
    %v6844 = vld [vmem:[#allocation8 + $0xc38] sm:$0xff]
    %v6845 = vld [vmem:[#allocation8 + $0xc40] sm:$0xff]
    %v6846 = vld [vmem:[#allocation8 + $0xc48] sm:$0xff]
    %v6847 = vld [vmem:[#allocation8 + $0xc50] sm:$0xff]
    %v6848 = vld [vmem:[#allocation8 + $0xc58] sm:$0xff]
    %v6849 = vld [vmem:[#allocation8 + $0xc60] sm:$0xff]
    %v6850 = vld [vmem:[#allocation8 + $0xc68] sm:$0xff]
    %v6851 = vld [vmem:[#allocation8 + $0xc70] sm:$0xff]
    %v6852 = vld [vmem:[#allocation8 + $0xc78] sm:$0xff]
    %v6853 = vld [vmem:[#allocation8 + $0xc80] sm:$0xff]
    %v6854 = vld [vmem:[#allocation8 + $0xc88] sm:$0xff]
    %v6855 = vld [vmem:[#allocation8 + $0xc90] sm:$0xff]
    %v6856 = vld [vmem:[#allocation8 + $0xc98] sm:$0xff]
    %v6857 = vld [vmem:[#allocation8 + $0xca0] sm:$0xff]
    %v6858 = vld [vmem:[#allocation8 + $0xca8] sm:$0xff]
    %v6859 = vld [vmem:[#allocation8 + $0xcb0] sm:$0xff]
    %v6860 = vld [vmem:[#allocation8 + $0xcb8] sm:$0xff]
    %v6861 = vld [vmem:[#allocation8 + $0xcc0] sm:$0xff]
    %v6862 = vld [vmem:[#allocation8 + $0xcc8] sm:$0xff]
    %v6863 = vld [vmem:[#allocation8 + $0xcd0] sm:$0xff]
    %v6864 = vld [vmem:[#allocation8 + $0xcd8] sm:$0xff]
    %v6865 = vld [vmem:[#allocation8 + $0xce0] sm:$0xff]
    %v6866 = vld [vmem:[#allocation8 + $0xce8] sm:$0xff]
    %v6867 = vld [vmem:[#allocation8 + $0xcf0] sm:$0xff]
    %v6868 = vld [vmem:[#allocation8 + $0xcf8] sm:$0xff]
    %v6869 = vld [vmem:[#allocation8 + $0xd00] sm:$0xff]
    %v6870 = vld [vmem:[#allocation8 + $0xd08] sm:$0xff]
    %v6871 = vld [vmem:[#allocation8 + $0xd10] sm:$0xff]
    %v6872 = vld [vmem:[#allocation8 + $0xd18] sm:$0xff]
    %v6873 = vld [vmem:[#allocation8 + $0xd20] sm:$0xff]
    %v6874 = vld [vmem:[#allocation8 + $0xd28] sm:$0xff]
    %v6875 = vld [vmem:[#allocation8 + $0xd30] sm:$0xff]
    %v6876 = vld [vmem:[#allocation8 + $0xd38] sm:$0xff]
    %v6877 = vld [vmem:[#allocation8 + $0xd40] sm:$0xff]
    %v6878 = vld [vmem:[#allocation8 + $0xd48] sm:$0xff]
    %v6879 = vld [vmem:[#allocation8 + $0xd50] sm:$0xff]
    %v6880 = vld [vmem:[#allocation8 + $0xd58] sm:$0xff]
    %v6881 = vld [vmem:[#allocation8 + $0xd60] sm:$0xff]
    %v6882 = vld [vmem:[#allocation8 + $0xd68] sm:$0xff]
    %v6883 = vld [vmem:[#allocation8 + $0xd70] sm:$0xff]
    %v6884 = vld [vmem:[#allocation8 + $0xd78] sm:$0xff]
    %v6885 = vld [vmem:[#allocation8 + $0xd80] sm:$0xff]
    %v6886 = vld [vmem:[#allocation8 + $0xd88] sm:$0xff]
    %v6887 = vld [vmem:[#allocation8 + $0xd90] sm:$0xff]
    %v6888 = vld [vmem:[#allocation8 + $0xd98] sm:$0xff]
    %v6889 = vld [vmem:[#allocation8 + $0xda0] sm:$0xff]
    %v6890 = vld [vmem:[#allocation8 + $0xda8] sm:$0xff]
    %v6891 = vld [vmem:[#allocation8 + $0xdb0] sm:$0xff]
    %v6892 = vld [vmem:[#allocation8 + $0xdb8] sm:$0xff]
    %v6893 = vld [vmem:[#allocation8 + $0xdc0] sm:$0xff]
    %v6894 = vld [vmem:[#allocation8 + $0xdc8] sm:$0xff]
    %v6895 = vld [vmem:[#allocation8 + $0xdd0] sm:$0xff]
    %v6896 = vld [vmem:[#allocation8 + $0xdd8] sm:$0xff]
    %v6897 = vld [vmem:[#allocation8 + $0xde0] sm:$0xff]
    %v6898 = vld [vmem:[#allocation8 + $0xde8] sm:$0xff]
    %v6899 = vld [vmem:[#allocation8 + $0xdf0] sm:$0xff]
    %v6900 = vld [vmem:[#allocation8 + $0xdf8] sm:$0xff]
    %v6901 = vld [vmem:[#allocation8 + $0xe00] sm:$0xff]
    %v6902 = vld [vmem:[#allocation8 + $0xe08] sm:$0xff]
    %v6903 = vld [vmem:[#allocation8 + $0xe10] sm:$0xff]
    %v6904 = vld [vmem:[#allocation8 + $0xe18] sm:$0xff]
    %v6905 = vld [vmem:[#allocation8 + $0xe20] sm:$0xff]
    %v6906 = vld [vmem:[#allocation8 + $0xe28] sm:$0xff]
    %v6907 = vld [vmem:[#allocation8 + $0xe30] sm:$0xff]
    %v6908 = vld [vmem:[#allocation8 + $0xe38] sm:$0xff]
    %v6909 = vld [vmem:[#allocation8 + $0xe40] sm:$0xff]
    %v6910 = vld [vmem:[#allocation8 + $0xe48] sm:$0xff]
    %v6911 = vld [vmem:[#allocation8 + $0xe50] sm:$0xff]
    %v6912 = vld [vmem:[#allocation8 + $0xe58] sm:$0xff]
    %v6913 = vld [vmem:[#allocation8 + $0xe60] sm:$0xff]
    %v6914 = vld [vmem:[#allocation8 + $0xe68] sm:$0xff]
    %v6915 = vld [vmem:[#allocation8 + $0xe70] sm:$0xff]
    %v6916 = vld [vmem:[#allocation8 + $0xe78] sm:$0xff]
    %v6917 = vld [vmem:[#allocation8 + $0xe80] sm:$0xff]
    %v6918 = vld [vmem:[#allocation8 + $0xe88] sm:$0xff]
    %v6919 = vld [vmem:[#allocation8 + $0xe90] sm:$0xff]
    %v6920 = vld [vmem:[#allocation8 + $0xe98] sm:$0xff]
    %v6921 = vld [vmem:[#allocation8 + $0xea0] sm:$0xff]
    %v6922 = vld [vmem:[#allocation8 + $0xea8] sm:$0xff]
    %v6923 = vld [vmem:[#allocation8 + $0xeb0] sm:$0xff]
    %v6924 = vld [vmem:[#allocation8 + $0xeb8] sm:$0xff]
    %v6925 = vld [vmem:[#allocation8 + $0xec0] sm:$0xff]
    %v6926 = vld [vmem:[#allocation8 + $0xec8] sm:$0xff]
    %v6927 = vld [vmem:[#allocation8 + $0xed0] sm:$0xff]
    %v6928 = vld [vmem:[#allocation8 + $0xed8] sm:$0xff]
    %v6929 = vld [vmem:[#allocation8 + $0xee0] sm:$0xff]
    %v6930 = vld [vmem:[#allocation8 + $0xee8] sm:$0xff]
    %v6931 = vld [vmem:[#allocation8 + $0xef0] sm:$0xff]
    %v6932 = vld [vmem:[#allocation8 + $0xef8] sm:$0xff]
    %v6933 = vld [vmem:[#allocation8 + $0xf00] sm:$0xff]
    %v6934 = vld [vmem:[#allocation8 + $0xf08] sm:$0xff]
    %v6935 = vld [vmem:[#allocation8 + $0xf10] sm:$0xff]
    %v6936 = vld [vmem:[#allocation8 + $0xf18] sm:$0xff]
    %v6937 = vld [vmem:[#allocation8 + $0xf20] sm:$0xff]
    %v6938 = vld [vmem:[#allocation8 + $0xf28] sm:$0xff]
    %v6939 = vld [vmem:[#allocation8 + $0xf30] sm:$0xff]
    %v6940 = vld [vmem:[#allocation8 + $0xf38] sm:$0xff]
    %v6941 = vld [vmem:[#allocation8 + $0xf40] sm:$0xff]
    %v6942 = vld [vmem:[#allocation8 + $0xf48] sm:$0xff]
    %v6943 = vld [vmem:[#allocation8 + $0xf50] sm:$0xff]
    %v6944 = vld [vmem:[#allocation8 + $0xf58] sm:$0xff]
    %v6945 = vld [vmem:[#allocation8 + $0xf60] sm:$0xff]
    %v6946 = vld [vmem:[#allocation8 + $0xf68] sm:$0xff]
    %v6947 = vld [vmem:[#allocation8 + $0xf70] sm:$0xff]
    %v6948 = vld [vmem:[#allocation8 + $0xf78] sm:$0xff]
    %v6949 = vld [vmem:[#allocation8 + $0xf80] sm:$0xff]
    %v6950 = vld [vmem:[#allocation8 + $0xf88] sm:$0xff]
    %v6951 = vld [vmem:[#allocation8 + $0xf90] sm:$0xff]
    %v6952 = vld [vmem:[#allocation8 + $0xf98] sm:$0xff]
    %v6953 = vld [vmem:[#allocation8 + $0xfa0] sm:$0xff]
    %v6954 = vld [vmem:[#allocation8 + $0xfa8] sm:$0xff]
    %v6955 = vld [vmem:[#allocation8 + $0xfb0] sm:$0xff]
    %v6956 = vld [vmem:[#allocation8 + $0xfb8] sm:$0xff]
    %v6957 = vld [vmem:[#allocation8 + $0xfc0] sm:$0xff]
    %v6958 = vld [vmem:[#allocation8 + $0xfc8] sm:$0xff]
    %v6959 = vld [vmem:[#allocation8 + $0xfd0] sm:$0xff]
    %v6960 = vld [vmem:[#allocation8 + $0xfd8] sm:$0xff]
    %v6961 = vld [vmem:[#allocation8 + $0xfe0] sm:$0xff]
    %v6962 = vld [vmem:[#allocation8 + $0xfe8] sm:$0xff]
    %v6963 = vld [vmem:[#allocation8 + $0xff0] sm:$0xff]
    %v6964 = vld [vmem:[#allocation8 + $0xff8] sm:$0xff]
    %v6965 = vld [vmem:[#allocation8 + $0x1000] sm:$0xff]
    %v6966 = vld [vmem:[#allocation8 + $0x1008] sm:$0xff]
    %v6967 = vld [vmem:[#allocation8 + $0x1010] sm:$0xff]
    %v6968 = vld [vmem:[#allocation8 + $0x1018] sm:$0xff]
    %v6969 = vld [vmem:[#allocation8 + $0x1020] sm:$0xff]
    %v6970 = vld [vmem:[#allocation8 + $0x1028] sm:$0xff]
    %v6971 = vld [vmem:[#allocation8 + $0x1030] sm:$0xff]
    %v6972 = vld [vmem:[#allocation8 + $0x1038] sm:$0xff]
    %v6973 = vld [vmem:[#allocation8 + $0x1040] sm:$0xff]
    %v6974 = vld [vmem:[#allocation8 + $0x1048] sm:$0xff]
    %v6975 = vld [vmem:[#allocation8 + $0x1050] sm:$0xff]
    %v6976 = vld [vmem:[#allocation8 + $0x1058] sm:$0xff]
    %v6977 = vld [vmem:[#allocation8 + $0x1060] sm:$0xff]
    %v6978 = vld [vmem:[#allocation8 + $0x1068] sm:$0xff]
    %v6979 = vld [vmem:[#allocation8 + $0x1070] sm:$0xff]
    %v6980 = vld [vmem:[#allocation8 + $0x1078] sm:$0xff]
    %v6981 = vld [vmem:[#allocation8 + $0x1080] sm:$0xff]
    %v6982 = vld [vmem:[#allocation8 + $0x1088] sm:$0xff]
    %v6983 = vld [vmem:[#allocation8 + $0x1090] sm:$0xff]
    %v6984 = vld [vmem:[#allocation8 + $0x1098] sm:$0xff]
    %v6985 = vld [vmem:[#allocation8 + $0x10a0] sm:$0xff]
    %v6986 = vld [vmem:[#allocation8 + $0x10a8] sm:$0xff]
    %v6987 = vld [vmem:[#allocation8 + $0x10b0] sm:$0xff]
    %v6988 = vld [vmem:[#allocation8 + $0x10b8] sm:$0xff]
    %v6989 = vld [vmem:[#allocation8 + $0x10c0] sm:$0xff]
    %v6990 = vld [vmem:[#allocation8 + $0x10c8] sm:$0xff]
    %v6991 = vld [vmem:[#allocation8 + $0x10d0] sm:$0xff]
    %v6992 = vld [vmem:[#allocation8 + $0x10d8] sm:$0xff]
    %v6993 = vld [vmem:[#allocation8 + $0x10e0] sm:$0xff]
    %v6994 = vld [vmem:[#allocation8 + $0x10e8] sm:$0xff]
    %v6995 = vld [vmem:[#allocation8 + $0x10f0] sm:$0xff]
    %v6996 = vld [vmem:[#allocation8 + $0x10f8] sm:$0xff]
    %v6997 = vld [vmem:[#allocation8 + $0x1100] sm:$0xff]
    %v6998 = vld [vmem:[#allocation8 + $0x1108] sm:$0xff]
    %v6999 = vld [vmem:[#allocation8 + $0x1110] sm:$0xff]
    %v7000 = vld [vmem:[#allocation8 + $0x1118] sm:$0xff]
    %v7001 = vld [vmem:[#allocation8 + $0x1120] sm:$0xff]
    %v7002 = vld [vmem:[#allocation8 + $0x1128] sm:$0xff]
    %v7003 = vld [vmem:[#allocation8 + $0x1130] sm:$0xff]
    %v7004 = vld [vmem:[#allocation8 + $0x1138] sm:$0xff]
    %v7005 = vld [vmem:[#allocation8 + $0x1140] sm:$0xff]
    %v7006 = vld [vmem:[#allocation8 + $0x1148] sm:$0xff]
    %v7007 = vld [vmem:[#allocation8 + $0x1150] sm:$0xff]
    %v7008 = vld [vmem:[#allocation8 + $0x1158] sm:$0xff]
    %v7009 = vld [vmem:[#allocation8 + $0x1160] sm:$0xff]
    %v7010 = vld [vmem:[#allocation8 + $0x1168] sm:$0xff]
    %v7011 = vld [vmem:[#allocation8 + $0x1170] sm:$0xff]
    %v7012 = vld [vmem:[#allocation8 + $0x1178] sm:$0xff]
    %v7013 = vld [vmem:[#allocation8 + $0x1180] sm:$0xff]
    %v7014 = vld [vmem:[#allocation8 + $0x1188] sm:$0xff]
    %v7015 = vld [vmem:[#allocation8 + $0x1190] sm:$0xff]
    %v7016 = vld [vmem:[#allocation8 + $0x1198] sm:$0xff]
    %v7017 = vld [vmem:[#allocation8 + $0x11a0] sm:$0xff]
    %v7018 = vld [vmem:[#allocation8 + $0x11a8] sm:$0xff]
    %v7019 = vld [vmem:[#allocation8 + $0x11b0] sm:$0xff]
    %v7020 = vld [vmem:[#allocation8 + $0x11b8] sm:$0xff]
    %v7021 = vld [vmem:[#allocation8 + $0x11c0] sm:$0xff]
    %v7022 = vld [vmem:[#allocation8 + $0x11c8] sm:$0xff]
    %v7023 = vld [vmem:[#allocation8 + $0x11d0] sm:$0xff]
    %v7024 = vld [vmem:[#allocation8 + $0x11d8] sm:$0xff]
    %v7025 = vld [vmem:[#allocation8 + $0x11e0] sm:$0xff]
    %v7026 = vld [vmem:[#allocation8 + $0x11e8] sm:$0xff]
    %v7027 = vld [vmem:[#allocation8 + $0x11f0] sm:$0xff]
    %v7028 = vld [vmem:[#allocation8 + $0x11f8] sm:$0xff]
    %v7029 = vld [vmem:[#allocation8 + $0x1200] sm:$0xff]
    %v7030 = vld [vmem:[#allocation8 + $0x1208] sm:$0xff]
    %v7031 = vld [vmem:[#allocation8 + $0x1210] sm:$0xff]
    %v7032 = vld [vmem:[#allocation8 + $0x1218] sm:$0xff]
    %v7033 = vld [vmem:[#allocation8 + $0x1220] sm:$0xff]
    %v7034 = vld [vmem:[#allocation8 + $0x1228] sm:$0xff]
    %v7035 = vld [vmem:[#allocation8 + $0x1230] sm:$0xff]
    %v7036 = vld [vmem:[#allocation8 + $0x1238] sm:$0xff]
    %v7037 = vld [vmem:[#allocation8 + $0x1240] sm:$0xff]
    %v7038 = vld [vmem:[#allocation8 + $0x1248] sm:$0xff]
    %v7039 = vld [vmem:[#allocation8 + $0x1250] sm:$0xff]
    %v7040 = vld [vmem:[#allocation8 + $0x1258] sm:$0xff]
    %v7041 = vld [vmem:[#allocation8 + $0x1260] sm:$0xff]
    %v7042 = vld [vmem:[#allocation8 + $0x1268] sm:$0xff]
    %v7043 = vld [vmem:[#allocation8 + $0x1270] sm:$0xff]
    %v7044 = vld [vmem:[#allocation8 + $0x1278] sm:$0xff]
    %v7045 = vld [vmem:[#allocation8 + $0x1280] sm:$0xff]
    %v7046 = vld [vmem:[#allocation8 + $0x1288] sm:$0xff]
    %v7047 = vld [vmem:[#allocation8 + $0x1290] sm:$0xff]
    %v7048 = vld [vmem:[#allocation8 + $0x1298] sm:$0xff]
    %v7049 = vld [vmem:[#allocation8 + $0x12a0] sm:$0xff]
    %v7050 = vld [vmem:[#allocation8 + $0x12a8] sm:$0xff]
    %v7051 = vld [vmem:[#allocation8 + $0x12b0] sm:$0xff]
    %v7052 = vld [vmem:[#allocation8 + $0x12b8] sm:$0xff]
    %v7053 = vld [vmem:[#allocation8 + $0x12c0] sm:$0xff]
    %v7054 = vld [vmem:[#allocation8 + $0x12c8] sm:$0xff]
    %v7055 = vld [vmem:[#allocation8 + $0x12d0] sm:$0xff]
    %v7056 = vld [vmem:[#allocation8 + $0x12d8] sm:$0xff]
    %v7057 = vld [vmem:[#allocation8 + $0x12e0] sm:$0xff]
    %v7058 = vld [vmem:[#allocation8 + $0x12e8] sm:$0xff]
    %v7059 = vld [vmem:[#allocation8 + $0x12f0] sm:$0xff]
    %v7060 = vld [vmem:[#allocation8 + $0x12f8] sm:$0xff]
    %v7061 = vld [vmem:[#allocation8 + $0x1300] sm:$0xff]
    %v7062 = vld [vmem:[#allocation8 + $0x1308] sm:$0xff]
    %v7063 = vld [vmem:[#allocation8 + $0x1310] sm:$0xff]
    %v7064 = vld [vmem:[#allocation8 + $0x1318] sm:$0xff]
    %v7065 = vld [vmem:[#allocation8 + $0x1320] sm:$0xff]
    %v7066 = vld [vmem:[#allocation8 + $0x1328] sm:$0xff]
    %v7067 = vld [vmem:[#allocation8 + $0x1330] sm:$0xff]
    %v7068 = vld [vmem:[#allocation8 + $0x1338] sm:$0xff]
    %v7069 = vld [vmem:[#allocation8 + $0x1340] sm:$0xff]
    %v7070 = vld [vmem:[#allocation8 + $0x1348] sm:$0xff]
    %v7071 = vld [vmem:[#allocation8 + $0x1350] sm:$0xff]
    %v7072 = vld [vmem:[#allocation8 + $0x1358] sm:$0xff]
    %v7073 = vld [vmem:[#allocation8 + $0x1360] sm:$0xff]
    %v7074 = vld [vmem:[#allocation8 + $0x1368] sm:$0xff]
    %v7075 = vld [vmem:[#allocation8 + $0x1370] sm:$0xff]
    %v7076 = vld [vmem:[#allocation8 + $0x1378] sm:$0xff]
    %v7077 = vld [vmem:[#allocation8 + $0x1380] sm:$0xff]
    %v7078 = vld [vmem:[#allocation8 + $0x1388] sm:$0xff]
    %v7079 = vld [vmem:[#allocation8 + $0x1390] sm:$0xff]
    %v7080 = vld [vmem:[#allocation8 + $0x1398] sm:$0xff]
    %v7081 = vld [vmem:[#allocation8 + $0x13a0] sm:$0xff]
    %v7082 = vld [vmem:[#allocation8 + $0x13a8] sm:$0xff]
    %v7083 = vld [vmem:[#allocation8 + $0x13b0] sm:$0xff]
    %v7084 = vld [vmem:[#allocation8 + $0x13b8] sm:$0xff]
    %v7085 = vld [vmem:[#allocation8 + $0x13c0] sm:$0xff]
    %v7086 = vld [vmem:[#allocation8 + $0x13c8] sm:$0xff]
    %v7087 = vld [vmem:[#allocation8 + $0x13d0] sm:$0xff]
    %v7088 = vld [vmem:[#allocation8 + $0x13d8] sm:$0xff]
    %v7089 = vld [vmem:[#allocation8 + $0x13e0] sm:$0xff]
    %v7090 = vld [vmem:[#allocation8 + $0x13e8] sm:$0xff]
    %v7091 = vld [vmem:[#allocation8 + $0x13f0] sm:$0xff]
    %v7092 = vld [vmem:[#allocation8 + $0x13f8] sm:$0xff]
    %v7093 = vld [vmem:[#allocation8 + $0x1400] sm:$0xff]
    %v7094 = vld [vmem:[#allocation8 + $0x1408] sm:$0xff]
    %v7095 = vld [vmem:[#allocation8 + $0x1410] sm:$0xff]
    %v7096 = vld [vmem:[#allocation8 + $0x1418] sm:$0xff]
    %v7097 = vld [vmem:[#allocation8 + $0x1420] sm:$0xff]
    %v7098 = vld [vmem:[#allocation8 + $0x1428] sm:$0xff]
    %v7099 = vld [vmem:[#allocation8 + $0x1430] sm:$0xff]
    %v7100 = vld [vmem:[#allocation8 + $0x1438] sm:$0xff]
    %v7101 = vld [vmem:[#allocation8 + $0x1440] sm:$0xff]
    %v7102 = vld [vmem:[#allocation8 + $0x1448] sm:$0xff]
    %v7103 = vld [vmem:[#allocation8 + $0x1450] sm:$0xff]
    %v7104 = vld [vmem:[#allocation8 + $0x1458] sm:$0xff]
    %v7105 = vld [vmem:[#allocation8 + $0x1460] sm:$0xff]
    %v7106 = vld [vmem:[#allocation8 + $0x1468] sm:$0xff]
    %v7107 = vld [vmem:[#allocation8 + $0x1470] sm:$0xff]
    %v7108 = vld [vmem:[#allocation8 + $0x1478] sm:$0xff]
    %v7109 = vld [vmem:[#allocation8 + $0x1480] sm:$0xff]
    %v7110 = vld [vmem:[#allocation8 + $0x1488] sm:$0xff]
    %v7111 = vld [vmem:[#allocation8 + $0x1490] sm:$0xff]
    %v7112 = vld [vmem:[#allocation8 + $0x1498] sm:$0xff]
    %v7113 = vld [vmem:[#allocation8 + $0x14a0] sm:$0xff]
    %v7114 = vld [vmem:[#allocation8 + $0x14a8] sm:$0xff]
    %v7115 = vld [vmem:[#allocation8 + $0x14b0] sm:$0xff]
    %v7116 = vld [vmem:[#allocation8 + $0x14b8] sm:$0xff]
    %v7117 = vld [vmem:[#allocation8 + $0x14c0] sm:$0xff]
    %v7118 = vld [vmem:[#allocation8 + $0x14c8] sm:$0xff]
    %v7119 = vld [vmem:[#allocation8 + $0x14d0] sm:$0xff]
    %v7120 = vld [vmem:[#allocation8 + $0x14d8] sm:$0xff]
    %v7121 = vld [vmem:[#allocation8 + $0x14e0] sm:$0xff]
    %v7122 = vld [vmem:[#allocation8 + $0x14e8] sm:$0xff]
    %v7123 = vld [vmem:[#allocation8 + $0x14f0] sm:$0xff]
    %v7124 = vld [vmem:[#allocation8 + $0x14f8] sm:$0xff]
    %v7125 = vld [vmem:[#allocation8 + $0x1500] sm:$0xff]
    %v7126 = vld [vmem:[#allocation8 + $0x1508] sm:$0xff]
    %v7127 = vld [vmem:[#allocation8 + $0x1510] sm:$0xff]
    %v7128 = vld [vmem:[#allocation8 + $0x1518] sm:$0xff]
    %v7129 = vld [vmem:[#allocation8 + $0x1520] sm:$0xff]
    %v7130 = vld [vmem:[#allocation8 + $0x1528] sm:$0xff]
    %v7131 = vld [vmem:[#allocation8 + $0x1530] sm:$0xff]
    %v7132 = vld [vmem:[#allocation8 + $0x1538] sm:$0xff]
    %v7133 = vld [vmem:[#allocation8 + $0x1540] sm:$0xff]
    %v7134 = vld [vmem:[#allocation8 + $0x1548] sm:$0xff]
    %v7135 = vld [vmem:[#allocation8 + $0x1550] sm:$0xff]
    %v7136 = vld [vmem:[#allocation8 + $0x1558] sm:$0xff]
    %v7137 = vld [vmem:[#allocation8 + $0x1560] sm:$0xff]
    %v7138 = vld [vmem:[#allocation8 + $0x1568] sm:$0xff]
    %v7139 = vld [vmem:[#allocation8 + $0x1570] sm:$0xff]
    %v7140 = vld [vmem:[#allocation8 + $0x1578] sm:$0xff]
    %v7141 = vld [vmem:[#allocation8 + $0x1580] sm:$0xff]
    %v7142 = vld [vmem:[#allocation8 + $0x1588] sm:$0xff]
    %v7143 = vld [vmem:[#allocation8 + $0x1590] sm:$0xff]
    %v7144 = vld [vmem:[#allocation8 + $0x1598] sm:$0xff]
    %v7145 = vld [vmem:[#allocation8 + $0x15a0] sm:$0xff]
    %v7146 = vld [vmem:[#allocation8 + $0x15a8] sm:$0xff]
    %v7147 = vld [vmem:[#allocation8 + $0x15b0] sm:$0xff]
    %v7148 = vld [vmem:[#allocation8 + $0x15b8] sm:$0xff]
    %v7149 = vld [vmem:[#allocation8 + $0x15c0] sm:$0xff]
    %v7150 = vld [vmem:[#allocation8 + $0x15c8] sm:$0xff]
    %v7151 = vld [vmem:[#allocation8 + $0x15d0] sm:$0xff]
    %v7152 = vld [vmem:[#allocation8 + $0x15d8] sm:$0xff]
    %v7153 = vld [vmem:[#allocation8 + $0x15e0] sm:$0xff]
    %v7154 = vld [vmem:[#allocation8 + $0x15e8] sm:$0xff]
    %v7155 = vld [vmem:[#allocation8 + $0x15f0] sm:$0xff]
    %v7156 = vld [vmem:[#allocation8 + $0x15f8] sm:$0xff]
    %v7157 = vld [vmem:[#allocation8 + $0x1600] sm:$0xff]
    %v7158 = vld [vmem:[#allocation8 + $0x1608] sm:$0xff]
    %v7159 = vld [vmem:[#allocation8 + $0x1610] sm:$0xff]
    %v7160 = vld [vmem:[#allocation8 + $0x1618] sm:$0xff]
    %v7161 = vld [vmem:[#allocation8 + $0x1620] sm:$0xff]
    %v7162 = vld [vmem:[#allocation8 + $0x1628] sm:$0xff]
    %v7163 = vld [vmem:[#allocation8 + $0x1630] sm:$0xff]
    %v7164 = vld [vmem:[#allocation8 + $0x1638] sm:$0xff]
    %v7165 = vld [vmem:[#allocation8 + $0x1640] sm:$0xff]
    %v7166 = vld [vmem:[#allocation8 + $0x1648] sm:$0xff]
    %v7167 = vld [vmem:[#allocation8 + $0x1650] sm:$0xff]
    %v7168 = vld [vmem:[#allocation8 + $0x1658] sm:$0xff]
    %v7169 = vld [vmem:[#allocation8 + $0x1660] sm:$0xff]
    %v7170 = vld [vmem:[#allocation8 + $0x1668] sm:$0xff]
    %v7171 = vld [vmem:[#allocation8 + $0x1670] sm:$0xff]
    %v7172 = vld [vmem:[#allocation8 + $0x1678] sm:$0xff]
    %v7173 = vld [vmem:[#allocation8 + $0x1680] sm:$0xff]
    %v7174 = vld [vmem:[#allocation8 + $0x1688] sm:$0xff]
    %v7175 = vld [vmem:[#allocation8 + $0x1690] sm:$0xff]
    %v7176 = vld [vmem:[#allocation8 + $0x1698] sm:$0xff]
    %v7177 = vld [vmem:[#allocation8 + $0x16a0] sm:$0xff]
    %v7178 = vld [vmem:[#allocation8 + $0x16a8] sm:$0xff]
    %v7179 = vld [vmem:[#allocation8 + $0x16b0] sm:$0xff]
    %v7180 = vld [vmem:[#allocation8 + $0x16b8] sm:$0xff]
    %v7181 = vld [vmem:[#allocation8 + $0x16c0] sm:$0xff]
    %v7182 = vld [vmem:[#allocation8 + $0x16c8] sm:$0xff]
    %v7183 = vld [vmem:[#allocation8 + $0x16d0] sm:$0xff]
    %v7184 = vld [vmem:[#allocation8 + $0x16d8] sm:$0xff]
    %v7185 = vld [vmem:[#allocation8 + $0x16e0] sm:$0xff]
    %v7186 = vld [vmem:[#allocation8 + $0x16e8] sm:$0xff]
    %v7187 = vld [vmem:[#allocation8 + $0x16f0] sm:$0xff]
    %v7188 = vld [vmem:[#allocation8 + $0x16f8] sm:$0xff]
    %v7189 = vld [vmem:[#allocation8 + $0x1700] sm:$0xff]
    %v7190 = vld [vmem:[#allocation8 + $0x1708] sm:$0xff]
    %v7191 = vld [vmem:[#allocation8 + $0x1710] sm:$0xff]
    %v7192 = vld [vmem:[#allocation8 + $0x1718] sm:$0xff]
    %v7193 = vld [vmem:[#allocation8 + $0x1720] sm:$0xff]
    %v7194 = vld [vmem:[#allocation8 + $0x1728] sm:$0xff]
    %v7195 = vld [vmem:[#allocation8 + $0x1730] sm:$0xff]
    %v7196 = vld [vmem:[#allocation8 + $0x1738] sm:$0xff]
    %v7197 = vld [vmem:[#allocation8 + $0x1740] sm:$0xff]
    %v7198 = vld [vmem:[#allocation8 + $0x1748] sm:$0xff]
    %v7199 = vld [vmem:[#allocation8 + $0x1750] sm:$0xff]
    %v7200 = vld [vmem:[#allocation8 + $0x1758] sm:$0xff]
    %v7201 = vld [vmem:[#allocation8 + $0x1760] sm:$0xff]
    %v7202 = vld [vmem:[#allocation8 + $0x1768] sm:$0xff]
    %v7203 = vld [vmem:[#allocation8 + $0x1770] sm:$0xff]
    %v7204 = vld [vmem:[#allocation8 + $0x1778] sm:$0xff]
    %v7205 = vld [vmem:[#allocation8 + $0x1780] sm:$0xff]
    %v7206 = vld [vmem:[#allocation8 + $0x1788] sm:$0xff]
    %v7207 = vld [vmem:[#allocation8 + $0x1790] sm:$0xff]
    %v7208 = vld [vmem:[#allocation8 + $0x1798] sm:$0xff]
    %v7209 = vld [vmem:[#allocation8 + $0x17a0] sm:$0xff]
    %v7210 = vld [vmem:[#allocation8 + $0x17a8] sm:$0xff]
    %v7211 = vld [vmem:[#allocation8 + $0x17b0] sm:$0xff]
    %v7212 = vld [vmem:[#allocation8 + $0x17b8] sm:$0xff]
    %v7213 = vld [vmem:[#allocation8 + $0x17c0] sm:$0xff]
    %v7214 = vld [vmem:[#allocation8 + $0x17c8] sm:$0xff]
    %v7215 = vld [vmem:[#allocation8 + $0x17d0] sm:$0xff]
    %v7216 = vld [vmem:[#allocation8 + $0x17d8] sm:$0xff]
    %v7217 = vld [vmem:[#allocation8 + $0x17e0] sm:$0xff]
    %v7218 = vld [vmem:[#allocation8 + $0x17e8] sm:$0xff]
    %v7219 = vld [vmem:[#allocation8 + $0x17f0] sm:$0xff]
    %v7220 = vld [vmem:[#allocation8 + $0x17f8] sm:$0xff]
    %v7221 = vld [vmem:[#allocation9] sm:$0x3f]
    %v7223 = vlaneseq
    %v7224 = vshrl.u32 %v7223, 7
    %v7225 = vsub.s32 0, %v7224
    %v7226 = vrot.slane %v7221, %v7225
    %v7227 = vlaneseq
    %v7228 = vshrl.u32 %v7227, 7
    %v7229 = vsub.s32 1, %v7228
    %v7230 = vrot.slane %v7221, %v7229
    %v7231 = vlaneseq
    %v7232 = vshrl.u32 %v7231, 7
    %v7233 = vsub.s32 2, %v7232
    %v7234 = vrot.slane %v7221, %v7233
    %v7235 = vlaneseq
    %v7236 = vshrl.u32 %v7235, 7
    %v7237 = vsub.s32 3, %v7236
    %v7238 = vrot.slane %v7221, %v7237
    %v7239 = vlaneseq
    %v7240 = vshrl.u32 %v7239, 7
    %v7241 = vsub.s32 4, %v7240
    %v7242 = vrot.slane %v7221, %v7241
    %v7243 = vlaneseq
    %v7244 = vshrl.u32 %v7243, 7
    %v7245 = vsub.s32 5, %v7244
    %v7246 = vrot.slane %v7221, %v7245
    %v8021 = vunpack.c.l.b16 %v6453
    %v8022 = vunpack.c.h.b16 %v6453
    %v8023 = vunpack.c.l.b16 %v6454
    %v8024 = vunpack.c.h.b16 %v6454
    %v8025 = vunpack.c.l.b16 %v6455
    %v8026 = vunpack.c.h.b16 %v6455
    %v8027 = vunpack.c.l.b16 %v6456
    %v8028 = vunpack.c.h.b16 %v6456
    %v8029 = vunpack.c.l.b16 %v6457
    %v8030 = vunpack.c.h.b16 %v6457
    %v8031 = vunpack.c.l.b16 %v6458
    %v8032 = vunpack.c.h.b16 %v6458
    %v8033 = vunpack.c.l.b16 %v6459
    %v8034 = vunpack.c.h.b16 %v6459
    %v8035 = vunpack.c.l.b16 %v6460
    %v8036 = vunpack.c.h.b16 %v6460
    %v8037 = vunpack.c.l.b16 %v6461
    %v8038 = vunpack.c.h.b16 %v6461
    %v8039 = vunpack.c.l.b16 %v6462
    %v8040 = vunpack.c.h.b16 %v6462
    %v8041 = vunpack.c.l.b16 %v6463
    %v8042 = vunpack.c.h.b16 %v6463
    %v8043 = vunpack.c.l.b16 %v6464
    %v8044 = vunpack.c.h.b16 %v6464
    %v8045 = vunpack.c.l.b16 %v6465
    %v8046 = vunpack.c.h.b16 %v6465
    %v8047 = vunpack.c.l.b16 %v6466
    %v8048 = vunpack.c.h.b16 %v6466
    %v8049 = vunpack.c.l.b16 %v6467
    %v8050 = vunpack.c.h.b16 %v6467
    %v8051 = vunpack.c.l.b16 %v6468
    %v8052 = vunpack.c.h.b16 %v6468
    %v8053 = vunpack.c.l.b16 %v6469
    %v8054 = vunpack.c.h.b16 %v6469
    %v8055 = vunpack.c.l.b16 %v6470
    %v8056 = vunpack.c.h.b16 %v6470
    %v8057 = vunpack.c.l.b16 %v6471
    %v8058 = vunpack.c.h.b16 %v6471
    %v8059 = vunpack.c.l.b16 %v6472
    %v8060 = vunpack.c.h.b16 %v6472
    %v8061 = vunpack.c.l.b16 %v6473
    %v8062 = vunpack.c.h.b16 %v6473
    %v8063 = vunpack.c.l.b16 %v6474
    %v8064 = vunpack.c.h.b16 %v6474
    %v8065 = vunpack.c.l.b16 %v6475
    %v8066 = vunpack.c.h.b16 %v6475
    %v8067 = vunpack.c.l.b16 %v6476
    %v8068 = vunpack.c.h.b16 %v6476
    %v8069 = vunpack.c.l.b16 %v6477
    %v8070 = vunpack.c.h.b16 %v6477
    %v8071 = vunpack.c.l.b16 %v6478
    %v8072 = vunpack.c.h.b16 %v6478
    %v8073 = vunpack.c.l.b16 %v6479
    %v8074 = vunpack.c.h.b16 %v6479
    %v8075 = vunpack.c.l.b16 %v6480
    %v8076 = vunpack.c.h.b16 %v6480
    %v8077 = vunpack.c.l.b16 %v6481
    %v8078 = vunpack.c.h.b16 %v6481
    %v8079 = vunpack.c.l.b16 %v6482
    %v8080 = vunpack.c.h.b16 %v6482
    %v8081 = vunpack.c.l.b16 %v6483
    %v8082 = vunpack.c.h.b16 %v6483
    %v8083 = vunpack.c.l.b16 %v6484
    %v8084 = vunpack.c.h.b16 %v6484
    %v8085 = vunpack.c.l.b16 %v6485
    %v8086 = vunpack.c.h.b16 %v6485
    %v8087 = vunpack.c.l.b16 %v6486
    %v8088 = vunpack.c.h.b16 %v6486
    %v8089 = vunpack.c.l.b16 %v6487
    %v8090 = vunpack.c.h.b16 %v6487
    %v8091 = vunpack.c.l.b16 %v6488
    %v8092 = vunpack.c.h.b16 %v6488
    %v8093 = vunpack.c.l.b16 %v6489
    %v8094 = vunpack.c.h.b16 %v6489
    %v8095 = vunpack.c.l.b16 %v6490
    %v8096 = vunpack.c.h.b16 %v6490
    %v8097 = vunpack.c.l.b16 %v6491
    %v8098 = vunpack.c.h.b16 %v6491
    %v8099 = vunpack.c.l.b16 %v6492
    %v8100 = vunpack.c.h.b16 %v6492
    %v8101 = vunpack.c.l.b16 %v6493
    %v8102 = vunpack.c.h.b16 %v6493
    %v8103 = vunpack.c.l.b16 %v6494
    %v8104 = vunpack.c.h.b16 %v6494
    %v8105 = vunpack.c.l.b16 %v6495
    %v8106 = vunpack.c.h.b16 %v6495
    %v8107 = vunpack.c.l.b16 %v6496
    %v8108 = vunpack.c.h.b16 %v6496
    %v8109 = vunpack.c.l.b16 %v6497
    %v8110 = vunpack.c.h.b16 %v6497
    %v8111 = vunpack.c.l.b16 %v6498
    %v8112 = vunpack.c.h.b16 %v6498
    %v8113 = vunpack.c.l.b16 %v6499
    %v8114 = vunpack.c.h.b16 %v6499
    %v8115 = vunpack.c.l.b16 %v6500
    %v8116 = vunpack.c.h.b16 %v6500
    %v8117 = vunpack.c.l.b16 %v6501
    %v8118 = vunpack.c.h.b16 %v6501
    %v8119 = vunpack.c.l.b16 %v6502
    %v8120 = vunpack.c.h.b16 %v6502
    %v8121 = vunpack.c.l.b16 %v6503
    %v8122 = vunpack.c.h.b16 %v6503
    %v8123 = vunpack.c.l.b16 %v6504
    %v8124 = vunpack.c.h.b16 %v6504
    %v8125 = vunpack.c.l.b16 %v6505
    %v8126 = vunpack.c.h.b16 %v6505
    %v8127 = vunpack.c.l.b16 %v6506
    %v8128 = vunpack.c.h.b16 %v6506
    %v8129 = vunpack.c.l.b16 %v6507
    %v8130 = vunpack.c.h.b16 %v6507
    %v8131 = vunpack.c.l.b16 %v6508
    %v8132 = vunpack.c.h.b16 %v6508
    %v8133 = vunpack.c.l.b16 %v6509
    %v8134 = vunpack.c.h.b16 %v6509
    %v8135 = vunpack.c.l.b16 %v6510
    %v8136 = vunpack.c.h.b16 %v6510
    %v8137 = vunpack.c.l.b16 %v6511
    %v8138 = vunpack.c.h.b16 %v6511
    %v8139 = vunpack.c.l.b16 %v6512
    %v8140 = vunpack.c.h.b16 %v6512
    %v8141 = vunpack.c.l.b16 %v6513
    %v8142 = vunpack.c.h.b16 %v6513
    %v8143 = vunpack.c.l.b16 %v6514
    %v8144 = vunpack.c.h.b16 %v6514
    %v8145 = vunpack.c.l.b16 %v6515
    %v8146 = vunpack.c.h.b16 %v6515
    %v8147 = vunpack.c.l.b16 %v6516
    %v8148 = vunpack.c.h.b16 %v6516
    %v8149 = vunpack.c.l.b16 %v6517
    %v8150 = vunpack.c.h.b16 %v6517
    %v8151 = vunpack.c.l.b16 %v6518
    %v8152 = vunpack.c.h.b16 %v6518
    %v8153 = vunpack.c.l.b16 %v6519
    %v8154 = vunpack.c.h.b16 %v6519
    %v8155 = vunpack.c.l.b16 %v6520
    %v8156 = vunpack.c.h.b16 %v6520
    %v8157 = vunpack.c.l.b16 %v6521
    %v8158 = vunpack.c.h.b16 %v6521
    %v8159 = vunpack.c.l.b16 %v6522
    %v8160 = vunpack.c.h.b16 %v6522
    %v8161 = vunpack.c.l.b16 %v6523
    %v8162 = vunpack.c.h.b16 %v6523
    %v8163 = vunpack.c.l.b16 %v6524
    %v8164 = vunpack.c.h.b16 %v6524
    %v8165 = vunpack.c.l.b16 %v6525
    %v8166 = vunpack.c.h.b16 %v6525
    %v8167 = vunpack.c.l.b16 %v6526
    %v8168 = vunpack.c.h.b16 %v6526
    %v8169 = vunpack.c.l.b16 %v6527
    %v8170 = vunpack.c.h.b16 %v6527
    %v8171 = vunpack.c.l.b16 %v6528
    %v8172 = vunpack.c.h.b16 %v6528
    %v8173 = vunpack.c.l.b16 %v6529
    %v8174 = vunpack.c.h.b16 %v6529
    %v8175 = vunpack.c.l.b16 %v6530
    %v8176 = vunpack.c.h.b16 %v6530
    %v8177 = vunpack.c.l.b16 %v6531
    %v8178 = vunpack.c.h.b16 %v6531
    %v8179 = vunpack.c.l.b16 %v6532
    %v8180 = vunpack.c.h.b16 %v6532
    %v8181 = vunpack.c.l.b16 %v6533
    %v8182 = vunpack.c.h.b16 %v6533
    %v8183 = vunpack.c.l.b16 %v6534
    %v8184 = vunpack.c.h.b16 %v6534
    %v8185 = vunpack.c.l.b16 %v6535
    %v8186 = vunpack.c.h.b16 %v6535
    %v8187 = vunpack.c.l.b16 %v6536
    %v8188 = vunpack.c.h.b16 %v6536
    %v8189 = vunpack.c.l.b16 %v6537
    %v8190 = vunpack.c.h.b16 %v6537
    %v8191 = vunpack.c.l.b16 %v6538
    %v8192 = vunpack.c.h.b16 %v6538
    %v8193 = vunpack.c.l.b16 %v6539
    %v8194 = vunpack.c.h.b16 %v6539
    %v8195 = vunpack.c.l.b16 %v6540
    %v8196 = vunpack.c.h.b16 %v6540
    %v8197 = vunpack.c.l.b16 %v6541
    %v8198 = vunpack.c.h.b16 %v6541
    %v8199 = vunpack.c.l.b16 %v6542
    %v8200 = vunpack.c.h.b16 %v6542
    %v8201 = vunpack.c.l.b16 %v6543
    %v8202 = vunpack.c.h.b16 %v6543
    %v8203 = vunpack.c.l.b16 %v6544
    %v8204 = vunpack.c.h.b16 %v6544
    %v8205 = vunpack.c.l.b16 %v6545
    %v8206 = vunpack.c.h.b16 %v6545
    %v8207 = vunpack.c.l.b16 %v6546
    %v8208 = vunpack.c.h.b16 %v6546
    %v8209 = vunpack.c.l.b16 %v6547
    %v8210 = vunpack.c.h.b16 %v6547
    %v8211 = vunpack.c.l.b16 %v6548
    %v8212 = vunpack.c.h.b16 %v6548
    %v8213 = vunpack.c.l.b16 %v6549
    %v8214 = vunpack.c.h.b16 %v6549
    %v8215 = vunpack.c.l.b16 %v6550
    %v8216 = vunpack.c.h.b16 %v6550
    %v8217 = vunpack.c.l.b16 %v6551
    %v8218 = vunpack.c.h.b16 %v6551
    %v8219 = vunpack.c.l.b16 %v6552
    %v8220 = vunpack.c.h.b16 %v6552
    %v8221 = vunpack.c.l.b16 %v6553
    %v8222 = vunpack.c.h.b16 %v6553
    %v8223 = vunpack.c.l.b16 %v6554
    %v8224 = vunpack.c.h.b16 %v6554
    %v8225 = vunpack.c.l.b16 %v6555
    %v8226 = vunpack.c.h.b16 %v6555
    %v8227 = vunpack.c.l.b16 %v6556
    %v8228 = vunpack.c.h.b16 %v6556
    %v8229 = vunpack.c.l.b16 %v6557
    %v8230 = vunpack.c.h.b16 %v6557
    %v8231 = vunpack.c.l.b16 %v6558
    %v8232 = vunpack.c.h.b16 %v6558
    %v8233 = vunpack.c.l.b16 %v6559
    %v8234 = vunpack.c.h.b16 %v6559
    %v8235 = vunpack.c.l.b16 %v6560
    %v8236 = vunpack.c.h.b16 %v6560
    %v8237 = vunpack.c.l.b16 %v6561
    %v8238 = vunpack.c.h.b16 %v6561
    %v8239 = vunpack.c.l.b16 %v6562
    %v8240 = vunpack.c.h.b16 %v6562
    %v8241 = vunpack.c.l.b16 %v6563
    %v8242 = vunpack.c.h.b16 %v6563
    %v8243 = vunpack.c.l.b16 %v6564
    %v8244 = vunpack.c.h.b16 %v6564
    %v8245 = vunpack.c.l.b16 %v6565
    %v8246 = vunpack.c.h.b16 %v6565
    %v8247 = vunpack.c.l.b16 %v6566
    %v8248 = vunpack.c.h.b16 %v6566
    %v8249 = vunpack.c.l.b16 %v6567
    %v8250 = vunpack.c.h.b16 %v6567
    %v8251 = vunpack.c.l.b16 %v6568
    %v8252 = vunpack.c.h.b16 %v6568
    %v8253 = vunpack.c.l.b16 %v6569
    %v8254 = vunpack.c.h.b16 %v6569
    %v8255 = vunpack.c.l.b16 %v6570
    %v8256 = vunpack.c.h.b16 %v6570
    %v8257 = vunpack.c.l.b16 %v6571
    %v8258 = vunpack.c.h.b16 %v6571
    %v8259 = vunpack.c.l.b16 %v6572
    %v8260 = vunpack.c.h.b16 %v6572
    %v8261 = vunpack.c.l.b16 %v6573
    %v8262 = vunpack.c.h.b16 %v6573
    %v8263 = vunpack.c.l.b16 %v6574
    %v8264 = vunpack.c.h.b16 %v6574
    %v8265 = vunpack.c.l.b16 %v6575
    %v8266 = vunpack.c.h.b16 %v6575
    %v8267 = vunpack.c.l.b16 %v6576
    %v8268 = vunpack.c.h.b16 %v6576
    %v8269 = vunpack.c.l.b16 %v6577
    %v8270 = vunpack.c.h.b16 %v6577
    %v8271 = vunpack.c.l.b16 %v6578
    %v8272 = vunpack.c.h.b16 %v6578
    %v8273 = vunpack.c.l.b16 %v6579
    %v8274 = vunpack.c.h.b16 %v6579
    %v8275 = vunpack.c.l.b16 %v6580
    %v8276 = vunpack.c.h.b16 %v6580
    %v8277 = vunpack.c.l.b16 %v6581
    %v8278 = vunpack.c.h.b16 %v6581
    %v8279 = vunpack.c.l.b16 %v6582
    %v8280 = vunpack.c.h.b16 %v6582
    %v8281 = vunpack.c.l.b16 %v6583
    %v8282 = vunpack.c.h.b16 %v6583
    %v8283 = vunpack.c.l.b16 %v6584
    %v8284 = vunpack.c.h.b16 %v6584
    %v8285 = vunpack.c.l.b16 %v6585
    %v8286 = vunpack.c.h.b16 %v6585
    %v8287 = vunpack.c.l.b16 %v6586
    %v8288 = vunpack.c.h.b16 %v6586
    %v8289 = vunpack.c.l.b16 %v6587
    %v8290 = vunpack.c.h.b16 %v6587
    %v8291 = vunpack.c.l.b16 %v6588
    %v8292 = vunpack.c.h.b16 %v6588
    %v8293 = vunpack.c.l.b16 %v6589
    %v8294 = vunpack.c.h.b16 %v6589
    %v8295 = vunpack.c.l.b16 %v6590
    %v8296 = vunpack.c.h.b16 %v6590
    %v8297 = vunpack.c.l.b16 %v6591
    %v8298 = vunpack.c.h.b16 %v6591
    %v8299 = vunpack.c.l.b16 %v6592
    %v8300 = vunpack.c.h.b16 %v6592
    %v8301 = vunpack.c.l.b16 %v6593
    %v8302 = vunpack.c.h.b16 %v6593
    %v8303 = vunpack.c.l.b16 %v6594
    %v8304 = vunpack.c.h.b16 %v6594
    %v8305 = vunpack.c.l.b16 %v6595
    %v8306 = vunpack.c.h.b16 %v6595
    %v8307 = vunpack.c.l.b16 %v6596
    %v8308 = vunpack.c.h.b16 %v6596
    %v8309 = vunpack.c.l.b16 %v6597
    %v8310 = vunpack.c.h.b16 %v6597
    %v8311 = vunpack.c.l.b16 %v6598
    %v8312 = vunpack.c.h.b16 %v6598
    %v8313 = vunpack.c.l.b16 %v6599
    %v8314 = vunpack.c.h.b16 %v6599
    %v8315 = vunpack.c.l.b16 %v6600
    %v8316 = vunpack.c.h.b16 %v6600
    %v8317 = vunpack.c.l.b16 %v6601
    %v8318 = vunpack.c.h.b16 %v6601
    %v8319 = vunpack.c.l.b16 %v6602
    %v8320 = vunpack.c.h.b16 %v6602
    %v8321 = vunpack.c.l.b16 %v6603
    %v8322 = vunpack.c.h.b16 %v6603
    %v8323 = vunpack.c.l.b16 %v6604
    %v8324 = vunpack.c.h.b16 %v6604
    %v8325 = vunpack.c.l.b16 %v6605
    %v8326 = vunpack.c.h.b16 %v6605
    %v8327 = vunpack.c.l.b16 %v6606
    %v8328 = vunpack.c.h.b16 %v6606
    %v8329 = vunpack.c.l.b16 %v6607
    %v8330 = vunpack.c.h.b16 %v6607
    %v8331 = vunpack.c.l.b16 %v6608
    %v8332 = vunpack.c.h.b16 %v6608
    %v8333 = vunpack.c.l.b16 %v6609
    %v8334 = vunpack.c.h.b16 %v6609
    %v8335 = vunpack.c.l.b16 %v6610
    %v8336 = vunpack.c.h.b16 %v6610
    %v8337 = vunpack.c.l.b16 %v6611
    %v8338 = vunpack.c.h.b16 %v6611
    %v8339 = vunpack.c.l.b16 %v6612
    %v8340 = vunpack.c.h.b16 %v6612
    %v8341 = vunpack.c.l.b16 %v6613
    %v8342 = vunpack.c.h.b16 %v6613
    %v8343 = vunpack.c.l.b16 %v6614
    %v8344 = vunpack.c.h.b16 %v6614
    %v8345 = vunpack.c.l.b16 %v6615
    %v8346 = vunpack.c.h.b16 %v6615
    %v8347 = vunpack.c.l.b16 %v6616
    %v8348 = vunpack.c.h.b16 %v6616
    %v8349 = vunpack.c.l.b16 %v6617
    %v8350 = vunpack.c.h.b16 %v6617
    %v8351 = vunpack.c.l.b16 %v6618
    %v8352 = vunpack.c.h.b16 %v6618
    %v8353 = vunpack.c.l.b16 %v6619
    %v8354 = vunpack.c.h.b16 %v6619
    %v8355 = vunpack.c.l.b16 %v6620
    %v8356 = vunpack.c.h.b16 %v6620
    %v8357 = vunpack.c.l.b16 %v6621
    %v8358 = vunpack.c.h.b16 %v6621
    %v8359 = vunpack.c.l.b16 %v6622
    %v8360 = vunpack.c.h.b16 %v6622
    %v8361 = vunpack.c.l.b16 %v6623
    %v8362 = vunpack.c.h.b16 %v6623
    %v8363 = vunpack.c.l.b16 %v6624
    %v8364 = vunpack.c.h.b16 %v6624
    %v8365 = vunpack.c.l.b16 %v6625
    %v8366 = vunpack.c.h.b16 %v6625
    %v8367 = vunpack.c.l.b16 %v6626
    %v8368 = vunpack.c.h.b16 %v6626
    %v8369 = vunpack.c.l.b16 %v6627
    %v8370 = vunpack.c.h.b16 %v6627
    %v8371 = vunpack.c.l.b16 %v6628
    %v8372 = vunpack.c.h.b16 %v6628
    %v8373 = vunpack.c.l.b16 %v6629
    %v8374 = vunpack.c.h.b16 %v6629
    %v8375 = vunpack.c.l.b16 %v6630
    %v8376 = vunpack.c.h.b16 %v6630
    %v8377 = vunpack.c.l.b16 %v6631
    %v8378 = vunpack.c.h.b16 %v6631
    %v8379 = vunpack.c.l.b16 %v6632
    %v8380 = vunpack.c.h.b16 %v6632
    %v8381 = vunpack.c.l.b16 %v6633
    %v8382 = vunpack.c.h.b16 %v6633
    %v8383 = vunpack.c.l.b16 %v6634
    %v8384 = vunpack.c.h.b16 %v6634
    %v8385 = vunpack.c.l.b16 %v6635
    %v8386 = vunpack.c.h.b16 %v6635
    %v8387 = vunpack.c.l.b16 %v6636
    %v8388 = vunpack.c.h.b16 %v6636
    %v8389 = vunpack.c.l.b16 %v6637
    %v8390 = vunpack.c.h.b16 %v6637
    %v8391 = vunpack.c.l.b16 %v6638
    %v8392 = vunpack.c.h.b16 %v6638
    %v8393 = vunpack.c.l.b16 %v6639
    %v8394 = vunpack.c.h.b16 %v6639
    %v8395 = vunpack.c.l.b16 %v6640
    %v8396 = vunpack.c.h.b16 %v6640
    %v8397 = vunpack.c.l.b16 %v6641
    %v8398 = vunpack.c.h.b16 %v6641
    %v8399 = vunpack.c.l.b16 %v6642
    %v8400 = vunpack.c.h.b16 %v6642
    %v8401 = vunpack.c.l.b16 %v6643
    %v8402 = vunpack.c.h.b16 %v6643
    %v8403 = vunpack.c.l.b16 %v6644
    %v8404 = vunpack.c.h.b16 %v6644
    %v8405 = vunpack.c.l.b16 %v6645
    %v8406 = vunpack.c.h.b16 %v6645
    %v8407 = vunpack.c.l.b16 %v6646
    %v8408 = vunpack.c.h.b16 %v6646
    %v8409 = vunpack.c.l.b16 %v6647
    %v8410 = vunpack.c.h.b16 %v6647
    %v8411 = vunpack.c.l.b16 %v6648
    %v8412 = vunpack.c.h.b16 %v6648
    %v8413 = vunpack.c.l.b16 %v6649
    %v8414 = vunpack.c.h.b16 %v6649
    %v8415 = vunpack.c.l.b16 %v6650
    %v8416 = vunpack.c.h.b16 %v6650
    %v8417 = vunpack.c.l.b16 %v6651
    %v8418 = vunpack.c.h.b16 %v6651
    %v8419 = vunpack.c.l.b16 %v6652
    %v8420 = vunpack.c.h.b16 %v6652
    %v8421 = vunpack.c.l.b16 %v6653
    %v8422 = vunpack.c.h.b16 %v6653
    %v8423 = vunpack.c.l.b16 %v6654
    %v8424 = vunpack.c.h.b16 %v6654
    %v8425 = vunpack.c.l.b16 %v6655
    %v8426 = vunpack.c.h.b16 %v6655
    %v8427 = vunpack.c.l.b16 %v6656
    %v8428 = vunpack.c.h.b16 %v6656
    %v8429 = vunpack.c.l.b16 %v6657
    %v8430 = vunpack.c.h.b16 %v6657
    %v8431 = vunpack.c.l.b16 %v6658
    %v8432 = vunpack.c.h.b16 %v6658
    %v8433 = vunpack.c.l.b16 %v6659
    %v8434 = vunpack.c.h.b16 %v6659
    %v8435 = vunpack.c.l.b16 %v6660
    %v8436 = vunpack.c.h.b16 %v6660
    %v8437 = vunpack.c.l.b16 %v6661
    %v8438 = vunpack.c.h.b16 %v6661
    %v8439 = vunpack.c.l.b16 %v6662
    %v8440 = vunpack.c.h.b16 %v6662
    %v8441 = vunpack.c.l.b16 %v6663
    %v8442 = vunpack.c.h.b16 %v6663
    %v8443 = vunpack.c.l.b16 %v6664
    %v8444 = vunpack.c.h.b16 %v6664
    %v8445 = vunpack.c.l.b16 %v6665
    %v8446 = vunpack.c.h.b16 %v6665
    %v8447 = vunpack.c.l.b16 %v6666
    %v8448 = vunpack.c.h.b16 %v6666
    %v8449 = vunpack.c.l.b16 %v6667
    %v8450 = vunpack.c.h.b16 %v6667
    %v8451 = vunpack.c.l.b16 %v6668
    %v8452 = vunpack.c.h.b16 %v6668
    %v8453 = vunpack.c.l.b16 %v6669
    %v8454 = vunpack.c.h.b16 %v6669
    %v8455 = vunpack.c.l.b16 %v6670
    %v8456 = vunpack.c.h.b16 %v6670
    %v8457 = vunpack.c.l.b16 %v6671
    %v8458 = vunpack.c.h.b16 %v6671
    %v8459 = vunpack.c.l.b16 %v6672
    %v8460 = vunpack.c.h.b16 %v6672
    %v8461 = vunpack.c.l.b16 %v6673
    %v8462 = vunpack.c.h.b16 %v6673
    %v8463 = vunpack.c.l.b16 %v6674
    %v8464 = vunpack.c.h.b16 %v6674
    %v8465 = vunpack.c.l.b16 %v6675
    %v8466 = vunpack.c.h.b16 %v6675
    %v8467 = vunpack.c.l.b16 %v6676
    %v8468 = vunpack.c.h.b16 %v6676
    %v8469 = vunpack.c.l.b16 %v6677
    %v8470 = vunpack.c.h.b16 %v6677
    %v8471 = vunpack.c.l.b16 %v6678
    %v8472 = vunpack.c.h.b16 %v6678
    %v8473 = vunpack.c.l.b16 %v6679
    %v8474 = vunpack.c.h.b16 %v6679
    %v8475 = vunpack.c.l.b16 %v6680
    %v8476 = vunpack.c.h.b16 %v6680
    %v8477 = vunpack.c.l.b16 %v6681
    %v8478 = vunpack.c.h.b16 %v6681
    %v8479 = vunpack.c.l.b16 %v6682
    %v8480 = vunpack.c.h.b16 %v6682
    %v8481 = vunpack.c.l.b16 %v6683
    %v8482 = vunpack.c.h.b16 %v6683
    %v8483 = vunpack.c.l.b16 %v6684
    %v8484 = vunpack.c.h.b16 %v6684
    %v8485 = vunpack.c.l.b16 %v6685
    %v8486 = vunpack.c.h.b16 %v6685
    %v8487 = vunpack.c.l.b16 %v6686
    %v8488 = vunpack.c.h.b16 %v6686
    %v8489 = vunpack.c.l.b16 %v6687
    %v8490 = vunpack.c.h.b16 %v6687
    %v8491 = vunpack.c.l.b16 %v6688
    %v8492 = vunpack.c.h.b16 %v6688
    %v8493 = vunpack.c.l.b16 %v6689
    %v8494 = vunpack.c.h.b16 %v6689
    %v8495 = vunpack.c.l.b16 %v6690
    %v8496 = vunpack.c.h.b16 %v6690
    %v8497 = vunpack.c.l.b16 %v6691
    %v8498 = vunpack.c.h.b16 %v6691
    %v8499 = vunpack.c.l.b16 %v6692
    %v8500 = vunpack.c.h.b16 %v6692
    %v8501 = vunpack.c.l.b16 %v6693
    %v8502 = vunpack.c.h.b16 %v6693
    %v8503 = vunpack.c.l.b16 %v6694
    %v8504 = vunpack.c.h.b16 %v6694
    %v8505 = vunpack.c.l.b16 %v6695
    %v8506 = vunpack.c.h.b16 %v6695
    %v8507 = vunpack.c.l.b16 %v6696
    %v8508 = vunpack.c.h.b16 %v6696
    %v8509 = vunpack.c.l.b16 %v6697
    %v8510 = vunpack.c.h.b16 %v6697
    %v8511 = vunpack.c.l.b16 %v6698
    %v8512 = vunpack.c.h.b16 %v6698
    %v8513 = vunpack.c.l.b16 %v6699
    %v8514 = vunpack.c.h.b16 %v6699
    %v8515 = vunpack.c.l.b16 %v6700
    %v8516 = vunpack.c.h.b16 %v6700
    %v8517 = vunpack.c.l.b16 %v6701
    %v8518 = vunpack.c.h.b16 %v6701
    %v8519 = vunpack.c.l.b16 %v6702
    %v8520 = vunpack.c.h.b16 %v6702
    %v8521 = vunpack.c.l.b16 %v6703
    %v8522 = vunpack.c.h.b16 %v6703
    %v8523 = vunpack.c.l.b16 %v6704
    %v8524 = vunpack.c.h.b16 %v6704
    %v8525 = vunpack.c.l.b16 %v6705
    %v8526 = vunpack.c.h.b16 %v6705
    %v8527 = vunpack.c.l.b16 %v6706
    %v8528 = vunpack.c.h.b16 %v6706
    %v8529 = vunpack.c.l.b16 %v6707
    %v8530 = vunpack.c.h.b16 %v6707
    %v8531 = vunpack.c.l.b16 %v6708
    %v8532 = vunpack.c.h.b16 %v6708
    %v8533 = vunpack.c.l.b16 %v6709
    %v8534 = vunpack.c.h.b16 %v6709
    %v8535 = vunpack.c.l.b16 %v6710
    %v8536 = vunpack.c.h.b16 %v6710
    %v8537 = vunpack.c.l.b16 %v6711
    %v8538 = vunpack.c.h.b16 %v6711
    %v8539 = vunpack.c.l.b16 %v6712
    %v8540 = vunpack.c.h.b16 %v6712
    %v8541 = vunpack.c.l.b16 %v6713
    %v8542 = vunpack.c.h.b16 %v6713
    %v8543 = vunpack.c.l.b16 %v6714
    %v8544 = vunpack.c.h.b16 %v6714
    %v8545 = vunpack.c.l.b16 %v6715
    %v8546 = vunpack.c.h.b16 %v6715
    %v8547 = vunpack.c.l.b16 %v6716
    %v8548 = vunpack.c.h.b16 %v6716
    %v8549 = vunpack.c.l.b16 %v6717
    %v8550 = vunpack.c.h.b16 %v6717
    %v8551 = vunpack.c.l.b16 %v6718
    %v8552 = vunpack.c.h.b16 %v6718
    %v8553 = vunpack.c.l.b16 %v6719
    %v8554 = vunpack.c.h.b16 %v6719
    %v8555 = vunpack.c.l.b16 %v6720
    %v8556 = vunpack.c.h.b16 %v6720
    %v8557 = vunpack.c.l.b16 %v6721
    %v8558 = vunpack.c.h.b16 %v6721
    %v8559 = vunpack.c.l.b16 %v6722
    %v8560 = vunpack.c.h.b16 %v6722
    %v8561 = vunpack.c.l.b16 %v6723
    %v8562 = vunpack.c.h.b16 %v6723
    %v8563 = vunpack.c.l.b16 %v6724
    %v8564 = vunpack.c.h.b16 %v6724
    %v8565 = vunpack.c.l.b16 %v6725
    %v8566 = vunpack.c.h.b16 %v6725
    %v8567 = vunpack.c.l.b16 %v6726
    %v8568 = vunpack.c.h.b16 %v6726
    %v8569 = vunpack.c.l.b16 %v6727
    %v8570 = vunpack.c.h.b16 %v6727
    %v8571 = vunpack.c.l.b16 %v6728
    %v8572 = vunpack.c.h.b16 %v6728
    %v8573 = vunpack.c.l.b16 %v6729
    %v8574 = vunpack.c.h.b16 %v6729
    %v8575 = vunpack.c.l.b16 %v6730
    %v8576 = vunpack.c.h.b16 %v6730
    %v8577 = vunpack.c.l.b16 %v6731
    %v8578 = vunpack.c.h.b16 %v6731
    %v8579 = vunpack.c.l.b16 %v6732
    %v8580 = vunpack.c.h.b16 %v6732
    %v8581 = vunpack.c.l.b16 %v6733
    %v8582 = vunpack.c.h.b16 %v6733
    %v8583 = vunpack.c.l.b16 %v6734
    %v8584 = vunpack.c.h.b16 %v6734
    %v8585 = vunpack.c.l.b16 %v6735
    %v8586 = vunpack.c.h.b16 %v6735
    %v8587 = vunpack.c.l.b16 %v6736
    %v8588 = vunpack.c.h.b16 %v6736
    %v8589 = vunpack.c.l.b16 %v6737
    %v8590 = vunpack.c.h.b16 %v6737
    %v8591 = vunpack.c.l.b16 %v6738
    %v8592 = vunpack.c.h.b16 %v6738
    %v8593 = vunpack.c.l.b16 %v6739
    %v8594 = vunpack.c.h.b16 %v6739
    %v8595 = vunpack.c.l.b16 %v6740
    %v8596 = vunpack.c.h.b16 %v6740
    %v8597 = vunpack.c.l.b16 %v6741
    %v8598 = vunpack.c.h.b16 %v6741
    %v8599 = vunpack.c.l.b16 %v6742
    %v8600 = vunpack.c.h.b16 %v6742
    %v8601 = vunpack.c.l.b16 %v6743
    %v8602 = vunpack.c.h.b16 %v6743
    %v8603 = vunpack.c.l.b16 %v6744
    %v8604 = vunpack.c.h.b16 %v6744
    %v8605 = vunpack.c.l.b16 %v6745
    %v8606 = vunpack.c.h.b16 %v6745
    %v8607 = vunpack.c.l.b16 %v6746
    %v8608 = vunpack.c.h.b16 %v6746
    %v8609 = vunpack.c.l.b16 %v6747
    %v8610 = vunpack.c.h.b16 %v6747
    %v8611 = vunpack.c.l.b16 %v6748
    %v8612 = vunpack.c.h.b16 %v6748
    %v8613 = vunpack.c.l.b16 %v6749
    %v8614 = vunpack.c.h.b16 %v6749
    %v8615 = vunpack.c.l.b16 %v6750
    %v8616 = vunpack.c.h.b16 %v6750
    %v8617 = vunpack.c.l.b16 %v6751
    %v8618 = vunpack.c.h.b16 %v6751
    %v8619 = vunpack.c.l.b16 %v6752
    %v8620 = vunpack.c.h.b16 %v6752
    %v8621 = vunpack.c.l.b16 %v6753
    %v8622 = vunpack.c.h.b16 %v6753
    %v8623 = vunpack.c.l.b16 %v6754
    %v8624 = vunpack.c.h.b16 %v6754
    %v8625 = vunpack.c.l.b16 %v6755
    %v8626 = vunpack.c.h.b16 %v6755
    %v8627 = vunpack.c.l.b16 %v6756
    %v8628 = vunpack.c.h.b16 %v6756
    %v8629 = vunpack.c.l.b16 %v6757
    %v8630 = vunpack.c.h.b16 %v6757
    %v8631 = vunpack.c.l.b16 %v6758
    %v8632 = vunpack.c.h.b16 %v6758
    %v8633 = vunpack.c.l.b16 %v6759
    %v8634 = vunpack.c.h.b16 %v6759
    %v8635 = vunpack.c.l.b16 %v6760
    %v8636 = vunpack.c.h.b16 %v6760
    %v8637 = vunpack.c.l.b16 %v6761
    %v8638 = vunpack.c.h.b16 %v6761
    %v8639 = vunpack.c.l.b16 %v6762
    %v8640 = vunpack.c.h.b16 %v6762
    %v8641 = vunpack.c.l.b16 %v6763
    %v8642 = vunpack.c.h.b16 %v6763
    %v8643 = vunpack.c.l.b16 %v6764
    %v8644 = vunpack.c.h.b16 %v6764
    %v8645 = vunpack.c.l.b16 %v6765
    %v8646 = vunpack.c.h.b16 %v6765
    %v8647 = vunpack.c.l.b16 %v6766
    %v8648 = vunpack.c.h.b16 %v6766
    %v8649 = vunpack.c.l.b16 %v6767
    %v8650 = vunpack.c.h.b16 %v6767
    %v8651 = vunpack.c.l.b16 %v6768
    %v8652 = vunpack.c.h.b16 %v6768
    %v8653 = vunpack.c.l.b16 %v6769
    %v8654 = vunpack.c.h.b16 %v6769
    %v8655 = vunpack.c.l.b16 %v6770
    %v8656 = vunpack.c.h.b16 %v6770
    %v8657 = vunpack.c.l.b16 %v6771
    %v8658 = vunpack.c.h.b16 %v6771
    %v8659 = vunpack.c.l.b16 %v6772
    %v8660 = vunpack.c.h.b16 %v6772
    %v8661 = vunpack.c.l.b16 %v6773
    %v8662 = vunpack.c.h.b16 %v6773
    %v8663 = vunpack.c.l.b16 %v6774
    %v8664 = vunpack.c.h.b16 %v6774
    %v8665 = vunpack.c.l.b16 %v6775
    %v8666 = vunpack.c.h.b16 %v6775
    %v8667 = vunpack.c.l.b16 %v6776
    %v8668 = vunpack.c.h.b16 %v6776
    %v8669 = vunpack.c.l.b16 %v6777
    %v8670 = vunpack.c.h.b16 %v6777
    %v8671 = vunpack.c.l.b16 %v6778
    %v8672 = vunpack.c.h.b16 %v6778
    %v8673 = vunpack.c.l.b16 %v6779
    %v8674 = vunpack.c.h.b16 %v6779
    %v8675 = vunpack.c.l.b16 %v6780
    %v8676 = vunpack.c.h.b16 %v6780
    %v8677 = vunpack.c.l.b16 %v6781
    %v8678 = vunpack.c.h.b16 %v6781
    %v8679 = vunpack.c.l.b16 %v6782
    %v8680 = vunpack.c.h.b16 %v6782
    %v8681 = vunpack.c.l.b16 %v6783
    %v8682 = vunpack.c.h.b16 %v6783
    %v8683 = vunpack.c.l.b16 %v6784
    %v8684 = vunpack.c.h.b16 %v6784
    %v8685 = vunpack.c.l.b16 %v6785
    %v8686 = vunpack.c.h.b16 %v6785
    %v8687 = vunpack.c.l.b16 %v6786
    %v8688 = vunpack.c.h.b16 %v6786
    %v8689 = vunpack.c.l.b16 %v6787
    %v8690 = vunpack.c.h.b16 %v6787
    %v8691 = vunpack.c.l.b16 %v6788
    %v8692 = vunpack.c.h.b16 %v6788
    %v8693 = vunpack.c.l.b16 %v6789
    %v8694 = vunpack.c.h.b16 %v6789
    %v8695 = vunpack.c.l.b16 %v6790
    %v8696 = vunpack.c.h.b16 %v6790
    %v8697 = vunpack.c.l.b16 %v6791
    %v8698 = vunpack.c.h.b16 %v6791
    %v8699 = vunpack.c.l.b16 %v6792
    %v8700 = vunpack.c.h.b16 %v6792
    %v8701 = vunpack.c.l.b16 %v6793
    %v8702 = vunpack.c.h.b16 %v6793
    %v8703 = vunpack.c.l.b16 %v6794
    %v8704 = vunpack.c.h.b16 %v6794
    %v8705 = vunpack.c.l.b16 %v6795
    %v8706 = vunpack.c.h.b16 %v6795
    %v8707 = vunpack.c.l.b16 %v6796
    %v8708 = vunpack.c.h.b16 %v6796
    %v8709 = vunpack.c.l.b16 %v6797
    %v8710 = vunpack.c.h.b16 %v6797
    %v8711 = vunpack.c.l.b16 %v6798
    %v8712 = vunpack.c.h.b16 %v6798
    %v8713 = vunpack.c.l.b16 %v6799
    %v8714 = vunpack.c.h.b16 %v6799
    %v8715 = vunpack.c.l.b16 %v6800
    %v8716 = vunpack.c.h.b16 %v6800
    %v8717 = vunpack.c.l.b16 %v6801
    %v8718 = vunpack.c.h.b16 %v6801
    %v8719 = vunpack.c.l.b16 %v6802
    %v8720 = vunpack.c.h.b16 %v6802
    %v8721 = vunpack.c.l.b16 %v6803
    %v8722 = vunpack.c.h.b16 %v6803
    %v8723 = vunpack.c.l.b16 %v6804
    %v8724 = vunpack.c.h.b16 %v6804
    %v8725 = vunpack.c.l.b16 %v6805
    %v8726 = vunpack.c.h.b16 %v6805
    %v8727 = vunpack.c.l.b16 %v6806
    %v8728 = vunpack.c.h.b16 %v6806
    %v8729 = vunpack.c.l.b16 %v6807
    %v8730 = vunpack.c.h.b16 %v6807
    %v8731 = vunpack.c.l.b16 %v6808
    %v8732 = vunpack.c.h.b16 %v6808
    %v8733 = vunpack.c.l.b16 %v6809
    %v8734 = vunpack.c.h.b16 %v6809
    %v8735 = vunpack.c.l.b16 %v6810
    %v8736 = vunpack.c.h.b16 %v6810
    %v8737 = vunpack.c.l.b16 %v6811
    %v8738 = vunpack.c.h.b16 %v6811
    %v8739 = vunpack.c.l.b16 %v6812
    %v8740 = vunpack.c.h.b16 %v6812
    %v8741 = vunpack.c.l.b16 %v6813
    %v8742 = vunpack.c.h.b16 %v6813
    %v8743 = vunpack.c.l.b16 %v6814
    %v8744 = vunpack.c.h.b16 %v6814
    %v8745 = vunpack.c.l.b16 %v6815
    %v8746 = vunpack.c.h.b16 %v6815
    %v8747 = vunpack.c.l.b16 %v6816
    %v8748 = vunpack.c.h.b16 %v6816
    %v8749 = vunpack.c.l.b16 %v6817
    %v8750 = vunpack.c.h.b16 %v6817
    %v8751 = vunpack.c.l.b16 %v6818
    %v8752 = vunpack.c.h.b16 %v6818
    %v8753 = vunpack.c.l.b16 %v6819
    %v8754 = vunpack.c.h.b16 %v6819
    %v8755 = vunpack.c.l.b16 %v6820
    %v8756 = vunpack.c.h.b16 %v6820
    %v8757 = vunpack.c.l.b16 %v6821
    %v8758 = vunpack.c.h.b16 %v6821
    %v8759 = vunpack.c.l.b16 %v6822
    %v8760 = vunpack.c.h.b16 %v6822
    %v8761 = vunpack.c.l.b16 %v6823
    %v8762 = vunpack.c.h.b16 %v6823
    %v8763 = vunpack.c.l.b16 %v6824
    %v8764 = vunpack.c.h.b16 %v6824
    %v8765 = vunpack.c.l.b16 %v6825
    %v8766 = vunpack.c.h.b16 %v6825
    %v8767 = vunpack.c.l.b16 %v6826
    %v8768 = vunpack.c.h.b16 %v6826
    %v8769 = vunpack.c.l.b16 %v6827
    %v8770 = vunpack.c.h.b16 %v6827
    %v8771 = vunpack.c.l.b16 %v6828
    %v8772 = vunpack.c.h.b16 %v6828
    %v8773 = vunpack.c.l.b16 %v6829
    %v8774 = vunpack.c.h.b16 %v6829
    %v8775 = vunpack.c.l.b16 %v6830
    %v8776 = vunpack.c.h.b16 %v6830
    %v8777 = vunpack.c.l.b16 %v6831
    %v8778 = vunpack.c.h.b16 %v6831
    %v8779 = vunpack.c.l.b16 %v6832
    %v8780 = vunpack.c.h.b16 %v6832
    %v8781 = vunpack.c.l.b16 %v6833
    %v8782 = vunpack.c.h.b16 %v6833
    %v8783 = vunpack.c.l.b16 %v6834
    %v8784 = vunpack.c.h.b16 %v6834
    %v8785 = vunpack.c.l.b16 %v6835
    %v8786 = vunpack.c.h.b16 %v6835
    %v8787 = vunpack.c.l.b16 %v6836
    %v8788 = vunpack.c.h.b16 %v6836
    %v8789 = vunpack.c.l.b16 %v6837
    %v8790 = vunpack.c.h.b16 %v6837
    %v8791 = vunpack.c.l.b16 %v6838
    %v8792 = vunpack.c.h.b16 %v6838
    %v8793 = vunpack.c.l.b16 %v6839
    %v8794 = vunpack.c.h.b16 %v6839
    %v8795 = vunpack.c.l.b16 %v6840
    %v8796 = vunpack.c.h.b16 %v6840
    %v8797 = vunpack.c.l.b16 %v6841
    %v8798 = vunpack.c.h.b16 %v6841
    %v8799 = vunpack.c.l.b16 %v6842
    %v8800 = vunpack.c.h.b16 %v6842
    %v8801 = vunpack.c.l.b16 %v6843
    %v8802 = vunpack.c.h.b16 %v6843
    %v8803 = vunpack.c.l.b16 %v6844
    %v8804 = vunpack.c.h.b16 %v6844
    %v8805 = vunpack.c.l.b16 %v6845
    %v8806 = vunpack.c.h.b16 %v6845
    %v8807 = vunpack.c.l.b16 %v6846
    %v8808 = vunpack.c.h.b16 %v6846
    %v8809 = vunpack.c.l.b16 %v6847
    %v8810 = vunpack.c.h.b16 %v6847
    %v8811 = vunpack.c.l.b16 %v6848
    %v8812 = vunpack.c.h.b16 %v6848
    %v8813 = vunpack.c.l.b16 %v6849
    %v8814 = vunpack.c.h.b16 %v6849
    %v8815 = vunpack.c.l.b16 %v6850
    %v8816 = vunpack.c.h.b16 %v6850
    %v8817 = vunpack.c.l.b16 %v6851
    %v8818 = vunpack.c.h.b16 %v6851
    %v8819 = vunpack.c.l.b16 %v6852
    %v8820 = vunpack.c.h.b16 %v6852
    %v8821 = vunpack.c.l.b16 %v6853
    %v8822 = vunpack.c.h.b16 %v6853
    %v8823 = vunpack.c.l.b16 %v6854
    %v8824 = vunpack.c.h.b16 %v6854
    %v8825 = vunpack.c.l.b16 %v6855
    %v8826 = vunpack.c.h.b16 %v6855
    %v8827 = vunpack.c.l.b16 %v6856
    %v8828 = vunpack.c.h.b16 %v6856
    %v8829 = vunpack.c.l.b16 %v6857
    %v8830 = vunpack.c.h.b16 %v6857
    %v8831 = vunpack.c.l.b16 %v6858
    %v8832 = vunpack.c.h.b16 %v6858
    %v8833 = vunpack.c.l.b16 %v6859
    %v8834 = vunpack.c.h.b16 %v6859
    %v8835 = vunpack.c.l.b16 %v6860
    %v8836 = vunpack.c.h.b16 %v6860
    %v8837 = vunpack.c.l.b16 %v6861
    %v8838 = vunpack.c.h.b16 %v6861
    %v8839 = vunpack.c.l.b16 %v6862
    %v8840 = vunpack.c.h.b16 %v6862
    %v8841 = vunpack.c.l.b16 %v6863
    %v8842 = vunpack.c.h.b16 %v6863
    %v8843 = vunpack.c.l.b16 %v6864
    %v8844 = vunpack.c.h.b16 %v6864
    %v8845 = vunpack.c.l.b16 %v6865
    %v8846 = vunpack.c.h.b16 %v6865
    %v8847 = vunpack.c.l.b16 %v6866
    %v8848 = vunpack.c.h.b16 %v6866
    %v8849 = vunpack.c.l.b16 %v6867
    %v8850 = vunpack.c.h.b16 %v6867
    %v8851 = vunpack.c.l.b16 %v6868
    %v8852 = vunpack.c.h.b16 %v6868
    %v8853 = vunpack.c.l.b16 %v6869
    %v8854 = vunpack.c.h.b16 %v6869
    %v8855 = vunpack.c.l.b16 %v6870
    %v8856 = vunpack.c.h.b16 %v6870
    %v8857 = vunpack.c.l.b16 %v6871
    %v8858 = vunpack.c.h.b16 %v6871
    %v8859 = vunpack.c.l.b16 %v6872
    %v8860 = vunpack.c.h.b16 %v6872
    %v8861 = vunpack.c.l.b16 %v6873
    %v8862 = vunpack.c.h.b16 %v6873
    %v8863 = vunpack.c.l.b16 %v6874
    %v8864 = vunpack.c.h.b16 %v6874
    %v8865 = vunpack.c.l.b16 %v6875
    %v8866 = vunpack.c.h.b16 %v6875
    %v8867 = vunpack.c.l.b16 %v6876
    %v8868 = vunpack.c.h.b16 %v6876
    %v8869 = vunpack.c.l.b16 %v6877
    %v8870 = vunpack.c.h.b16 %v6877
    %v8871 = vunpack.c.l.b16 %v6878
    %v8872 = vunpack.c.h.b16 %v6878
    %v8873 = vunpack.c.l.b16 %v6879
    %v8874 = vunpack.c.h.b16 %v6879
    %v8875 = vunpack.c.l.b16 %v6880
    %v8876 = vunpack.c.h.b16 %v6880
    %v8877 = vunpack.c.l.b16 %v6881
    %v8878 = vunpack.c.h.b16 %v6881
    %v8879 = vunpack.c.l.b16 %v6882
    %v8880 = vunpack.c.h.b16 %v6882
    %v8881 = vunpack.c.l.b16 %v6883
    %v8882 = vunpack.c.h.b16 %v6883
    %v8883 = vunpack.c.l.b16 %v6884
    %v8884 = vunpack.c.h.b16 %v6884
    %v8885 = vunpack.c.l.b16 %v6885
    %v8886 = vunpack.c.h.b16 %v6885
    %v8887 = vunpack.c.l.b16 %v6886
    %v8888 = vunpack.c.h.b16 %v6886
    %v8889 = vunpack.c.l.b16 %v6887
    %v8890 = vunpack.c.h.b16 %v6887
    %v8891 = vunpack.c.l.b16 %v6888
    %v8892 = vunpack.c.h.b16 %v6888
    %v8893 = vunpack.c.l.b16 %v6889
    %v8894 = vunpack.c.h.b16 %v6889
    %v8895 = vunpack.c.l.b16 %v6890
    %v8896 = vunpack.c.h.b16 %v6890
    %v8897 = vunpack.c.l.b16 %v6891
    %v8898 = vunpack.c.h.b16 %v6891
    %v8899 = vunpack.c.l.b16 %v6892
    %v8900 = vunpack.c.h.b16 %v6892
    %v8901 = vunpack.c.l.b16 %v6893
    %v8902 = vunpack.c.h.b16 %v6893
    %v8903 = vunpack.c.l.b16 %v6894
    %v8904 = vunpack.c.h.b16 %v6894
    %v8905 = vunpack.c.l.b16 %v6895
    %v8906 = vunpack.c.h.b16 %v6895
    %v8907 = vunpack.c.l.b16 %v6896
    %v8908 = vunpack.c.h.b16 %v6896
    %v8909 = vunpack.c.l.b16 %v6897
    %v8910 = vunpack.c.h.b16 %v6897
    %v8911 = vunpack.c.l.b16 %v6898
    %v8912 = vunpack.c.h.b16 %v6898
    %v8913 = vunpack.c.l.b16 %v6899
    %v8914 = vunpack.c.h.b16 %v6899
    %v8915 = vunpack.c.l.b16 %v6900
    %v8916 = vunpack.c.h.b16 %v6900
    %v8917 = vunpack.c.l.b16 %v6901
    %v8918 = vunpack.c.h.b16 %v6901
    %v8919 = vunpack.c.l.b16 %v6902
    %v8920 = vunpack.c.h.b16 %v6902
    %v8921 = vunpack.c.l.b16 %v6903
    %v8922 = vunpack.c.h.b16 %v6903
    %v8923 = vunpack.c.l.b16 %v6904
    %v8924 = vunpack.c.h.b16 %v6904
    %v8925 = vunpack.c.l.b16 %v6905
    %v8926 = vunpack.c.h.b16 %v6905
    %v8927 = vunpack.c.l.b16 %v6906
    %v8928 = vunpack.c.h.b16 %v6906
    %v8929 = vunpack.c.l.b16 %v6907
    %v8930 = vunpack.c.h.b16 %v6907
    %v8931 = vunpack.c.l.b16 %v6908
    %v8932 = vunpack.c.h.b16 %v6908
    %v8933 = vunpack.c.l.b16 %v6909
    %v8934 = vunpack.c.h.b16 %v6909
    %v8935 = vunpack.c.l.b16 %v6910
    %v8936 = vunpack.c.h.b16 %v6910
    %v8937 = vunpack.c.l.b16 %v6911
    %v8938 = vunpack.c.h.b16 %v6911
    %v8939 = vunpack.c.l.b16 %v6912
    %v8940 = vunpack.c.h.b16 %v6912
    %v8941 = vunpack.c.l.b16 %v6913
    %v8942 = vunpack.c.h.b16 %v6913
    %v8943 = vunpack.c.l.b16 %v6914
    %v8944 = vunpack.c.h.b16 %v6914
    %v8945 = vunpack.c.l.b16 %v6915
    %v8946 = vunpack.c.h.b16 %v6915
    %v8947 = vunpack.c.l.b16 %v6916
    %v8948 = vunpack.c.h.b16 %v6916
    %v8949 = vunpack.c.l.b16 %v6917
    %v8950 = vunpack.c.h.b16 %v6917
    %v8951 = vunpack.c.l.b16 %v6918
    %v8952 = vunpack.c.h.b16 %v6918
    %v8953 = vunpack.c.l.b16 %v6919
    %v8954 = vunpack.c.h.b16 %v6919
    %v8955 = vunpack.c.l.b16 %v6920
    %v8956 = vunpack.c.h.b16 %v6920
    %v8957 = vunpack.c.l.b16 %v6921
    %v8958 = vunpack.c.h.b16 %v6921
    %v8959 = vunpack.c.l.b16 %v6922
    %v8960 = vunpack.c.h.b16 %v6922
    %v8961 = vunpack.c.l.b16 %v6923
    %v8962 = vunpack.c.h.b16 %v6923
    %v8963 = vunpack.c.l.b16 %v6924
    %v8964 = vunpack.c.h.b16 %v6924
    %v8965 = vunpack.c.l.b16 %v6925
    %v8966 = vunpack.c.h.b16 %v6925
    %v8967 = vunpack.c.l.b16 %v6926
    %v8968 = vunpack.c.h.b16 %v6926
    %v8969 = vunpack.c.l.b16 %v6927
    %v8970 = vunpack.c.h.b16 %v6927
    %v8971 = vunpack.c.l.b16 %v6928
    %v8972 = vunpack.c.h.b16 %v6928
    %v8973 = vunpack.c.l.b16 %v6929
    %v8974 = vunpack.c.h.b16 %v6929
    %v8975 = vunpack.c.l.b16 %v6930
    %v8976 = vunpack.c.h.b16 %v6930
    %v8977 = vunpack.c.l.b16 %v6931
    %v8978 = vunpack.c.h.b16 %v6931
    %v8979 = vunpack.c.l.b16 %v6932
    %v8980 = vunpack.c.h.b16 %v6932
    %v8981 = vunpack.c.l.b16 %v6933
    %v8982 = vunpack.c.h.b16 %v6933
    %v8983 = vunpack.c.l.b16 %v6934
    %v8984 = vunpack.c.h.b16 %v6934
    %v8985 = vunpack.c.l.b16 %v6935
    %v8986 = vunpack.c.h.b16 %v6935
    %v8987 = vunpack.c.l.b16 %v6936
    %v8988 = vunpack.c.h.b16 %v6936
    %v8989 = vunpack.c.l.b16 %v6937
    %v8990 = vunpack.c.h.b16 %v6937
    %v8991 = vunpack.c.l.b16 %v6938
    %v8992 = vunpack.c.h.b16 %v6938
    %v8993 = vunpack.c.l.b16 %v6939
    %v8994 = vunpack.c.h.b16 %v6939
    %v8995 = vunpack.c.l.b16 %v6940
    %v8996 = vunpack.c.h.b16 %v6940
    %v8997 = vunpack.c.l.b16 %v6941
    %v8998 = vunpack.c.h.b16 %v6941
    %v8999 = vunpack.c.l.b16 %v6942
    %v9000 = vunpack.c.h.b16 %v6942
    %v9001 = vunpack.c.l.b16 %v6943
    %v9002 = vunpack.c.h.b16 %v6943
    %v9003 = vunpack.c.l.b16 %v6944
    %v9004 = vunpack.c.h.b16 %v6944
    %v9005 = vunpack.c.l.b16 %v6945
    %v9006 = vunpack.c.h.b16 %v6945
    %v9007 = vunpack.c.l.b16 %v6946
    %v9008 = vunpack.c.h.b16 %v6946
    %v9009 = vunpack.c.l.b16 %v6947
    %v9010 = vunpack.c.h.b16 %v6947
    %v9011 = vunpack.c.l.b16 %v6948
    %v9012 = vunpack.c.h.b16 %v6948
    %v9013 = vunpack.c.l.b16 %v6949
    %v9014 = vunpack.c.h.b16 %v6949
    %v9015 = vunpack.c.l.b16 %v6950
    %v9016 = vunpack.c.h.b16 %v6950
    %v9017 = vunpack.c.l.b16 %v6951
    %v9018 = vunpack.c.h.b16 %v6951
    %v9019 = vunpack.c.l.b16 %v6952
    %v9020 = vunpack.c.h.b16 %v6952
    %v9021 = vunpack.c.l.b16 %v6953
    %v9022 = vunpack.c.h.b16 %v6953
    %v9023 = vunpack.c.l.b16 %v6954
    %v9024 = vunpack.c.h.b16 %v6954
    %v9025 = vunpack.c.l.b16 %v6955
    %v9026 = vunpack.c.h.b16 %v6955
    %v9027 = vunpack.c.l.b16 %v6956
    %v9028 = vunpack.c.h.b16 %v6956
    %v9029 = vunpack.c.l.b16 %v6957
    %v9030 = vunpack.c.h.b16 %v6957
    %v9031 = vunpack.c.l.b16 %v6958
    %v9032 = vunpack.c.h.b16 %v6958
    %v9033 = vunpack.c.l.b16 %v6959
    %v9034 = vunpack.c.h.b16 %v6959
    %v9035 = vunpack.c.l.b16 %v6960
    %v9036 = vunpack.c.h.b16 %v6960
    %v9037 = vunpack.c.l.b16 %v6961
    %v9038 = vunpack.c.h.b16 %v6961
    %v9039 = vunpack.c.l.b16 %v6962
    %v9040 = vunpack.c.h.b16 %v6962
    %v9041 = vunpack.c.l.b16 %v6963
    %v9042 = vunpack.c.h.b16 %v6963
    %v9043 = vunpack.c.l.b16 %v6964
    %v9044 = vunpack.c.h.b16 %v6964
    %v9045 = vunpack.c.l.b16 %v6965
    %v9046 = vunpack.c.h.b16 %v6965
    %v9047 = vunpack.c.l.b16 %v6966
    %v9048 = vunpack.c.h.b16 %v6966
    %v9049 = vunpack.c.l.b16 %v6967
    %v9050 = vunpack.c.h.b16 %v6967
    %v9051 = vunpack.c.l.b16 %v6968
    %v9052 = vunpack.c.h.b16 %v6968
    %v9053 = vunpack.c.l.b16 %v6969
    %v9054 = vunpack.c.h.b16 %v6969
    %v9055 = vunpack.c.l.b16 %v6970
    %v9056 = vunpack.c.h.b16 %v6970
    %v9057 = vunpack.c.l.b16 %v6971
    %v9058 = vunpack.c.h.b16 %v6971
    %v9059 = vunpack.c.l.b16 %v6972
    %v9060 = vunpack.c.h.b16 %v6972
    %v9061 = vunpack.c.l.b16 %v6973
    %v9062 = vunpack.c.h.b16 %v6973
    %v9063 = vunpack.c.l.b16 %v6974
    %v9064 = vunpack.c.h.b16 %v6974
    %v9065 = vunpack.c.l.b16 %v6975
    %v9066 = vunpack.c.h.b16 %v6975
    %v9067 = vunpack.c.l.b16 %v6976
    %v9068 = vunpack.c.h.b16 %v6976
    %v9069 = vunpack.c.l.b16 %v6977
    %v9070 = vunpack.c.h.b16 %v6977
    %v9071 = vunpack.c.l.b16 %v6978
    %v9072 = vunpack.c.h.b16 %v6978
    %v9073 = vunpack.c.l.b16 %v6979
    %v9074 = vunpack.c.h.b16 %v6979
    %v9075 = vunpack.c.l.b16 %v6980
    %v9076 = vunpack.c.h.b16 %v6980
    %v9077 = vunpack.c.l.b16 %v6981
    %v9078 = vunpack.c.h.b16 %v6981
    %v9079 = vunpack.c.l.b16 %v6982
    %v9080 = vunpack.c.h.b16 %v6982
    %v9081 = vunpack.c.l.b16 %v6983
    %v9082 = vunpack.c.h.b16 %v6983
    %v9083 = vunpack.c.l.b16 %v6984
    %v9084 = vunpack.c.h.b16 %v6984
    %v9085 = vunpack.c.l.b16 %v6985
    %v9086 = vunpack.c.h.b16 %v6985
    %v9087 = vunpack.c.l.b16 %v6986
    %v9088 = vunpack.c.h.b16 %v6986
    %v9089 = vunpack.c.l.b16 %v6987
    %v9090 = vunpack.c.h.b16 %v6987
    %v9091 = vunpack.c.l.b16 %v6988
    %v9092 = vunpack.c.h.b16 %v6988
    %v9093 = vunpack.c.l.b16 %v6989
    %v9094 = vunpack.c.h.b16 %v6989
    %v9095 = vunpack.c.l.b16 %v6990
    %v9096 = vunpack.c.h.b16 %v6990
    %v9097 = vunpack.c.l.b16 %v6991
    %v9098 = vunpack.c.h.b16 %v6991
    %v9099 = vunpack.c.l.b16 %v6992
    %v9100 = vunpack.c.h.b16 %v6992
    %v9101 = vunpack.c.l.b16 %v6993
    %v9102 = vunpack.c.h.b16 %v6993
    %v9103 = vunpack.c.l.b16 %v6994
    %v9104 = vunpack.c.h.b16 %v6994
    %v9105 = vunpack.c.l.b16 %v6995
    %v9106 = vunpack.c.h.b16 %v6995
    %v9107 = vunpack.c.l.b16 %v6996
    %v9108 = vunpack.c.h.b16 %v6996
    %v9109 = vunpack.c.l.b16 %v6997
    %v9110 = vunpack.c.h.b16 %v6997
    %v9111 = vunpack.c.l.b16 %v6998
    %v9112 = vunpack.c.h.b16 %v6998
    %v9113 = vunpack.c.l.b16 %v6999
    %v9114 = vunpack.c.h.b16 %v6999
    %v9115 = vunpack.c.l.b16 %v7000
    %v9116 = vunpack.c.h.b16 %v7000
    %v9117 = vunpack.c.l.b16 %v7001
    %v9118 = vunpack.c.h.b16 %v7001
    %v9119 = vunpack.c.l.b16 %v7002
    %v9120 = vunpack.c.h.b16 %v7002
    %v9121 = vunpack.c.l.b16 %v7003
    %v9122 = vunpack.c.h.b16 %v7003
    %v9123 = vunpack.c.l.b16 %v7004
    %v9124 = vunpack.c.h.b16 %v7004
    %v9125 = vunpack.c.l.b16 %v7005
    %v9126 = vunpack.c.h.b16 %v7005
    %v9127 = vunpack.c.l.b16 %v7006
    %v9128 = vunpack.c.h.b16 %v7006
    %v9129 = vunpack.c.l.b16 %v7007
    %v9130 = vunpack.c.h.b16 %v7007
    %v9131 = vunpack.c.l.b16 %v7008
    %v9132 = vunpack.c.h.b16 %v7008
    %v9133 = vunpack.c.l.b16 %v7009
    %v9134 = vunpack.c.h.b16 %v7009
    %v9135 = vunpack.c.l.b16 %v7010
    %v9136 = vunpack.c.h.b16 %v7010
    %v9137 = vunpack.c.l.b16 %v7011
    %v9138 = vunpack.c.h.b16 %v7011
    %v9139 = vunpack.c.l.b16 %v7012
    %v9140 = vunpack.c.h.b16 %v7012
    %v9141 = vunpack.c.l.b16 %v7013
    %v9142 = vunpack.c.h.b16 %v7013
    %v9143 = vunpack.c.l.b16 %v7014
    %v9144 = vunpack.c.h.b16 %v7014
    %v9145 = vunpack.c.l.b16 %v7015
    %v9146 = vunpack.c.h.b16 %v7015
    %v9147 = vunpack.c.l.b16 %v7016
    %v9148 = vunpack.c.h.b16 %v7016
    %v9149 = vunpack.c.l.b16 %v7017
    %v9150 = vunpack.c.h.b16 %v7017
    %v9151 = vunpack.c.l.b16 %v7018
    %v9152 = vunpack.c.h.b16 %v7018
    %v9153 = vunpack.c.l.b16 %v7019
    %v9154 = vunpack.c.h.b16 %v7019
    %v9155 = vunpack.c.l.b16 %v7020
    %v9156 = vunpack.c.h.b16 %v7020
    %v9157 = vunpack.c.l.b16 %v7021
    %v9158 = vunpack.c.h.b16 %v7021
    %v9159 = vunpack.c.l.b16 %v7022
    %v9160 = vunpack.c.h.b16 %v7022
    %v9161 = vunpack.c.l.b16 %v7023
    %v9162 = vunpack.c.h.b16 %v7023
    %v9163 = vunpack.c.l.b16 %v7024
    %v9164 = vunpack.c.h.b16 %v7024
    %v9165 = vunpack.c.l.b16 %v7025
    %v9166 = vunpack.c.h.b16 %v7025
    %v9167 = vunpack.c.l.b16 %v7026
    %v9168 = vunpack.c.h.b16 %v7026
    %v9169 = vunpack.c.l.b16 %v7027
    %v9170 = vunpack.c.h.b16 %v7027
    %v9171 = vunpack.c.l.b16 %v7028
    %v9172 = vunpack.c.h.b16 %v7028
    %v9173 = vunpack.c.l.b16 %v7029
    %v9174 = vunpack.c.h.b16 %v7029
    %v9175 = vunpack.c.l.b16 %v7030
    %v9176 = vunpack.c.h.b16 %v7030
    %v9177 = vunpack.c.l.b16 %v7031
    %v9178 = vunpack.c.h.b16 %v7031
    %v9179 = vunpack.c.l.b16 %v7032
    %v9180 = vunpack.c.h.b16 %v7032
    %v9181 = vunpack.c.l.b16 %v7033
    %v9182 = vunpack.c.h.b16 %v7033
    %v9183 = vunpack.c.l.b16 %v7034
    %v9184 = vunpack.c.h.b16 %v7034
    %v9185 = vunpack.c.l.b16 %v7035
    %v9186 = vunpack.c.h.b16 %v7035
    %v9187 = vunpack.c.l.b16 %v7036
    %v9188 = vunpack.c.h.b16 %v7036
    %v9189 = vunpack.c.l.b16 %v7037
    %v9190 = vunpack.c.h.b16 %v7037
    %v9191 = vunpack.c.l.b16 %v7038
    %v9192 = vunpack.c.h.b16 %v7038
    %v9193 = vunpack.c.l.b16 %v7039
    %v9194 = vunpack.c.h.b16 %v7039
    %v9195 = vunpack.c.l.b16 %v7040
    %v9196 = vunpack.c.h.b16 %v7040
    %v9197 = vunpack.c.l.b16 %v7041
    %v9198 = vunpack.c.h.b16 %v7041
    %v9199 = vunpack.c.l.b16 %v7042
    %v9200 = vunpack.c.h.b16 %v7042
    %v9201 = vunpack.c.l.b16 %v7043
    %v9202 = vunpack.c.h.b16 %v7043
    %v9203 = vunpack.c.l.b16 %v7044
    %v9204 = vunpack.c.h.b16 %v7044
    %v9205 = vunpack.c.l.b16 %v7045
    %v9206 = vunpack.c.h.b16 %v7045
    %v9207 = vunpack.c.l.b16 %v7046
    %v9208 = vunpack.c.h.b16 %v7046
    %v9209 = vunpack.c.l.b16 %v7047
    %v9210 = vunpack.c.h.b16 %v7047
    %v9211 = vunpack.c.l.b16 %v7048
    %v9212 = vunpack.c.h.b16 %v7048
    %v9213 = vunpack.c.l.b16 %v7049
    %v9214 = vunpack.c.h.b16 %v7049
    %v9215 = vunpack.c.l.b16 %v7050
    %v9216 = vunpack.c.h.b16 %v7050
    %v9217 = vunpack.c.l.b16 %v7051
    %v9218 = vunpack.c.h.b16 %v7051
    %v9219 = vunpack.c.l.b16 %v7052
    %v9220 = vunpack.c.h.b16 %v7052
    %v9221 = vunpack.c.l.b16 %v7053
    %v9222 = vunpack.c.h.b16 %v7053
    %v9223 = vunpack.c.l.b16 %v7054
    %v9224 = vunpack.c.h.b16 %v7054
    %v9225 = vunpack.c.l.b16 %v7055
    %v9226 = vunpack.c.h.b16 %v7055
    %v9227 = vunpack.c.l.b16 %v7056
    %v9228 = vunpack.c.h.b16 %v7056
    %v9229 = vunpack.c.l.b16 %v7057
    %v9230 = vunpack.c.h.b16 %v7057
    %v9231 = vunpack.c.l.b16 %v7058
    %v9232 = vunpack.c.h.b16 %v7058
    %v9233 = vunpack.c.l.b16 %v7059
    %v9234 = vunpack.c.h.b16 %v7059
    %v9235 = vunpack.c.l.b16 %v7060
    %v9236 = vunpack.c.h.b16 %v7060
    %v9237 = vunpack.c.l.b16 %v7061
    %v9238 = vunpack.c.h.b16 %v7061
    %v9239 = vunpack.c.l.b16 %v7062
    %v9240 = vunpack.c.h.b16 %v7062
    %v9241 = vunpack.c.l.b16 %v7063
    %v9242 = vunpack.c.h.b16 %v7063
    %v9243 = vunpack.c.l.b16 %v7064
    %v9244 = vunpack.c.h.b16 %v7064
    %v9245 = vunpack.c.l.b16 %v7065
    %v9246 = vunpack.c.h.b16 %v7065
    %v9247 = vunpack.c.l.b16 %v7066
    %v9248 = vunpack.c.h.b16 %v7066
    %v9249 = vunpack.c.l.b16 %v7067
    %v9250 = vunpack.c.h.b16 %v7067
    %v9251 = vunpack.c.l.b16 %v7068
    %v9252 = vunpack.c.h.b16 %v7068
    %v9253 = vunpack.c.l.b16 %v7069
    %v9254 = vunpack.c.h.b16 %v7069
    %v9255 = vunpack.c.l.b16 %v7070
    %v9256 = vunpack.c.h.b16 %v7070
    %v9257 = vunpack.c.l.b16 %v7071
    %v9258 = vunpack.c.h.b16 %v7071
    %v9259 = vunpack.c.l.b16 %v7072
    %v9260 = vunpack.c.h.b16 %v7072
    %v9261 = vunpack.c.l.b16 %v7073
    %v9262 = vunpack.c.h.b16 %v7073
    %v9263 = vunpack.c.l.b16 %v7074
    %v9264 = vunpack.c.h.b16 %v7074
    %v9265 = vunpack.c.l.b16 %v7075
    %v9266 = vunpack.c.h.b16 %v7075
    %v9267 = vunpack.c.l.b16 %v7076
    %v9268 = vunpack.c.h.b16 %v7076
    %v9269 = vunpack.c.l.b16 %v7077
    %v9270 = vunpack.c.h.b16 %v7077
    %v9271 = vunpack.c.l.b16 %v7078
    %v9272 = vunpack.c.h.b16 %v7078
    %v9273 = vunpack.c.l.b16 %v7079
    %v9274 = vunpack.c.h.b16 %v7079
    %v9275 = vunpack.c.l.b16 %v7080
    %v9276 = vunpack.c.h.b16 %v7080
    %v9277 = vunpack.c.l.b16 %v7081
    %v9278 = vunpack.c.h.b16 %v7081
    %v9279 = vunpack.c.l.b16 %v7082
    %v9280 = vunpack.c.h.b16 %v7082
    %v9281 = vunpack.c.l.b16 %v7083
    %v9282 = vunpack.c.h.b16 %v7083
    %v9283 = vunpack.c.l.b16 %v7084
    %v9284 = vunpack.c.h.b16 %v7084
    %v9285 = vunpack.c.l.b16 %v7085
    %v9286 = vunpack.c.h.b16 %v7085
    %v9287 = vunpack.c.l.b16 %v7086
    %v9288 = vunpack.c.h.b16 %v7086
    %v9289 = vunpack.c.l.b16 %v7087
    %v9290 = vunpack.c.h.b16 %v7087
    %v9291 = vunpack.c.l.b16 %v7088
    %v9292 = vunpack.c.h.b16 %v7088
    %v9293 = vunpack.c.l.b16 %v7089
    %v9294 = vunpack.c.h.b16 %v7089
    %v9295 = vunpack.c.l.b16 %v7090
    %v9296 = vunpack.c.h.b16 %v7090
    %v9297 = vunpack.c.l.b16 %v7091
    %v9298 = vunpack.c.h.b16 %v7091
    %v9299 = vunpack.c.l.b16 %v7092
    %v9300 = vunpack.c.h.b16 %v7092
    %v9301 = vunpack.c.l.b16 %v7093
    %v9302 = vunpack.c.h.b16 %v7093
    %v9303 = vunpack.c.l.b16 %v7094
    %v9304 = vunpack.c.h.b16 %v7094
    %v9305 = vunpack.c.l.b16 %v7095
    %v9306 = vunpack.c.h.b16 %v7095
    %v9307 = vunpack.c.l.b16 %v7096
    %v9308 = vunpack.c.h.b16 %v7096
    %v9309 = vunpack.c.l.b16 %v7097
    %v9310 = vunpack.c.h.b16 %v7097
    %v9311 = vunpack.c.l.b16 %v7098
    %v9312 = vunpack.c.h.b16 %v7098
    %v9313 = vunpack.c.l.b16 %v7099
    %v9314 = vunpack.c.h.b16 %v7099
    %v9315 = vunpack.c.l.b16 %v7100
    %v9316 = vunpack.c.h.b16 %v7100
    %v9317 = vunpack.c.l.b16 %v7101
    %v9318 = vunpack.c.h.b16 %v7101
    %v9319 = vunpack.c.l.b16 %v7102
    %v9320 = vunpack.c.h.b16 %v7102
    %v9321 = vunpack.c.l.b16 %v7103
    %v9322 = vunpack.c.h.b16 %v7103
    %v9323 = vunpack.c.l.b16 %v7104
    %v9324 = vunpack.c.h.b16 %v7104
    %v9325 = vunpack.c.l.b16 %v7105
    %v9326 = vunpack.c.h.b16 %v7105
    %v9327 = vunpack.c.l.b16 %v7106
    %v9328 = vunpack.c.h.b16 %v7106
    %v9329 = vunpack.c.l.b16 %v7107
    %v9330 = vunpack.c.h.b16 %v7107
    %v9331 = vunpack.c.l.b16 %v7108
    %v9332 = vunpack.c.h.b16 %v7108
    %v9333 = vunpack.c.l.b16 %v7109
    %v9334 = vunpack.c.h.b16 %v7109
    %v9335 = vunpack.c.l.b16 %v7110
    %v9336 = vunpack.c.h.b16 %v7110
    %v9337 = vunpack.c.l.b16 %v7111
    %v9338 = vunpack.c.h.b16 %v7111
    %v9339 = vunpack.c.l.b16 %v7112
    %v9340 = vunpack.c.h.b16 %v7112
    %v9341 = vunpack.c.l.b16 %v7113
    %v9342 = vunpack.c.h.b16 %v7113
    %v9343 = vunpack.c.l.b16 %v7114
    %v9344 = vunpack.c.h.b16 %v7114
    %v9345 = vunpack.c.l.b16 %v7115
    %v9346 = vunpack.c.h.b16 %v7115
    %v9347 = vunpack.c.l.b16 %v7116
    %v9348 = vunpack.c.h.b16 %v7116
    %v9349 = vunpack.c.l.b16 %v7117
    %v9350 = vunpack.c.h.b16 %v7117
    %v9351 = vunpack.c.l.b16 %v7118
    %v9352 = vunpack.c.h.b16 %v7118
    %v9353 = vunpack.c.l.b16 %v7119
    %v9354 = vunpack.c.h.b16 %v7119
    %v9355 = vunpack.c.l.b16 %v7120
    %v9356 = vunpack.c.h.b16 %v7120
    %v9357 = vunpack.c.l.b16 %v7121
    %v9358 = vunpack.c.h.b16 %v7121
    %v9359 = vunpack.c.l.b16 %v7122
    %v9360 = vunpack.c.h.b16 %v7122
    %v9361 = vunpack.c.l.b16 %v7123
    %v9362 = vunpack.c.h.b16 %v7123
    %v9363 = vunpack.c.l.b16 %v7124
    %v9364 = vunpack.c.h.b16 %v7124
    %v9365 = vunpack.c.l.b16 %v7125
    %v9366 = vunpack.c.h.b16 %v7125
    %v9367 = vunpack.c.l.b16 %v7126
    %v9368 = vunpack.c.h.b16 %v7126
    %v9369 = vunpack.c.l.b16 %v7127
    %v9370 = vunpack.c.h.b16 %v7127
    %v9371 = vunpack.c.l.b16 %v7128
    %v9372 = vunpack.c.h.b16 %v7128
    %v9373 = vunpack.c.l.b16 %v7129
    %v9374 = vunpack.c.h.b16 %v7129
    %v9375 = vunpack.c.l.b16 %v7130
    %v9376 = vunpack.c.h.b16 %v7130
    %v9377 = vunpack.c.l.b16 %v7131
    %v9378 = vunpack.c.h.b16 %v7131
    %v9379 = vunpack.c.l.b16 %v7132
    %v9380 = vunpack.c.h.b16 %v7132
    %v9381 = vunpack.c.l.b16 %v7133
    %v9382 = vunpack.c.h.b16 %v7133
    %v9383 = vunpack.c.l.b16 %v7134
    %v9384 = vunpack.c.h.b16 %v7134
    %v9385 = vunpack.c.l.b16 %v7135
    %v9386 = vunpack.c.h.b16 %v7135
    %v9387 = vunpack.c.l.b16 %v7136
    %v9388 = vunpack.c.h.b16 %v7136
    %v9389 = vunpack.c.l.b16 %v7137
    %v9390 = vunpack.c.h.b16 %v7137
    %v9391 = vunpack.c.l.b16 %v7138
    %v9392 = vunpack.c.h.b16 %v7138
    %v9393 = vunpack.c.l.b16 %v7139
    %v9394 = vunpack.c.h.b16 %v7139
    %v9395 = vunpack.c.l.b16 %v7140
    %v9396 = vunpack.c.h.b16 %v7140
    %v9397 = vunpack.c.l.b16 %v7141
    %v9398 = vunpack.c.h.b16 %v7141
    %v9399 = vunpack.c.l.b16 %v7142
    %v9400 = vunpack.c.h.b16 %v7142
    %v9401 = vunpack.c.l.b16 %v7143
    %v9402 = vunpack.c.h.b16 %v7143
    %v9403 = vunpack.c.l.b16 %v7144
    %v9404 = vunpack.c.h.b16 %v7144
    %v9405 = vunpack.c.l.b16 %v7145
    %v9406 = vunpack.c.h.b16 %v7145
    %v9407 = vunpack.c.l.b16 %v7146
    %v9408 = vunpack.c.h.b16 %v7146
    %v9409 = vunpack.c.l.b16 %v7147
    %v9410 = vunpack.c.h.b16 %v7147
    %v9411 = vunpack.c.l.b16 %v7148
    %v9412 = vunpack.c.h.b16 %v7148
    %v9413 = vunpack.c.l.b16 %v7149
    %v9414 = vunpack.c.h.b16 %v7149
    %v9415 = vunpack.c.l.b16 %v7150
    %v9416 = vunpack.c.h.b16 %v7150
    %v9417 = vunpack.c.l.b16 %v7151
    %v9418 = vunpack.c.h.b16 %v7151
    %v9419 = vunpack.c.l.b16 %v7152
    %v9420 = vunpack.c.h.b16 %v7152
    %v9421 = vunpack.c.l.b16 %v7153
    %v9422 = vunpack.c.h.b16 %v7153
    %v9423 = vunpack.c.l.b16 %v7154
    %v9424 = vunpack.c.h.b16 %v7154
    %v9425 = vunpack.c.l.b16 %v7155
    %v9426 = vunpack.c.h.b16 %v7155
    %v9427 = vunpack.c.l.b16 %v7156
    %v9428 = vunpack.c.h.b16 %v7156
    %v9429 = vunpack.c.l.b16 %v7157
    %v9430 = vunpack.c.h.b16 %v7157
    %v9431 = vunpack.c.l.b16 %v7158
    %v9432 = vunpack.c.h.b16 %v7158
    %v9433 = vunpack.c.l.b16 %v7159
    %v9434 = vunpack.c.h.b16 %v7159
    %v9435 = vunpack.c.l.b16 %v7160
    %v9436 = vunpack.c.h.b16 %v7160
    %v9437 = vunpack.c.l.b16 %v7161
    %v9438 = vunpack.c.h.b16 %v7161
    %v9439 = vunpack.c.l.b16 %v7162
    %v9440 = vunpack.c.h.b16 %v7162
    %v9441 = vunpack.c.l.b16 %v7163
    %v9442 = vunpack.c.h.b16 %v7163
    %v9443 = vunpack.c.l.b16 %v7164
    %v9444 = vunpack.c.h.b16 %v7164
    %v9445 = vunpack.c.l.b16 %v7165
    %v9446 = vunpack.c.h.b16 %v7165
    %v9447 = vunpack.c.l.b16 %v7166
    %v9448 = vunpack.c.h.b16 %v7166
    %v9449 = vunpack.c.l.b16 %v7167
    %v9450 = vunpack.c.h.b16 %v7167
    %v9451 = vunpack.c.l.b16 %v7168
    %v9452 = vunpack.c.h.b16 %v7168
    %v9453 = vunpack.c.l.b16 %v7169
    %v9454 = vunpack.c.h.b16 %v7169
    %v9455 = vunpack.c.l.b16 %v7170
    %v9456 = vunpack.c.h.b16 %v7170
    %v9457 = vunpack.c.l.b16 %v7171
    %v9458 = vunpack.c.h.b16 %v7171
    %v9459 = vunpack.c.l.b16 %v7172
    %v9460 = vunpack.c.h.b16 %v7172
    %v9461 = vunpack.c.l.b16 %v7173
    %v9462 = vunpack.c.h.b16 %v7173
    %v9463 = vunpack.c.l.b16 %v7174
    %v9464 = vunpack.c.h.b16 %v7174
    %v9465 = vunpack.c.l.b16 %v7175
    %v9466 = vunpack.c.h.b16 %v7175
    %v9467 = vunpack.c.l.b16 %v7176
    %v9468 = vunpack.c.h.b16 %v7176
    %v9469 = vunpack.c.l.b16 %v7177
    %v9470 = vunpack.c.h.b16 %v7177
    %v9471 = vunpack.c.l.b16 %v7178
    %v9472 = vunpack.c.h.b16 %v7178
    %v9473 = vunpack.c.l.b16 %v7179
    %v9474 = vunpack.c.h.b16 %v7179
    %v9475 = vunpack.c.l.b16 %v7180
    %v9476 = vunpack.c.h.b16 %v7180
    %v9477 = vunpack.c.l.b16 %v7181
    %v9478 = vunpack.c.h.b16 %v7181
    %v9479 = vunpack.c.l.b16 %v7182
    %v9480 = vunpack.c.h.b16 %v7182
    %v9481 = vunpack.c.l.b16 %v7183
    %v9482 = vunpack.c.h.b16 %v7183
    %v9483 = vunpack.c.l.b16 %v7184
    %v9484 = vunpack.c.h.b16 %v7184
    %v9485 = vunpack.c.l.b16 %v7185
    %v9486 = vunpack.c.h.b16 %v7185
    %v9487 = vunpack.c.l.b16 %v7186
    %v9488 = vunpack.c.h.b16 %v7186
    %v9489 = vunpack.c.l.b16 %v7187
    %v9490 = vunpack.c.h.b16 %v7187
    %v9491 = vunpack.c.l.b16 %v7188
    %v9492 = vunpack.c.h.b16 %v7188
    %v9493 = vunpack.c.l.b16 %v7189
    %v9494 = vunpack.c.h.b16 %v7189
    %v9495 = vunpack.c.l.b16 %v7190
    %v9496 = vunpack.c.h.b16 %v7190
    %v9497 = vunpack.c.l.b16 %v7191
    %v9498 = vunpack.c.h.b16 %v7191
    %v9499 = vunpack.c.l.b16 %v7192
    %v9500 = vunpack.c.h.b16 %v7192
    %v9501 = vunpack.c.l.b16 %v7193
    %v9502 = vunpack.c.h.b16 %v7193
    %v9503 = vunpack.c.l.b16 %v7194
    %v9504 = vunpack.c.h.b16 %v7194
    %v9505 = vunpack.c.l.b16 %v7195
    %v9506 = vunpack.c.h.b16 %v7195
    %v9507 = vunpack.c.l.b16 %v7196
    %v9508 = vunpack.c.h.b16 %v7196
    %v9509 = vunpack.c.l.b16 %v7197
    %v9510 = vunpack.c.h.b16 %v7197
    %v9511 = vunpack.c.l.b16 %v7198
    %v9512 = vunpack.c.h.b16 %v7198
    %v9513 = vunpack.c.l.b16 %v7199
    %v9514 = vunpack.c.h.b16 %v7199
    %v9515 = vunpack.c.l.b16 %v7200
    %v9516 = vunpack.c.h.b16 %v7200
    %v9517 = vunpack.c.l.b16 %v7201
    %v9518 = vunpack.c.h.b16 %v7201
    %v9519 = vunpack.c.l.b16 %v7202
    %v9520 = vunpack.c.h.b16 %v7202
    %v9521 = vunpack.c.l.b16 %v7203
    %v9522 = vunpack.c.h.b16 %v7203
    %v9523 = vunpack.c.l.b16 %v7204
    %v9524 = vunpack.c.h.b16 %v7204
    %v9525 = vunpack.c.l.b16 %v7205
    %v9526 = vunpack.c.h.b16 %v7205
    %v9527 = vunpack.c.l.b16 %v7206
    %v9528 = vunpack.c.h.b16 %v7206
    %v9529 = vunpack.c.l.b16 %v7207
    %v9530 = vunpack.c.h.b16 %v7207
    %v9531 = vunpack.c.l.b16 %v7208
    %v9532 = vunpack.c.h.b16 %v7208
    %v9533 = vunpack.c.l.b16 %v7209
    %v9534 = vunpack.c.h.b16 %v7209
    %v9535 = vunpack.c.l.b16 %v7210
    %v9536 = vunpack.c.h.b16 %v7210
    %v9537 = vunpack.c.l.b16 %v7211
    %v9538 = vunpack.c.h.b16 %v7211
    %v9539 = vunpack.c.l.b16 %v7212
    %v9540 = vunpack.c.h.b16 %v7212
    %v9541 = vunpack.c.l.b16 %v7213
    %v9542 = vunpack.c.h.b16 %v7213
    %v9543 = vunpack.c.l.b16 %v7214
    %v9544 = vunpack.c.h.b16 %v7214
    %v9545 = vunpack.c.l.b16 %v7215
    %v9546 = vunpack.c.h.b16 %v7215
    %v9547 = vunpack.c.l.b16 %v7216
    %v9548 = vunpack.c.h.b16 %v7216
    %v9549 = vunpack.c.l.b16 %v7217
    %v9550 = vunpack.c.h.b16 %v7217
    %v9551 = vunpack.c.l.b16 %v7218
    %v9552 = vunpack.c.h.b16 %v7218
    %v9553 = vunpack.c.l.b16 %v7219
    %v9554 = vunpack.c.h.b16 %v7219
    %v9555 = vunpack.c.l.b16 %v7220
    %v9556 = vunpack.c.h.b16 %v7220
    %v9557 = vpack.c.b16 %v8027, %v8021
    %v9558 = vpack.c.b16 %v8028, %v8022
    %v9559 = vpack.c.b16 %v8029, %v8023
    %v9560 = vpack.c.b16 %v8030, %v8024
    %v9561 = vpack.c.b16 %v8031, %v8025
    %v9562 = vpack.c.b16 %v8032, %v8026
    %v9563 = vpack.c.b16 %v8039, %v8033
    %v9564 = vpack.c.b16 %v8040, %v8034
    %v9565 = vpack.c.b16 %v8041, %v8035
    %v9566 = vpack.c.b16 %v8042, %v8036
    %v9567 = vpack.c.b16 %v8043, %v8037
    %v9568 = vpack.c.b16 %v8044, %v8038
    %v9569 = vpack.c.b16 %v8051, %v8045
    %v9570 = vpack.c.b16 %v8052, %v8046
    %v9571 = vpack.c.b16 %v8053, %v8047
    %v9572 = vpack.c.b16 %v8054, %v8048
    %v9573 = vpack.c.b16 %v8055, %v8049
    %v9574 = vpack.c.b16 %v8056, %v8050
    %v9575 = vpack.c.b16 %v8063, %v8057
    %v9576 = vpack.c.b16 %v8064, %v8058
    %v9577 = vpack.c.b16 %v8065, %v8059
    %v9578 = vpack.c.b16 %v8066, %v8060
    %v9579 = vpack.c.b16 %v8067, %v8061
    %v9580 = vpack.c.b16 %v8068, %v8062
    %v9581 = vpack.c.b16 %v8075, %v8069
    %v9582 = vpack.c.b16 %v8076, %v8070
    %v9583 = vpack.c.b16 %v8077, %v8071
    %v9584 = vpack.c.b16 %v8078, %v8072
    %v9585 = vpack.c.b16 %v8079, %v8073
    %v9586 = vpack.c.b16 %v8080, %v8074
    %v9587 = vpack.c.b16 %v8087, %v8081
    %v9588 = vpack.c.b16 %v8088, %v8082
    %v9589 = vpack.c.b16 %v8089, %v8083
    %v9590 = vpack.c.b16 %v8090, %v8084
    %v9591 = vpack.c.b16 %v8091, %v8085
    %v9592 = vpack.c.b16 %v8092, %v8086
    %v9593 = vpack.c.b16 %v8099, %v8093
    %v9594 = vpack.c.b16 %v8100, %v8094
    %v9595 = vpack.c.b16 %v8101, %v8095
    %v9596 = vpack.c.b16 %v8102, %v8096
    %v9597 = vpack.c.b16 %v8103, %v8097
    %v9598 = vpack.c.b16 %v8104, %v8098
    %v9599 = vpack.c.b16 %v8111, %v8105
    %v9600 = vpack.c.b16 %v8112, %v8106
    %v9601 = vpack.c.b16 %v8113, %v8107
    %v9602 = vpack.c.b16 %v8114, %v8108
    %v9603 = vpack.c.b16 %v8115, %v8109
    %v9604 = vpack.c.b16 %v8116, %v8110
    %v9605 = vpack.c.b16 %v8123, %v8117
    %v9606 = vpack.c.b16 %v8124, %v8118
    %v9607 = vpack.c.b16 %v8125, %v8119
    %v9608 = vpack.c.b16 %v8126, %v8120
    %v9609 = vpack.c.b16 %v8127, %v8121
    %v9610 = vpack.c.b16 %v8128, %v8122
    %v9611 = vpack.c.b16 %v8135, %v8129
    %v9612 = vpack.c.b16 %v8136, %v8130
    %v9613 = vpack.c.b16 %v8137, %v8131
    %v9614 = vpack.c.b16 %v8138, %v8132
    %v9615 = vpack.c.b16 %v8139, %v8133
    %v9616 = vpack.c.b16 %v8140, %v8134
    %v9617 = vpack.c.b16 %v8147, %v8141
    %v9618 = vpack.c.b16 %v8148, %v8142
    %v9619 = vpack.c.b16 %v8149, %v8143
    %v9620 = vpack.c.b16 %v8150, %v8144
    %v9621 = vpack.c.b16 %v8151, %v8145
    %v9622 = vpack.c.b16 %v8152, %v8146
    %v9623 = vpack.c.b16 %v8159, %v8153
    %v9624 = vpack.c.b16 %v8160, %v8154
    %v9625 = vpack.c.b16 %v8161, %v8155
    %v9626 = vpack.c.b16 %v8162, %v8156
    %v9627 = vpack.c.b16 %v8163, %v8157
    %v9628 = vpack.c.b16 %v8164, %v8158
    %v9629 = vpack.c.b16 %v8171, %v8165
    %v9630 = vpack.c.b16 %v8172, %v8166
    %v9631 = vpack.c.b16 %v8173, %v8167
    %v9632 = vpack.c.b16 %v8174, %v8168
    %v9633 = vpack.c.b16 %v8175, %v8169
    %v9634 = vpack.c.b16 %v8176, %v8170
    %v9635 = vpack.c.b16 %v8183, %v8177
    %v9636 = vpack.c.b16 %v8184, %v8178
    %v9637 = vpack.c.b16 %v8185, %v8179
    %v9638 = vpack.c.b16 %v8186, %v8180
    %v9639 = vpack.c.b16 %v8187, %v8181
    %v9640 = vpack.c.b16 %v8188, %v8182
    %v9641 = vpack.c.b16 %v8195, %v8189
    %v9642 = vpack.c.b16 %v8196, %v8190
    %v9643 = vpack.c.b16 %v8197, %v8191
    %v9644 = vpack.c.b16 %v8198, %v8192
    %v9645 = vpack.c.b16 %v8199, %v8193
    %v9646 = vpack.c.b16 %v8200, %v8194
    %v9647 = vpack.c.b16 %v8207, %v8201
    %v9648 = vpack.c.b16 %v8208, %v8202
    %v9649 = vpack.c.b16 %v8209, %v8203
    %v9650 = vpack.c.b16 %v8210, %v8204
    %v9651 = vpack.c.b16 %v8211, %v8205
    %v9652 = vpack.c.b16 %v8212, %v8206
    %v9653 = vpack.c.b16 %v8219, %v8213
    %v9654 = vpack.c.b16 %v8220, %v8214
    %v9655 = vpack.c.b16 %v8221, %v8215
    %v9656 = vpack.c.b16 %v8222, %v8216
    %v9657 = vpack.c.b16 %v8223, %v8217
    %v9658 = vpack.c.b16 %v8224, %v8218
    %v9659 = vpack.c.b16 %v8231, %v8225
    %v9660 = vpack.c.b16 %v8232, %v8226
    %v9661 = vpack.c.b16 %v8233, %v8227
    %v9662 = vpack.c.b16 %v8234, %v8228
    %v9663 = vpack.c.b16 %v8235, %v8229
    %v9664 = vpack.c.b16 %v8236, %v8230
    %v9665 = vpack.c.b16 %v8243, %v8237
    %v9666 = vpack.c.b16 %v8244, %v8238
    %v9667 = vpack.c.b16 %v8245, %v8239
    %v9668 = vpack.c.b16 %v8246, %v8240
    %v9669 = vpack.c.b16 %v8247, %v8241
    %v9670 = vpack.c.b16 %v8248, %v8242
    %v9671 = vpack.c.b16 %v8255, %v8249
    %v9672 = vpack.c.b16 %v8256, %v8250
    %v9673 = vpack.c.b16 %v8257, %v8251
    %v9674 = vpack.c.b16 %v8258, %v8252
    %v9675 = vpack.c.b16 %v8259, %v8253
    %v9676 = vpack.c.b16 %v8260, %v8254
    %v9677 = vpack.c.b16 %v8267, %v8261
    %v9678 = vpack.c.b16 %v8268, %v8262
    %v9679 = vpack.c.b16 %v8269, %v8263
    %v9680 = vpack.c.b16 %v8270, %v8264
    %v9681 = vpack.c.b16 %v8271, %v8265
    %v9682 = vpack.c.b16 %v8272, %v8266
    %v9683 = vpack.c.b16 %v8279, %v8273
    %v9684 = vpack.c.b16 %v8280, %v8274
    %v9685 = vpack.c.b16 %v8281, %v8275
    %v9686 = vpack.c.b16 %v8282, %v8276
    %v9687 = vpack.c.b16 %v8283, %v8277
    %v9688 = vpack.c.b16 %v8284, %v8278
    %v9689 = vpack.c.b16 %v8291, %v8285
    %v9690 = vpack.c.b16 %v8292, %v8286
    %v9691 = vpack.c.b16 %v8293, %v8287
    %v9692 = vpack.c.b16 %v8294, %v8288
    %v9693 = vpack.c.b16 %v8295, %v8289
    %v9694 = vpack.c.b16 %v8296, %v8290
    %v9695 = vpack.c.b16 %v8303, %v8297
    %v9696 = vpack.c.b16 %v8304, %v8298
    %v9697 = vpack.c.b16 %v8305, %v8299
    %v9698 = vpack.c.b16 %v8306, %v8300
    %v9699 = vpack.c.b16 %v8307, %v8301
    %v9700 = vpack.c.b16 %v8308, %v8302
    %v9701 = vpack.c.b16 %v8315, %v8309
    %v9702 = vpack.c.b16 %v8316, %v8310
    %v9703 = vpack.c.b16 %v8317, %v8311
    %v9704 = vpack.c.b16 %v8318, %v8312
    %v9705 = vpack.c.b16 %v8319, %v8313
    %v9706 = vpack.c.b16 %v8320, %v8314
    %v9707 = vpack.c.b16 %v8327, %v8321
    %v9708 = vpack.c.b16 %v8328, %v8322
    %v9709 = vpack.c.b16 %v8329, %v8323
    %v9710 = vpack.c.b16 %v8330, %v8324
    %v9711 = vpack.c.b16 %v8331, %v8325
    %v9712 = vpack.c.b16 %v8332, %v8326
    %v9713 = vpack.c.b16 %v8339, %v8333
    %v9714 = vpack.c.b16 %v8340, %v8334
    %v9715 = vpack.c.b16 %v8341, %v8335
    %v9716 = vpack.c.b16 %v8342, %v8336
    %v9717 = vpack.c.b16 %v8343, %v8337
    %v9718 = vpack.c.b16 %v8344, %v8338
    %v9719 = vpack.c.b16 %v8351, %v8345
    %v9720 = vpack.c.b16 %v8352, %v8346
    %v9721 = vpack.c.b16 %v8353, %v8347
    %v9722 = vpack.c.b16 %v8354, %v8348
    %v9723 = vpack.c.b16 %v8355, %v8349
    %v9724 = vpack.c.b16 %v8356, %v8350
    %v9725 = vpack.c.b16 %v8363, %v8357
    %v9726 = vpack.c.b16 %v8364, %v8358
    %v9727 = vpack.c.b16 %v8365, %v8359
    %v9728 = vpack.c.b16 %v8366, %v8360
    %v9729 = vpack.c.b16 %v8367, %v8361
    %v9730 = vpack.c.b16 %v8368, %v8362
    %v9731 = vpack.c.b16 %v8375, %v8369
    %v9732 = vpack.c.b16 %v8376, %v8370
    %v9733 = vpack.c.b16 %v8377, %v8371
    %v9734 = vpack.c.b16 %v8378, %v8372
    %v9735 = vpack.c.b16 %v8379, %v8373
    %v9736 = vpack.c.b16 %v8380, %v8374
    %v9737 = vpack.c.b16 %v8387, %v8381
    %v9738 = vpack.c.b16 %v8388, %v8382
    %v9739 = vpack.c.b16 %v8389, %v8383
    %v9740 = vpack.c.b16 %v8390, %v8384
    %v9741 = vpack.c.b16 %v8391, %v8385
    %v9742 = vpack.c.b16 %v8392, %v8386
    %v9743 = vpack.c.b16 %v8399, %v8393
    %v9744 = vpack.c.b16 %v8400, %v8394
    %v9745 = vpack.c.b16 %v8401, %v8395
    %v9746 = vpack.c.b16 %v8402, %v8396
    %v9747 = vpack.c.b16 %v8403, %v8397
    %v9748 = vpack.c.b16 %v8404, %v8398
    %v9749 = vpack.c.b16 %v8411, %v8405
    %v9750 = vpack.c.b16 %v8412, %v8406
    %v9751 = vpack.c.b16 %v8413, %v8407
    %v9752 = vpack.c.b16 %v8414, %v8408
    %v9753 = vpack.c.b16 %v8415, %v8409
    %v9754 = vpack.c.b16 %v8416, %v8410
    %v9755 = vpack.c.b16 %v8423, %v8417
    %v9756 = vpack.c.b16 %v8424, %v8418
    %v9757 = vpack.c.b16 %v8425, %v8419
    %v9758 = vpack.c.b16 %v8426, %v8420
    %v9759 = vpack.c.b16 %v8427, %v8421
    %v9760 = vpack.c.b16 %v8428, %v8422
    %v9761 = vpack.c.b16 %v8435, %v8429
    %v9762 = vpack.c.b16 %v8436, %v8430
    %v9763 = vpack.c.b16 %v8437, %v8431
    %v9764 = vpack.c.b16 %v8438, %v8432
    %v9765 = vpack.c.b16 %v8439, %v8433
    %v9766 = vpack.c.b16 %v8440, %v8434
    %v9767 = vpack.c.b16 %v8447, %v8441
    %v9768 = vpack.c.b16 %v8448, %v8442
    %v9769 = vpack.c.b16 %v8449, %v8443
    %v9770 = vpack.c.b16 %v8450, %v8444
    %v9771 = vpack.c.b16 %v8451, %v8445
    %v9772 = vpack.c.b16 %v8452, %v8446
    %v9773 = vpack.c.b16 %v8459, %v8453
    %v9774 = vpack.c.b16 %v8460, %v8454
    %v9775 = vpack.c.b16 %v8461, %v8455
    %v9776 = vpack.c.b16 %v8462, %v8456
    %v9777 = vpack.c.b16 %v8463, %v8457
    %v9778 = vpack.c.b16 %v8464, %v8458
    %v9779 = vpack.c.b16 %v8471, %v8465
    %v9780 = vpack.c.b16 %v8472, %v8466
    %v9781 = vpack.c.b16 %v8473, %v8467
    %v9782 = vpack.c.b16 %v8474, %v8468
    %v9783 = vpack.c.b16 %v8475, %v8469
    %v9784 = vpack.c.b16 %v8476, %v8470
    %v9785 = vpack.c.b16 %v8483, %v8477
    %v9786 = vpack.c.b16 %v8484, %v8478
    %v9787 = vpack.c.b16 %v8485, %v8479
    %v9788 = vpack.c.b16 %v8486, %v8480
    %v9789 = vpack.c.b16 %v8487, %v8481
    %v9790 = vpack.c.b16 %v8488, %v8482
    %v9791 = vpack.c.b16 %v8495, %v8489
    %v9792 = vpack.c.b16 %v8496, %v8490
    %v9793 = vpack.c.b16 %v8497, %v8491
    %v9794 = vpack.c.b16 %v8498, %v8492
    %v9795 = vpack.c.b16 %v8499, %v8493
    %v9796 = vpack.c.b16 %v8500, %v8494
    %v9797 = vpack.c.b16 %v8507, %v8501
    %v9798 = vpack.c.b16 %v8508, %v8502
    %v9799 = vpack.c.b16 %v8509, %v8503
    %v9800 = vpack.c.b16 %v8510, %v8504
    %v9801 = vpack.c.b16 %v8511, %v8505
    %v9802 = vpack.c.b16 %v8512, %v8506
    %v9803 = vpack.c.b16 %v8519, %v8513
    %v9804 = vpack.c.b16 %v8520, %v8514
    %v9805 = vpack.c.b16 %v8521, %v8515
    %v9806 = vpack.c.b16 %v8522, %v8516
    %v9807 = vpack.c.b16 %v8523, %v8517
    %v9808 = vpack.c.b16 %v8524, %v8518
    %v9809 = vpack.c.b16 %v8531, %v8525
    %v9810 = vpack.c.b16 %v8532, %v8526
    %v9811 = vpack.c.b16 %v8533, %v8527
    %v9812 = vpack.c.b16 %v8534, %v8528
    %v9813 = vpack.c.b16 %v8535, %v8529
    %v9814 = vpack.c.b16 %v8536, %v8530
    %v9815 = vpack.c.b16 %v8543, %v8537
    %v9816 = vpack.c.b16 %v8544, %v8538
    %v9817 = vpack.c.b16 %v8545, %v8539
    %v9818 = vpack.c.b16 %v8546, %v8540
    %v9819 = vpack.c.b16 %v8547, %v8541
    %v9820 = vpack.c.b16 %v8548, %v8542
    %v9821 = vpack.c.b16 %v8555, %v8549
    %v9822 = vpack.c.b16 %v8556, %v8550
    %v9823 = vpack.c.b16 %v8557, %v8551
    %v9824 = vpack.c.b16 %v8558, %v8552
    %v9825 = vpack.c.b16 %v8559, %v8553
    %v9826 = vpack.c.b16 %v8560, %v8554
    %v9827 = vpack.c.b16 %v8567, %v8561
    %v9828 = vpack.c.b16 %v8568, %v8562
    %v9829 = vpack.c.b16 %v8569, %v8563
    %v9830 = vpack.c.b16 %v8570, %v8564
    %v9831 = vpack.c.b16 %v8571, %v8565
    %v9832 = vpack.c.b16 %v8572, %v8566
    %v9833 = vpack.c.b16 %v8579, %v8573
    %v9834 = vpack.c.b16 %v8580, %v8574
    %v9835 = vpack.c.b16 %v8581, %v8575
    %v9836 = vpack.c.b16 %v8582, %v8576
    %v9837 = vpack.c.b16 %v8583, %v8577
    %v9838 = vpack.c.b16 %v8584, %v8578
    %v9839 = vpack.c.b16 %v8591, %v8585
    %v9840 = vpack.c.b16 %v8592, %v8586
    %v9841 = vpack.c.b16 %v8593, %v8587
    %v9842 = vpack.c.b16 %v8594, %v8588
    %v9843 = vpack.c.b16 %v8595, %v8589
    %v9844 = vpack.c.b16 %v8596, %v8590
    %v9845 = vpack.c.b16 %v8603, %v8597
    %v9846 = vpack.c.b16 %v8604, %v8598
    %v9847 = vpack.c.b16 %v8605, %v8599
    %v9848 = vpack.c.b16 %v8606, %v8600
    %v9849 = vpack.c.b16 %v8607, %v8601
    %v9850 = vpack.c.b16 %v8608, %v8602
    %v9851 = vpack.c.b16 %v8615, %v8609
    %v9852 = vpack.c.b16 %v8616, %v8610
    %v9853 = vpack.c.b16 %v8617, %v8611
    %v9854 = vpack.c.b16 %v8618, %v8612
    %v9855 = vpack.c.b16 %v8619, %v8613
    %v9856 = vpack.c.b16 %v8620, %v8614
    %v9857 = vpack.c.b16 %v8627, %v8621
    %v9858 = vpack.c.b16 %v8628, %v8622
    %v9859 = vpack.c.b16 %v8629, %v8623
    %v9860 = vpack.c.b16 %v8630, %v8624
    %v9861 = vpack.c.b16 %v8631, %v8625
    %v9862 = vpack.c.b16 %v8632, %v8626
    %v9863 = vpack.c.b16 %v8639, %v8633
    %v9864 = vpack.c.b16 %v8640, %v8634
    %v9865 = vpack.c.b16 %v8641, %v8635
    %v9866 = vpack.c.b16 %v8642, %v8636
    %v9867 = vpack.c.b16 %v8643, %v8637
    %v9868 = vpack.c.b16 %v8644, %v8638
    %v9869 = vpack.c.b16 %v8651, %v8645
    %v9870 = vpack.c.b16 %v8652, %v8646
    %v9871 = vpack.c.b16 %v8653, %v8647
    %v9872 = vpack.c.b16 %v8654, %v8648
    %v9873 = vpack.c.b16 %v8655, %v8649
    %v9874 = vpack.c.b16 %v8656, %v8650
    %v9875 = vpack.c.b16 %v8663, %v8657
    %v9876 = vpack.c.b16 %v8664, %v8658
    %v9877 = vpack.c.b16 %v8665, %v8659
    %v9878 = vpack.c.b16 %v8666, %v8660
    %v9879 = vpack.c.b16 %v8667, %v8661
    %v9880 = vpack.c.b16 %v8668, %v8662
    %v9881 = vpack.c.b16 %v8675, %v8669
    %v9882 = vpack.c.b16 %v8676, %v8670
    %v9883 = vpack.c.b16 %v8677, %v8671
    %v9884 = vpack.c.b16 %v8678, %v8672
    %v9885 = vpack.c.b16 %v8679, %v8673
    %v9886 = vpack.c.b16 %v8680, %v8674
    %v9887 = vpack.c.b16 %v8687, %v8681
    %v9888 = vpack.c.b16 %v8688, %v8682
    %v9889 = vpack.c.b16 %v8689, %v8683
    %v9890 = vpack.c.b16 %v8690, %v8684
    %v9891 = vpack.c.b16 %v8691, %v8685
    %v9892 = vpack.c.b16 %v8692, %v8686
    %v9893 = vpack.c.b16 %v8699, %v8693
    %v9894 = vpack.c.b16 %v8700, %v8694
    %v9895 = vpack.c.b16 %v8701, %v8695
    %v9896 = vpack.c.b16 %v8702, %v8696
    %v9897 = vpack.c.b16 %v8703, %v8697
    %v9898 = vpack.c.b16 %v8704, %v8698
    %v9899 = vpack.c.b16 %v8711, %v8705
    %v9900 = vpack.c.b16 %v8712, %v8706
    %v9901 = vpack.c.b16 %v8713, %v8707
    %v9902 = vpack.c.b16 %v8714, %v8708
    %v9903 = vpack.c.b16 %v8715, %v8709
    %v9904 = vpack.c.b16 %v8716, %v8710
    %v9905 = vpack.c.b16 %v8723, %v8717
    %v9906 = vpack.c.b16 %v8724, %v8718
    %v9907 = vpack.c.b16 %v8725, %v8719
    %v9908 = vpack.c.b16 %v8726, %v8720
    %v9909 = vpack.c.b16 %v8727, %v8721
    %v9910 = vpack.c.b16 %v8728, %v8722
    %v9911 = vpack.c.b16 %v8735, %v8729
    %v9912 = vpack.c.b16 %v8736, %v8730
    %v9913 = vpack.c.b16 %v8737, %v8731
    %v9914 = vpack.c.b16 %v8738, %v8732
    %v9915 = vpack.c.b16 %v8739, %v8733
    %v9916 = vpack.c.b16 %v8740, %v8734
    %v9917 = vpack.c.b16 %v8747, %v8741
    %v9918 = vpack.c.b16 %v8748, %v8742
    %v9919 = vpack.c.b16 %v8749, %v8743
    %v9920 = vpack.c.b16 %v8750, %v8744
    %v9921 = vpack.c.b16 %v8751, %v8745
    %v9922 = vpack.c.b16 %v8752, %v8746
    %v9923 = vpack.c.b16 %v8759, %v8753
    %v9924 = vpack.c.b16 %v8760, %v8754
    %v9925 = vpack.c.b16 %v8761, %v8755
    %v9926 = vpack.c.b16 %v8762, %v8756
    %v9927 = vpack.c.b16 %v8763, %v8757
    %v9928 = vpack.c.b16 %v8764, %v8758
    %v9929 = vpack.c.b16 %v8771, %v8765
    %v9930 = vpack.c.b16 %v8772, %v8766
    %v9931 = vpack.c.b16 %v8773, %v8767
    %v9932 = vpack.c.b16 %v8774, %v8768
    %v9933 = vpack.c.b16 %v8775, %v8769
    %v9934 = vpack.c.b16 %v8776, %v8770
    %v9935 = vpack.c.b16 %v8783, %v8777
    %v9936 = vpack.c.b16 %v8784, %v8778
    %v9937 = vpack.c.b16 %v8785, %v8779
    %v9938 = vpack.c.b16 %v8786, %v8780
    %v9939 = vpack.c.b16 %v8787, %v8781
    %v9940 = vpack.c.b16 %v8788, %v8782
    %v9941 = vpack.c.b16 %v8795, %v8789
    %v9942 = vpack.c.b16 %v8796, %v8790
    %v9943 = vpack.c.b16 %v8797, %v8791
    %v9944 = vpack.c.b16 %v8798, %v8792
    %v9945 = vpack.c.b16 %v8799, %v8793
    %v9946 = vpack.c.b16 %v8800, %v8794
    %v9947 = vpack.c.b16 %v8807, %v8801
    %v9948 = vpack.c.b16 %v8808, %v8802
    %v9949 = vpack.c.b16 %v8809, %v8803
    %v9950 = vpack.c.b16 %v8810, %v8804
    %v9951 = vpack.c.b16 %v8811, %v8805
    %v9952 = vpack.c.b16 %v8812, %v8806
    %v9953 = vpack.c.b16 %v8819, %v8813
    %v9954 = vpack.c.b16 %v8820, %v8814
    %v9955 = vpack.c.b16 %v8821, %v8815
    %v9956 = vpack.c.b16 %v8822, %v8816
    %v9957 = vpack.c.b16 %v8823, %v8817
    %v9958 = vpack.c.b16 %v8824, %v8818
    %v9959 = vpack.c.b16 %v8831, %v8825
    %v9960 = vpack.c.b16 %v8832, %v8826
    %v9961 = vpack.c.b16 %v8833, %v8827
    %v9962 = vpack.c.b16 %v8834, %v8828
    %v9963 = vpack.c.b16 %v8835, %v8829
    %v9964 = vpack.c.b16 %v8836, %v8830
    %v9965 = vpack.c.b16 %v8843, %v8837
    %v9966 = vpack.c.b16 %v8844, %v8838
    %v9967 = vpack.c.b16 %v8845, %v8839
    %v9968 = vpack.c.b16 %v8846, %v8840
    %v9969 = vpack.c.b16 %v8847, %v8841
    %v9970 = vpack.c.b16 %v8848, %v8842
    %v9971 = vpack.c.b16 %v8855, %v8849
    %v9972 = vpack.c.b16 %v8856, %v8850
    %v9973 = vpack.c.b16 %v8857, %v8851
    %v9974 = vpack.c.b16 %v8858, %v8852
    %v9975 = vpack.c.b16 %v8859, %v8853
    %v9976 = vpack.c.b16 %v8860, %v8854
    %v9977 = vpack.c.b16 %v8867, %v8861
    %v9978 = vpack.c.b16 %v8868, %v8862
    %v9979 = vpack.c.b16 %v8869, %v8863
    %v9980 = vpack.c.b16 %v8870, %v8864
    %v9981 = vpack.c.b16 %v8871, %v8865
    %v9982 = vpack.c.b16 %v8872, %v8866
    %v9983 = vpack.c.b16 %v8879, %v8873
    %v9984 = vpack.c.b16 %v8880, %v8874
    %v9985 = vpack.c.b16 %v8881, %v8875
    %v9986 = vpack.c.b16 %v8882, %v8876
    %v9987 = vpack.c.b16 %v8883, %v8877
    %v9988 = vpack.c.b16 %v8884, %v8878
    %v9989 = vpack.c.b16 %v8891, %v8885
    %v9990 = vpack.c.b16 %v8892, %v8886
    %v9991 = vpack.c.b16 %v8893, %v8887
    %v9992 = vpack.c.b16 %v8894, %v8888
    %v9993 = vpack.c.b16 %v8895, %v8889
    %v9994 = vpack.c.b16 %v8896, %v8890
    %v9995 = vpack.c.b16 %v8903, %v8897
    %v9996 = vpack.c.b16 %v8904, %v8898
    %v9997 = vpack.c.b16 %v8905, %v8899
    %v9998 = vpack.c.b16 %v8906, %v8900
    %v9999 = vpack.c.b16 %v8907, %v8901
    %v10000 = vpack.c.b16 %v8908, %v8902
    %v10001 = vpack.c.b16 %v8915, %v8909
    %v10002 = vpack.c.b16 %v8916, %v8910
    %v10003 = vpack.c.b16 %v8917, %v8911
    %v10004 = vpack.c.b16 %v8918, %v8912
    %v10005 = vpack.c.b16 %v8919, %v8913
    %v10006 = vpack.c.b16 %v8920, %v8914
    %v10007 = vpack.c.b16 %v8927, %v8921
    %v10008 = vpack.c.b16 %v8928, %v8922
    %v10009 = vpack.c.b16 %v8929, %v8923
    %v10010 = vpack.c.b16 %v8930, %v8924
    %v10011 = vpack.c.b16 %v8931, %v8925
    %v10012 = vpack.c.b16 %v8932, %v8926
    %v10013 = vpack.c.b16 %v8939, %v8933
    %v10014 = vpack.c.b16 %v8940, %v8934
    %v10015 = vpack.c.b16 %v8941, %v8935
    %v10016 = vpack.c.b16 %v8942, %v8936
    %v10017 = vpack.c.b16 %v8943, %v8937
    %v10018 = vpack.c.b16 %v8944, %v8938
    %v10019 = vpack.c.b16 %v8951, %v8945
    %v10020 = vpack.c.b16 %v8952, %v8946
    %v10021 = vpack.c.b16 %v8953, %v8947
    %v10022 = vpack.c.b16 %v8954, %v8948
    %v10023 = vpack.c.b16 %v8955, %v8949
    %v10024 = vpack.c.b16 %v8956, %v8950
    %v10025 = vpack.c.b16 %v8963, %v8957
    %v10026 = vpack.c.b16 %v8964, %v8958
    %v10027 = vpack.c.b16 %v8965, %v8959
    %v10028 = vpack.c.b16 %v8966, %v8960
    %v10029 = vpack.c.b16 %v8967, %v8961
    %v10030 = vpack.c.b16 %v8968, %v8962
    %v10031 = vpack.c.b16 %v8975, %v8969
    %v10032 = vpack.c.b16 %v8976, %v8970
    %v10033 = vpack.c.b16 %v8977, %v8971
    %v10034 = vpack.c.b16 %v8978, %v8972
    %v10035 = vpack.c.b16 %v8979, %v8973
    %v10036 = vpack.c.b16 %v8980, %v8974
    %v10037 = vpack.c.b16 %v8987, %v8981
    %v10038 = vpack.c.b16 %v8988, %v8982
    %v10039 = vpack.c.b16 %v8989, %v8983
    %v10040 = vpack.c.b16 %v8990, %v8984
    %v10041 = vpack.c.b16 %v8991, %v8985
    %v10042 = vpack.c.b16 %v8992, %v8986
    %v10043 = vpack.c.b16 %v8999, %v8993
    %v10044 = vpack.c.b16 %v9000, %v8994
    %v10045 = vpack.c.b16 %v9001, %v8995
    %v10046 = vpack.c.b16 %v9002, %v8996
    %v10047 = vpack.c.b16 %v9003, %v8997
    %v10048 = vpack.c.b16 %v9004, %v8998
    %v10049 = vpack.c.b16 %v9011, %v9005
    %v10050 = vpack.c.b16 %v9012, %v9006
    %v10051 = vpack.c.b16 %v9013, %v9007
    %v10052 = vpack.c.b16 %v9014, %v9008
    %v10053 = vpack.c.b16 %v9015, %v9009
    %v10054 = vpack.c.b16 %v9016, %v9010
    %v10055 = vpack.c.b16 %v9023, %v9017
    %v10056 = vpack.c.b16 %v9024, %v9018
    %v10057 = vpack.c.b16 %v9025, %v9019
    %v10058 = vpack.c.b16 %v9026, %v9020
    %v10059 = vpack.c.b16 %v9027, %v9021
    %v10060 = vpack.c.b16 %v9028, %v9022
    %v10061 = vpack.c.b16 %v9035, %v9029
    %v10062 = vpack.c.b16 %v9036, %v9030
    %v10063 = vpack.c.b16 %v9037, %v9031
    %v10064 = vpack.c.b16 %v9038, %v9032
    %v10065 = vpack.c.b16 %v9039, %v9033
    %v10066 = vpack.c.b16 %v9040, %v9034
    %v10067 = vpack.c.b16 %v9047, %v9041
    %v10068 = vpack.c.b16 %v9048, %v9042
    %v10069 = vpack.c.b16 %v9049, %v9043
    %v10070 = vpack.c.b16 %v9050, %v9044
    %v10071 = vpack.c.b16 %v9051, %v9045
    %v10072 = vpack.c.b16 %v9052, %v9046
    %v10073 = vpack.c.b16 %v9059, %v9053
    %v10074 = vpack.c.b16 %v9060, %v9054
    %v10075 = vpack.c.b16 %v9061, %v9055
    %v10076 = vpack.c.b16 %v9062, %v9056
    %v10077 = vpack.c.b16 %v9063, %v9057
    %v10078 = vpack.c.b16 %v9064, %v9058
    %v10079 = vpack.c.b16 %v9071, %v9065
    %v10080 = vpack.c.b16 %v9072, %v9066
    %v10081 = vpack.c.b16 %v9073, %v9067
    %v10082 = vpack.c.b16 %v9074, %v9068
    %v10083 = vpack.c.b16 %v9075, %v9069
    %v10084 = vpack.c.b16 %v9076, %v9070
    %v10085 = vpack.c.b16 %v9083, %v9077
    %v10086 = vpack.c.b16 %v9084, %v9078
    %v10087 = vpack.c.b16 %v9085, %v9079
    %v10088 = vpack.c.b16 %v9086, %v9080
    %v10089 = vpack.c.b16 %v9087, %v9081
    %v10090 = vpack.c.b16 %v9088, %v9082
    %v10091 = vpack.c.b16 %v9095, %v9089
    %v10092 = vpack.c.b16 %v9096, %v9090
    %v10093 = vpack.c.b16 %v9097, %v9091
    %v10094 = vpack.c.b16 %v9098, %v9092
    %v10095 = vpack.c.b16 %v9099, %v9093
    %v10096 = vpack.c.b16 %v9100, %v9094
    %v10097 = vpack.c.b16 %v9107, %v9101
    %v10098 = vpack.c.b16 %v9108, %v9102
    %v10099 = vpack.c.b16 %v9109, %v9103
    %v10100 = vpack.c.b16 %v9110, %v9104
    %v10101 = vpack.c.b16 %v9111, %v9105
    %v10102 = vpack.c.b16 %v9112, %v9106
    %v10103 = vpack.c.b16 %v9119, %v9113
    %v10104 = vpack.c.b16 %v9120, %v9114
    %v10105 = vpack.c.b16 %v9121, %v9115
    %v10106 = vpack.c.b16 %v9122, %v9116
    %v10107 = vpack.c.b16 %v9123, %v9117
    %v10108 = vpack.c.b16 %v9124, %v9118
    %v10109 = vpack.c.b16 %v9131, %v9125
    %v10110 = vpack.c.b16 %v9132, %v9126
    %v10111 = vpack.c.b16 %v9133, %v9127
    %v10112 = vpack.c.b16 %v9134, %v9128
    %v10113 = vpack.c.b16 %v9135, %v9129
    %v10114 = vpack.c.b16 %v9136, %v9130
    %v10115 = vpack.c.b16 %v9143, %v9137
    %v10116 = vpack.c.b16 %v9144, %v9138
    %v10117 = vpack.c.b16 %v9145, %v9139
    %v10118 = vpack.c.b16 %v9146, %v9140
    %v10119 = vpack.c.b16 %v9147, %v9141
    %v10120 = vpack.c.b16 %v9148, %v9142
    %v10121 = vpack.c.b16 %v9155, %v9149
    %v10122 = vpack.c.b16 %v9156, %v9150
    %v10123 = vpack.c.b16 %v9157, %v9151
    %v10124 = vpack.c.b16 %v9158, %v9152
    %v10125 = vpack.c.b16 %v9159, %v9153
    %v10126 = vpack.c.b16 %v9160, %v9154
    %v10127 = vpack.c.b16 %v9167, %v9161
    %v10128 = vpack.c.b16 %v9168, %v9162
    %v10129 = vpack.c.b16 %v9169, %v9163
    %v10130 = vpack.c.b16 %v9170, %v9164
    %v10131 = vpack.c.b16 %v9171, %v9165
    %v10132 = vpack.c.b16 %v9172, %v9166
    %v10133 = vpack.c.b16 %v9179, %v9173
    %v10134 = vpack.c.b16 %v9180, %v9174
    %v10135 = vpack.c.b16 %v9181, %v9175
    %v10136 = vpack.c.b16 %v9182, %v9176
    %v10137 = vpack.c.b16 %v9183, %v9177
    %v10138 = vpack.c.b16 %v9184, %v9178
    %v10139 = vpack.c.b16 %v9191, %v9185
    %v10140 = vpack.c.b16 %v9192, %v9186
    %v10141 = vpack.c.b16 %v9193, %v9187
    %v10142 = vpack.c.b16 %v9194, %v9188
    %v10143 = vpack.c.b16 %v9195, %v9189
    %v10144 = vpack.c.b16 %v9196, %v9190
    %v10145 = vpack.c.b16 %v9203, %v9197
    %v10146 = vpack.c.b16 %v9204, %v9198
    %v10147 = vpack.c.b16 %v9205, %v9199
    %v10148 = vpack.c.b16 %v9206, %v9200
    %v10149 = vpack.c.b16 %v9207, %v9201
    %v10150 = vpack.c.b16 %v9208, %v9202
    %v10151 = vpack.c.b16 %v9215, %v9209
    %v10152 = vpack.c.b16 %v9216, %v9210
    %v10153 = vpack.c.b16 %v9217, %v9211
    %v10154 = vpack.c.b16 %v9218, %v9212
    %v10155 = vpack.c.b16 %v9219, %v9213
    %v10156 = vpack.c.b16 %v9220, %v9214
    %v10157 = vpack.c.b16 %v9227, %v9221
    %v10158 = vpack.c.b16 %v9228, %v9222
    %v10159 = vpack.c.b16 %v9229, %v9223
    %v10160 = vpack.c.b16 %v9230, %v9224
    %v10161 = vpack.c.b16 %v9231, %v9225
    %v10162 = vpack.c.b16 %v9232, %v9226
    %v10163 = vpack.c.b16 %v9239, %v9233
    %v10164 = vpack.c.b16 %v9240, %v9234
    %v10165 = vpack.c.b16 %v9241, %v9235
    %v10166 = vpack.c.b16 %v9242, %v9236
    %v10167 = vpack.c.b16 %v9243, %v9237
    %v10168 = vpack.c.b16 %v9244, %v9238
    %v10169 = vpack.c.b16 %v9251, %v9245
    %v10170 = vpack.c.b16 %v9252, %v9246
    %v10171 = vpack.c.b16 %v9253, %v9247
    %v10172 = vpack.c.b16 %v9254, %v9248
    %v10173 = vpack.c.b16 %v9255, %v9249
    %v10174 = vpack.c.b16 %v9256, %v9250
    %v10175 = vpack.c.b16 %v9263, %v9257
    %v10176 = vpack.c.b16 %v9264, %v9258
    %v10177 = vpack.c.b16 %v9265, %v9259
    %v10178 = vpack.c.b16 %v9266, %v9260
    %v10179 = vpack.c.b16 %v9267, %v9261
    %v10180 = vpack.c.b16 %v9268, %v9262
    %v10181 = vpack.c.b16 %v9275, %v9269
    %v10182 = vpack.c.b16 %v9276, %v9270
    %v10183 = vpack.c.b16 %v9277, %v9271
    %v10184 = vpack.c.b16 %v9278, %v9272
    %v10185 = vpack.c.b16 %v9279, %v9273
    %v10186 = vpack.c.b16 %v9280, %v9274
    %v10187 = vpack.c.b16 %v9287, %v9281
    %v10188 = vpack.c.b16 %v9288, %v9282
    %v10189 = vpack.c.b16 %v9289, %v9283
    %v10190 = vpack.c.b16 %v9290, %v9284
    %v10191 = vpack.c.b16 %v9291, %v9285
    %v10192 = vpack.c.b16 %v9292, %v9286
    %v10193 = vpack.c.b16 %v9299, %v9293
    %v10194 = vpack.c.b16 %v9300, %v9294
    %v10195 = vpack.c.b16 %v9301, %v9295
    %v10196 = vpack.c.b16 %v9302, %v9296
    %v10197 = vpack.c.b16 %v9303, %v9297
    %v10198 = vpack.c.b16 %v9304, %v9298
    %v10199 = vpack.c.b16 %v9311, %v9305
    %v10200 = vpack.c.b16 %v9312, %v9306
    %v10201 = vpack.c.b16 %v9313, %v9307
    %v10202 = vpack.c.b16 %v9314, %v9308
    %v10203 = vpack.c.b16 %v9315, %v9309
    %v10204 = vpack.c.b16 %v9316, %v9310
    %v10205 = vpack.c.b16 %v9323, %v9317
    %v10206 = vpack.c.b16 %v9324, %v9318
    %v10207 = vpack.c.b16 %v9325, %v9319
    %v10208 = vpack.c.b16 %v9326, %v9320
    %v10209 = vpack.c.b16 %v9327, %v9321
    %v10210 = vpack.c.b16 %v9328, %v9322
    %v10211 = vpack.c.b16 %v9335, %v9329
    %v10212 = vpack.c.b16 %v9336, %v9330
    %v10213 = vpack.c.b16 %v9337, %v9331
    %v10214 = vpack.c.b16 %v9338, %v9332
    %v10215 = vpack.c.b16 %v9339, %v9333
    %v10216 = vpack.c.b16 %v9340, %v9334
    %v10217 = vpack.c.b16 %v9347, %v9341
    %v10218 = vpack.c.b16 %v9348, %v9342
    %v10219 = vpack.c.b16 %v9349, %v9343
    %v10220 = vpack.c.b16 %v9350, %v9344
    %v10221 = vpack.c.b16 %v9351, %v9345
    %v10222 = vpack.c.b16 %v9352, %v9346
    %v10223 = vpack.c.b16 %v9359, %v9353
    %v10224 = vpack.c.b16 %v9360, %v9354
    %v10225 = vpack.c.b16 %v9361, %v9355
    %v10226 = vpack.c.b16 %v9362, %v9356
    %v10227 = vpack.c.b16 %v9363, %v9357
    %v10228 = vpack.c.b16 %v9364, %v9358
    %v10229 = vpack.c.b16 %v9371, %v9365
    %v10230 = vpack.c.b16 %v9372, %v9366
    %v10231 = vpack.c.b16 %v9373, %v9367
    %v10232 = vpack.c.b16 %v9374, %v9368
    %v10233 = vpack.c.b16 %v9375, %v9369
    %v10234 = vpack.c.b16 %v9376, %v9370
    %v10235 = vpack.c.b16 %v9383, %v9377
    %v10236 = vpack.c.b16 %v9384, %v9378
    %v10237 = vpack.c.b16 %v9385, %v9379
    %v10238 = vpack.c.b16 %v9386, %v9380
    %v10239 = vpack.c.b16 %v9387, %v9381
    %v10240 = vpack.c.b16 %v9388, %v9382
    %v10241 = vpack.c.b16 %v9395, %v9389
    %v10242 = vpack.c.b16 %v9396, %v9390
    %v10243 = vpack.c.b16 %v9397, %v9391
    %v10244 = vpack.c.b16 %v9398, %v9392
    %v10245 = vpack.c.b16 %v9399, %v9393
    %v10246 = vpack.c.b16 %v9400, %v9394
    %v10247 = vpack.c.b16 %v9407, %v9401
    %v10248 = vpack.c.b16 %v9408, %v9402
    %v10249 = vpack.c.b16 %v9409, %v9403
    %v10250 = vpack.c.b16 %v9410, %v9404
    %v10251 = vpack.c.b16 %v9411, %v9405
    %v10252 = vpack.c.b16 %v9412, %v9406
    %v10253 = vpack.c.b16 %v9419, %v9413
    %v10254 = vpack.c.b16 %v9420, %v9414
    %v10255 = vpack.c.b16 %v9421, %v9415
    %v10256 = vpack.c.b16 %v9422, %v9416
    %v10257 = vpack.c.b16 %v9423, %v9417
    %v10258 = vpack.c.b16 %v9424, %v9418
    %v10259 = vpack.c.b16 %v9431, %v9425
    %v10260 = vpack.c.b16 %v9432, %v9426
    %v10261 = vpack.c.b16 %v9433, %v9427
    %v10262 = vpack.c.b16 %v9434, %v9428
    %v10263 = vpack.c.b16 %v9435, %v9429
    %v10264 = vpack.c.b16 %v9436, %v9430
    %v10265 = vpack.c.b16 %v9443, %v9437
    %v10266 = vpack.c.b16 %v9444, %v9438
    %v10267 = vpack.c.b16 %v9445, %v9439
    %v10268 = vpack.c.b16 %v9446, %v9440
    %v10269 = vpack.c.b16 %v9447, %v9441
    %v10270 = vpack.c.b16 %v9448, %v9442
    %v10271 = vpack.c.b16 %v9455, %v9449
    %v10272 = vpack.c.b16 %v9456, %v9450
    %v10273 = vpack.c.b16 %v9457, %v9451
    %v10274 = vpack.c.b16 %v9458, %v9452
    %v10275 = vpack.c.b16 %v9459, %v9453
    %v10276 = vpack.c.b16 %v9460, %v9454
    %v10277 = vpack.c.b16 %v9467, %v9461
    %v10278 = vpack.c.b16 %v9468, %v9462
    %v10279 = vpack.c.b16 %v9469, %v9463
    %v10280 = vpack.c.b16 %v9470, %v9464
    %v10281 = vpack.c.b16 %v9471, %v9465
    %v10282 = vpack.c.b16 %v9472, %v9466
    %v10283 = vpack.c.b16 %v9479, %v9473
    %v10284 = vpack.c.b16 %v9480, %v9474
    %v10285 = vpack.c.b16 %v9481, %v9475
    %v10286 = vpack.c.b16 %v9482, %v9476
    %v10287 = vpack.c.b16 %v9483, %v9477
    %v10288 = vpack.c.b16 %v9484, %v9478
    %v10289 = vpack.c.b16 %v9491, %v9485
    %v10290 = vpack.c.b16 %v9492, %v9486
    %v10291 = vpack.c.b16 %v9493, %v9487
    %v10292 = vpack.c.b16 %v9494, %v9488
    %v10293 = vpack.c.b16 %v9495, %v9489
    %v10294 = vpack.c.b16 %v9496, %v9490
    %v10295 = vpack.c.b16 %v9503, %v9497
    %v10296 = vpack.c.b16 %v9504, %v9498
    %v10297 = vpack.c.b16 %v9505, %v9499
    %v10298 = vpack.c.b16 %v9506, %v9500
    %v10299 = vpack.c.b16 %v9507, %v9501
    %v10300 = vpack.c.b16 %v9508, %v9502
    %v10301 = vpack.c.b16 %v9515, %v9509
    %v10302 = vpack.c.b16 %v9516, %v9510
    %v10303 = vpack.c.b16 %v9517, %v9511
    %v10304 = vpack.c.b16 %v9518, %v9512
    %v10305 = vpack.c.b16 %v9519, %v9513
    %v10306 = vpack.c.b16 %v9520, %v9514
    %v10307 = vpack.c.b16 %v9527, %v9521
    %v10308 = vpack.c.b16 %v9528, %v9522
    %v10309 = vpack.c.b16 %v9529, %v9523
    %v10310 = vpack.c.b16 %v9530, %v9524
    %v10311 = vpack.c.b16 %v9531, %v9525
    %v10312 = vpack.c.b16 %v9532, %v9526
    %v10313 = vpack.c.b16 %v9539, %v9533
    %v10314 = vpack.c.b16 %v9540, %v9534
    %v10315 = vpack.c.b16 %v9541, %v9535
    %v10316 = vpack.c.b16 %v9542, %v9536
    %v10317 = vpack.c.b16 %v9543, %v9537
    %v10318 = vpack.c.b16 %v9544, %v9538
    %v10319 = vpack.c.b16 %v9551, %v9545
    %v10320 = vpack.c.b16 %v9552, %v9546
    %v10321 = vpack.c.b16 %v9553, %v9547
    %v10322 = vpack.c.b16 %v9554, %v9548
    %v10323 = vpack.c.b16 %v9555, %v9549
    %v10324 = vpack.c.b16 %v9556, %v9550
    %11093 = vmatprep.subr.bf16.mxu0 %v9558
    %11094 = vmatpush1.bf16.msra.mxu0 %v9557
    %11095 = vmatprep.subr.bf16.mxu0 %v9564
    %11096 = vmatpush1.bf16.msra.mxu0 %v9563
    %11097 = vmatprep.subr.bf16.mxu0 %v9570
    %11098 = vmatpush1.bf16.msra.mxu0 %v9569
    %11099 = vmatprep.subr.bf16.mxu0 %v9576
    %11100 = vmatpush1.bf16.msra.mxu0 %v9575
    %11101 = vmatprep.subr.bf16.mxu0 %v9582
    %11102 = vmatpush1.bf16.msra.mxu0 %v9581
    %11103 = vmatprep.subr.bf16.mxu0 %v9588
    %11104 = vmatpush1.bf16.msra.mxu0 %v9587
    %11105 = vmatprep.subr.bf16.mxu0 %v9594
    %11106 = vmatpush1.bf16.msra.mxu0 %v9593
    %11107 = vmatprep.subr.bf16.mxu0 %v9600
    %11108 = vmatpush1.bf16.msra.mxu0 %v9599
    %11109 = vmatprep.subr.bf16.mxu0 %v9606
    %11110 = vmatpush1.bf16.msra.mxu0 %v9605
    %11111 = vmatprep.subr.bf16.mxu0 %v9612
    %11112 = vmatpush1.bf16.msra.mxu0 %v9611
    %11113 = vmatprep.subr.bf16.mxu0 %v9618
    %11114 = vmatpush1.bf16.msra.mxu0 %v9617
    %11115 = vmatprep.subr.bf16.mxu0 %v9624
    %11116 = vmatpush1.bf16.msra.mxu0 %v9623
    %11117 = vmatprep.subr.bf16.mxu0 %v9630
    %11118 = vmatpush1.bf16.msra.mxu0 %v9629
    %11119 = vmatprep.subr.bf16.mxu0 %v9636
    %11120 = vmatpush1.bf16.msra.mxu0 %v9635
    %11121 = vmatprep.subr.bf16.mxu0 %v9642
    %11122 = vmatpush1.bf16.msra.mxu0 %v9641
    %11123 = vmatprep.subr.bf16.mxu0 %v9648
    %11124 = vmatpush1.bf16.msra.mxu0 %v9647
    %11125 = vmatprep.mubr.bf16.mxu0 %v6438
    %11126 = vmatmul.mubr.bf16.gmra.mrb[0].mxu0 %v6437
    %v11127 = vpop.f32.mrb[0].mxu0
    %v11128 = vadd.f32 %v7226, %v11127
    %v11129 = vpop.f32.mrb[0].mxu0
    %v11130 = vadd.f32 %v7230, %v11129
    %v11131 = vpop.f32.mrb[0].mxu0
    %v11132 = vpop.f32.mrb[0].mxu0
    %11133 = vdwg.mxu0
    %11134 = vmatprep.subr.bf16.mxu0 %v9654
    %11135 = vmatpush1.bf16.msra.mxu0 %v9653
    %11136 = vmatprep.subr.bf16.mxu0 %v9660
    %11137 = vmatpush1.bf16.msra.mxu0 %v9659
    %11138 = vmatprep.subr.bf16.mxu0 %v9666
    %11139 = vmatpush1.bf16.msra.mxu0 %v9665
    %11140 = vmatprep.subr.bf16.mxu0 %v9672
    %11141 = vmatpush1.bf16.msra.mxu0 %v9671
    %11142 = vmatprep.subr.bf16.mxu0 %v9678
    %11143 = vmatpush1.bf16.msra.mxu0 %v9677
    %11144 = vmatprep.subr.bf16.mxu0 %v9684
    %11145 = vmatpush1.bf16.msra.mxu0 %v9683
    %11146 = vmatprep.subr.bf16.mxu0 %v9690
    %11147 = vmatpush1.bf16.msra.mxu0 %v9689
    %11148 = vmatprep.subr.bf16.mxu0 %v9696
    %11149 = vmatpush1.bf16.msra.mxu0 %v9695
    %11150 = vmatprep.subr.bf16.mxu0 %v9702
    %11151 = vmatpush1.bf16.msra.mxu0 %v9701
    %11152 = vmatprep.subr.bf16.mxu0 %v9708
    %11153 = vmatpush1.bf16.msra.mxu0 %v9707
    %11154 = vmatprep.subr.bf16.mxu0 %v9714
    %11155 = vmatpush1.bf16.msra.mxu0 %v9713
    %11156 = vmatprep.subr.bf16.mxu0 %v9720
    %11157 = vmatpush1.bf16.msra.mxu0 %v9719
    %11158 = vmatprep.subr.bf16.mxu0 %v9726
    %11159 = vmatpush1.bf16.msra.mxu0 %v9725
    %11160 = vmatprep.subr.bf16.mxu0 %v9732
    %11161 = vmatpush1.bf16.msra.mxu0 %v9731
    %11162 = vmatprep.subr.bf16.mxu0 %v9738
    %11163 = vmatpush1.bf16.msra.mxu0 %v9737
    %11164 = vmatprep.subr.bf16.mxu0 %v9744
    %11165 = vmatpush1.bf16.msra.mxu0 %v9743
    %11166 = vmatprep.mubr.bf16.mxu0 %v6440
    %11167 = vmatmul.mubr.bf16.gmra.mrb[0].mxu0 %v6439
    %v11168 = vpop.f32.mrb[0].mxu0
    %v11169 = vadd.f32 %v11128, %v11168
    %v11170 = vpop.f32.mrb[0].mxu0
    %v11171 = vadd.f32 %v11130, %v11170
    %v11172 = vpop.f32.mrb[0].mxu0
    %v11173 = vpop.f32.mrb[0].mxu0
    %11174 = vdwg.mxu0
    %11175 = vmatprep.subr.bf16.mxu0 %v9750
    %11176 = vmatpush1.bf16.msra.mxu0 %v9749
    %11177 = vmatprep.subr.bf16.mxu0 %v9756
    %11178 = vmatpush1.bf16.msra.mxu0 %v9755
    %11179 = vmatprep.subr.bf16.mxu0 %v9762
    %11180 = vmatpush1.bf16.msra.mxu0 %v9761
    %11181 = vmatprep.subr.bf16.mxu0 %v9768
    %11182 = vmatpush1.bf16.msra.mxu0 %v9767
    %11183 = vmatprep.subr.bf16.mxu0 %v9774
    %11184 = vmatpush1.bf16.msra.mxu0 %v9773
    %11185 = vmatprep.subr.bf16.mxu0 %v9780
    %11186 = vmatpush1.bf16.msra.mxu0 %v9779
    %11187 = vmatprep.subr.bf16.mxu0 %v9786
    %11188 = vmatpush1.bf16.msra.mxu0 %v9785
    %11189 = vmatprep.subr.bf16.mxu0 %v9792
    %11190 = vmatpush1.bf16.msra.mxu0 %v9791
    %11191 = vmatprep.subr.bf16.mxu0 %v9798
    %11192 = vmatpush1.bf16.msra.mxu0 %v9797
    %11193 = vmatprep.subr.bf16.mxu0 %v9804
    %11194 = vmatpush1.bf16.msra.mxu0 %v9803
    %11195 = vmatprep.subr.bf16.mxu0 %v9810
    %11196 = vmatpush1.bf16.msra.mxu0 %v9809
    %11197 = vmatprep.subr.bf16.mxu0 %v9816
    %11198 = vmatpush1.bf16.msra.mxu0 %v9815
    %11199 = vmatprep.subr.bf16.mxu0 %v9822
    %11200 = vmatpush1.bf16.msra.mxu0 %v9821
    %11201 = vmatprep.subr.bf16.mxu0 %v9828
    %11202 = vmatpush1.bf16.msra.mxu0 %v9827
    %11203 = vmatprep.subr.bf16.mxu0 %v9834
    %11204 = vmatpush1.bf16.msra.mxu0 %v9833
    %11205 = vmatprep.subr.bf16.mxu0 %v9840
    %11206 = vmatpush1.bf16.msra.mxu0 %v9839
    %11207 = vmatprep.mubr.bf16.mxu0 %v6442
    %11208 = vmatmul.mubr.bf16.gmra.mrb[0].mxu0 %v6441
    %v11209 = vpop.f32.mrb[0].mxu0
    %v11210 = vadd.f32 %v11169, %v11209
    %v11211 = vpop.f32.mrb[0].mxu0
    %v11212 = vadd.f32 %v11171, %v11211
    %v11213 = vpop.f32.mrb[0].mxu0
    %v11214 = vpop.f32.mrb[0].mxu0
    %11215 = vdwg.mxu0
    %11216 = vmatprep.subr.bf16.mxu0 %v9846
    %11217 = vmatpush1.bf16.msra.mxu0 %v9845
    %11218 = vmatprep.subr.bf16.mxu0 %v9852
    %11219 = vmatpush1.bf16.msra.mxu0 %v9851
    %11220 = vmatprep.subr.bf16.mxu0 %v9858
    %11221 = vmatpush1.bf16.msra.mxu0 %v9857
    %11222 = vmatprep.subr.bf16.mxu0 %v9864
    %11223 = vmatpush1.bf16.msra.mxu0 %v9863
    %11224 = vmatprep.subr.bf16.mxu0 %v9870
    %11225 = vmatpush1.bf16.msra.mxu0 %v9869
    %11226 = vmatprep.subr.bf16.mxu0 %v9876
    %11227 = vmatpush1.bf16.msra.mxu0 %v9875
    %11228 = vmatprep.subr.bf16.mxu0 %v9882
    %11229 = vmatpush1.bf16.msra.mxu0 %v9881
    %11230 = vmatprep.subr.bf16.mxu0 %v9888
    %11231 = vmatpush1.bf16.msra.mxu0 %v9887
    %11232 = vmatprep.subr.bf16.mxu0 %v9894
    %11233 = vmatpush1.bf16.msra.mxu0 %v9893
    %11234 = vmatprep.subr.bf16.mxu0 %v9900
    %11235 = vmatpush1.bf16.msra.mxu0 %v9899
    %11236 = vmatprep.subr.bf16.mxu0 %v9906
    %11237 = vmatpush1.bf16.msra.mxu0 %v9905
    %11238 = vmatprep.subr.bf16.mxu0 %v9912
    %11239 = vmatpush1.bf16.msra.mxu0 %v9911
    %11240 = vmatprep.subr.bf16.mxu0 %v9918
    %11241 = vmatpush1.bf16.msra.mxu0 %v9917
    %11242 = vmatprep.subr.bf16.mxu0 %v9924
    %11243 = vmatpush1.bf16.msra.mxu0 %v9923
    %11244 = vmatprep.subr.bf16.mxu0 %v9930
    %11245 = vmatpush1.bf16.msra.mxu0 %v9929
    %11246 = vmatprep.subr.bf16.mxu0 %v9936
    %11247 = vmatpush1.bf16.msra.mxu0 %v9935
    %11248 = vmatprep.mubr.bf16.mxu0 %v6444
    %11249 = vmatmul.mubr.bf16.gmra.mrb[0].mxu0 %v6443
    %v11250 = vpop.f32.mrb[0].mxu0
    %v11251 = vadd.f32 %v11210, %v11250
    %v11252 = vpop.f32.mrb[0].mxu0
    %v11253 = vadd.f32 %v11212, %v11252
    %v11254 = vpop.f32.mrb[0].mxu0
    %v11255 = vpop.f32.mrb[0].mxu0
    %11256 = vdwg.mxu0
    %11257 = vmatprep.subr.bf16.mxu0 %v9942
    %11258 = vmatpush1.bf16.msra.mxu0 %v9941
    %11259 = vmatprep.subr.bf16.mxu0 %v9948
    %11260 = vmatpush1.bf16.msra.mxu0 %v9947
    %11261 = vmatprep.subr.bf16.mxu0 %v9954
    %11262 = vmatpush1.bf16.msra.mxu0 %v9953
    %11263 = vmatprep.subr.bf16.mxu0 %v9960
    %11264 = vmatpush1.bf16.msra.mxu0 %v9959
    %11265 = vmatprep.subr.bf16.mxu0 %v9966
    %11266 = vmatpush1.bf16.msra.mxu0 %v9965
    %11267 = vmatprep.subr.bf16.mxu0 %v9972
    %11268 = vmatpush1.bf16.msra.mxu0 %v9971
    %11269 = vmatprep.subr.bf16.mxu0 %v9978
    %11270 = vmatpush1.bf16.msra.mxu0 %v9977
    %11271 = vmatprep.subr.bf16.mxu0 %v9984
    %11272 = vmatpush1.bf16.msra.mxu0 %v9983
    %11273 = vmatprep.subr.bf16.mxu0 %v9990
    %11274 = vmatpush1.bf16.msra.mxu0 %v9989
    %11275 = vmatprep.subr.bf16.mxu0 %v9996
    %11276 = vmatpush1.bf16.msra.mxu0 %v9995
    %11277 = vmatprep.subr.bf16.mxu0 %v10002
    %11278 = vmatpush1.bf16.msra.mxu0 %v10001
    %11279 = vmatprep.subr.bf16.mxu0 %v10008
    %11280 = vmatpush1.bf16.msra.mxu0 %v10007
    %11281 = vmatprep.subr.bf16.mxu0 %v10014
    %11282 = vmatpush1.bf16.msra.mxu0 %v10013
    %11283 = vmatprep.subr.bf16.mxu0 %v10020
    %11284 = vmatpush1.bf16.msra.mxu0 %v10019
    %11285 = vmatprep.subr.bf16.mxu0 %v10026
    %11286 = vmatpush1.bf16.msra.mxu0 %v10025
    %11287 = vmatprep.subr.bf16.mxu0 %v10032
    %11288 = vmatpush1.bf16.msra.mxu0 %v10031
    %11289 = vmatprep.mubr.bf16.mxu0 %v6446
    %11290 = vmatmul.mubr.bf16.gmra.mrb[0].mxu0 %v6445
    %v11291 = vpop.f32.mrb[0].mxu0
    %v11292 = vadd.f32 %v11251, %v11291
    %v11293 = vpop.f32.mrb[0].mxu0
    %v11294 = vadd.f32 %v11253, %v11293
    %v11295 = vpop.f32.mrb[0].mxu0
    %v11296 = vpop.f32.mrb[0].mxu0
    %11297 = vdwg.mxu0
    %11298 = vmatprep.subr.bf16.mxu0 %v10038
    %11299 = vmatpush1.bf16.msra.mxu0 %v10037
    %11300 = vmatprep.subr.bf16.mxu0 %v10044
    %11301 = vmatpush1.bf16.msra.mxu0 %v10043
    %11302 = vmatprep.subr.bf16.mxu0 %v10050
    %11303 = vmatpush1.bf16.msra.mxu0 %v10049
    %11304 = vmatprep.subr.bf16.mxu0 %v10056
    %11305 = vmatpush1.bf16.msra.mxu0 %v10055
    %11306 = vmatprep.subr.bf16.mxu0 %v10062
    %11307 = vmatpush1.bf16.msra.mxu0 %v10061
    %11308 = vmatprep.subr.bf16.mxu0 %v10068
    %11309 = vmatpush1.bf16.msra.mxu0 %v10067
    %11310 = vmatprep.subr.bf16.mxu0 %v10074
    %11311 = vmatpush1.bf16.msra.mxu0 %v10073
    %11312 = vmatprep.subr.bf16.mxu0 %v10080
    %11313 = vmatpush1.bf16.msra.mxu0 %v10079
    %11314 = vmatprep.subr.bf16.mxu0 %v10086
    %11315 = vmatpush1.bf16.msra.mxu0 %v10085
    %11316 = vmatprep.subr.bf16.mxu0 %v10092
    %11317 = vmatpush1.bf16.msra.mxu0 %v10091
    %11318 = vmatprep.subr.bf16.mxu0 %v10098
    %11319 = vmatpush1.bf16.msra.mxu0 %v10097
    %11320 = vmatprep.subr.bf16.mxu0 %v10104
    %11321 = vmatpush1.bf16.msra.mxu0 %v10103
    %11322 = vmatprep.subr.bf16.mxu0 %v10110
    %11323 = vmatpush1.bf16.msra.mxu0 %v10109
    %11324 = vmatprep.subr.bf16.mxu0 %v10116
    %11325 = vmatpush1.bf16.msra.mxu0 %v10115
    %11326 = vmatprep.subr.bf16.mxu0 %v10122
    %11327 = vmatpush1.bf16.msra.mxu0 %v10121
    %11328 = vmatprep.subr.bf16.mxu0 %v10128
    %11329 = vmatpush1.bf16.msra.mxu0 %v10127
    %11330 = vmatprep.mubr.bf16.mxu0 %v6448
    %11331 = vmatmul.mubr.bf16.gmra.mrb[0].mxu0 %v6447
    %v11332 = vpop.f32.mrb[0].mxu0
    %v11333 = vadd.f32 %v11292, %v11332
    %v11334 = vpop.f32.mrb[0].mxu0
    %v11335 = vadd.f32 %v11294, %v11334
    %v11336 = vpop.f32.mrb[0].mxu0
    %v11337 = vpop.f32.mrb[0].mxu0
    %11338 = vdwg.mxu0
    %11339 = vmatprep.subr.bf16.mxu0 %v10134
    %11340 = vmatpush1.bf16.msra.mxu0 %v10133
    %11341 = vmatprep.subr.bf16.mxu0 %v10140
    %11342 = vmatpush1.bf16.msra.mxu0 %v10139
    %11343 = vmatprep.subr.bf16.mxu0 %v10146
    %11344 = vmatpush1.bf16.msra.mxu0 %v10145
    %11345 = vmatprep.subr.bf16.mxu0 %v10152
    %11346 = vmatpush1.bf16.msra.mxu0 %v10151
    %11347 = vmatprep.subr.bf16.mxu0 %v10158
    %11348 = vmatpush1.bf16.msra.mxu0 %v10157
    %11349 = vmatprep.subr.bf16.mxu0 %v10164
    %11350 = vmatpush1.bf16.msra.mxu0 %v10163
    %11351 = vmatprep.subr.bf16.mxu0 %v10170
    %11352 = vmatpush1.bf16.msra.mxu0 %v10169
    %11353 = vmatprep.subr.bf16.mxu0 %v10176
    %11354 = vmatpush1.bf16.msra.mxu0 %v10175
    %11355 = vmatprep.subr.bf16.mxu0 %v10182
    %11356 = vmatpush1.bf16.msra.mxu0 %v10181
    %11357 = vmatprep.subr.bf16.mxu0 %v10188
    %11358 = vmatpush1.bf16.msra.mxu0 %v10187
    %11359 = vmatprep.subr.bf16.mxu0 %v10194
    %11360 = vmatpush1.bf16.msra.mxu0 %v10193
    %11361 = vmatprep.subr.bf16.mxu0 %v10200
    %11362 = vmatpush1.bf16.msra.mxu0 %v10199
    %11363 = vmatprep.subr.bf16.mxu0 %v10206
    %11364 = vmatpush1.bf16.msra.mxu0 %v10205
    %11365 = vmatprep.subr.bf16.mxu0 %v10212
    %11366 = vmatpush1.bf16.msra.mxu0 %v10211
    %11367 = vmatprep.subr.bf16.mxu0 %v10218
    %11368 = vmatpush1.bf16.msra.mxu0 %v10217
    %11369 = vmatprep.subr.bf16.mxu0 %v10224
    %11370 = vmatpush1.bf16.msra.mxu0 %v10223
    %11371 = vmatprep.mubr.bf16.mxu0 %v6450
    %11372 = vmatmul.mubr.bf16.gmra.mrb[0].mxu0 %v6449
    %v11373 = vpop.f32.mrb[0].mxu0
    %v11374 = vadd.f32 %v11333, %v11373
    %v11375 = vpop.f32.mrb[0].mxu0
    %v11376 = vadd.f32 %v11335, %v11375
    %v11377 = vpop.f32.mrb[0].mxu0
    %v11378 = vpop.f32.mrb[0].mxu0
    %11379 = vdwg.mxu0
    %11380 = vmatprep.subr.bf16.mxu0 %v10230
    %11381 = vmatpush1.bf16.msra.mxu0 %v10229
    %11382 = vmatprep.subr.bf16.mxu0 %v10236
    %11383 = vmatpush1.bf16.msra.mxu0 %v10235
    %11384 = vmatprep.subr.bf16.mxu0 %v10242
    %11385 = vmatpush1.bf16.msra.mxu0 %v10241
    %11386 = vmatprep.subr.bf16.mxu0 %v10248
    %11387 = vmatpush1.bf16.msra.mxu0 %v10247
    %11388 = vmatprep.subr.bf16.mxu0 %v10254
    %11389 = vmatpush1.bf16.msra.mxu0 %v10253
    %11390 = vmatprep.subr.bf16.mxu0 %v10260
    %11391 = vmatpush1.bf16.msra.mxu0 %v10259
    %11392 = vmatprep.subr.bf16.mxu0 %v10266
    %11393 = vmatpush1.bf16.msra.mxu0 %v10265
    %11394 = vmatprep.subr.bf16.mxu0 %v10272
    %11395 = vmatpush1.bf16.msra.mxu0 %v10271
    %11396 = vmatprep.subr.bf16.mxu0 %v10278
    %11397 = vmatpush1.bf16.msra.mxu0 %v10277
    %11398 = vmatprep.subr.bf16.mxu0 %v10284
    %11399 = vmatpush1.bf16.msra.mxu0 %v10283
    %11400 = vmatprep.subr.bf16.mxu0 %v10290
    %11401 = vmatpush1.bf16.msra.mxu0 %v10289
    %11402 = vmatprep.subr.bf16.mxu0 %v10296
    %11403 = vmatpush1.bf16.msra.mxu0 %v10295
    %11404 = vmatprep.subr.bf16.mxu0 %v10302
    %11405 = vmatpush1.bf16.msra.mxu0 %v10301
    %11406 = vmatprep.subr.bf16.mxu0 %v10308
    %11407 = vmatpush1.bf16.msra.mxu0 %v10307
    %11408 = vmatprep.subr.bf16.mxu0 %v10314
    %11409 = vmatpush1.bf16.msra.mxu0 %v10313
    %11410 = vmatprep.subr.bf16.mxu0 %v10320
    %11411 = vmatpush1.bf16.msra.mxu0 %v10319
    %11412 = vmatprep.mubr.bf16.mxu0 %v6452
    %11413 = vmatmul.mubr.bf16.gmra.mrb[0].mxu0 %v6451
    %v11414 = vpop.f32.mrb[0].mxu0
    %v11415 = vadd.f32 %v11374, %v11414
    %v11416 = vpop.f32.mrb[0].mxu0
    %v11417 = vadd.f32 %v11376, %v11416
    %v11418 = vpop.f32.mrb[0].mxu0
    %v11419 = vpop.f32.mrb[0].mxu0
    %11420 = vdwg.mxu0
    %11421 = vmatprep.subr.bf16.mxu0 %v9560
    %11422 = vmatpush1.bf16.msra.mxu0 %v9559
    %11423 = vmatprep.subr.bf16.mxu0 %v9566
    %11424 = vmatpush1.bf16.msra.mxu0 %v9565
    %11425 = vmatprep.subr.bf16.mxu0 %v9572
    %11426 = vmatpush1.bf16.msra.mxu0 %v9571
    %11427 = vmatprep.subr.bf16.mxu0 %v9578
    %11428 = vmatpush1.bf16.msra.mxu0 %v9577
    %11429 = vmatprep.subr.bf16.mxu0 %v9584
    %11430 = vmatpush1.bf16.msra.mxu0 %v9583
    %11431 = vmatprep.subr.bf16.mxu0 %v9590
    %11432 = vmatpush1.bf16.msra.mxu0 %v9589
    %11433 = vmatprep.subr.bf16.mxu0 %v9596
    %11434 = vmatpush1.bf16.msra.mxu0 %v9595
    %11435 = vmatprep.subr.bf16.mxu0 %v9602
    %11436 = vmatpush1.bf16.msra.mxu0 %v9601
    %11437 = vmatprep.subr.bf16.mxu0 %v9608
    %11438 = vmatpush1.bf16.msra.mxu0 %v9607
    %11439 = vmatprep.subr.bf16.mxu0 %v9614
    %11440 = vmatpush1.bf16.msra.mxu0 %v9613
    %11441 = vmatprep.subr.bf16.mxu0 %v9620
    %11442 = vmatpush1.bf16.msra.mxu0 %v9619
    %11443 = vmatprep.subr.bf16.mxu0 %v9626
    %11444 = vmatpush1.bf16.msra.mxu0 %v9625
    %11445 = vmatprep.subr.bf16.mxu0 %v9632
    %11446 = vmatpush1.bf16.msra.mxu0 %v9631
    %11447 = vmatprep.subr.bf16.mxu0 %v9638
    %11448 = vmatpush1.bf16.msra.mxu0 %v9637
    %11449 = vmatprep.subr.bf16.mxu0 %v9644
    %11450 = vmatpush1.bf16.msra.mxu0 %v9643
    %11451 = vmatprep.subr.bf16.mxu0 %v9650
    %11452 = vmatpush1.bf16.msra.mxu0 %v9649
    %11453 = vmatprep.mubr.bf16.mxu0 %v6438
    %11454 = vmatmul.mubr.bf16.gmra.mrb[0].mxu0 %v6437
    %v11455 = vpop.f32.mrb[0].mxu0
    %v11456 = vadd.f32 %v7234, %v11455
    %v11457 = vpop.f32.mrb[0].mxu0
    %v11458 = vadd.f32 %v7238, %v11457
    %v11459 = vpop.f32.mrb[0].mxu0
    %v11460 = vpop.f32.mrb[0].mxu0
    %11461 = vdwg.mxu0
    %11462 = vmatprep.subr.bf16.mxu0 %v9656
    %11463 = vmatpush1.bf16.msra.mxu0 %v9655
    %11464 = vmatprep.subr.bf16.mxu0 %v9662
    %11465 = vmatpush1.bf16.msra.mxu0 %v9661
    %11466 = vmatprep.subr.bf16.mxu0 %v9668
    %11467 = vmatpush1.bf16.msra.mxu0 %v9667
    %11468 = vmatprep.subr.bf16.mxu0 %v9674
    %11469 = vmatpush1.bf16.msra.mxu0 %v9673
    %11470 = vmatprep.subr.bf16.mxu0 %v9680
    %11471 = vmatpush1.bf16.msra.mxu0 %v9679
    %11472 = vmatprep.subr.bf16.mxu0 %v9686
    %11473 = vmatpush1.bf16.msra.mxu0 %v9685
    %11474 = vmatprep.subr.bf16.mxu0 %v9692
    %11475 = vmatpush1.bf16.msra.mxu0 %v9691
    %11476 = vmatprep.subr.bf16.mxu0 %v9698
    %11477 = vmatpush1.bf16.msra.mxu0 %v9697
    %11478 = vmatprep.subr.bf16.mxu0 %v9704
    %11479 = vmatpush1.bf16.msra.mxu0 %v9703
    %11480 = vmatprep.subr.bf16.mxu0 %v9710
    %11481 = vmatpush1.bf16.msra.mxu0 %v9709
    %11482 = vmatprep.subr.bf16.mxu0 %v9716
    %11483 = vmatpush1.bf16.msra.mxu0 %v9715
    %11484 = vmatprep.subr.bf16.mxu0 %v9722
    %11485 = vmatpush1.bf16.msra.mxu0 %v9721
    %11486 = vmatprep.subr.bf16.mxu0 %v9728
    %11487 = vmatpush1.bf16.msra.mxu0 %v9727
    %11488 = vmatprep.subr.bf16.mxu0 %v9734
    %11489 = vmatpush1.bf16.msra.mxu0 %v9733
    %11490 = vmatprep.subr.bf16.mxu0 %v9740
    %11491 = vmatpush1.bf16.msra.mxu0 %v9739
    %11492 = vmatprep.subr.bf16.mxu0 %v9746
    %11493 = vmatpush1.bf16.msra.mxu0 %v9745
    %11494 = vmatprep.mubr.bf16.mxu0 %v6440
    %11495 = vmatmul.mubr.bf16.gmra.mrb[0].mxu0 %v6439
    %v11496 = vpop.f32.mrb[0].mxu0
    %v11497 = vadd.f32 %v11456, %v11496
    %v11498 = vpop.f32.mrb[0].mxu0
    %v11499 = vadd.f32 %v11458, %v11498
    %v11500 = vpop.f32.mrb[0].mxu0
    %v11501 = vpop.f32.mrb[0].mxu0
    %11502 = vdwg.mxu0
    %11503 = vmatprep.subr.bf16.mxu0 %v9752
    %11504 = vmatpush1.bf16.msra.mxu0 %v9751
    %11505 = vmatprep.subr.bf16.mxu0 %v9758
    %11506 = vmatpush1.bf16.msra.mxu0 %v9757
    %11507 = vmatprep.subr.bf16.mxu0 %v9764
    %11508 = vmatpush1.bf16.msra.mxu0 %v9763
    %11509 = vmatprep.subr.bf16.mxu0 %v9770
    %11510 = vmatpush1.bf16.msra.mxu0 %v9769
    %11511 = vmatprep.subr.bf16.mxu0 %v9776
    %11512 = vmatpush1.bf16.msra.mxu0 %v9775
    %11513 = vmatprep.subr.bf16.mxu0 %v9782
    %11514 = vmatpush1.bf16.msra.mxu0 %v9781
    %11515 = vmatprep.subr.bf16.mxu0 %v9788
    %11516 = vmatpush1.bf16.msra.mxu0 %v9787
    %11517 = vmatprep.subr.bf16.mxu0 %v9794
    %11518 = vmatpush1.bf16.msra.mxu0 %v9793
    %11519 = vmatprep.subr.bf16.mxu0 %v9800
    %11520 = vmatpush1.bf16.msra.mxu0 %v9799
    %11521 = vmatprep.subr.bf16.mxu0 %v9806
    %11522 = vmatpush1.bf16.msra.mxu0 %v9805
    %11523 = vmatprep.subr.bf16.mxu0 %v9812
    %11524 = vmatpush1.bf16.msra.mxu0 %v9811
    %11525 = vmatprep.subr.bf16.mxu0 %v9818
    %11526 = vmatpush1.bf16.msra.mxu0 %v9817
    %11527 = vmatprep.subr.bf16.mxu0 %v9824
    %11528 = vmatpush1.bf16.msra.mxu0 %v9823
    %11529 = vmatprep.subr.bf16.mxu0 %v9830
    %11530 = vmatpush1.bf16.msra.mxu0 %v9829
    %11531 = vmatprep.subr.bf16.mxu0 %v9836
    %11532 = vmatpush1.bf16.msra.mxu0 %v9835
    %11533 = vmatprep.subr.bf16.mxu0 %v9842
    %11534 = vmatpush1.bf16.msra.mxu0 %v9841
    %11535 = vmatprep.mubr.bf16.mxu0 %v6442
    %11536 = vmatmul.mubr.bf16.gmra.mrb[0].mxu0 %v6441
    %v11537 = vpop.f32.mrb[0].mxu0
    %v11538 = vadd.f32 %v11497, %v11537
    %v11539 = vpop.f32.mrb[0].mxu0
    %v11540 = vadd.f32 %v11499, %v11539
    %v11541 = vpop.f32.mrb[0].mxu0
    %v11542 = vpop.f32.mrb[0].mxu0
    %11543 = vdwg.mxu0
    %11544 = vmatprep.subr.bf16.mxu0 %v9848
    %11545 = vmatpush1.bf16.msra.mxu0 %v9847
    %11546 = vmatprep.subr.bf16.mxu0 %v9854
    %11547 = vmatpush1.bf16.msra.mxu0 %v9853
    %11548 = vmatprep.subr.bf16.mxu0 %v9860
    %11549 = vmatpush1.bf16.msra.mxu0 %v9859
    %11550 = vmatprep.subr.bf16.mxu0 %v9866
    %11551 = vmatpush1.bf16.msra.mxu0 %v9865
    %11552 = vmatprep.subr.bf16.mxu0 %v9872
    %11553 = vmatpush1.bf16.msra.mxu0 %v9871
    %11554 = vmatprep.subr.bf16.mxu0 %v9878
    %11555 = vmatpush1.bf16.msra.mxu0 %v9877
    %11556 = vmatprep.subr.bf16.mxu0 %v9884
    %11557 = vmatpush1.bf16.msra.mxu0 %v9883
    %11558 = vmatprep.subr.bf16.mxu0 %v9890
    %11559 = vmatpush1.bf16.msra.mxu0 %v9889
    %11560 = vmatprep.subr.bf16.mxu0 %v9896
    %11561 = vmatpush1.bf16.msra.mxu0 %v9895
    %11562 = vmatprep.subr.bf16.mxu0 %v9902
    %11563 = vmatpush1.bf16.msra.mxu0 %v9901
    %11564 = vmatprep.subr.bf16.mxu0 %v9908
    %11565 = vmatpush1.bf16.msra.mxu0 %v9907
    %11566 = vmatprep.subr.bf16.mxu0 %v9914
    %11567 = vmatpush1.bf16.msra.mxu0 %v9913
    %11568 = vmatprep.subr.bf16.mxu0 %v9920
    %11569 = vmatpush1.bf16.msra.mxu0 %v9919
    %11570 = vmatprep.subr.bf16.mxu0 %v9926
    %11571 = vmatpush1.bf16.msra.mxu0 %v9925
    %11572 = vmatprep.subr.bf16.mxu0 %v9932
    %11573 = vmatpush1.bf16.msra.mxu0 %v9931
    %11574 = vmatprep.subr.bf16.mxu0 %v9938
    %11575 = vmatpush1.bf16.msra.mxu0 %v9937
    %11576 = vmatprep.mubr.bf16.mxu0 %v6444
    %11577 = vmatmul.mubr.bf16.gmra.mrb[0].mxu0 %v6443
    %v11578 = vpop.f32.mrb[0].mxu0
    %v11579 = vadd.f32 %v11538, %v11578
    %v11580 = vpop.f32.mrb[0].mxu0
    %v11581 = vadd.f32 %v11540, %v11580
    %v11582 = vpop.f32.mrb[0].mxu0
    %v11583 = vpop.f32.mrb[0].mxu0
    %11584 = vdwg.mxu0
    %11585 = vmatprep.subr.bf16.mxu0 %v9944
    %11586 = vmatpush1.bf16.msra.mxu0 %v9943
    %11587 = vmatprep.subr.bf16.mxu0 %v9950
    %11588 = vmatpush1.bf16.msra.mxu0 %v9949
    %11589 = vmatprep.subr.bf16.mxu0 %v9956
    %11590 = vmatpush1.bf16.msra.mxu0 %v9955
    %11591 = vmatprep.subr.bf16.mxu0 %v9962
    %11592 = vmatpush1.bf16.msra.mxu0 %v9961
    %11593 = vmatprep.subr.bf16.mxu0 %v9968
    %11594 = vmatpush1.bf16.msra.mxu0 %v9967
    %11595 = vmatprep.subr.bf16.mxu0 %v9974
    %11596 = vmatpush1.bf16.msra.mxu0 %v9973
    %11597 = vmatprep.subr.bf16.mxu0 %v9980
    %11598 = vmatpush1.bf16.msra.mxu0 %v9979
    %11599 = vmatprep.subr.bf16.mxu0 %v9986
    %11600 = vmatpush1.bf16.msra.mxu0 %v9985
    %11601 = vmatprep.subr.bf16.mxu0 %v9992
    %11602 = vmatpush1.bf16.msra.mxu0 %v9991
    %11603 = vmatprep.subr.bf16.mxu0 %v9998
    %11604 = vmatpush1.bf16.msra.mxu0 %v9997
    %11605 = vmatprep.subr.bf16.mxu0 %v10004
    %11606 = vmatpush1.bf16.msra.mxu0 %v10003
    %11607 = vmatprep.subr.bf16.mxu0 %v10010
    %11608 = vmatpush1.bf16.msra.mxu0 %v10009
    %11609 = vmatprep.subr.bf16.mxu0 %v10016
    %11610 = vmatpush1.bf16.msra.mxu0 %v10015
    %11611 = vmatprep.subr.bf16.mxu0 %v10022
    %11612 = vmatpush1.bf16.msra.mxu0 %v10021
    %11613 = vmatprep.subr.bf16.mxu0 %v10028
    %11614 = vmatpush1.bf16.msra.mxu0 %v10027
    %11615 = vmatprep.subr.bf16.mxu0 %v10034
    %11616 = vmatpush1.bf16.msra.mxu0 %v10033
    %11617 = vmatprep.mubr.bf16.mxu0 %v6446
    %11618 = vmatmul.mubr.bf16.gmra.mrb[0].mxu0 %v6445
    %v11619 = vpop.f32.mrb[0].mxu0
    %v11620 = vadd.f32 %v11579, %v11619
    %v11621 = vpop.f32.mrb[0].mxu0
    %v11622 = vadd.f32 %v11581, %v11621
    %v11623 = vpop.f32.mrb[0].mxu0
    %v11624 = vpop.f32.mrb[0].mxu0
    %11625 = vdwg.mxu0
    %11626 = vmatprep.subr.bf16.mxu0 %v10040
    %11627 = vmatpush1.bf16.msra.mxu0 %v10039
    %11628 = vmatprep.subr.bf16.mxu0 %v10046
    %11629 = vmatpush1.bf16.msra.mxu0 %v10045
    %11630 = vmatprep.subr.bf16.mxu0 %v10052
    %11631 = vmatpush1.bf16.msra.mxu0 %v10051
    %11632 = vmatprep.subr.bf16.mxu0 %v10058
    %11633 = vmatpush1.bf16.msra.mxu0 %v10057
    %11634 = vmatprep.subr.bf16.mxu0 %v10064
    %11635 = vmatpush1.bf16.msra.mxu0 %v10063
    %11636 = vmatprep.subr.bf16.mxu0 %v10070
    %11637 = vmatpush1.bf16.msra.mxu0 %v10069
    %11638 = vmatprep.subr.bf16.mxu0 %v10076
    %11639 = vmatpush1.bf16.msra.mxu0 %v10075
    %11640 = vmatprep.subr.bf16.mxu0 %v10082
    %11641 = vmatpush1.bf16.msra.mxu0 %v10081
    %11642 = vmatprep.subr.bf16.mxu0 %v10088
    %11643 = vmatpush1.bf16.msra.mxu0 %v10087
    %11644 = vmatprep.subr.bf16.mxu0 %v10094
    %11645 = vmatpush1.bf16.msra.mxu0 %v10093
    %11646 = vmatprep.subr.bf16.mxu0 %v10100
    %11647 = vmatpush1.bf16.msra.mxu0 %v10099
    %11648 = vmatprep.subr.bf16.mxu0 %v10106
    %11649 = vmatpush1.bf16.msra.mxu0 %v10105
    %11650 = vmatprep.subr.bf16.mxu0 %v10112
    %11651 = vmatpush1.bf16.msra.mxu0 %v10111
    %11652 = vmatprep.subr.bf16.mxu0 %v10118
    %11653 = vmatpush1.bf16.msra.mxu0 %v10117
    %11654 = vmatprep.subr.bf16.mxu0 %v10124
    %11655 = vmatpush1.bf16.msra.mxu0 %v10123
    %11656 = vmatprep.subr.bf16.mxu0 %v10130
    %11657 = vmatpush1.bf16.msra.mxu0 %v10129
    %11658 = vmatprep.mubr.bf16.mxu0 %v6448
    %11659 = vmatmul.mubr.bf16.gmra.mrb[0].mxu0 %v6447
    %v11660 = vpop.f32.mrb[0].mxu0
    %v11661 = vadd.f32 %v11620, %v11660
    %v11662 = vpop.f32.mrb[0].mxu0
    %v11663 = vadd.f32 %v11622, %v11662
    %v11664 = vpop.f32.mrb[0].mxu0
    %v11665 = vpop.f32.mrb[0].mxu0
    %11666 = vdwg.mxu0
    %11667 = vmatprep.subr.bf16.mxu0 %v10136
    %11668 = vmatpush1.bf16.msra.mxu0 %v10135
    %11669 = vmatprep.subr.bf16.mxu0 %v10142
    %11670 = vmatpush1.bf16.msra.mxu0 %v10141
    %11671 = vmatprep.subr.bf16.mxu0 %v10148
    %11672 = vmatpush1.bf16.msra.mxu0 %v10147
    %11673 = vmatprep.subr.bf16.mxu0 %v10154
    %11674 = vmatpush1.bf16.msra.mxu0 %v10153
    %11675 = vmatprep.subr.bf16.mxu0 %v10160
    %11676 = vmatpush1.bf16.msra.mxu0 %v10159
    %11677 = vmatprep.subr.bf16.mxu0 %v10166
    %11678 = vmatpush1.bf16.msra.mxu0 %v10165
    %11679 = vmatprep.subr.bf16.mxu0 %v10172
    %11680 = vmatpush1.bf16.msra.mxu0 %v10171
    %11681 = vmatprep.subr.bf16.mxu0 %v10178
    %11682 = vmatpush1.bf16.msra.mxu0 %v10177
    %11683 = vmatprep.subr.bf16.mxu0 %v10184
    %11684 = vmatpush1.bf16.msra.mxu0 %v10183
    %11685 = vmatprep.subr.bf16.mxu0 %v10190
    %11686 = vmatpush1.bf16.msra.mxu0 %v10189
    %11687 = vmatprep.subr.bf16.mxu0 %v10196
    %11688 = vmatpush1.bf16.msra.mxu0 %v10195
    %11689 = vmatprep.subr.bf16.mxu0 %v10202
    %11690 = vmatpush1.bf16.msra.mxu0 %v10201
    %11691 = vmatprep.subr.bf16.mxu0 %v10208
    %11692 = vmatpush1.bf16.msra.mxu0 %v10207
    %11693 = vmatprep.subr.bf16.mxu0 %v10214
    %11694 = vmatpush1.bf16.msra.mxu0 %v10213
    %11695 = vmatprep.subr.bf16.mxu0 %v10220
    %11696 = vmatpush1.bf16.msra.mxu0 %v10219
    %11697 = vmatprep.subr.bf16.mxu0 %v10226
    %11698 = vmatpush1.bf16.msra.mxu0 %v10225
    %11699 = vmatprep.mubr.bf16.mxu0 %v6450
    %11700 = vmatmul.mubr.bf16.gmra.mrb[0].mxu0 %v6449
    %v11701 = vpop.f32.mrb[0].mxu0
    %v11702 = vadd.f32 %v11661, %v11701
    %v11703 = vpop.f32.mrb[0].mxu0
    %v11704 = vadd.f32 %v11663, %v11703
    %v11705 = vpop.f32.mrb[0].mxu0
    %v11706 = vpop.f32.mrb[0].mxu0
    %11707 = vdwg.mxu0
    %11708 = vmatprep.subr.bf16.mxu0 %v10232
    %11709 = vmatpush1.bf16.msra.mxu0 %v10231
    %11710 = vmatprep.subr.bf16.mxu0 %v10238
    %11711 = vmatpush1.bf16.msra.mxu0 %v10237
    %11712 = vmatprep.subr.bf16.mxu0 %v10244
    %11713 = vmatpush1.bf16.msra.mxu0 %v10243
    %11714 = vmatprep.subr.bf16.mxu0 %v10250
    %11715 = vmatpush1.bf16.msra.mxu0 %v10249
    %11716 = vmatprep.subr.bf16.mxu0 %v10256
    %11717 = vmatpush1.bf16.msra.mxu0 %v10255
    %11718 = vmatprep.subr.bf16.mxu0 %v10262
    %11719 = vmatpush1.bf16.msra.mxu0 %v10261
    %11720 = vmatprep.subr.bf16.mxu0 %v10268
    %11721 = vmatpush1.bf16.msra.mxu0 %v10267
    %11722 = vmatprep.subr.bf16.mxu0 %v10274
    %11723 = vmatpush1.bf16.msra.mxu0 %v10273
    %11724 = vmatprep.subr.bf16.mxu0 %v10280
    %11725 = vmatpush1.bf16.msra.mxu0 %v10279
    %11726 = vmatprep.subr.bf16.mxu0 %v10286
    %11727 = vmatpush1.bf16.msra.mxu0 %v10285
    %11728 = vmatprep.subr.bf16.mxu0 %v10292
    %11729 = vmatpush1.bf16.msra.mxu0 %v10291
    %11730 = vmatprep.subr.bf16.mxu0 %v10298
    %11731 = vmatpush1.bf16.msra.mxu0 %v10297
    %11732 = vmatprep.subr.bf16.mxu0 %v10304
    %11733 = vmatpush1.bf16.msra.mxu0 %v10303
    %11734 = vmatprep.subr.bf16.mxu0 %v10310
    %11735 = vmatpush1.bf16.msra.mxu0 %v10309
    %11736 = vmatprep.subr.bf16.mxu0 %v10316
    %11737 = vmatpush1.bf16.msra.mxu0 %v10315
    %11738 = vmatprep.subr.bf16.mxu0 %v10322
    %11739 = vmatpush1.bf16.msra.mxu0 %v10321
    %11740 = vmatprep.mubr.bf16.mxu0 %v6452
    %11741 = vmatmul.mubr.bf16.gmra.mrb[0].mxu0 %v6451
    %v11742 = vpop.f32.mrb[0].mxu0
    %v11743 = vadd.f32 %v11702, %v11742
    %v11744 = vpop.f32.mrb[0].mxu0
    %v11745 = vadd.f32 %v11704, %v11744
    %v11746 = vpop.f32.mrb[0].mxu0
    %v11747 = vpop.f32.mrb[0].mxu0
    %11748 = vdwg.mxu0
    %11749 = vmatprep.subr.bf16.mxu0 %v9562
    %11750 = vmatpush1.bf16.msra.mxu0 %v9561
    %11751 = vmatprep.subr.bf16.mxu0 %v9568
    %11752 = vmatpush1.bf16.msra.mxu0 %v9567
    %11753 = vmatprep.subr.bf16.mxu0 %v9574
    %11754 = vmatpush1.bf16.msra.mxu0 %v9573
    %11755 = vmatprep.subr.bf16.mxu0 %v9580
    %11756 = vmatpush1.bf16.msra.mxu0 %v9579
    %11757 = vmatprep.subr.bf16.mxu0 %v9586
    %11758 = vmatpush1.bf16.msra.mxu0 %v9585
    %11759 = vmatprep.subr.bf16.mxu0 %v9592
    %11760 = vmatpush1.bf16.msra.mxu0 %v9591
    %11761 = vmatprep.subr.bf16.mxu0 %v9598
    %11762 = vmatpush1.bf16.msra.mxu0 %v9597
    %11763 = vmatprep.subr.bf16.mxu0 %v9604
    %11764 = vmatpush1.bf16.msra.mxu0 %v9603
    %11765 = vmatprep.subr.bf16.mxu0 %v9610
    %11766 = vmatpush1.bf16.msra.mxu0 %v9609
    %11767 = vmatprep.subr.bf16.mxu0 %v9616
    %11768 = vmatpush1.bf16.msra.mxu0 %v9615
    %11769 = vmatprep.subr.bf16.mxu0 %v9622
    %11770 = vmatpush1.bf16.msra.mxu0 %v9621
    %11771 = vmatprep.subr.bf16.mxu0 %v9628
    %11772 = vmatpush1.bf16.msra.mxu0 %v9627
    %11773 = vmatprep.subr.bf16.mxu0 %v9634
    %11774 = vmatpush1.bf16.msra.mxu0 %v9633
    %11775 = vmatprep.subr.bf16.mxu0 %v9640
    %11776 = vmatpush1.bf16.msra.mxu0 %v9639
    %11777 = vmatprep.subr.bf16.mxu0 %v9646
    %11778 = vmatpush1.bf16.msra.mxu0 %v9645
    %11779 = vmatprep.subr.bf16.mxu0 %v9652
    %11780 = vmatpush1.bf16.msra.mxu0 %v9651
    %11781 = vmatprep.mubr.bf16.mxu0 %v6438
    %11782 = vmatmul.mubr.bf16.gmra.mrb[0].mxu0 %v6437
    %v11783 = vpop.f32.mrb[0].mxu0
    %v11784 = vadd.f32 %v7242, %v11783
    %v11785 = vpop.f32.mrb[0].mxu0
    %v11786 = vadd.f32 %v7246, %v11785
    %v11787 = vpop.f32.mrb[0].mxu0
    %v11788 = vpop.f32.mrb[0].mxu0
    %11789 = vdwg.mxu0
    %11790 = vmatprep.subr.bf16.mxu0 %v9658
    %11791 = vmatpush1.bf16.msra.mxu0 %v9657
    %11792 = vmatprep.subr.bf16.mxu0 %v9664
    %11793 = vmatpush1.bf16.msra.mxu0 %v9663
    %11794 = vmatprep.subr.bf16.mxu0 %v9670
    %11795 = vmatpush1.bf16.msra.mxu0 %v9669
    %11796 = vmatprep.subr.bf16.mxu0 %v9676
    %11797 = vmatpush1.bf16.msra.mxu0 %v9675
    %11798 = vmatprep.subr.bf16.mxu0 %v9682
    %11799 = vmatpush1.bf16.msra.mxu0 %v9681
    %11800 = vmatprep.subr.bf16.mxu0 %v9688
    %11801 = vmatpush1.bf16.msra.mxu0 %v9687
    %11802 = vmatprep.subr.bf16.mxu0 %v9694
    %11803 = vmatpush1.bf16.msra.mxu0 %v9693
    %11804 = vmatprep.subr.bf16.mxu0 %v9700
    %11805 = vmatpush1.bf16.msra.mxu0 %v9699
    %11806 = vmatprep.subr.bf16.mxu0 %v9706
    %11807 = vmatpush1.bf16.msra.mxu0 %v9705
    %11808 = vmatprep.subr.bf16.mxu0 %v9712
    %11809 = vmatpush1.bf16.msra.mxu0 %v9711
    %11810 = vmatprep.subr.bf16.mxu0 %v9718
    %11811 = vmatpush1.bf16.msra.mxu0 %v9717
    %11812 = vmatprep.subr.bf16.mxu0 %v9724
    %11813 = vmatpush1.bf16.msra.mxu0 %v9723
    %11814 = vmatprep.subr.bf16.mxu0 %v9730
    %11815 = vmatpush1.bf16.msra.mxu0 %v9729
    %11816 = vmatprep.subr.bf16.mxu0 %v9736
    %11817 = vmatpush1.bf16.msra.mxu0 %v9735
    %11818 = vmatprep.subr.bf16.mxu0 %v9742
    %11819 = vmatpush1.bf16.msra.mxu0 %v9741
    %11820 = vmatprep.subr.bf16.mxu0 %v9748
    %11821 = vmatpush1.bf16.msra.mxu0 %v9747
    %11822 = vmatprep.mubr.bf16.mxu0 %v6440
    %11823 = vmatmul.mubr.bf16.gmra.mrb[0].mxu0 %v6439
    %v11824 = vpop.f32.mrb[0].mxu0
    %v11825 = vadd.f32 %v11784, %v11824
    %v11826 = vpop.f32.mrb[0].mxu0
    %v11827 = vadd.f32 %v11786, %v11826
    %v11828 = vpop.f32.mrb[0].mxu0
    %v11829 = vpop.f32.mrb[0].mxu0
    %11830 = vdwg.mxu0
    %11831 = vmatprep.subr.bf16.mxu0 %v9754
    %11832 = vmatpush1.bf16.msra.mxu0 %v9753
    %11833 = vmatprep.subr.bf16.mxu0 %v9760
    %11834 = vmatpush1.bf16.msra.mxu0 %v9759
    %11835 = vmatprep.subr.bf16.mxu0 %v9766
    %11836 = vmatpush1.bf16.msra.mxu0 %v9765
    %11837 = vmatprep.subr.bf16.mxu0 %v9772
    %11838 = vmatpush1.bf16.msra.mxu0 %v9771
    %11839 = vmatprep.subr.bf16.mxu0 %v9778
    %11840 = vmatpush1.bf16.msra.mxu0 %v9777
    %11841 = vmatprep.subr.bf16.mxu0 %v9784
    %11842 = vmatpush1.bf16.msra.mxu0 %v9783
    %11843 = vmatprep.subr.bf16.mxu0 %v9790
    %11844 = vmatpush1.bf16.msra.mxu0 %v9789
    %11845 = vmatprep.subr.bf16.mxu0 %v9796
    %11846 = vmatpush1.bf16.msra.mxu0 %v9795
    %11847 = vmatprep.subr.bf16.mxu0 %v9802
    %11848 = vmatpush1.bf16.msra.mxu0 %v9801
    %11849 = vmatprep.subr.bf16.mxu0 %v9808
    %11850 = vmatpush1.bf16.msra.mxu0 %v9807
    %11851 = vmatprep.subr.bf16.mxu0 %v9814
    %11852 = vmatpush1.bf16.msra.mxu0 %v9813
    %11853 = vmatprep.subr.bf16.mxu0 %v9820
    %11854 = vmatpush1.bf16.msra.mxu0 %v9819
    %11855 = vmatprep.subr.bf16.mxu0 %v9826
    %11856 = vmatpush1.bf16.msra.mxu0 %v9825
    %11857 = vmatprep.subr.bf16.mxu0 %v9832
    %11858 = vmatpush1.bf16.msra.mxu0 %v9831
    %11859 = vmatprep.subr.bf16.mxu0 %v9838
    %11860 = vmatpush1.bf16.msra.mxu0 %v9837
    %11861 = vmatprep.subr.bf16.mxu0 %v9844
    %11862 = vmatpush1.bf16.msra.mxu0 %v9843
    %11863 = vmatprep.mubr.bf16.mxu0 %v6442
    %11864 = vmatmul.mubr.bf16.gmra.mrb[0].mxu0 %v6441
    %v11865 = vpop.f32.mrb[0].mxu0
    %v11866 = vadd.f32 %v11825, %v11865
    %v11867 = vpop.f32.mrb[0].mxu0
    %v11868 = vadd.f32 %v11827, %v11867
    %v11869 = vpop.f32.mrb[0].mxu0
    %v11870 = vpop.f32.mrb[0].mxu0
    %11871 = vdwg.mxu0
    %11872 = vmatprep.subr.bf16.mxu0 %v9850
    %11873 = vmatpush1.bf16.msra.mxu0 %v9849
    %11874 = vmatprep.subr.bf16.mxu0 %v9856
    %11875 = vmatpush1.bf16.msra.mxu0 %v9855
    %11876 = vmatprep.subr.bf16.mxu0 %v9862
    %11877 = vmatpush1.bf16.msra.mxu0 %v9861
    %11878 = vmatprep.subr.bf16.mxu0 %v9868
    %11879 = vmatpush1.bf16.msra.mxu0 %v9867
    %11880 = vmatprep.subr.bf16.mxu0 %v9874
    %11881 = vmatpush1.bf16.msra.mxu0 %v9873
    %11882 = vmatprep.subr.bf16.mxu0 %v9880
    %11883 = vmatpush1.bf16.msra.mxu0 %v9879
    %11884 = vmatprep.subr.bf16.mxu0 %v9886
    %11885 = vmatpush1.bf16.msra.mxu0 %v9885
    %11886 = vmatprep.subr.bf16.mxu0 %v9892
    %11887 = vmatpush1.bf16.msra.mxu0 %v9891
    %11888 = vmatprep.subr.bf16.mxu0 %v9898
    %11889 = vmatpush1.bf16.msra.mxu0 %v9897
    %11890 = vmatprep.subr.bf16.mxu0 %v9904
    %11891 = vmatpush1.bf16.msra.mxu0 %v9903
    %11892 = vmatprep.subr.bf16.mxu0 %v9910
    %11893 = vmatpush1.bf16.msra.mxu0 %v9909
    %11894 = vmatprep.subr.bf16.mxu0 %v9916
    %11895 = vmatpush1.bf16.msra.mxu0 %v9915
    %11896 = vmatprep.subr.bf16.mxu0 %v9922
    %11897 = vmatpush1.bf16.msra.mxu0 %v9921
    %11898 = vmatprep.subr.bf16.mxu0 %v9928
    %11899 = vmatpush1.bf16.msra.mxu0 %v9927
    %11900 = vmatprep.subr.bf16.mxu0 %v9934
    %11901 = vmatpush1.bf16.msra.mxu0 %v9933
    %11902 = vmatprep.subr.bf16.mxu0 %v9940
    %11903 = vmatpush1.bf16.msra.mxu0 %v9939
    %11904 = vmatprep.mubr.bf16.mxu0 %v6444
    %11905 = vmatmul.mubr.bf16.gmra.mrb[0].mxu0 %v6443
    %v11906 = vpop.f32.mrb[0].mxu0
    %v11907 = vadd.f32 %v11866, %v11906
    %v11908 = vpop.f32.mrb[0].mxu0
    %v11909 = vadd.f32 %v11868, %v11908
    %v11910 = vpop.f32.mrb[0].mxu0
    %v11911 = vpop.f32.mrb[0].mxu0
    %11912 = vdwg.mxu0
    %11913 = vmatprep.subr.bf16.mxu0 %v9946
    %11914 = vmatpush1.bf16.msra.mxu0 %v9945
    %11915 = vmatprep.subr.bf16.mxu0 %v9952
    %11916 = vmatpush1.bf16.msra.mxu0 %v9951
    %11917 = vmatprep.subr.bf16.mxu0 %v9958
    %11918 = vmatpush1.bf16.msra.mxu0 %v9957
    %11919 = vmatprep.subr.bf16.mxu0 %v9964
    %11920 = vmatpush1.bf16.msra.mxu0 %v9963
    %11921 = vmatprep.subr.bf16.mxu0 %v9970
    %11922 = vmatpush1.bf16.msra.mxu0 %v9969
    %11923 = vmatprep.subr.bf16.mxu0 %v9976
    %11924 = vmatpush1.bf16.msra.mxu0 %v9975
    %11925 = vmatprep.subr.bf16.mxu0 %v9982
    %11926 = vmatpush1.bf16.msra.mxu0 %v9981
    %11927 = vmatprep.subr.bf16.mxu0 %v9988
    %11928 = vmatpush1.bf16.msra.mxu0 %v9987
    %11929 = vmatprep.subr.bf16.mxu0 %v9994
    %11930 = vmatpush1.bf16.msra.mxu0 %v9993
    %11931 = vmatprep.subr.bf16.mxu0 %v10000
    %11932 = vmatpush1.bf16.msra.mxu0 %v9999
    %11933 = vmatprep.subr.bf16.mxu0 %v10006
    %11934 = vmatpush1.bf16.msra.mxu0 %v10005
    %11935 = vmatprep.subr.bf16.mxu0 %v10012
    %11936 = vmatpush1.bf16.msra.mxu0 %v10011
    %11937 = vmatprep.subr.bf16.mxu0 %v10018
    %11938 = vmatpush1.bf16.msra.mxu0 %v10017
    %11939 = vmatprep.subr.bf16.mxu0 %v10024
    %11940 = vmatpush1.bf16.msra.mxu0 %v10023
    %11941 = vmatprep.subr.bf16.mxu0 %v10030
    %11942 = vmatpush1.bf16.msra.mxu0 %v10029
    %11943 = vmatprep.subr.bf16.mxu0 %v10036
    %11944 = vmatpush1.bf16.msra.mxu0 %v10035
    %11945 = vmatprep.mubr.bf16.mxu0 %v6446
    %11946 = vmatmul.mubr.bf16.gmra.mrb[0].mxu0 %v6445
    %v11947 = vpop.f32.mrb[0].mxu0
    %v11948 = vadd.f32 %v11907, %v11947
    %v11949 = vpop.f32.mrb[0].mxu0
    %v11950 = vadd.f32 %v11909, %v11949
    %v11951 = vpop.f32.mrb[0].mxu0
    %v11952 = vpop.f32.mrb[0].mxu0
    %11953 = vdwg.mxu0
    %11954 = vmatprep.subr.bf16.mxu0 %v10042
    %11955 = vmatpush1.bf16.msra.mxu0 %v10041
    %11956 = vmatprep.subr.bf16.mxu0 %v10048
    %11957 = vmatpush1.bf16.msra.mxu0 %v10047
    %11958 = vmatprep.subr.bf16.mxu0 %v10054
    %11959 = vmatpush1.bf16.msra.mxu0 %v10053
    %11960 = vmatprep.subr.bf16.mxu0 %v10060
    %11961 = vmatpush1.bf16.msra.mxu0 %v10059
    %11962 = vmatprep.subr.bf16.mxu0 %v10066
    %11963 = vmatpush1.bf16.msra.mxu0 %v10065
    %11964 = vmatprep.subr.bf16.mxu0 %v10072
    %11965 = vmatpush1.bf16.msra.mxu0 %v10071
    %11966 = vmatprep.subr.bf16.mxu0 %v10078
    %11967 = vmatpush1.bf16.msra.mxu0 %v10077
    %11968 = vmatprep.subr.bf16.mxu0 %v10084
    %11969 = vmatpush1.bf16.msra.mxu0 %v10083
    %11970 = vmatprep.subr.bf16.mxu0 %v10090
    %11971 = vmatpush1.bf16.msra.mxu0 %v10089
    %11972 = vmatprep.subr.bf16.mxu0 %v10096
    %11973 = vmatpush1.bf16.msra.mxu0 %v10095
    %11974 = vmatprep.subr.bf16.mxu0 %v10102
    %11975 = vmatpush1.bf16.msra.mxu0 %v10101
    %11976 = vmatprep.subr.bf16.mxu0 %v10108
    %11977 = vmatpush1.bf16.msra.mxu0 %v10107
    %11978 = vmatprep.subr.bf16.mxu0 %v10114
    %11979 = vmatpush1.bf16.msra.mxu0 %v10113
    %11980 = vmatprep.subr.bf16.mxu0 %v10120
    %11981 = vmatpush1.bf16.msra.mxu0 %v10119
    %11982 = vmatprep.subr.bf16.mxu0 %v10126
    %11983 = vmatpush1.bf16.msra.mxu0 %v10125
    %11984 = vmatprep.subr.bf16.mxu0 %v10132
    %11985 = vmatpush1.bf16.msra.mxu0 %v10131
    %11986 = vmatprep.mubr.bf16.mxu0 %v6448
    %11987 = vmatmul.mubr.bf16.gmra.mrb[0].mxu0 %v6447
    %v11988 = vpop.f32.mrb[0].mxu0
    %v11989 = vadd.f32 %v11948, %v11988
    %v11990 = vpop.f32.mrb[0].mxu0
    %v11991 = vadd.f32 %v11950, %v11990
    %v11992 = vpop.f32.mrb[0].mxu0
    %v11993 = vpop.f32.mrb[0].mxu0
    %11994 = vdwg.mxu0
    %11995 = vmatprep.subr.bf16.mxu0 %v10138
    %11996 = vmatpush1.bf16.msra.mxu0 %v10137
    %11997 = vmatprep.subr.bf16.mxu0 %v10144
    %11998 = vmatpush1.bf16.msra.mxu0 %v10143
    %11999 = vmatprep.subr.bf16.mxu0 %v10150
    %12000 = vmatpush1.bf16.msra.mxu0 %v10149
    %12001 = vmatprep.subr.bf16.mxu0 %v10156
    %12002 = vmatpush1.bf16.msra.mxu0 %v10155
    %12003 = vmatprep.subr.bf16.mxu0 %v10162
    %12004 = vmatpush1.bf16.msra.mxu0 %v10161
    %12005 = vmatprep.subr.bf16.mxu0 %v10168
    %12006 = vmatpush1.bf16.msra.mxu0 %v10167
    %12007 = vmatprep.subr.bf16.mxu0 %v10174
    %12008 = vmatpush1.bf16.msra.mxu0 %v10173
    %12009 = vmatprep.subr.bf16.mxu0 %v10180
    %12010 = vmatpush1.bf16.msra.mxu0 %v10179
    %12011 = vmatprep.subr.bf16.mxu0 %v10186
    %12012 = vmatpush1.bf16.msra.mxu0 %v10185
    %12013 = vmatprep.subr.bf16.mxu0 %v10192
    %12014 = vmatpush1.bf16.msra.mxu0 %v10191
    %12015 = vmatprep.subr.bf16.mxu0 %v10198
    %12016 = vmatpush1.bf16.msra.mxu0 %v10197
    %12017 = vmatprep.subr.bf16.mxu0 %v10204
    %12018 = vmatpush1.bf16.msra.mxu0 %v10203
    %12019 = vmatprep.subr.bf16.mxu0 %v10210
    %12020 = vmatpush1.bf16.msra.mxu0 %v10209
    %12021 = vmatprep.subr.bf16.mxu0 %v10216
    %12022 = vmatpush1.bf16.msra.mxu0 %v10215
    %12023 = vmatprep.subr.bf16.mxu0 %v10222
    %12024 = vmatpush1.bf16.msra.mxu0 %v10221
    %12025 = vmatprep.subr.bf16.mxu0 %v10228
    %12026 = vmatpush1.bf16.msra.mxu0 %v10227
    %12027 = vmatprep.mubr.bf16.mxu0 %v6450
    %12028 = vmatmul.mubr.bf16.gmra.mrb[0].mxu0 %v6449
    %v12029 = vpop.f32.mrb[0].mxu0
    %v12030 = vadd.f32 %v11989, %v12029
    %v12031 = vpop.f32.mrb[0].mxu0
    %v12032 = vadd.f32 %v11991, %v12031
    %v12033 = vpop.f32.mrb[0].mxu0
    %v12034 = vpop.f32.mrb[0].mxu0
    %12035 = vdwg.mxu0
    %12036 = vmatprep.subr.bf16.mxu0 %v10234
    %12037 = vmatpush1.bf16.msra.mxu0 %v10233
    %12038 = vmatprep.subr.bf16.mxu0 %v10240
    %12039 = vmatpush1.bf16.msra.mxu0 %v10239
    %12040 = vmatprep.subr.bf16.mxu0 %v10246
    %12041 = vmatpush1.bf16.msra.mxu0 %v10245
    %12042 = vmatprep.subr.bf16.mxu0 %v10252
    %12043 = vmatpush1.bf16.msra.mxu0 %v10251
    %12044 = vmatprep.subr.bf16.mxu0 %v10258
    %12045 = vmatpush1.bf16.msra.mxu0 %v10257
    %12046 = vmatprep.subr.bf16.mxu0 %v10264
    %12047 = vmatpush1.bf16.msra.mxu0 %v10263
    %12048 = vmatprep.subr.bf16.mxu0 %v10270
    %12049 = vmatpush1.bf16.msra.mxu0 %v10269
    %12050 = vmatprep.subr.bf16.mxu0 %v10276
    %12051 = vmatpush1.bf16.msra.mxu0 %v10275
    %12052 = vmatprep.subr.bf16.mxu0 %v10282
    %12053 = vmatpush1.bf16.msra.mxu0 %v10281
    %12054 = vmatprep.subr.bf16.mxu0 %v10288
    %12055 = vmatpush1.bf16.msra.mxu0 %v10287
    %12056 = vmatprep.subr.bf16.mxu0 %v10294
    %12057 = vmatpush1.bf16.msra.mxu0 %v10293
    %12058 = vmatprep.subr.bf16.mxu0 %v10300
    %12059 = vmatpush1.bf16.msra.mxu0 %v10299
    %12060 = vmatprep.subr.bf16.mxu0 %v10306
    %12061 = vmatpush1.bf16.msra.mxu0 %v10305
    %12062 = vmatprep.subr.bf16.mxu0 %v10312
    %12063 = vmatpush1.bf16.msra.mxu0 %v10311
    %12064 = vmatprep.subr.bf16.mxu0 %v10318
    %12065 = vmatpush1.bf16.msra.mxu0 %v10317
    %12066 = vmatprep.subr.bf16.mxu0 %v10324
    %12067 = vmatpush1.bf16.msra.mxu0 %v10323
    %12068 = vmatprep.mubr.bf16.mxu0 %v6452
    %12069 = vmatmul.mubr.bf16.gmra.mrb[0].mxu0 %v6451
    %v12070 = vpop.f32.mrb[0].mxu0
    %v12071 = vadd.f32 %v12030, %v12070
    %v12072 = vpop.f32.mrb[0].mxu0
    %v12073 = vadd.f32 %v12032, %v12072
    %v12074 = vpop.f32.mrb[0].mxu0
    %v12075 = vpop.f32.mrb[0].mxu0
    %12076 = vdwg.mxu0
    %v12083 = vcombine.low %v11415, %v11417
    %v12084 = vcombine.low %v11743, %v11745
    %v12086 = vunpack.c.l.s4 1983009808
    %v12087 = vunpack.c.0.s8 %v12086
    %v12088 = vlaneseq
    %v12089 = vshrl.u32 %v12088, 7
    %v12090 = vsub.s32 %v12087, %v12089
    %v12091 = vrot.slane %v12083, %v12090
    %v12093 = vunpack.c.l.s4 1983009808
    %v12094 = vunpack.c.0.s8 %v12093
    %v12095 = vlaneseq
    %v12096 = vshrl.u32 %v12095, 7
    %v12097 = vsub.s32 %v12094, %v12096
    %v12098 = vrot.slane %v12084, %v12097
    %v12099 = vcombine.low %v12091, %v12098
    %v12100 = vcombine.low %v12071, %v12073
    %v12102 = vunpack.c.l.s4 1983009808
    %v12103 = vunpack.c.0.s8 %v12102
    %v12104 = vlaneseq
    %v12105 = vshrl.u32 %v12104, 7
    %v12106 = vsub.s32 %v12103, %v12105
    %v12107 = vrot.slane %v12100, %v12106
    %12110 = vst [vmem:[#allocation11] sm:$0xff] %v12099
    %12111 = vst [vmem:[#allocation11 + $0x8] sm:$0xf] %v12107
    // Predicated region
    $region38: #{tpu_custom_call.1} parent=1 // pred_check
      _
    $region39: #{tpu_custom_call.1} parent=1 // pred_check_branch
      %12113 = sbr.rel (0) target = $region41
    $region40: #{tpu_custom_call.1} parent=1 // pred_region
      %s12115 = ssub.s32 192, 192
      %12116 = vsyncadd [#allocation5], %s12115
      %s12118 = sshll.u32 [#allocation11], 4
      %s12119 = int_to_ptr.vmem [resolvable:$true] %s12118
      %12121 = dma.vmem_to_hbm [thread:$0]  %s12119, 192, %s5, [#allocation5]
    $region41: #{tpu_custom_call.1} parent=1 // pred_fallthru
      _
    // Predicated region
    $region42: #{tpu_custom_call.1} parent=1 // pred_check
      _
    $region43: #{tpu_custom_call.1} parent=1 // pred_check_branch
      %12123 = sbr.rel (0) target = $region45
    $region44: #{tpu_custom_call.1} parent=1 // pred_region
      %12124 = dma.done [#allocation5], 192
    $region45: #{tpu_custom_call.1} parent=1 // pred_fallthru
      _
    %12125 = vsyncpa [#allocation4], 1
    %12126 = vsyncpa [#allocation7], 1
    %12127 = vsyncpa [#allocation10], 1
    %12128 = vsyncpa [#allocation5], 1

</llo_original>
